<compile_context>
chip_gen: v5e
topology: v5e:2x2
jax: 0.10.0
libtpu: 0.0.40
codegen_flags: <defaults>
</compile_context>

<pallas_src>
import functools

import numpy as np
import jax
import jax.numpy as jnp
from jax import lax
from jax.experimental import pallas as pl
from jax.experimental.pallas import tpu as pltpu

_NEG = -1e30  # "minus infinity" for max-pool padding (kept finite on purpose)


def _round_up(n, m):
    return ((n + m - 1) // m) * m


# ----------------------------------------------------------------------------
# In-kernel helper: depthwise 3x3, stride 1, on the flat padded-row layout.
#   t       : (np_rows, C) f32 value, spatial padding ring already zeroed
#   wd_ref  : (9, 1, C) depthwise taps (BN scale folded in)
#   scr_ref : (np_rows + 2*margin, C) f32 VMEM scratch
# Tap (kh, kw) of the 3x3 window is a static row shift of (kh-1)*(W+2) + (kw-1).
# ----------------------------------------------------------------------------
def _dw3x3_s1(t, wd_ref, scr_ref, *, np_rows, wp2, margin):
    c = t.shape[1]
    zeros = jnp.zeros((margin, c), jnp.float32)
    scr_ref[0:margin, :] = zeros
    scr_ref[margin + np_rows:margin + np_rows + margin, :] = zeros
    scr_ref[margin:margin + np_rows, :] = t
    acc = jnp.zeros((np_rows, c), jnp.float32)
    k = 0
    for kh in range(3):
        for kw in range(3):
            d = (kh - 1) * wp2 + (kw - 1)
            acc = acc + scr_ref[margin + d:margin + d + np_rows, :] * wd_ref[k]
            k += 1
    return acc


# ----------------------------------------------------------------------------
# Fused kernels
# ----------------------------------------------------------------------------
def _stem_kernel(cols_ref, m_ref, w_ref, b_ref, o_ref, scr_ref, *, np_rows, wp2, margin):
    """im2col 3x3/2 conv + folded-BN + ReLU + 3x3 max-pool (stride handled outside)."""
    m = m_ref[...]
    y = jnp.dot(cols_ref[...].astype(jnp.bfloat16), w_ref[...],
                preferred_element_type=jnp.float32) + b_ref[...]
    y = jnp.maximum(y, 0.0)
    # padding ring -> -1e30 so it never wins the max-pool (PyTorch pad semantics)
    y = y * m + (m - 1.0) * 1e30
    c = y.shape[1]
    fill = jnp.full((margin, c), _NEG, jnp.float32)
    scr_ref[0:margin, :] = fill
    scr_ref[margin + np_rows:margin + np_rows + margin, :] = fill
    scr_ref[margin:margin + np_rows, :] = y
    out = jnp.full((np_rows, c), _NEG, jnp.float32)
    for kh in range(3):
        for kw in range(3):
            d = (kh - 1) * wp2 + (kw - 1)
            out = jnp.maximum(out, scr_ref[margin + d:margin + d + np_rows, :])
    o_ref[...] = out


def _basic_unit_kernel(xr_ref, m_ref, w1_ref, b1_ref, wd_ref, bd_ref, w3_ref, b3_ref,
                       o_ref, scr_ref, *, np_rows, wp2, margin):
    """Right branch of a BasicUnit: 1x1+ReLU -> dw3x3 -> 1x1+ReLU (BN folded)."""
    m = m_ref[...]
    t = jnp.dot(xr_ref[...].astype(jnp.bfloat16), w1_ref[...],
                preferred_element_type=jnp.float32) + b1_ref[...]
    t = jnp.maximum(t, 0.0) * m                      # re-zero the spatial padding ring
    t = _dw3x3_s1(t, wd_ref, scr_ref, np_rows=np_rows, wp2=wp2, margin=margin) + bd_ref[...]
    t = jnp.dot(t.astype(jnp.bfloat16), w3_ref[...],
                preferred_element_type=jnp.float32) + b3_ref[...]
    o_ref[...] = jnp.maximum(t, 0.0)
    # TODO(synk): is_se / is_res branches (SE block, residual) not exercised for the
    # default constructor args (is_se=False, is_res=False).


def _dsampling_kernel(x_ref, m_ref,
                      wdl_ref, bdl_ref, wl2_ref, bl2_ref,
                      wr1_ref, br1_ref, wdr_ref, bdr_ref, wr3_ref, br3_ref,
                      ol_ref, or_ref, scrl_ref, scrr_ref, *, np_rows, wp2, margin):
    """DSampling: (dw3x3 -> 1x1+ReLU) || (1x1+ReLU -> dw3x3 -> 1x1+ReLU).
    Depthwise convs are computed at stride 1; the /2 subsample happens outside."""
    m = m_ref[...]
    x = x_ref[...] * m
    # left branch
    t = _dw3x3_s1(x, wdl_ref, scrl_ref, np_rows=np_rows, wp2=wp2, margin=margin) + bdl_ref[...]
    t = jnp.dot(t.astype(jnp.bfloat16), wl2_ref[...],
                preferred_element_type=jnp.float32) + bl2_ref[...]
    ol_ref[...] = jnp.maximum(t, 0.0)
    # right branch
    t = jnp.dot(x.astype(jnp.bfloat16), wr1_ref[...],
                preferred_element_type=jnp.float32) + br1_ref[...]
    t = jnp.maximum(t, 0.0) * m
    t = _dw3x3_s1(t, wdr_ref, scrr_ref, np_rows=np_rows, wp2=wp2, margin=margin) + bdr_ref[...]
    t = jnp.dot(t.astype(jnp.bfloat16), wr3_ref[...],
                preferred_element_type=jnp.float32) + br3_ref[...]
    or_ref[...] = jnp.maximum(t, 0.0)


# ----------------------------------------------------------------------------
# JAX-side layout glue (tiny tensors; XLA ops between the fused kernels)
# ----------------------------------------------------------------------------
def _flat_mask(B, H, W):
    """(B*(H+2)*(W+2), 1) f32 constant: 1 at interior spatial positions, 0 at the ring."""
    m = np.zeros((B, H + 2, W + 2, 1), np.float32)
    m[:, 1:H + 1, 1:W + 1, :] = 1.0
    return jnp.asarray(m.reshape(B * (H + 2) * (W + 2), 1))


def _to_flat_padded(x4):
    B, H, W, C = x4.shape
    xp = jnp.pad(x4, ((0, 0), (1, 1), (1, 1), (0, 0)))
    return xp.reshape(B * (H + 2) * (W + 2), C)


def _interior(flat, B, H, W, stride=1):
    C = flat.shape[-1]
    x4 = flat.reshape(B, H + 2, W + 2, C)
    return x4[:, 1:H + 1:stride, 1:W + 1:stride, :]


def _channel_shuffle_cat(a, b, groups=2):
    """shuffle_chnls(concat([a, b], channel), groups) — exact reference formula."""
    out = jnp.concatenate([a, b], axis=-1)
    c = out.shape[-1]
    cpg = c // groups
    shp = out.shape[:-1]
    out = out.reshape(*shp, groups, cpg)
    out = jnp.swapaxes(out, -1, -2)
    return out.reshape(*shp, c)


# ----------------------------------------------------------------------------
# pallas_call wrappers
# ----------------------------------------------------------------------------
def stem_forward(x_nhwc, p):
    """BN_Conv2d(3, C0, 3, 2, 1) + ReLU + MaxPool2d(3, 2, 1), fused."""
    B, H, W, Cin = x_nhwc.shape
    Hc, Wc = H // 2, W // 2
    xp = jnp.pad(x_nhwc, ((0, 0), (1, 1), (1, 1), (0, 0)))
    taps = []
    for kh in range(3):
        for kw in range(3):
            taps.append(lax.slice(
                xp, (0, kh, kw, 0),
                (B, kh + 2 * (Hc - 1) + 1, kw + 2 * (Wc - 1) + 1, Cin),
                (1, 2, 2, 1)))
    cols = jnp.concatenate(taps, axis=-1)            # (B, Hc, Wc, 9*Cin)  im2col
    cols = _to_flat_padded(cols)                     # (B*(Hc+2)*(Wc+2), 9*Cin)
    np_rows = B * (Hc + 2) * (Wc + 2)
    wp2 = Wc + 2
    margin = _round_up(wp2 + 1, 8)
    mask = _flat_mask(B, Hc, Wc)
    c0 = p['b'].shape[-1]
    y = pl.pallas_call(
        functools.partial(_stem_kernel, np_rows=np_rows, wp2=wp2, margin=margin),
        out_shape=jax.ShapeDtypeStruct((np_rows, c0), jnp.float32),
        scratch_shapes=[pltpu.VMEM((np_rows + 2 * margin, c0), jnp.float32)],
    )(cols, mask, p['w'], p['b'])
    pooled = _interior(y, B, Hc, Wc, stride=2)       # max-pool stride 2
    return _to_flat_padded(pooled), Hc // 2, Wc // 2


def basic_unit_forward(flat, p, B, H, W):
    np_rows = B * (H + 2) * (W + 2)
    wp2 = W + 2
    margin = _round_up(wp2 + 1, 8)
    cin = flat.shape[-1]
    l = cin // 2                                     # c_ratio = 0.5
    ro = p['conv1']['b'].shape[-1]
    x_l = flat[:, :l]
    x_r = flat[:, l:]
    mask = _flat_mask(B, H, W)
    out_r = pl.pallas_call(
        functools.partial(_basic_unit_kernel, np_rows=np_rows, wp2=wp2, margin=margin),
        out_shape=jax.ShapeDtypeStruct((np_rows, ro), jnp.float32),
        scratch_shapes=[pltpu.VMEM((np_rows + 2 * margin, ro), jnp.float32)],
    )(x_r, mask,
      p['conv1']['w'], p['conv1']['b'],
      p['dw']['w'], p['dw']['b'],
      p['conv3']['w'], p['conv3']['b'])
    return _channel_shuffle_cat(x_l, out_r)


def dsampling_forward(flat, p, B, H, W):
    np_rows = B * (H + 2) * (W + 2)
    wp2 = W + 2
    margin = _round_up(wp2 + 1, 8)
    c = flat.shape[-1]
    mask = _flat_mask(B, H, W)
    out_l, out_r = pl.pallas_call(
        functools.partial(_dsampling_kernel, np_rows=np_rows, wp2=wp2, margin=margin),
        out_shape=(jax.ShapeDtypeStruct((np_rows, c), jnp.float32),
                   jax.ShapeDtypeStruct((np_rows, c), jnp.float32)),
        scratch_shapes=[pltpu.VMEM((np_rows + 2 * margin, c), jnp.float32),
                        pltpu.VMEM((np_rows + 2 * margin, c), jnp.float32)],
    )(flat, mask,
      p['dwl']['w'], p['dwl']['b'], p['convl2']['w'], p['convl2']['b'],
      p['convr1']['w'], p['convr1']['b'], p['dwr']['w'], p['dwr']['b'],
      p['convr3']['w'], p['convr3']['b'])
    Ho, Wo = H // 2, W // 2
    a = _interior(out_l, B, H, W, stride=2)          # stride-2 subsample of the dw path
    b = _interior(out_r, B, H, W, stride=2)
    return _to_flat_padded(_channel_shuffle_cat(a, b)), Ho, Wo


# ----------------------------------------------------------------------------
# Parameter init (synthetic, deterministic; BN folded into weights / shift)
# ----------------------------------------------------------------------------
def _init_bn(key, cout):
    k1, k2, k3, k4 = jax.random.split(key, 4)
    gamma = jax.random.uniform(k1, (cout,), minval=0.5, maxval=1.5)
    beta = 0.1 * jax.random.normal(k2, (cout,))
    mean = 0.1 * jax.random.normal(k3, (cout,))
    var = jax.random.uniform(k4, (cout,), minval=0.5, maxval=1.5)
    scale = gamma / jnp.sqrt(var + 1e-5)
    shift = beta - mean * scale
    return scale.astype(jnp.float32), shift.astype(jnp.float32)


def _init_conv(key, cin, cout):
    """1x1 conv (or im2col'd 3x3) with folded BN; weights in bf16 for the MXU."""
    kw, kb = jax.random.split(key)
    w = 0.1 * jax.random.normal(kw, (cin, cout), dtype=jnp.float32)
    scale, shift = _init_bn(kb, cout)
    return {'w': (w * scale[None, :]).astype(jnp.bfloat16),
            'b': shift.reshape(1, cout)}


def _init_dw(key, c):
    """3x3 depthwise with folded BN; stays f32 (VPU path)."""
    kw, kb = jax.random.split(key)
    w = 0.1 * jax.random.normal(kw, (9, 1, c), dtype=jnp.float32)
    scale, shift = _init_bn(kb, c)
    return {'w': w * scale[None, None, :], 'b': shift.reshape(1, c)}


def _init_basic_unit(key, cin, cout):
    l = cin // 2
    r = cin - l
    ro = cout - l
    k1, k2, k3 = jax.random.split(key, 3)
    return {'conv1': _init_conv(k1, r, ro),
            'dw': _init_dw(k2, ro),
            'conv3': _init_conv(k3, ro, ro)}


def _init_dsampling(key, c):
    ks = jax.random.split(key, 5)
    return {'dwl': _init_dw(ks[0], c),
            'convl2': _init_conv(ks[1], c, c),
            'convr1': _init_conv(ks[2], c, c),
            'dwr': _init_dw(ks[3], c),
            'convr3': _init_conv(ks[4], c, c)}


def _init_stage(key, cin, cout, n_units):
    ks = jax.random.split(key, n_units + 1)
    units = [_init_basic_unit(ks[1], 2 * cin, cout)]
    for i in range(n_units - 1):
        units.append(_init_basic_unit(ks[2 + i], cout, cout))
    return {'ds': _init_dsampling(ks[0], cin), 'units': units}


def init_backbone(key, scale=0.5):
    chnl_sets = {0.5: [16, 32, 64], 1: [32, 64, 256], 1.5: [48, 96, 320], 2: [64, 128, 152]}
    units = [3, 7]
    c = chnl_sets[scale]
    k0, k1, k2 = jax.random.split(key, 3)
    return {'conv1': _init_conv(k0, 27, c[0]),       # stem 3x3, rows ordered (kh, kw, cin)
            'stage2': _init_stage(k1, c[0], c[1], units[0]),
            'stage3': _init_stage(k2, c[1], c[2], units[1])}


# ----------------------------------------------------------------------------
# Forward (is_se=False, is_res=False)
# ----------------------------------------------------------------------------
def _run_stage(flat, stage_p, B, H, W):
    flat, H, W = dsampling_forward(flat, stage_p['ds'], B, H, W)
    for up in stage_p['units']:
        flat = basic_unit_forward(flat, up, B, H, W)
    return flat, H, W


def shufflenetv2_backbone_fwd(params, x_nchw):
    x = jnp.transpose(x_nchw, (0, 2, 3, 1)).astype(jnp.float32)   # NCHW -> NHWC
    B = x.shape[0]
    flat, H, W = stem_forward(x, params['conv1'])
    flat, H, W = _run_stage(flat, params['stage2'], B, H, W)
    flat, H, W = _run_stage(flat, params['stage3'], B, H, W)
    out = _interior(flat, B, H, W)                                # (B, H, W, C)
    return jnp.transpose(out, (0, 3, 1, 2))                       # NHWC -> NCHW


# ----------------------------------------------------------------------------
if __name__ == "__main__":
    key = jax.random.PRNGKey(0)
    kp, kx = jax.random.split(key)

    params = init_backbone(kp, scale=0.5)
    x = jax.random.normal(kx, (2, 3, 32, 32), dtype=jnp.float32)  # NCHW, 3 input channels

    fwd = jax.jit(shufflenetv2_backbone_fwd)
    out = jax.block_until_ready(fwd(params, x))

    assert out.shape == (2, 64, 2, 2), out.shape
    assert bool(jnp.all(jnp.isfinite(out)))
    print("KERNEL_OK")
</pallas_src>

<mosaic_0001>
module attributes {stable_mosaic.version = 11 : i64} {
  func.func @_stem_kernel(%arg0: memref<648x27xf32, #tpu.memory_space<vmem>>, %arg1: memref<648x1xf32, #tpu.memory_space<vmem>>, %arg2: memref<27x16xbf16, #tpu.memory_space<vmem>>, %arg3: memref<1x16xf32, #tpu.memory_space<vmem>>, %arg4: memref<648x16xf32, #tpu.memory_space<vmem>>, %arg5: memref<696x16xf32, #tpu.memory_space<vmem>>) attributes {dimension_semantics = [], scalar_prefetch = 0 : i64, scratch_operands = 1 : i64, tpu.core_type = #tpu.core_type<tc>} {
    %c0 = arith.constant 0 : index
    %c0_0 = arith.constant 0 : index
    %0 = vector.load %arg1[%c0, %c0_0] : memref<648x1xf32, #tpu.memory_space<vmem>>, vector<648x1xf32>
    %c0_1 = arith.constant 0 : index
    %c0_2 = arith.constant 0 : index
    %1 = vector.load %arg0[%c0_1, %c0_2] : memref<648x27xf32, #tpu.memory_space<vmem>>, vector<648x27xf32>
    %2 = arith.truncf %1 : vector<648x27xf32> to vector<648x27xbf16>
    %c0_3 = arith.constant 0 : index
    %c0_4 = arith.constant 0 : index
    %3 = vector.load %arg2[%c0_3, %c0_4] : memref<27x16xbf16, #tpu.memory_space<vmem>>, vector<27x16xbf16>
    %cst = arith.constant dense<0.000000e+00> : vector<648x16xf32>
    %4 = tpu.matmul %2, %3, %cst {dimension_numbers = #tpu.dot_dimension_numbers<[1], [0], [0], [1], [0, 0, 1, 1], [], []>} : vector<648x27xbf16>, vector<27x16xbf16>, vector<648x16xf32> -> vector<648x16xf32>
    %c0_5 = arith.constant 0 : index
    %c0_6 = arith.constant 0 : index
    %5 = vector.load %arg3[%c0_5, %c0_6] : memref<1x16xf32, #tpu.memory_space<vmem>>, vector<1x16xf32>
    %6 = vector.broadcast %5 : vector<1x16xf32> to vector<648x16xf32>
    %7 = arith.addf %4, %6 : vector<648x16xf32>
    %cst_7 = arith.constant 0.000000e+00 : f32
    %8 = vector.broadcast %cst_7 : f32 to vector<648x16xf32>
    %9 = arith.maximumf %7, %8 : vector<648x16xf32>
    %10 = vector.broadcast %0 : vector<648x1xf32> to vector<648x16xf32>
    %11 = arith.mulf %9, %10 : vector<648x16xf32>
    %cst_8 = arith.constant 1.000000e+00 : f32
    %12 = vector.broadcast %cst_8 : f32 to vector<648x1xf32>
    %13 = arith.subf %0, %12 : vector<648x1xf32>
    %cst_9 = arith.constant 1.000000e+30 : f32
    %14 = vector.broadcast %cst_9 : f32 to vector<648x1xf32>
    %15 = arith.mulf %13, %14 : vector<648x1xf32>
    %16 = vector.broadcast %15 : vector<648x1xf32> to vector<648x16xf32>
    %17 = arith.addf %11, %16 : vector<648x16xf32>
    %cst_10 = arith.constant -1.000000e+30 : f32
    %18 = vector.broadcast %cst_10 : f32 to vector<24x16xf32>
    %c0_11 = arith.constant 0 : index
    %c0_12 = arith.constant 0 : index
    %19 = vector.load %arg5[%c0_11, %c0_12] : memref<696x16xf32, #tpu.memory_space<vmem>>, vector<24x16xf32>
    tpu.vector_store %arg5[%c0_11, %c0_12], %18 {strides = array<i32>} : memref<696x16xf32, #tpu.memory_space<vmem>>, vector<24x16xf32>,
    %c672 = arith.constant 672 : index
    %c0_13 = arith.constant 0 : index
    %20 = vector.load %arg5[%c672, %c0_13] : memref<696x16xf32, #tpu.memory_space<vmem>>, vector<24x16xf32>
    tpu.vector_store %arg5[%c672, %c0_13], %18 {strides = array<i32>} : memref<696x16xf32, #tpu.memory_space<vmem>>, vector<24x16xf32>,
    %c24 = arith.constant 24 : index
    %c0_14 = arith.constant 0 : index
    %21 = vector.load %arg5[%c24, %c0_14] : memref<696x16xf32, #tpu.memory_space<vmem>>, vector<648x16xf32>
    tpu.vector_store %arg5[%c24, %c0_14], %17 {strides = array<i32>} : memref<696x16xf32, #tpu.memory_space<vmem>>, vector<648x16xf32>,
    %cst_15 = arith.constant -1.000000e+30 : f32
    %22 = vector.broadcast %cst_15 : f32 to vector<648x16xf32>
    %c5 = arith.constant 5 : index
    %c0_16 = arith.constant 0 : index
    %23 = vector.load %arg5[%c5, %c0_16] : memref<696x16xf32, #tpu.memory_space<vmem>>, vector<648x16xf32>
    %24 = arith.maximumf %22, %23 : vector<648x16xf32>
    %c6 = arith.constant 6 : index
    %c0_17 = arith.constant 0 : index
    %25 = vector.load %arg5[%c6, %c0_17] : memref<696x16xf32, #tpu.memory_space<vmem>>, vector<648x16xf32>
    %26 = arith.maximumf %24, %25 : vector<648x16xf32>
    %c7 = arith.constant 7 : index
    %c0_18 = arith.constant 0 : index
    %27 = vector.load %arg5[%c7, %c0_18] : memref<696x16xf32, #tpu.memory_space<vmem>>, vector<648x16xf32>
    %28 = arith.maximumf %26, %27 : vector<648x16xf32>
    %c23 = arith.constant 23 : index
    %c0_19 = arith.constant 0 : index
    %29 = vector.load %arg5[%c23, %c0_19] : memref<696x16xf32, #tpu.memory_space<vmem>>, vector<648x16xf32>
    %30 = arith.maximumf %28, %29 : vector<648x16xf32>
    %c24_20 = arith.constant 24 : index
    %c0_21 = arith.constant 0 : index
    %31 = vector.load %arg5[%c24_20, %c0_21] : memref<696x16xf32, #tpu.memory_space<vmem>>, vector<648x16xf32>
    %32 = arith.maximumf %30, %31 : vector<648x16xf32>
    %c25 = arith.constant 25 : index
    %c0_22 = arith.constant 0 : index
    %33 = vector.load %arg5[%c25, %c0_22] : memref<696x16xf32, #tpu.memory_space<vmem>>, vector<648x16xf32>
    %34 = arith.maximumf %32, %33 : vector<648x16xf32>
    %c41 = arith.constant 41 : index
    %c0_23 = arith.constant 0 : index
    %35 = vector.load %arg5[%c41, %c0_23] : memref<696x16xf32, #tpu.memory_space<vmem>>, vector<648x16xf32>
    %36 = arith.maximumf %34, %35 : vector<648x16xf32>
    %c42 = arith.constant 42 : index
    %c0_24 = arith.constant 0 : index
    %37 = vector.load %arg5[%c42, %c0_24] : memref<696x16xf32, #tpu.memory_space<vmem>>, vector<648x16xf32>
    %38 = arith.maximumf %36, %37 : vector<648x16xf32>
    %c43 = arith.constant 43 : index
    %c0_25 = arith.constant 0 : index
    %39 = vector.load %arg5[%c43, %c0_25] : memref<696x16xf32, #tpu.memory_space<vmem>>, vector<648x16xf32>
    %40 = arith.maximumf %38, %39 : vector<648x16xf32>
    %c0_26 = arith.constant 0 : index
    %c0_27 = arith.constant 0 : index
    %41 = vector.load %arg4[%c0_26, %c0_27] : memref<648x16xf32, #tpu.memory_space<vmem>>, vector<648x16xf32>
    tpu.vector_store %arg4[%c0_26, %c0_27], %40 {strides = array<i32>} : memref<648x16xf32, #tpu.memory_space<vmem>>, vector<648x16xf32>,
    return
  }
}

module attributes {stable_mosaic.version = 11 : i64} {
  func.func @_dsampling_kernel(%arg0: memref<200x16xf32, #tpu.memory_space<vmem>>, %arg1: memref<200x1xf32, #tpu.memory_space<vmem>>, %arg2: memref<9x1x16xf32, #tpu.memory_space<vmem>>, %arg3: memref<1x16xf32, #tpu.memory_space<vmem>>, %arg4: memref<16x16xbf16, #tpu.memory_space<vmem>>, %arg5: memref<1x16xf32, #tpu.memory_space<vmem>>, %arg6: memref<16x16xbf16, #tpu.memory_space<vmem>>, %arg7: memref<1x16xf32, #tpu.memory_space<vmem>>, %arg8: memref<9x1x16xf32, #tpu.memory_space<vmem>>, %arg9: memref<1x16xf32, #tpu.memory_space<vmem>>, %arg10: memref<16x16xbf16, #tpu.memory_space<vmem>>, %arg11: memref<1x16xf32, #tpu.memory_space<vmem>>, %arg12: memref<200x16xf32, #tpu.memory_space<vmem>>, %arg13: memref<200x16xf32, #tpu.memory_space<vmem>>, %arg14: memref<232x16xf32, #tpu.memory_space<vmem>>, %arg15: memref<232x16xf32, #tpu.memory_space<vmem>>) attributes {dimension_semantics = [], scalar_prefetch = 0 : i64, scratch_operands = 2 : i64, tpu.core_type = #tpu.core_type<tc>} {
    %c0 = arith.constant 0 : index
    %c0_0 = arith.constant 0 : index
    %0 = vector.load %arg1[%c0, %c0_0] : memref<200x1xf32, #tpu.memory_space<vmem>>, vector<200x1xf32>
    %c0_1 = arith.constant 0 : index
    %c0_2 = arith.constant 0 : index
    %1 = vector.load %arg0[%c0_1, %c0_2] : memref<200x16xf32, #tpu.memory_space<vmem>>, vector<200x16xf32>
    %2 = vector.broadcast %0 : vector<200x1xf32> to vector<200x16xf32>
    %3 = arith.mulf %1, %2 : vector<200x16xf32>
    %cst = arith.constant 0.000000e+00 : f32
    %4 = vector.broadcast %cst : f32 to vector<16x16xf32>
    %c0_3 = arith.constant 0 : index
    %c0_4 = arith.constant 0 : index
    %5 = vector.load %arg14[%c0_3, %c0_4] : memref<232x16xf32, #tpu.memory_space<vmem>>, vector<16x16xf32>
    tpu.vector_store %arg14[%c0_3, %c0_4], %4 {strides = array<i32>} : memref<232x16xf32, #tpu.memory_space<vmem>>, vector<16x16xf32>,
    %c216 = arith.constant 216 : index
    %c0_5 = arith.constant 0 : index
    %6 = vector.load %arg14[%c216, %c0_5] : memref<232x16xf32, #tpu.memory_space<vmem>>, vector<16x16xf32>
    tpu.vector_store %arg14[%c216, %c0_5], %4 {strides = array<i32>} : memref<232x16xf32, #tpu.memory_space<vmem>>, vector<16x16xf32>,
    %c16 = arith.constant 16 : index
    %c0_6 = arith.constant 0 : index
    %7 = vector.load %arg14[%c16, %c0_6] : memref<232x16xf32, #tpu.memory_space<vmem>>, vector<200x16xf32>
    tpu.vector_store %arg14[%c16, %c0_6], %3 {strides = array<i32>} : memref<232x16xf32, #tpu.memory_space<vmem>>, vector<200x16xf32>,
    %cst_7 = arith.constant 0.000000e+00 : f32
    %8 = vector.broadcast %cst_7 : f32 to vector<200x16xf32>
    %c5 = arith.constant 5 : index
    %c0_8 = arith.constant 0 : index
    %9 = vector.load %arg14[%c5, %c0_8] : memref<232x16xf32, #tpu.memory_space<vmem>>, vector<200x16xf32>
    %c0_9 = arith.constant 0 : index
    %c0_10 = arith.constant 0 : index
    %c0_11 = arith.constant 0 : index
    %10 = vector.load %arg2[%c0_9, %c0_10, %c0_11] : memref<9x1x16xf32, #tpu.memory_space<vmem>>, vector<1x1x16xf32>
    %11 = vector.shape_cast %10 : vector<1x1x16xf32> to vector<1x16xf32>
    %12 = vector.broadcast %11 : vector<1x16xf32> to vector<200x16xf32>
    %13 = arith.mulf %9, %12 : vector<200x16xf32>
    %14 = arith.addf %8, %13 : vector<200x16xf32>
    %c6 = arith.constant 6 : index
    %c0_12 = arith.constant 0 : index
    %15 = vector.load %arg14[%c6, %c0_12] : memref<232x16xf32, #tpu.memory_space<vmem>>, vector<200x16xf32>
    %c1 = arith.constant 1 : index
    %c0_13 = arith.constant 0 : index
    %c0_14 = arith.constant 0 : index
    %16 = vector.load %arg2[%c1, %c0_13, %c0_14] : memref<9x1x16xf32, #tpu.memory_space<vmem>>, vector<1x1x16xf32>
    %17 = vector.shape_cast %16 : vector<1x1x16xf32> to vector<1x16xf32>
    %18 = vector.broadcast %17 : vector<1x16xf32> to vector<200x16xf32>
    %19 = arith.mulf %15, %18 : vector<200x16xf32>
    %20 = arith.addf %14, %19 : vector<200x16xf32>
    %c7 = arith.constant 7 : index
    %c0_15 = arith.constant 0 : index
    %21 = vector.load %arg14[%c7, %c0_15] : memref<232x16xf32, #tpu.memory_space<vmem>>, vector<200x16xf32>
    %c2 = arith.constant 2 : index
    %c0_16 = arith.constant 0 : index
    %c0_17 = arith.constant 0 : index
    %22 = vector.load %arg2[%c2, %c0_16, %c0_17] : memref<9x1x16xf32, #tpu.memory_space<vmem>>, vector<1x1x16xf32>
    %23 = vector.shape_cast %22 : vector<1x1x16xf32> to vector<1x16xf32>
    %24 = vector.broadcast %23 : vector<1x16xf32> to vector<200x16xf32>
    %25 = arith.mulf %21, %24 : vector<200x16xf32>
    %26 = arith.addf %20, %25 : vector<200x16xf32>
    %c15 = arith.constant 15 : index
    %c0_18 = arith.constant 0 : index
    %27 = vector.load %arg14[%c15, %c0_18] : memref<232x16xf32, #tpu.memory_space<vmem>>, vector<200x16xf32>
    %c3 = arith.constant 3 : index
    %c0_19 = arith.constant 0 : index
    %c0_20 = arith.constant 0 : index
    %28 = vector.load %arg2[%c3, %c0_19, %c0_20] : memref<9x1x16xf32, #tpu.memory_space<vmem>>, vector<1x1x16xf32>
    %29 = vector.shape_cast %28 : vector<1x1x16xf32> to vector<1x16xf32>
    %30 = vector.broadcast %29 : vector<1x16xf32> to vector<200x16xf32>
    %31 = arith.mulf %27, %30 : vector<200x16xf32>
    %32 = arith.addf %26, %31 : vector<200x16xf32>
    %c16_21 = arith.constant 16 : index
    %c0_22 = arith.constant 0 : index
    %33 = vector.load %arg14[%c16_21, %c0_22] : memref<232x16xf32, #tpu.memory_space<vmem>>, vector<200x16xf32>
    %c4 = arith.constant 4 : index
    %c0_23 = arith.constant 0 : index
    %c0_24 = arith.constant 0 : index
    %34 = vector.load %arg2[%c4, %c0_23, %c0_24] : memref<9x1x16xf32, #tpu.memory_space<vmem>>, vector<1x1x16xf32>
    %35 = vector.shape_cast %34 : vector<1x1x16xf32> to vector<1x16xf32>
    %36 = vector.broadcast %35 : vector<1x16xf32> to vector<200x16xf32>
    %37 = arith.mulf %33, %36 : vector<200x16xf32>
    %38 = arith.addf %32, %37 : vector<200x16xf32>
    %c17 = arith.constant 17 : index
    %c0_25 = arith.constant 0 : index
    %39 = vector.load %arg14[%c17, %c0_25] : memref<232x16xf32, #tpu.memory_space<vmem>>, vector<200x16xf32>
    %c5_26 = arith.constant 5 : index
    %c0_27 = arith.constant 0 : index
    %c0_28 = arith.constant 0 : index
    %40 = vector.load %arg2[%c5_26, %c0_27, %c0_28] : memref<9x1x16xf32, #tpu.memory_space<vmem>>, vector<1x1x16xf32>
    %41 = vector.shape_cast %40 : vector<1x1x16xf32> to vector<1x16xf32>
    %42 = vector.broadcast %41 : vector<1x16xf32> to vector<200x16xf32>
    %43 = arith.mulf %39, %42 : vector<200x16xf32>
    %44 = arith.addf %38, %43 : vector<200x16xf32>
    %c25 = arith.constant 25 : index
    %c0_29 = arith.constant 0 : index
    %45 = vector.load %arg14[%c25, %c0_29] : memref<232x16xf32, #tpu.memory_space<vmem>>, vector<200x16xf32>
    %c6_30 = arith.constant 6 : index
    %c0_31 = arith.constant 0 : index
    %c0_32 = arith.constant 0 : index
    %46 = vector.load %arg2[%c6_30, %c0_31, %c0_32] : memref<9x1x16xf32, #tpu.memory_space<vmem>>, vector<1x1x16xf32>
    %47 = vector.shape_cast %46 : vector<1x1x16xf32> to vector<1x16xf32>
    %48 = vector.broadcast %47 : vector<1x16xf32> to vector<200x16xf32>
    %49 = arith.mulf %45, %48 : vector<200x16xf32>
    %50 = arith.addf %44, %49 : vector<200x16xf32>
    %c26 = arith.constant 26 : index
    %c0_33 = arith.constant 0 : index
    %51 = vector.load %arg14[%c26, %c0_33] : memref<232x16xf32, #tpu.memory_space<vmem>>, vector<200x16xf32>
    %c7_34 = arith.constant 7 : index
    %c0_35 = arith.constant 0 : index
    %c0_36 = arith.constant 0 : index
    %52 = vector.load %arg2[%c7_34, %c0_35, %c0_36] : memref<9x1x16xf32, #tpu.memory_space<vmem>>, vector<1x1x16xf32>
    %53 = vector.shape_cast %52 : vector<1x1x16xf32> to vector<1x16xf32>
    %54 = vector.broadcast %53 : vector<1x16xf32> to vector<200x16xf32>
    %55 = arith.mulf %51, %54 : vector<200x16xf32>
    %56 = arith.addf %50, %55 : vector<200x16xf32>
    %c27 = arith.constant 27 : index
    %c0_37 = arith.constant 0 : index
    %57 = vector.load %arg14[%c27, %c0_37] : memref<232x16xf32, #tpu.memory_space<vmem>>, vector<200x16xf32>
    %c8 = arith.constant 8 : index
    %c0_38 = arith.constant 0 : index
    %c0_39 = arith.constant 0 : index
    %58 = vector.load %arg2[%c8, %c0_38, %c0_39] : memref<9x1x16xf32, #tpu.memory_space<vmem>>, vector<1x1x16xf32>
    %59 = vector.shape_cast %58 : vector<1x1x16xf32> to vector<1x16xf32>
    %60 = vector.broadcast %59 : vector<1x16xf32> to vector<200x16xf32>
    %61 = arith.mulf %57, %60 : vector<200x16xf32>
    %62 = arith.addf %56, %61 : vector<200x16xf32>
    %c0_40 = arith.constant 0 : index
    %c0_41 = arith.constant 0 : index
    %63 = vector.load %arg3[%c0_40, %c0_41] : memref<1x16xf32, #tpu.memory_space<vmem>>, vector<1x16xf32>
    %64 = vector.broadcast %63 : vector<1x16xf32> to vector<200x16xf32>
    %65 = arith.addf %62, %64 : vector<200x16xf32>
    %66 = arith.truncf %65 : vector<200x16xf32> to vector<200x16xbf16>
    %c0_42 = arith.constant 0 : index
    %c0_43 = arith.constant 0 : index
    %67 = vector.load %arg4[%c0_42, %c0_43] : memref<16x16xbf16, #tpu.memory_space<vmem>>, vector<16x16xbf16>
    %cst_44 = arith.constant dense<0.000000e+00> : vector<200x16xf32>
    %68 = tpu.matmul %66, %67, %cst_44 {dimension_numbers = #tpu.dot_dimension_numbers<[1], [0], [0], [1], [0, 0, 1, 1], [], []>} : vector<200x16xbf16>, vector<16x16xbf16>, vector<200x16xf32> -> vector<200x16xf32>
    %c0_45 = arith.constant 0 : index
    %c0_46 = arith.constant 0 : index
    %69 = vector.load %arg5[%c0_45, %c0_46] : memref<1x16xf32, #tpu.memory_space<vmem>>, vector<1x16xf32>
    %70 = vector.broadcast %69 : vector<1x16xf32> to vector<200x16xf32>
    %71 = arith.addf %68, %70 : vector<200x16xf32>
    %cst_47 = arith.constant 0.000000e+00 : f32
    %72 = vector.broadcast %cst_47 : f32 to vector<200x16xf32>
    %73 = arith.maximumf %71, %72 : vector<200x16xf32>
    %c0_48 = arith.constant 0 : index
    %c0_49 = arith.constant 0 : index
    %74 = vector.load %arg12[%c0_48, %c0_49] : memref<200x16xf32, #tpu.memory_space<vmem>>, vector<200x16xf32>
    tpu.vector_store %arg12[%c0_48, %c0_49], %73 {strides = array<i32>} : memref<200x16xf32, #tpu.memory_space<vmem>>, vector<200x16xf32>,
    %75 = arith.truncf %3 : vector<200x16xf32> to vector<200x16xbf16>
    %c0_50 = arith.constant 0 : index
    %c0_51 = arith.constant 0 : index
    %76 = vector.load %arg6[%c0_50, %c0_51] : memref<16x16xbf16, #tpu.memory_space<vmem>>, vector<16x16xbf16>
    %cst_52 = arith.constant dense<0.000000e+00> : vector<200x16xf32>
    %77 = tpu.matmul %75, %76, %cst_52 {dimension_numbers = #tpu.dot_dimension_numbers<[1], [0], [0], [1], [0, 0, 1, 1], [], []>} : vector<200x16xbf16>, vector<16x16xbf16>, vector<200x16xf32> -> vector<200x16xf32>
    %c0_53 = arith.constant 0 : index
    %c0_54 = arith.constant 0 : index
    %78 = vector.load %arg7[%c0_53, %c0_54] : memref<1x16xf32, #tpu.memory_space<vmem>>, vector<1x16xf32>
    %79 = vector.broadcast %78 : vector<1x16xf32> to vector<200x16xf32>
    %80 = arith.addf %77, %79 : vector<200x16xf32>
    %cst_55 = arith.constant 0.000000e+00 : f32
    %81 = vector.broadcast %cst_55 : f32 to vector<200x16xf32>
    %82 = arith.maximumf %80, %81 : vector<200x16xf32>
    %83 = vector.broadcast %0 : vector<200x1xf32> to vector<200x16xf32>
    %84 = arith.mulf %82, %83 : vector<200x16xf32>
    %cst_56 = arith.constant 0.000000e+00 : f32
    %85 = vector.broadcast %cst_56 : f32 to vector<16x16xf32>
    %c0_57 = arith.constant 0 : index
    %c0_58 = arith.constant 0 : index
    %86 = vector.load %arg15[%c0_57, %c0_58] : memref<232x16xf32, #tpu.memory_space<vmem>>, vector<16x16xf32>
    tpu.vector_store %arg15[%c0_57, %c0_58], %85 {strides = array<i32>} : memref<232x16xf32, #tpu.memory_space<vmem>>, vector<16x16xf32>,
    %c216_59 = arith.constant 216 : index
    %c0_60 = arith.constant 0 : index
    %87 = vector.load %arg15[%c216_59, %c0_60] : memref<232x16xf32, #tpu.memory_space<vmem>>, vector<16x16xf32>
    tpu.vector_store %arg15[%c216_59, %c0_60], %85 {strides = array<i32>} : memref<232x16xf32, #tpu.memory_space<vmem>>, vector<16x16xf32>,
    %c16_61 = arith.constant 16 : index
    %c0_62 = arith.constant 0 : index
    %88 = vector.load %arg15[%c16_61, %c0_62] : memref<232x16xf32, #tpu.memory_space<vmem>>, vector<200x16xf32>
    tpu.vector_store %arg15[%c16_61, %c0_62], %84 {strides = array<i32>} : memref<232x16xf32, #tpu.memory_space<vmem>>, vector<200x16xf32>,
    %cst_63 = arith.constant 0.000000e+00 : f32
    %89 = vector.broadcast %cst_63 : f32 to vector<200x16xf32>
    %c5_64 = arith.constant 5 : index
    %c0_65 = arith.constant 0 : index
    %90 = vector.load %arg15[%c5_64, %c0_65] : memref<232x16xf32, #tpu.memory_space<vmem>>, vector<200x16xf32>
    %c0_66 = arith.constant 0 : index
    %c0_67 = arith.constant 0 : index
    %c0_68 = arith.constant 0 : index
    %91 = vector.load %arg8[%c0_66, %c0_67, %c0_68] : memref<9x1x16xf32, #tpu.memory_space<vmem>>, vector<1x1x16xf32>
    %92 = vector.shape_cast %91 : vector<1x1x16xf32> to vector<1x16xf32>
    %93 = vector.broadcast %92 : vector<1x16xf32> to vector<200x16xf32>
    %94 = arith.mulf %90, %93 : vector<200x16xf32>
    %95 = arith.addf %89, %94 : vector<200x16xf32>
    %c6_69 = arith.constant 6 : index
    %c0_70 = arith.constant 0 : index
    %96 = vector.load %arg15[%c6_69, %c0_70] : memref<232x16xf32, #tpu.memory_space<vmem>>, vector<200x16xf32>
    %c1_71 = arith.constant 1 : index
    %c0_72 = arith.constant 0 : index
    %c0_73 = arith.constant 0 : index
    %97 = vector.load %arg8[%c1_71, %c0_72, %c0_73] : memref<9x1x16xf32, #tpu.memory_space<vmem>>, vector<1x1x16xf32>
    %98 = vector.shape_cast %97 : vector<1x1x16xf32> to vector<1x16xf32>
    %99 = vector.broadcast %98 : vector<1x16xf32> to vector<200x16xf32>
    %100 = arith.mulf %96, %99 : vector<200x16xf32>
    %101 = arith.addf %95, %100 : vector<200x16xf32>
    %c7_74 = arith.constant 7 : index
    %c0_75 = arith.constant 0 : index
    %102 = vector.load %arg15[%c7_74, %c0_75] : memref<232x16xf32, #tpu.memory_space<vmem>>, vector<200x16xf32>
    %c2_76 = arith.constant 2 : index
    %c0_77 = arith.constant 0 : index
    %c0_78 = arith.constant 0 : index
    %103 = vector.load %arg8[%c2_76, %c0_77, %c0_78] : memref<9x1x16xf32, #tpu.memory_space<vmem>>, vector<1x1x16xf32>
    %104 = vector.shape_cast %103 : vector<1x1x16xf32> to vector<1x16xf32>
    %105 = vector.broadcast %104 : vector<1x16xf32> to vector<200x16xf32>
    %106 = arith.mulf %102, %105 : vector<200x16xf32>
    %107 = arith.addf %101, %106 : vector<200x16xf32>
    %c15_79 = arith.constant 15 : index
    %c0_80 = arith.constant 0 : index
    %108 = vector.load %arg15[%c15_79, %c0_80] : memref<232x16xf32, #tpu.memory_space<vmem>>, vector<200x16xf32>
    %c3_81 = arith.constant 3 : index
    %c0_82 = arith.constant 0 : index
    %c0_83 = arith.constant 0 : index
    %109 = vector.load %arg8[%c3_81, %c0_82, %c0_83] : memref<9x1x16xf32, #tpu.memory_space<vmem>>, vector<1x1x16xf32>
    %110 = vector.shape_cast %109 : vector<1x1x16xf32> to vector<1x16xf32>
    %111 = vector.broadcast %110 : vector<1x16xf32> to vector<200x16xf32>
    %112 = arith.mulf %108, %111 : vector<200x16xf32>
    %113 = arith.addf %107, %112 : vector<200x16xf32>
    %c16_84 = arith.constant 16 : index
    %c0_85 = arith.constant 0 : index
    %114 = vector.load %arg15[%c16_84, %c0_85] : memref<232x16xf32, #tpu.memory_space<vmem>>, vector<200x16xf32>
    %c4_86 = arith.constant 4 : index
    %c0_87 = arith.constant 0 : index
    %c0_88 = arith.constant 0 : index
    %115 = vector.load %arg8[%c4_86, %c0_87, %c0_88] : memref<9x1x16xf32, #tpu.memory_space<vmem>>, vector<1x1x16xf32>
    %116 = vector.shape_cast %115 : vector<1x1x16xf32> to vector<1x16xf32>
    %117 = vector.broadcast %116 : vector<1x16xf32> to vector<200x16xf32>
    %118 = arith.mulf %114, %117 : vector<200x16xf32>
    %119 = arith.addf %113, %118 : vector<200x16xf32>
    %c17_89 = arith.constant 17 : index
    %c0_90 = arith.constant 0 : index
    %120 = vector.load %arg15[%c17_89, %c0_90] : memref<232x16xf32, #tpu.memory_space<vmem>>, vector<200x16xf32>
    %c5_91 = arith.constant 5 : index
    %c0_92 = arith.constant 0 : index
    %c0_93 = arith.constant 0 : index
    %121 = vector.load %arg8[%c5_91, %c0_92, %c0_93] : memref<9x1x16xf32, #tpu.memory_space<vmem>>, vector<1x1x16xf32>
    %122 = vector.shape_cast %121 : vector<1x1x16xf32> to vector<1x16xf32>
    %123 = vector.broadcast %122 : vector<1x16xf32> to vector<200x16xf32>
    %124 = arith.mulf %120, %123 : vector<200x16xf32>
    %125 = arith.addf %119, %124 : vector<200x16xf32>
    %c25_94 = arith.constant 25 : index
    %c0_95 = arith.constant 0 : index
    %126 = vector.load %arg15[%c25_94, %c0_95] : memref<232x16xf32, #tpu.memory_space<vmem>>, vector<200x16xf32>
    %c6_96 = arith.constant 6 : index
    %c0_97 = arith.constant 0 : index
    %c0_98 = arith.constant 0 : index
    %127 = vector.load %arg8[%c6_96, %c0_97, %c0_98] : memref<9x1x16xf32, #tpu.memory_space<vmem>>, vector<1x1x16xf32>
    %128 = vector.shape_cast %127 : vector<1x1x16xf32> to vector<1x16xf32>
    %129 = vector.broadcast %128 : vector<1x16xf32> to vector<200x16xf32>
    %130 = arith.mulf %126, %129 : vector<200x16xf32>
    %131 = arith.addf %125, %130 : vector<200x16xf32>
    %c26_99 = arith.constant 26 : index
    %c0_100 = arith.constant 0 : index
    %132 = vector.load %arg15[%c26_99, %c0_100] : memref<232x16xf32, #tpu.memory_space<vmem>>, vector<200x16xf32>
    %c7_101 = arith.constant 7 : index
    %c0_102 = arith.constant 0 : index
    %c0_103 = arith.constant 0 : index
    %133 = vector.load %arg8[%c7_101, %c0_102, %c0_103] : memref<9x1x16xf32, #tpu.memory_space<vmem>>, vector<1x1x16xf32>
    %134 = vector.shape_cast %133 : vector<1x1x16xf32> to vector<1x16xf32>
    %135 = vector.broadcast %134 : vector<1x16xf32> to vector<200x16xf32>
    %136 = arith.mulf %132, %135 : vector<200x16xf32>
    %137 = arith.addf %131, %136 : vector<200x16xf32>
    %c27_104 = arith.constant 27 : index
    %c0_105 = arith.constant 0 : index
    %138 = vector.load %arg15[%c27_104, %c0_105] : memref<232x16xf32, #tpu.memory_space<vmem>>, vector<200x16xf32>
    %c8_106 = arith.constant 8 : index
    %c0_107 = arith.constant 0 : index
    %c0_108 = arith.constant 0 : index
    %139 = vector.load %arg8[%c8_106, %c0_107, %c0_108] : memref<9x1x16xf32, #tpu.memory_space<vmem>>, vector<1x1x16xf32>
    %140 = vector.shape_cast %139 : vector<1x1x16xf32> to vector<1x16xf32>
    %141 = vector.broadcast %140 : vector<1x16xf32> to vector<200x16xf32>
    %142 = arith.mulf %138, %141 : vector<200x16xf32>
    %143 = arith.addf %137, %142 : vector<200x16xf32>
    %c0_109 = arith.constant 0 : index
    %c0_110 = arith.constant 0 : index
    %144 = vector.load %arg9[%c0_109, %c0_110] : memref<1x16xf32, #tpu.memory_space<vmem>>, vector<1x16xf32>
    %145 = vector.broadcast %144 : vector<1x16xf32> to vector<200x16xf32>
    %146 = arith.addf %143, %145 : vector<200x16xf32>
    %147 = arith.truncf %146 : vector<200x16xf32> to vector<200x16xbf16>
    %c0_111 = arith.constant 0 : index
    %c0_112 = arith.constant 0 : index
    %148 = vector.load %arg10[%c0_111, %c0_112] : memref<16x16xbf16, #tpu.memory_space<vmem>>, vector<16x16xbf16>
    %cst_113 = arith.constant dense<0.000000e+00> : vector<200x16xf32>
    %149 = tpu.matmul %147, %148, %cst_113 {dimension_numbers = #tpu.dot_dimension_numbers<[1], [0], [0], [1], [0, 0, 1, 1], [], []>} : vector<200x16xbf16>, vector<16x16xbf16>, vector<200x16xf32> -> vector<200x16xf32>
    %c0_114 = arith.constant 0 : index
    %c0_115 = arith.constant 0 : index
    %150 = vector.load %arg11[%c0_114, %c0_115] : memref<1x16xf32, #tpu.memory_space<vmem>>, vector<1x16xf32>
    %151 = vector.broadcast %150 : vector<1x16xf32> to vector<200x16xf32>
    %152 = arith.addf %149, %151 : vector<200x16xf32>
    %cst_116 = arith.constant 0.000000e+00 : f32
    %153 = vector.broadcast %cst_116 : f32 to vector<200x16xf32>
    %154 = arith.maximumf %152, %153 : vector<200x16xf32>
    %c0_117 = arith.constant 0 : index
    %c0_118 = arith.constant 0 : index
    %155 = vector.load %arg13[%c0_117, %c0_118] : memref<200x16xf32, #tpu.memory_space<vmem>>, vector<200x16xf32>
    tpu.vector_store %arg13[%c0_117, %c0_118], %154 {strides = array<i32>} : memref<200x16xf32, #tpu.memory_space<vmem>>, vector<200x16xf32>,
    return
  }
}

module attributes {stable_mosaic.version = 11 : i64} {
  func.func @_dsampling_kernel(%arg0: memref<72x32xf32, #tpu.memory_space<vmem>>, %arg1: memref<72x1xf32, #tpu.memory_space<vmem>>, %arg2: memref<9x1x32xf32, #tpu.memory_space<vmem>>, %arg3: memref<1x32xf32, #tpu.memory_space<vmem>>, %arg4: memref<32x32xbf16, #tpu.memory_space<vmem>>, %arg5: memref<1x32xf32, #tpu.memory_space<vmem>>, %arg6: memref<32x32xbf16, #tpu.memory_space<vmem>>, %arg7: memref<1x32xf32, #tpu.memory_space<vmem>>, %arg8: memref<9x1x32xf32, #tpu.memory_space<vmem>>, %arg9: memref<1x32xf32, #tpu.memory_space<vmem>>, %arg10: memref<32x32xbf16, #tpu.memory_space<vmem>>, %arg11: memref<1x32xf32, #tpu.memory_space<vmem>>, %arg12: memref<72x32xf32, #tpu.memory_space<vmem>>, %arg13: memref<72x32xf32, #tpu.memory_space<vmem>>, %arg14: memref<88x32xf32, #tpu.memory_space<vmem>>, %arg15: memref<88x32xf32, #tpu.memory_space<vmem>>) attributes {dimension_semantics = [], scalar_prefetch = 0 : i64, scratch_operands = 2 : i64, tpu.core_type = #tpu.core_type<tc>} {
    %c0 = arith.constant 0 : index
    %c0_0 = arith.constant 0 : index
    %0 = vector.load %arg1[%c0, %c0_0] : memref<72x1xf32, #tpu.memory_space<vmem>>, vector<72x1xf32>
    %c0_1 = arith.constant 0 : index
    %c0_2 = arith.constant 0 : index
    %1 = vector.load %arg0[%c0_1, %c0_2] : memref<72x32xf32, #tpu.memory_space<vmem>>, vector<72x32xf32>
    %2 = vector.broadcast %0 : vector<72x1xf32> to vector<72x32xf32>
    %3 = arith.mulf %1, %2 : vector<72x32xf32>
    %cst = arith.constant 0.000000e+00 : f32
    %4 = vector.broadcast %cst : f32 to vector<8x32xf32>
    %c0_3 = arith.constant 0 : index
    %c0_4 = arith.constant 0 : index
    %5 = vector.load %arg14[%c0_3, %c0_4] : memref<88x32xf32, #tpu.memory_space<vmem>>, vector<8x32xf32>
    tpu.vector_store %arg14[%c0_3, %c0_4], %4 {strides = array<i32>} : memref<88x32xf32, #tpu.memory_space<vmem>>, vector<8x32xf32>,
    %c80 = arith.constant 80 : index
    %c0_5 = arith.constant 0 : index
    %6 = vector.load %arg14[%c80, %c0_5] : memref<88x32xf32, #tpu.memory_space<vmem>>, vector<8x32xf32>
    tpu.vector_store %arg14[%c80, %c0_5], %4 {strides = array<i32>} : memref<88x32xf32, #tpu.memory_space<vmem>>, vector<8x32xf32>,
    %c8 = arith.constant 8 : index
    %c0_6 = arith.constant 0 : index
    %7 = vector.load %arg14[%c8, %c0_6] : memref<88x32xf32, #tpu.memory_space<vmem>>, vector<72x32xf32>
    tpu.vector_store %arg14[%c8, %c0_6], %3 {strides = array<i32>} : memref<88x32xf32, #tpu.memory_space<vmem>>, vector<72x32xf32>,
    %cst_7 = arith.constant 0.000000e+00 : f32
    %8 = vector.broadcast %cst_7 : f32 to vector<72x32xf32>
    %c1 = arith.constant 1 : index
    %c0_8 = arith.constant 0 : index
    %9 = vector.load %arg14[%c1, %c0_8] : memref<88x32xf32, #tpu.memory_space<vmem>>, vector<72x32xf32>
    %c0_9 = arith.constant 0 : index
    %c0_10 = arith.constant 0 : index
    %c0_11 = arith.constant 0 : index
    %10 = vector.load %arg2[%c0_9, %c0_10, %c0_11] : memref<9x1x32xf32, #tpu.memory_space<vmem>>, vector<1x1x32xf32>
    %11 = vector.shape_cast %10 : vector<1x1x32xf32> to vector<1x32xf32>
    %12 = vector.broadcast %11 : vector<1x32xf32> to vector<72x32xf32>
    %13 = arith.mulf %9, %12 : vector<72x32xf32>
    %14 = arith.addf %8, %13 : vector<72x32xf32>
    %c2 = arith.constant 2 : index
    %c0_12 = arith.constant 0 : index
    %15 = vector.load %arg14[%c2, %c0_12] : memref<88x32xf32, #tpu.memory_space<vmem>>, vector<72x32xf32>
    %c1_13 = arith.constant 1 : index
    %c0_14 = arith.constant 0 : index
    %c0_15 = arith.constant 0 : index
    %16 = vector.load %arg2[%c1_13, %c0_14, %c0_15] : memref<9x1x32xf32, #tpu.memory_space<vmem>>, vector<1x1x32xf32>
    %17 = vector.shape_cast %16 : vector<1x1x32xf32> to vector<1x32xf32>
    %18 = vector.broadcast %17 : vector<1x32xf32> to vector<72x32xf32>
    %19 = arith.mulf %15, %18 : vector<72x32xf32>
    %20 = arith.addf %14, %19 : vector<72x32xf32>
    %c3 = arith.constant 3 : index
    %c0_16 = arith.constant 0 : index
    %21 = vector.load %arg14[%c3, %c0_16] : memref<88x32xf32, #tpu.memory_space<vmem>>, vector<72x32xf32>
    %c2_17 = arith.constant 2 : index
    %c0_18 = arith.constant 0 : index
    %c0_19 = arith.constant 0 : index
    %22 = vector.load %arg2[%c2_17, %c0_18, %c0_19] : memref<9x1x32xf32, #tpu.memory_space<vmem>>, vector<1x1x32xf32>
    %23 = vector.shape_cast %22 : vector<1x1x32xf32> to vector<1x32xf32>
    %24 = vector.broadcast %23 : vector<1x32xf32> to vector<72x32xf32>
    %25 = arith.mulf %21, %24 : vector<72x32xf32>
    %26 = arith.addf %20, %25 : vector<72x32xf32>
    %c7 = arith.constant 7 : index
    %c0_20 = arith.constant 0 : index
    %27 = vector.load %arg14[%c7, %c0_20] : memref<88x32xf32, #tpu.memory_space<vmem>>, vector<72x32xf32>
    %c3_21 = arith.constant 3 : index
    %c0_22 = arith.constant 0 : index
    %c0_23 = arith.constant 0 : index
    %28 = vector.load %arg2[%c3_21, %c0_22, %c0_23] : memref<9x1x32xf32, #tpu.memory_space<vmem>>, vector<1x1x32xf32>
    %29 = vector.shape_cast %28 : vector<1x1x32xf32> to vector<1x32xf32>
    %30 = vector.broadcast %29 : vector<1x32xf32> to vector<72x32xf32>
    %31 = arith.mulf %27, %30 : vector<72x32xf32>
    %32 = arith.addf %26, %31 : vector<72x32xf32>
    %c8_24 = arith.constant 8 : index
    %c0_25 = arith.constant 0 : index
    %33 = vector.load %arg14[%c8_24, %c0_25] : memref<88x32xf32, #tpu.memory_space<vmem>>, vector<72x32xf32>
    %c4 = arith.constant 4 : index
    %c0_26 = arith.constant 0 : index
    %c0_27 = arith.constant 0 : index
    %34 = vector.load %arg2[%c4, %c0_26, %c0_27] : memref<9x1x32xf32, #tpu.memory_space<vmem>>, vector<1x1x32xf32>
    %35 = vector.shape_cast %34 : vector<1x1x32xf32> to vector<1x32xf32>
    %36 = vector.broadcast %35 : vector<1x32xf32> to vector<72x32xf32>
    %37 = arith.mulf %33, %36 : vector<72x32xf32>
    %38 = arith.addf %32, %37 : vector<72x32xf32>
    %c9 = arith.constant 9 : index
    %c0_28 = arith.constant 0 : index
    %39 = vector.load %arg14[%c9, %c0_28] : memref<88x32xf32, #tpu.memory_space<vmem>>, vector<72x32xf32>
    %c5 = arith.constant 5 : index
    %c0_29 = arith.constant 0 : index
    %c0_30 = arith.constant 0 : index
    %40 = vector.load %arg2[%c5, %c0_29, %c0_30] : memref<9x1x32xf32, #tpu.memory_space<vmem>>, vector<1x1x32xf32>
    %41 = vector.shape_cast %40 : vector<1x1x32xf32> to vector<1x32xf32>
    %42 = vector.broadcast %41 : vector<1x32xf32> to vector<72x32xf32>
    %43 = arith.mulf %39, %42 : vector<72x32xf32>
    %44 = arith.addf %38, %43 : vector<72x32xf32>
    %c13 = arith.constant 13 : index
    %c0_31 = arith.constant 0 : index
    %45 = vector.load %arg14[%c13, %c0_31] : memref<88x32xf32, #tpu.memory_space<vmem>>, vector<72x32xf32>
    %c6 = arith.constant 6 : index
    %c0_32 = arith.constant 0 : index
    %c0_33 = arith.constant 0 : index
    %46 = vector.load %arg2[%c6, %c0_32, %c0_33] : memref<9x1x32xf32, #tpu.memory_space<vmem>>, vector<1x1x32xf32>
    %47 = vector.shape_cast %46 : vector<1x1x32xf32> to vector<1x32xf32>
    %48 = vector.broadcast %47 : vector<1x32xf32> to vector<72x32xf32>
    %49 = arith.mulf %45, %48 : vector<72x32xf32>
    %50 = arith.addf %44, %49 : vector<72x32xf32>
    %c14 = arith.constant 14 : index
    %c0_34 = arith.constant 0 : index
    %51 = vector.load %arg14[%c14, %c0_34] : memref<88x32xf32, #tpu.memory_space<vmem>>, vector<72x32xf32>
    %c7_35 = arith.constant 7 : index
    %c0_36 = arith.constant 0 : index
    %c0_37 = arith.constant 0 : index
    %52 = vector.load %arg2[%c7_35, %c0_36, %c0_37] : memref<9x1x32xf32, #tpu.memory_space<vmem>>, vector<1x1x32xf32>
    %53 = vector.shape_cast %52 : vector<1x1x32xf32> to vector<1x32xf32>
    %54 = vector.broadcast %53 : vector<1x32xf32> to vector<72x32xf32>
    %55 = arith.mulf %51, %54 : vector<72x32xf32>
    %56 = arith.addf %50, %55 : vector<72x32xf32>
    %c15 = arith.constant 15 : index
    %c0_38 = arith.constant 0 : index
    %57 = vector.load %arg14[%c15, %c0_38] : memref<88x32xf32, #tpu.memory_space<vmem>>, vector<72x32xf32>
    %c8_39 = arith.constant 8 : index
    %c0_40 = arith.constant 0 : index
    %c0_41 = arith.constant 0 : index
    %58 = vector.load %arg2[%c8_39, %c0_40, %c0_41] : memref<9x1x32xf32, #tpu.memory_space<vmem>>, vector<1x1x32xf32>
    %59 = vector.shape_cast %58 : vector<1x1x32xf32> to vector<1x32xf32>
    %60 = vector.broadcast %59 : vector<1x32xf32> to vector<72x32xf32>
    %61 = arith.mulf %57, %60 : vector<72x32xf32>
    %62 = arith.addf %56, %61 : vector<72x32xf32>
    %c0_42 = arith.constant 0 : index
    %c0_43 = arith.constant 0 : index
    %63 = vector.load %arg3[%c0_42, %c0_43] : memref<1x32xf32, #tpu.memory_space<vmem>>, vector<1x32xf32>
    %64 = vector.broadcast %63 : vector<1x32xf32> to vector<72x32xf32>
    %65 = arith.addf %62, %64 : vector<72x32xf32>
    %66 = arith.truncf %65 : vector<72x32xf32> to vector<72x32xbf16>
    %c0_44 = arith.constant 0 : index
    %c0_45 = arith.constant 0 : index
    %67 = vector.load %arg4[%c0_44, %c0_45] : memref<32x32xbf16, #tpu.memory_space<vmem>>, vector<32x32xbf16>
    %cst_46 = arith.constant dense<0.000000e+00> : vector<72x32xf32>
    %68 = tpu.matmul %66, %67, %cst_46 {dimension_numbers = #tpu.dot_dimension_numbers<[1], [0], [0], [1], [0, 0, 1, 1], [], []>} : vector<72x32xbf16>, vector<32x32xbf16>, vector<72x32xf32> -> vector<72x32xf32>
    %c0_47 = arith.constant 0 : index
    %c0_48 = arith.constant 0 : index
    %69 = vector.load %arg5[%c0_47, %c0_48] : memref<1x32xf32, #tpu.memory_space<vmem>>, vector<1x32xf32>
    %70 = vector.broadcast %69 : vector<1x32xf32> to vector<72x32xf32>
    %71 = arith.addf %68, %70 : vector<72x32xf32>
    %cst_49 = arith.constant 0.000000e+00 : f32
    %72 = vector.broadcast %cst_49 : f32 to vector<72x32xf32>
    %73 = arith.maximumf %71, %72 : vector<72x32xf32>
    %c0_50 = arith.constant 0 : index
    %c0_51 = arith.constant 0 : index
    %74 = vector.load %arg12[%c0_50, %c0_51] : memref<72x32xf32, #tpu.memory_space<vmem>>, vector<72x32xf32>
    tpu.vector_store %arg12[%c0_50, %c0_51], %73 {strides = array<i32>} : memref<72x32xf32, #tpu.memory_space<vmem>>, vector<72x32xf32>,
    %75 = arith.truncf %3 : vector<72x32xf32> to vector<72x32xbf16>
    %c0_52 = arith.constant 0 : index
    %c0_53 = arith.constant 0 : index
    %76 = vector.load %arg6[%c0_52, %c0_53] : memref<32x32xbf16, #tpu.memory_space<vmem>>, vector<32x32xbf16>
    %cst_54 = arith.constant dense<0.000000e+00> : vector<72x32xf32>
    %77 = tpu.matmul %75, %76, %cst_54 {dimension_numbers = #tpu.dot_dimension_numbers<[1], [0], [0], [1], [0, 0, 1, 1], [], []>} : vector<72x32xbf16>, vector<32x32xbf16>, vector<72x32xf32> -> vector<72x32xf32>
    %c0_55 = arith.constant 0 : index
    %c0_56 = arith.constant 0 : index
    %78 = vector.load %arg7[%c0_55, %c0_56] : memref<1x32xf32, #tpu.memory_space<vmem>>, vector<1x32xf32>
    %79 = vector.broadcast %78 : vector<1x32xf32> to vector<72x32xf32>
    %80 = arith.addf %77, %79 : vector<72x32xf32>
    %cst_57 = arith.constant 0.000000e+00 : f32
    %81 = vector.broadcast %cst_57 : f32 to vector<72x32xf32>
    %82 = arith.maximumf %80, %81 : vector<72x32xf32>
    %83 = vector.broadcast %0 : vector<72x1xf32> to vector<72x32xf32>
    %84 = arith.mulf %82, %83 : vector<72x32xf32>
    %cst_58 = arith.constant 0.000000e+00 : f32
    %85 = vector.broadcast %cst_58 : f32 to vector<8x32xf32>
    %c0_59 = arith.constant 0 : index
    %c0_60 = arith.constant 0 : index
    %86 = vector.load %arg15[%c0_59, %c0_60] : memref<88x32xf32, #tpu.memory_space<vmem>>, vector<8x32xf32>
    tpu.vector_store %arg15[%c0_59, %c0_60], %85 {strides = array<i32>} : memref<88x32xf32, #tpu.memory_space<vmem>>, vector<8x32xf32>,
    %c80_61 = arith.constant 80 : index
    %c0_62 = arith.constant 0 : index
    %87 = vector.load %arg15[%c80_61, %c0_62] : memref<88x32xf32, #tpu.memory_space<vmem>>, vector<8x32xf32>
    tpu.vector_store %arg15[%c80_61, %c0_62], %85 {strides = array<i32>} : memref<88x32xf32, #tpu.memory_space<vmem>>, vector<8x32xf32>,
    %c8_63 = arith.constant 8 : index
    %c0_64 = arith.constant 0 : index
    %88 = vector.load %arg15[%c8_63, %c0_64] : memref<88x32xf32, #tpu.memory_space<vmem>>, vector<72x32xf32>
    tpu.vector_store %arg15[%c8_63, %c0_64], %84 {strides = array<i32>} : memref<88x32xf32, #tpu.memory_space<vmem>>, vector<72x32xf32>,
    %cst_65 = arith.constant 0.000000e+00 : f32
    %89 = vector.broadcast %cst_65 : f32 to vector<72x32xf32>
    %c1_66 = arith.constant 1 : index
    %c0_67 = arith.constant 0 : index
    %90 = vector.load %arg15[%c1_66, %c0_67] : memref<88x32xf32, #tpu.memory_space<vmem>>, vector<72x32xf32>
    %c0_68 = arith.constant 0 : index
    %c0_69 = arith.constant 0 : index
    %c0_70 = arith.constant 0 : index
    %91 = vector.load %arg8[%c0_68, %c0_69, %c0_70] : memref<9x1x32xf32, #tpu.memory_space<vmem>>, vector<1x1x32xf32>
    %92 = vector.shape_cast %91 : vector<1x1x32xf32> to vector<1x32xf32>
    %93 = vector.broadcast %92 : vector<1x32xf32> to vector<72x32xf32>
    %94 = arith.mulf %90, %93 : vector<72x32xf32>
    %95 = arith.addf %89, %94 : vector<72x32xf32>
    %c2_71 = arith.constant 2 : index
    %c0_72 = arith.constant 0 : index
    %96 = vector.load %arg15[%c2_71, %c0_72] : memref<88x32xf32, #tpu.memory_space<vmem>>, vector<72x32xf32>
    %c1_73 = arith.constant 1 : index
    %c0_74 = arith.constant 0 : index
    %c0_75 = arith.constant 0 : index
    %97 = vector.load %arg8[%c1_73, %c0_74, %c0_75] : memref<9x1x32xf32, #tpu.memory_space<vmem>>, vector<1x1x32xf32>
    %98 = vector.shape_cast %97 : vector<1x1x32xf32> to vector<1x32xf32>
    %99 = vector.broadcast %98 : vector<1x32xf32> to vector<72x32xf32>
    %100 = arith.mulf %96, %99 : vector<72x32xf32>
    %101 = arith.addf %95, %100 : vector<72x32xf32>
    %c3_76 = arith.constant 3 : index
    %c0_77 = arith.constant 0 : index
    %102 = vector.load %arg15[%c3_76, %c0_77] : memref<88x32xf32, #tpu.memory_space<vmem>>, vector<72x32xf32>
    %c2_78 = arith.constant 2 : index
    %c0_79 = arith.constant 0 : index
    %c0_80 = arith.constant 0 : index
    %103 = vector.load %arg8[%c2_78, %c0_79, %c0_80] : memref<9x1x32xf32, #tpu.memory_space<vmem>>, vector<1x1x32xf32>
    %104 = vector.shape_cast %103 : vector<1x1x32xf32> to vector<1x32xf32>
    %105 = vector.broadcast %104 : vector<1x32xf32> to vector<72x32xf32>
    %106 = arith.mulf %102, %105 : vector<72x32xf32>
    %107 = arith.addf %101, %106 : vector<72x32xf32>
    %c7_81 = arith.constant 7 : index
    %c0_82 = arith.constant 0 : index
    %108 = vector.load %arg15[%c7_81, %c0_82] : memref<88x32xf32, #tpu.memory_space<vmem>>, vector<72x32xf32>
    %c3_83 = arith.constant 3 : index
    %c0_84 = arith.constant 0 : index
    %c0_85 = arith.constant 0 : index
    %109 = vector.load %arg8[%c3_83, %c0_84, %c0_85] : memref<9x1x32xf32, #tpu.memory_space<vmem>>, vector<1x1x32xf32>
    %110 = vector.shape_cast %109 : vector<1x1x32xf32> to vector<1x32xf32>
    %111 = vector.broadcast %110 : vector<1x32xf32> to vector<72x32xf32>
    %112 = arith.mulf %108, %111 : vector<72x32xf32>
    %113 = arith.addf %107, %112 : vector<72x32xf32>
    %c8_86 = arith.constant 8 : index
    %c0_87 = arith.constant 0 : index
    %114 = vector.load %arg15[%c8_86, %c0_87] : memref<88x32xf32, #tpu.memory_space<vmem>>, vector<72x32xf32>
    %c4_88 = arith.constant 4 : index
    %c0_89 = arith.constant 0 : index
    %c0_90 = arith.constant 0 : index
    %115 = vector.load %arg8[%c4_88, %c0_89, %c0_90] : memref<9x1x32xf32, #tpu.memory_space<vmem>>, vector<1x1x32xf32>
    %116 = vector.shape_cast %115 : vector<1x1x32xf32> to vector<1x32xf32>
    %117 = vector.broadcast %116 : vector<1x32xf32> to vector<72x32xf32>
    %118 = arith.mulf %114, %117 : vector<72x32xf32>
    %119 = arith.addf %113, %118 : vector<72x32xf32>
    %c9_91 = arith.constant 9 : index
    %c0_92 = arith.constant 0 : index
    %120 = vector.load %arg15[%c9_91, %c0_92] : memref<88x32xf32, #tpu.memory_space<vmem>>, vector<72x32xf32>
    %c5_93 = arith.constant 5 : index
    %c0_94 = arith.constant 0 : index
    %c0_95 = arith.constant 0 : index
    %121 = vector.load %arg8[%c5_93, %c0_94, %c0_95] : memref<9x1x32xf32, #tpu.memory_space<vmem>>, vector<1x1x32xf32>
    %122 = vector.shape_cast %121 : vector<1x1x32xf32> to vector<1x32xf32>
    %123 = vector.broadcast %122 : vector<1x32xf32> to vector<72x32xf32>
    %124 = arith.mulf %120, %123 : vector<72x32xf32>
    %125 = arith.addf %119, %124 : vector<72x32xf32>
    %c13_96 = arith.constant 13 : index
    %c0_97 = arith.constant 0 : index
    %126 = vector.load %arg15[%c13_96, %c0_97] : memref<88x32xf32, #tpu.memory_space<vmem>>, vector<72x32xf32>
    %c6_98 = arith.constant 6 : index
    %c0_99 = arith.constant 0 : index
    %c0_100 = arith.constant 0 : index
    %127 = vector.load %arg8[%c6_98, %c0_99, %c0_100] : memref<9x1x32xf32, #tpu.memory_space<vmem>>, vector<1x1x32xf32>
    %128 = vector.shape_cast %127 : vector<1x1x32xf32> to vector<1x32xf32>
    %129 = vector.broadcast %128 : vector<1x32xf32> to vector<72x32xf32>
    %130 = arith.mulf %126, %129 : vector<72x32xf32>
    %131 = arith.addf %125, %130 : vector<72x32xf32>
    %c14_101 = arith.constant 14 : index
    %c0_102 = arith.constant 0 : index
    %132 = vector.load %arg15[%c14_101, %c0_102] : memref<88x32xf32, #tpu.memory_space<vmem>>, vector<72x32xf32>
    %c7_103 = arith.constant 7 : index
    %c0_104 = arith.constant 0 : index
    %c0_105 = arith.constant 0 : index
    %133 = vector.load %arg8[%c7_103, %c0_104, %c0_105] : memref<9x1x32xf32, #tpu.memory_space<vmem>>, vector<1x1x32xf32>
    %134 = vector.shape_cast %133 : vector<1x1x32xf32> to vector<1x32xf32>
    %135 = vector.broadcast %134 : vector<1x32xf32> to vector<72x32xf32>
    %136 = arith.mulf %132, %135 : vector<72x32xf32>
    %137 = arith.addf %131, %136 : vector<72x32xf32>
    %c15_106 = arith.constant 15 : index
    %c0_107 = arith.constant 0 : index
    %138 = vector.load %arg15[%c15_106, %c0_107] : memref<88x32xf32, #tpu.memory_space<vmem>>, vector<72x32xf32>
    %c8_108 = arith.constant 8 : index
    %c0_109 = arith.constant 0 : index
    %c0_110 = arith.constant 0 : index
    %139 = vector.load %arg8[%c8_108, %c0_109, %c0_110] : memref<9x1x32xf32, #tpu.memory_space<vmem>>, vector<1x1x32xf32>
    %140 = vector.shape_cast %139 : vector<1x1x32xf32> to vector<1x32xf32>
    %141 = vector.broadcast %140 : vector<1x32xf32> to vector<72x32xf32>
    %142 = arith.mulf %138, %141 : vector<72x32xf32>
    %143 = arith.addf %137, %142 : vector<72x32xf32>
    %c0_111 = arith.constant 0 : index
    %c0_112 = arith.constant 0 : index
    %144 = vector.load %arg9[%c0_111, %c0_112] : memref<1x32xf32, #tpu.memory_space<vmem>>, vector<1x32xf32>
    %145 = vector.broadcast %144 : vector<1x32xf32> to vector<72x32xf32>
    %146 = arith.addf %143, %145 : vector<72x32xf32>
    %147 = arith.truncf %146 : vector<72x32xf32> to vector<72x32xbf16>
    %c0_113 = arith.constant 0 : index
    %c0_114 = arith.constant 0 : index
    %148 = vector.load %arg10[%c0_113, %c0_114] : memref<32x32xbf16, #tpu.memory_space<vmem>>, vector<32x32xbf16>
    %cst_115 = arith.constant dense<0.000000e+00> : vector<72x32xf32>
    %149 = tpu.matmul %147, %148, %cst_115 {dimension_numbers = #tpu.dot_dimension_numbers<[1], [0], [0], [1], [0, 0, 1, 1], [], []>} : vector<72x32xbf16>, vector<32x32xbf16>, vector<72x32xf32> -> vector<72x32xf32>
    %c0_116 = arith.constant 0 : index
    %c0_117 = arith.constant 0 : index
    %150 = vector.load %arg11[%c0_116, %c0_117] : memref<1x32xf32, #tpu.memory_space<vmem>>, vector<1x32xf32>
    %151 = vector.broadcast %150 : vector<1x32xf32> to vector<72x32xf32>
    %152 = arith.addf %149, %151 : vector<72x32xf32>
    %cst_118 = arith.constant 0.000000e+00 : f32
    %153 = vector.broadcast %cst_118 : f32 to vector<72x32xf32>
    %154 = arith.maximumf %152, %153 : vector<72x32xf32>
    %c0_119 = arith.constant 0 : index
    %c0_120 = arith.constant 0 : index
    %155 = vector.load %arg13[%c0_119, %c0_120] : memref<72x32xf32, #tpu.memory_space<vmem>>, vector<72x32xf32>
    tpu.vector_store %arg13[%c0_119, %c0_120], %154 {strides = array<i32>} : memref<72x32xf32, #tpu.memory_space<vmem>>, vector<72x32xf32>,
    return
  }
}

module attributes {stable_mosaic.version = 11 : i64} {
  func.func @_basic_unit_kernel(%arg0: memref<72x16xf32, #tpu.memory_space<vmem>>, %arg1: memref<72x1xf32, #tpu.memory_space<vmem>>, %arg2: memref<16x16xbf16, #tpu.memory_space<vmem>>, %arg3: memref<1x16xf32, #tpu.memory_space<vmem>>, %arg4: memref<9x1x16xf32, #tpu.memory_space<vmem>>, %arg5: memref<1x16xf32, #tpu.memory_space<vmem>>, %arg6: memref<16x16xbf16, #tpu.memory_space<vmem>>, %arg7: memref<1x16xf32, #tpu.memory_space<vmem>>, %arg8: memref<72x16xf32, #tpu.memory_space<vmem>>, %arg9: memref<88x16xf32, #tpu.memory_space<vmem>>) attributes {dimension_semantics = [], scalar_prefetch = 0 : i64, scratch_operands = 1 : i64, tpu.core_type = #tpu.core_type<tc>} {
    %c0 = arith.constant 0 : index
    %c0_0 = arith.constant 0 : index
    %0 = vector.load %arg1[%c0, %c0_0] : memref<72x1xf32, #tpu.memory_space<vmem>>, vector<72x1xf32>
    %c0_1 = arith.constant 0 : index
    %c0_2 = arith.constant 0 : index
    %1 = vector.load %arg0[%c0_1, %c0_2] : memref<72x16xf32, #tpu.memory_space<vmem>>, vector<72x16xf32>
    %2 = arith.truncf %1 : vector<72x16xf32> to vector<72x16xbf16>
    %c0_3 = arith.constant 0 : index
    %c0_4 = arith.constant 0 : index
    %3 = vector.load %arg2[%c0_3, %c0_4] : memref<16x16xbf16, #tpu.memory_space<vmem>>, vector<16x16xbf16>
    %cst = arith.constant dense<0.000000e+00> : vector<72x16xf32>
    %4 = tpu.matmul %2, %3, %cst {dimension_numbers = #tpu.dot_dimension_numbers<[1], [0], [0], [1], [0, 0, 1, 1], [], []>} : vector<72x16xbf16>, vector<16x16xbf16>, vector<72x16xf32> -> vector<72x16xf32>
    %c0_5 = arith.constant 0 : index
    %c0_6 = arith.constant 0 : index
    %5 = vector.load %arg3[%c0_5, %c0_6] : memref<1x16xf32, #tpu.memory_space<vmem>>, vector<1x16xf32>
    %6 = vector.broadcast %5 : vector<1x16xf32> to vector<72x16xf32>
    %7 = arith.addf %4, %6 : vector<72x16xf32>
    %cst_7 = arith.constant 0.000000e+00 : f32
    %8 = vector.broadcast %cst_7 : f32 to vector<72x16xf32>
    %9 = arith.maximumf %7, %8 : vector<72x16xf32>
    %10 = vector.broadcast %0 : vector<72x1xf32> to vector<72x16xf32>
    %11 = arith.mulf %9, %10 : vector<72x16xf32>
    %cst_8 = arith.constant 0.000000e+00 : f32
    %12 = vector.broadcast %cst_8 : f32 to vector<8x16xf32>
    %c0_9 = arith.constant 0 : index
    %c0_10 = arith.constant 0 : index
    %13 = vector.load %arg9[%c0_9, %c0_10] : memref<88x16xf32, #tpu.memory_space<vmem>>, vector<8x16xf32>
    tpu.vector_store %arg9[%c0_9, %c0_10], %12 {strides = array<i32>} : memref<88x16xf32, #tpu.memory_space<vmem>>, vector<8x16xf32>,
    %c80 = arith.constant 80 : index
    %c0_11 = arith.constant 0 : index
    %14 = vector.load %arg9[%c80, %c0_11] : memref<88x16xf32, #tpu.memory_space<vmem>>, vector<8x16xf32>
    tpu.vector_store %arg9[%c80, %c0_11], %12 {strides = array<i32>} : memref<88x16xf32, #tpu.memory_space<vmem>>, vector<8x16xf32>,
    %c8 = arith.constant 8 : index
    %c0_12 = arith.constant 0 : index
    %15 = vector.load %arg9[%c8, %c0_12] : memref<88x16xf32, #tpu.memory_space<vmem>>, vector<72x16xf32>
    tpu.vector_store %arg9[%c8, %c0_12], %11 {strides = array<i32>} : memref<88x16xf32, #tpu.memory_space<vmem>>, vector<72x16xf32>,
    %cst_13 = arith.constant 0.000000e+00 : f32
    %16 = vector.broadcast %cst_13 : f32 to vector<72x16xf32>
    %c1 = arith.constant 1 : index
    %c0_14 = arith.constant 0 : index
    %17 = vector.load %arg9[%c1, %c0_14] : memref<88x16xf32, #tpu.memory_space<vmem>>, vector<72x16xf32>
    %c0_15 = arith.constant 0 : index
    %c0_16 = arith.constant 0 : index
    %c0_17 = arith.constant 0 : index
    %18 = vector.load %arg4[%c0_15, %c0_16, %c0_17] : memref<9x1x16xf32, #tpu.memory_space<vmem>>, vector<1x1x16xf32>
    %19 = vector.shape_cast %18 : vector<1x1x16xf32> to vector<1x16xf32>
    %20 = vector.broadcast %19 : vector<1x16xf32> to vector<72x16xf32>
    %21 = arith.mulf %17, %20 : vector<72x16xf32>
    %22 = arith.addf %16, %21 : vector<72x16xf32>
    %c2 = arith.constant 2 : index
    %c0_18 = arith.constant 0 : index
    %23 = vector.load %arg9[%c2, %c0_18] : memref<88x16xf32, #tpu.memory_space<vmem>>, vector<72x16xf32>
    %c1_19 = arith.constant 1 : index
    %c0_20 = arith.constant 0 : index
    %c0_21 = arith.constant 0 : index
    %24 = vector.load %arg4[%c1_19, %c0_20, %c0_21] : memref<9x1x16xf32, #tpu.memory_space<vmem>>, vector<1x1x16xf32>
    %25 = vector.shape_cast %24 : vector<1x1x16xf32> to vector<1x16xf32>
    %26 = vector.broadcast %25 : vector<1x16xf32> to vector<72x16xf32>
    %27 = arith.mulf %23, %26 : vector<72x16xf32>
    %28 = arith.addf %22, %27 : vector<72x16xf32>
    %c3 = arith.constant 3 : index
    %c0_22 = arith.constant 0 : index
    %29 = vector.load %arg9[%c3, %c0_22] : memref<88x16xf32, #tpu.memory_space<vmem>>, vector<72x16xf32>
    %c2_23 = arith.constant 2 : index
    %c0_24 = arith.constant 0 : index
    %c0_25 = arith.constant 0 : index
    %30 = vector.load %arg4[%c2_23, %c0_24, %c0_25] : memref<9x1x16xf32, #tpu.memory_space<vmem>>, vector<1x1x16xf32>
    %31 = vector.shape_cast %30 : vector<1x1x16xf32> to vector<1x16xf32>
    %32 = vector.broadcast %31 : vector<1x16xf32> to vector<72x16xf32>
    %33 = arith.mulf %29, %32 : vector<72x16xf32>
    %34 = arith.addf %28, %33 : vector<72x16xf32>
    %c7 = arith.constant 7 : index
    %c0_26 = arith.constant 0 : index
    %35 = vector.load %arg9[%c7, %c0_26] : memref<88x16xf32, #tpu.memory_space<vmem>>, vector<72x16xf32>
    %c3_27 = arith.constant 3 : index
    %c0_28 = arith.constant 0 : index
    %c0_29 = arith.constant 0 : index
    %36 = vector.load %arg4[%c3_27, %c0_28, %c0_29] : memref<9x1x16xf32, #tpu.memory_space<vmem>>, vector<1x1x16xf32>
    %37 = vector.shape_cast %36 : vector<1x1x16xf32> to vector<1x16xf32>
    %38 = vector.broadcast %37 : vector<1x16xf32> to vector<72x16xf32>
    %39 = arith.mulf %35, %38 : vector<72x16xf32>
    %40 = arith.addf %34, %39 : vector<72x16xf32>
    %c8_30 = arith.constant 8 : index
    %c0_31 = arith.constant 0 : index
    %41 = vector.load %arg9[%c8_30, %c0_31] : memref<88x16xf32, #tpu.memory_space<vmem>>, vector<72x16xf32>
    %c4 = arith.constant 4 : index
    %c0_32 = arith.constant 0 : index
    %c0_33 = arith.constant 0 : index
    %42 = vector.load %arg4[%c4, %c0_32, %c0_33] : memref<9x1x16xf32, #tpu.memory_space<vmem>>, vector<1x1x16xf32>
    %43 = vector.shape_cast %42 : vector<1x1x16xf32> to vector<1x16xf32>
    %44 = vector.broadcast %43 : vector<1x16xf32> to vector<72x16xf32>
    %45 = arith.mulf %41, %44 : vector<72x16xf32>
    %46 = arith.addf %40, %45 : vector<72x16xf32>
    %c9 = arith.constant 9 : index
    %c0_34 = arith.constant 0 : index
    %47 = vector.load %arg9[%c9, %c0_34] : memref<88x16xf32, #tpu.memory_space<vmem>>, vector<72x16xf32>
    %c5 = arith.constant 5 : index
    %c0_35 = arith.constant 0 : index
    %c0_36 = arith.constant 0 : index
    %48 = vector.load %arg4[%c5, %c0_35, %c0_36] : memref<9x1x16xf32, #tpu.memory_space<vmem>>, vector<1x1x16xf32>
    %49 = vector.shape_cast %48 : vector<1x1x16xf32> to vector<1x16xf32>
    %50 = vector.broadcast %49 : vector<1x16xf32> to vector<72x16xf32>
    %51 = arith.mulf %47, %50 : vector<72x16xf32>
    %52 = arith.addf %46, %51 : vector<72x16xf32>
    %c13 = arith.constant 13 : index
    %c0_37 = arith.constant 0 : index
    %53 = vector.load %arg9[%c13, %c0_37] : memref<88x16xf32, #tpu.memory_space<vmem>>, vector<72x16xf32>
    %c6 = arith.constant 6 : index
    %c0_38 = arith.constant 0 : index
    %c0_39 = arith.constant 0 : index
    %54 = vector.load %arg4[%c6, %c0_38, %c0_39] : memref<9x1x16xf32, #tpu.memory_space<vmem>>, vector<1x1x16xf32>
    %55 = vector.shape_cast %54 : vector<1x1x16xf32> to vector<1x16xf32>
    %56 = vector.broadcast %55 : vector<1x16xf32> to vector<72x16xf32>
    %57 = arith.mulf %53, %56 : vector<72x16xf32>
    %58 = arith.addf %52, %57 : vector<72x16xf32>
    %c14 = arith.constant 14 : index
    %c0_40 = arith.constant 0 : index
    %59 = vector.load %arg9[%c14, %c0_40] : memref<88x16xf32, #tpu.memory_space<vmem>>, vector<72x16xf32>
    %c7_41 = arith.constant 7 : index
    %c0_42 = arith.constant 0 : index
    %c0_43 = arith.constant 0 : index
    %60 = vector.load %arg4[%c7_41, %c0_42, %c0_43] : memref<9x1x16xf32, #tpu.memory_space<vmem>>, vector<1x1x16xf32>
    %61 = vector.shape_cast %60 : vector<1x1x16xf32> to vector<1x16xf32>
    %62 = vector.broadcast %61 : vector<1x16xf32> to vector<72x16xf32>
    %63 = arith.mulf %59, %62 : vector<72x16xf32>
    %64 = arith.addf %58, %63 : vector<72x16xf32>
    %c15 = arith.constant 15 : index
    %c0_44 = arith.constant 0 : index
    %65 = vector.load %arg9[%c15, %c0_44] : memref<88x16xf32, #tpu.memory_space<vmem>>, vector<72x16xf32>
    %c8_45 = arith.constant 8 : index
    %c0_46 = arith.constant 0 : index
    %c0_47 = arith.constant 0 : index
    %66 = vector.load %arg4[%c8_45, %c0_46, %c0_47] : memref<9x1x16xf32, #tpu.memory_space<vmem>>, vector<1x1x16xf32>
    %67 = vector.shape_cast %66 : vector<1x1x16xf32> to vector<1x16xf32>
    %68 = vector.broadcast %67 : vector<1x16xf32> to vector<72x16xf32>
    %69 = arith.mulf %65, %68 : vector<72x16xf32>
    %70 = arith.addf %64, %69 : vector<72x16xf32>
    %c0_48 = arith.constant 0 : index
    %c0_49 = arith.constant 0 : index
    %71 = vector.load %arg5[%c0_48, %c0_49] : memref<1x16xf32, #tpu.memory_space<vmem>>, vector<1x16xf32>
    %72 = vector.broadcast %71 : vector<1x16xf32> to vector<72x16xf32>
    %73 = arith.addf %70, %72 : vector<72x16xf32>
    %74 = arith.truncf %73 : vector<72x16xf32> to vector<72x16xbf16>
    %c0_50 = arith.constant 0 : index
    %c0_51 = arith.constant 0 : index
    %75 = vector.load %arg6[%c0_50, %c0_51] : memref<16x16xbf16, #tpu.memory_space<vmem>>, vector<16x16xbf16>
    %cst_52 = arith.constant dense<0.000000e+00> : vector<72x16xf32>
    %76 = tpu.matmul %74, %75, %cst_52 {dimension_numbers = #tpu.dot_dimension_numbers<[1], [0], [0], [1], [0, 0, 1, 1], [], []>} : vector<72x16xbf16>, vector<16x16xbf16>, vector<72x16xf32> -> vector<72x16xf32>
    %c0_53 = arith.constant 0 : index
    %c0_54 = arith.constant 0 : index
    %77 = vector.load %arg7[%c0_53, %c0_54] : memref<1x16xf32, #tpu.memory_space<vmem>>, vector<1x16xf32>
    %78 = vector.broadcast %77 : vector<1x16xf32> to vector<72x16xf32>
    %79 = arith.addf %76, %78 : vector<72x16xf32>
    %cst_55 = arith.constant 0.000000e+00 : f32
    %80 = vector.broadcast %cst_55 : f32 to vector<72x16xf32>
    %81 = arith.maximumf %79, %80 : vector<72x16xf32>
    %c0_56 = arith.constant 0 : index
    %c0_57 = arith.constant 0 : index
    %82 = vector.load %arg8[%c0_56, %c0_57] : memref<72x16xf32, #tpu.memory_space<vmem>>, vector<72x16xf32>
    tpu.vector_store %arg8[%c0_56, %c0_57], %81 {strides = array<i32>} : memref<72x16xf32, #tpu.memory_space<vmem>>, vector<72x16xf32>,
    return
  }
}

module attributes {stable_mosaic.version = 11 : i64} {
  func.func @_basic_unit_kernel(%arg0: memref<32x32xf32, #tpu.memory_space<vmem>>, %arg1: memref<32x1xf32, #tpu.memory_space<vmem>>, %arg2: memref<32x32xbf16, #tpu.memory_space<vmem>>, %arg3: memref<1x32xf32, #tpu.memory_space<vmem>>, %arg4: memref<9x1x32xf32, #tpu.memory_space<vmem>>, %arg5: memref<1x32xf32, #tpu.memory_space<vmem>>, %arg6: memref<32x32xbf16, #tpu.memory_space<vmem>>, %arg7: memref<1x32xf32, #tpu.memory_space<vmem>>, %arg8: memref<32x32xf32, #tpu.memory_space<vmem>>, %arg9: memref<48x32xf32, #tpu.memory_space<vmem>>) attributes {dimension_semantics = [], scalar_prefetch = 0 : i64, scratch_operands = 1 : i64, tpu.core_type = #tpu.core_type<tc>} {
    %c0 = arith.constant 0 : index
    %c0_0 = arith.constant 0 : index
    %0 = vector.load %arg1[%c0, %c0_0] : memref<32x1xf32, #tpu.memory_space<vmem>>, vector<32x1xf32>
    %c0_1 = arith.constant 0 : index
    %c0_2 = arith.constant 0 : index
    %1 = vector.load %arg0[%c0_1, %c0_2] : memref<32x32xf32, #tpu.memory_space<vmem>>, vector<32x32xf32>
    %2 = arith.truncf %1 : vector<32x32xf32> to vector<32x32xbf16>
    %c0_3 = arith.constant 0 : index
    %c0_4 = arith.constant 0 : index
    %3 = vector.load %arg2[%c0_3, %c0_4] : memref<32x32xbf16, #tpu.memory_space<vmem>>, vector<32x32xbf16>
    %cst = arith.constant dense<0.000000e+00> : vector<32x32xf32>
    %4 = tpu.matmul %2, %3, %cst {dimension_numbers = #tpu.dot_dimension_numbers<[1], [0], [0], [1], [0, 0, 1, 1], [], []>} : vector<32x32xbf16>, vector<32x32xbf16>, vector<32x32xf32> -> vector<32x32xf32>
    %c0_5 = arith.constant 0 : index
    %c0_6 = arith.constant 0 : index
    %5 = vector.load %arg3[%c0_5, %c0_6] : memref<1x32xf32, #tpu.memory_space<vmem>>, vector<1x32xf32>
    %6 = vector.broadcast %5 : vector<1x32xf32> to vector<32x32xf32>
    %7 = arith.addf %4, %6 : vector<32x32xf32>
    %cst_7 = arith.constant 0.000000e+00 : f32
    %8 = vector.broadcast %cst_7 : f32 to vector<32x32xf32>
    %9 = arith.maximumf %7, %8 : vector<32x32xf32>
    %10 = vector.broadcast %0 : vector<32x1xf32> to vector<32x32xf32>
    %11 = arith.mulf %9, %10 : vector<32x32xf32>
    %cst_8 = arith.constant 0.000000e+00 : f32
    %12 = vector.broadcast %cst_8 : f32 to vector<8x32xf32>
    %c0_9 = arith.constant 0 : index
    %c0_10 = arith.constant 0 : index
    %13 = vector.load %arg9[%c0_9, %c0_10] : memref<48x32xf32, #tpu.memory_space<vmem>>, vector<8x32xf32>
    tpu.vector_store %arg9[%c0_9, %c0_10], %12 {strides = array<i32>} : memref<48x32xf32, #tpu.memory_space<vmem>>, vector<8x32xf32>,
    %c40 = arith.constant 40 : index
    %c0_11 = arith.constant 0 : index
    %14 = vector.load %arg9[%c40, %c0_11] : memref<48x32xf32, #tpu.memory_space<vmem>>, vector<8x32xf32>
    tpu.vector_store %arg9[%c40, %c0_11], %12 {strides = array<i32>} : memref<48x32xf32, #tpu.memory_space<vmem>>, vector<8x32xf32>,
    %c8 = arith.constant 8 : index
    %c0_12 = arith.constant 0 : index
    %15 = vector.load %arg9[%c8, %c0_12] : memref<48x32xf32, #tpu.memory_space<vmem>>, vector<32x32xf32>
    tpu.vector_store %arg9[%c8, %c0_12], %11 {strides = array<i32>} : memref<48x32xf32, #tpu.memory_space<vmem>>, vector<32x32xf32>,
    %cst_13 = arith.constant 0.000000e+00 : f32
    %16 = vector.broadcast %cst_13 : f32 to vector<32x32xf32>
    %c3 = arith.constant 3 : index
    %c0_14 = arith.constant 0 : index
    %17 = vector.load %arg9[%c3, %c0_14] : memref<48x32xf32, #tpu.memory_space<vmem>>, vector<32x32xf32>
    %c0_15 = arith.constant 0 : index
    %c0_16 = arith.constant 0 : index
    %c0_17 = arith.constant 0 : index
    %18 = vector.load %arg4[%c0_15, %c0_16, %c0_17] : memref<9x1x32xf32, #tpu.memory_space<vmem>>, vector<1x1x32xf32>
    %19 = vector.shape_cast %18 : vector<1x1x32xf32> to vector<1x32xf32>
    %20 = vector.broadcast %19 : vector<1x32xf32> to vector<32x32xf32>
    %21 = arith.mulf %17, %20 : vector<32x32xf32>
    %22 = arith.addf %16, %21 : vector<32x32xf32>
    %c4 = arith.constant 4 : index
    %c0_18 = arith.constant 0 : index
    %23 = vector.load %arg9[%c4, %c0_18] : memref<48x32xf32, #tpu.memory_space<vmem>>, vector<32x32xf32>
    %c1 = arith.constant 1 : index
    %c0_19 = arith.constant 0 : index
    %c0_20 = arith.constant 0 : index
    %24 = vector.load %arg4[%c1, %c0_19, %c0_20] : memref<9x1x32xf32, #tpu.memory_space<vmem>>, vector<1x1x32xf32>
    %25 = vector.shape_cast %24 : vector<1x1x32xf32> to vector<1x32xf32>
    %26 = vector.broadcast %25 : vector<1x32xf32> to vector<32x32xf32>
    %27 = arith.mulf %23, %26 : vector<32x32xf32>
    %28 = arith.addf %22, %27 : vector<32x32xf32>
    %c5 = arith.constant 5 : index
    %c0_21 = arith.constant 0 : index
    %29 = vector.load %arg9[%c5, %c0_21] : memref<48x32xf32, #tpu.memory_space<vmem>>, vector<32x32xf32>
    %c2 = arith.constant 2 : index
    %c0_22 = arith.constant 0 : index
    %c0_23 = arith.constant 0 : index
    %30 = vector.load %arg4[%c2, %c0_22, %c0_23] : memref<9x1x32xf32, #tpu.memory_space<vmem>>, vector<1x1x32xf32>
    %31 = vector.shape_cast %30 : vector<1x1x32xf32> to vector<1x32xf32>
    %32 = vector.broadcast %31 : vector<1x32xf32> to vector<32x32xf32>
    %33 = arith.mulf %29, %32 : vector<32x32xf32>
    %34 = arith.addf %28, %33 : vector<32x32xf32>
    %c7 = arith.constant 7 : index
    %c0_24 = arith.constant 0 : index
    %35 = vector.load %arg9[%c7, %c0_24] : memref<48x32xf32, #tpu.memory_space<vmem>>, vector<32x32xf32>
    %c3_25 = arith.constant 3 : index
    %c0_26 = arith.constant 0 : index
    %c0_27 = arith.constant 0 : index
    %36 = vector.load %arg4[%c3_25, %c0_26, %c0_27] : memref<9x1x32xf32, #tpu.memory_space<vmem>>, vector<1x1x32xf32>
    %37 = vector.shape_cast %36 : vector<1x1x32xf32> to vector<1x32xf32>
    %38 = vector.broadcast %37 : vector<1x32xf32> to vector<32x32xf32>
    %39 = arith.mulf %35, %38 : vector<32x32xf32>
    %40 = arith.addf %34, %39 : vector<32x32xf32>
    %c8_28 = arith.constant 8 : index
    %c0_29 = arith.constant 0 : index
    %41 = vector.load %arg9[%c8_28, %c0_29] : memref<48x32xf32, #tpu.memory_space<vmem>>, vector<32x32xf32>
    %c4_30 = arith.constant 4 : index
    %c0_31 = arith.constant 0 : index
    %c0_32 = arith.constant 0 : index
    %42 = vector.load %arg4[%c4_30, %c0_31, %c0_32] : memref<9x1x32xf32, #tpu.memory_space<vmem>>, vector<1x1x32xf32>
    %43 = vector.shape_cast %42 : vector<1x1x32xf32> to vector<1x32xf32>
    %44 = vector.broadcast %43 : vector<1x32xf32> to vector<32x32xf32>
    %45 = arith.mulf %41, %44 : vector<32x32xf32>
    %46 = arith.addf %40, %45 : vector<32x32xf32>
    %c9 = arith.constant 9 : index
    %c0_33 = arith.constant 0 : index
    %47 = vector.load %arg9[%c9, %c0_33] : memref<48x32xf32, #tpu.memory_space<vmem>>, vector<32x32xf32>
    %c5_34 = arith.constant 5 : index
    %c0_35 = arith.constant 0 : index
    %c0_36 = arith.constant 0 : index
    %48 = vector.load %arg4[%c5_34, %c0_35, %c0_36] : memref<9x1x32xf32, #tpu.memory_space<vmem>>, vector<1x1x32xf32>
    %49 = vector.shape_cast %48 : vector<1x1x32xf32> to vector<1x32xf32>
    %50 = vector.broadcast %49 : vector<1x32xf32> to vector<32x32xf32>
    %51 = arith.mulf %47, %50 : vector<32x32xf32>
    %52 = arith.addf %46, %51 : vector<32x32xf32>
    %c11 = arith.constant 11 : index
    %c0_37 = arith.constant 0 : index
    %53 = vector.load %arg9[%c11, %c0_37] : memref<48x32xf32, #tpu.memory_space<vmem>>, vector<32x32xf32>
    %c6 = arith.constant 6 : index
    %c0_38 = arith.constant 0 : index
    %c0_39 = arith.constant 0 : index
    %54 = vector.load %arg4[%c6, %c0_38, %c0_39] : memref<9x1x32xf32, #tpu.memory_space<vmem>>, vector<1x1x32xf32>
    %55 = vector.shape_cast %54 : vector<1x1x32xf32> to vector<1x32xf32>
    %56 = vector.broadcast %55 : vector<1x32xf32> to vector<32x32xf32>
    %57 = arith.mulf %53, %56 : vector<32x32xf32>
    %58 = arith.addf %52, %57 : vector<32x32xf32>
    %c12 = arith.constant 12 : index
    %c0_40 = arith.constant 0 : index
    %59 = vector.load %arg9[%c12, %c0_40] : memref<48x32xf32, #tpu.memory_space<vmem>>, vector<32x32xf32>
    %c7_41 = arith.constant 7 : index
    %c0_42 = arith.constant 0 : index
    %c0_43 = arith.constant 0 : index
    %60 = vector.load %arg4[%c7_41, %c0_42, %c0_43] : memref<9x1x32xf32, #tpu.memory_space<vmem>>, vector<1x1x32xf32>
    %61 = vector.shape_cast %60 : vector<1x1x32xf32> to vector<1x32xf32>
    %62 = vector.broadcast %61 : vector<1x32xf32> to vector<32x32xf32>
    %63 = arith.mulf %59, %62 : vector<32x32xf32>
    %64 = arith.addf %58, %63 : vector<32x32xf32>
    %c13 = arith.constant 13 : index
    %c0_44 = arith.constant 0 : index
    %65 = vector.load %arg9[%c13, %c0_44] : memref<48x32xf32, #tpu.memory_space<vmem>>, vector<32x32xf32>
    %c8_45 = arith.constant 8 : index
    %c0_46 = arith.constant 0 : index
    %c0_47 = arith.constant 0 : index
    %66 = vector.load %arg4[%c8_45, %c0_46, %c0_47] : memref<9x1x32xf32, #tpu.memory_space<vmem>>, vector<1x1x32xf32>
    %67 = vector.shape_cast %66 : vector<1x1x32xf32> to vector<1x32xf32>
    %68 = vector.broadcast %67 : vector<1x32xf32> to vector<32x32xf32>
    %69 = arith.mulf %65, %68 : vector<32x32xf32>
    %70 = arith.addf %64, %69 : vector<32x32xf32>
    %c0_48 = arith.constant 0 : index
    %c0_49 = arith.constant 0 : index
    %71 = vector.load %arg5[%c0_48, %c0_49] : memref<1x32xf32, #tpu.memory_space<vmem>>, vector<1x32xf32>
    %72 = vector.broadcast %71 : vector<1x32xf32> to vector<32x32xf32>
    %73 = arith.addf %70, %72 : vector<32x32xf32>
    %74 = arith.truncf %73 : vector<32x32xf32> to vector<32x32xbf16>
    %c0_50 = arith.constant 0 : index
    %c0_51 = arith.constant 0 : index
    %75 = vector.load %arg6[%c0_50, %c0_51] : memref<32x32xbf16, #tpu.memory_space<vmem>>, vector<32x32xbf16>
    %cst_52 = arith.constant dense<0.000000e+00> : vector<32x32xf32>
    %76 = tpu.matmul %74, %75, %cst_52 {dimension_numbers = #tpu.dot_dimension_numbers<[1], [0], [0], [1], [0, 0, 1, 1], [], []>} : vector<32x32xbf16>, vector<32x32xbf16>, vector<32x32xf32> -> vector<32x32xf32>
    %c0_53 = arith.constant 0 : index
    %c0_54 = arith.constant 0 : index
    %77 = vector.load %arg7[%c0_53, %c0_54] : memref<1x32xf32, #tpu.memory_space<vmem>>, vector<1x32xf32>
    %78 = vector.broadcast %77 : vector<1x32xf32> to vector<32x32xf32>
    %79 = arith.addf %76, %78 : vector<32x32xf32>
    %cst_55 = arith.constant 0.000000e+00 : f32
    %80 = vector.broadcast %cst_55 : f32 to vector<32x32xf32>
    %81 = arith.maximumf %79, %80 : vector<32x32xf32>
    %c0_56 = arith.constant 0 : index
    %c0_57 = arith.constant 0 : index
    %82 = vector.load %arg8[%c0_56, %c0_57] : memref<32x32xf32, #tpu.memory_space<vmem>>, vector<32x32xf32>
    tpu.vector_store %arg8[%c0_56, %c0_57], %81 {strides = array<i32>} : memref<32x32xf32, #tpu.memory_space<vmem>>, vector<32x32xf32>,
    return
  }
}

</mosaic_0001>

<llo_original>
// kernel: shufflenetv2_backbone_fwd.14
$region0: #{shufflenetv2_backbone_fwd.14}
  #allocation0 [shape = 'u32[]', space=smem, size = 0x4, offset = 0x4, fixed_abs, tag = 'smem constant byte address 0x4 - core index']
  #allocation1 [shape = 'u32[72,128]{1,0:T(1,128)}', space=vmem, size = 0x9000, scoped, tag = 'internal scratch']
  #allocation2 [shape = 'f32[232,16]{1,0:T(8,128)}', space=vmem, size = 0x1d000, scoped, tag = 'scratch operand']
  #allocation3 [shape = 'f32[232,16]{1,0:T(8,128)}', space=vmem, size = 0x1d000, scoped, tag = 'scratch operand']
  %s0 = inlined_call_operand.vmem [shape: f32[200,16], index: 0, kind: input, shape index: {}]
  %s1 = inlined_call_operand.vmem [shape: f32[200,1], index: 1, kind: input, shape index: {}]
  %s2 = inlined_call_operand.vmem [shape: f32[9,1,16], index: 2, kind: input, shape index: {}]
  %s3 = inlined_call_operand.vmem [shape: f32[1,16], index: 3, kind: input, shape index: {}]
  %s4 = inlined_call_operand.vmem [shape: bf16[16,16], index: 4, kind: input, shape index: {}]
  %s5 = inlined_call_operand.vmem [shape: f32[1,16], index: 5, kind: input, shape index: {}]
  %s6 = inlined_call_operand.vmem [shape: bf16[16,16], index: 6, kind: input, shape index: {}]
  %s7 = inlined_call_operand.vmem [shape: f32[1,16], index: 7, kind: input, shape index: {}]
  %s8 = inlined_call_operand.vmem [shape: f32[9,1,16], index: 8, kind: input, shape index: {}]
  %s9 = inlined_call_operand.vmem [shape: f32[1,16], index: 9, kind: input, shape index: {}]
  %s10 = inlined_call_operand.vmem [shape: bf16[16,16], index: 10, kind: input, shape index: {}]
  %s11 = inlined_call_operand.vmem [shape: f32[1,16], index: 11, kind: input, shape index: {}]
  %s12 = inlined_call_operand.vmem [shape: f32[200,16], index: 12, kind: output, shape index: {0}]
  %s13 = inlined_call_operand.vmem [shape: f32[200,16], index: 13, kind: output, shape index: {1}]
  %14 = xla_tuple %s12, %s13
  %s15 = sld [smem:[#allocation0]]
  $region66: #{shufflenetv2_backbone_fwd.14} parent=0
    _
  %s17 = ssub.s32 1, %s15
  %s18 = scalar_select 0, %s17, %s15
  // Predicated region
  $region2: #{shufflenetv2_backbone_fwd.14} parent=0 // pred_check
    _
  $region3: #{shufflenetv2_backbone_fwd.14} parent=0 // pred_check_branch
    %20 = sbr.rel (0) target = $region5
  $region4: #{shufflenetv2_backbone_fwd.14} parent=0 // pred_region
    _
  $region5: #{shufflenetv2_backbone_fwd.14} parent=0 // pred_fallthru
    _
  // Predicated region
  $region6: #{shufflenetv2_backbone_fwd.14} parent=0 // pred_check
    _
  $region7: #{shufflenetv2_backbone_fwd.14} parent=0 // pred_check_branch
    %22 = sbr.rel (0) target = $region9
  $region8: #{shufflenetv2_backbone_fwd.14} parent=0 // pred_region
    _
  $region9: #{shufflenetv2_backbone_fwd.14} parent=0 // pred_fallthru
    _
  // Predicated region
  $region10: #{shufflenetv2_backbone_fwd.14} parent=0 // pred_check
    _
  $region11: #{shufflenetv2_backbone_fwd.14} parent=0 // pred_check_branch
    %24 = sbr.rel (0) target = $region13
  $region12: #{shufflenetv2_backbone_fwd.14} parent=0 // pred_region
    _
  $region13: #{shufflenetv2_backbone_fwd.14} parent=0 // pred_fallthru
    _
  // Predicated region
  $region14: #{shufflenetv2_backbone_fwd.14} parent=0 // pred_check
    _
  $region15: #{shufflenetv2_backbone_fwd.14} parent=0 // pred_check_branch
    %26 = sbr.rel (0) target = $region17
  $region16: #{shufflenetv2_backbone_fwd.14} parent=0 // pred_region
    _
  $region17: #{shufflenetv2_backbone_fwd.14} parent=0 // pred_fallthru
    _
  // Predicated region
  $region18: #{shufflenetv2_backbone_fwd.14} parent=0 // pred_check
    _
  $region19: #{shufflenetv2_backbone_fwd.14} parent=0 // pred_check_branch
    %28 = sbr.rel (0) target = $region21
  $region20: #{shufflenetv2_backbone_fwd.14} parent=0 // pred_region
    _
  $region21: #{shufflenetv2_backbone_fwd.14} parent=0 // pred_fallthru
    _
  // Predicated region
  $region22: #{shufflenetv2_backbone_fwd.14} parent=0 // pred_check
    _
  $region23: #{shufflenetv2_backbone_fwd.14} parent=0 // pred_check_branch
    %30 = sbr.rel (0) target = $region25
  $region24: #{shufflenetv2_backbone_fwd.14} parent=0 // pred_region
    _
  $region25: #{shufflenetv2_backbone_fwd.14} parent=0 // pred_fallthru
    _
  // Predicated region
  $region26: #{shufflenetv2_backbone_fwd.14} parent=0 // pred_check
    _
  $region27: #{shufflenetv2_backbone_fwd.14} parent=0 // pred_check_branch
    %32 = sbr.rel (0) target = $region29
  $region28: #{shufflenetv2_backbone_fwd.14} parent=0 // pred_region
    _
  $region29: #{shufflenetv2_backbone_fwd.14} parent=0 // pred_fallthru
    _
  // Predicated region
  $region30: #{shufflenetv2_backbone_fwd.14} parent=0 // pred_check
    _
  $region31: #{shufflenetv2_backbone_fwd.14} parent=0 // pred_check_branch
    %34 = sbr.rel (0) target = $region33
  $region32: #{shufflenetv2_backbone_fwd.14} parent=0 // pred_region
    _
  $region33: #{shufflenetv2_backbone_fwd.14} parent=0 // pred_fallthru
    _
  // Predicated region
  $region34: #{shufflenetv2_backbone_fwd.14} parent=0 // pred_check
    _
  $region35: #{shufflenetv2_backbone_fwd.14} parent=0 // pred_check_branch
    %36 = sbr.rel (0) target = $region37
  $region36: #{shufflenetv2_backbone_fwd.14} parent=0 // pred_region
    _
  $region37: #{shufflenetv2_backbone_fwd.14} parent=0 // pred_fallthru
    _
  // Predicated region
  $region38: #{shufflenetv2_backbone_fwd.14} parent=0 // pred_check
    _
  $region39: #{shufflenetv2_backbone_fwd.14} parent=0 // pred_check_branch
    %38 = sbr.rel (0) target = $region41
  $region40: #{shufflenetv2_backbone_fwd.14} parent=0 // pred_region
    _
  $region41: #{shufflenetv2_backbone_fwd.14} parent=0 // pred_fallthru
    _
  // Predicated region
  $region42: #{shufflenetv2_backbone_fwd.14} parent=0 // pred_check
    _
  $region43: #{shufflenetv2_backbone_fwd.14} parent=0 // pred_check_branch
    %40 = sbr.rel (0) target = $region45
  $region44: #{shufflenetv2_backbone_fwd.14} parent=0 // pred_region
    _
  $region45: #{shufflenetv2_backbone_fwd.14} parent=0 // pred_fallthru
    _
  // Predicated region
  $region46: #{shufflenetv2_backbone_fwd.14} parent=0 // pred_check
    _
  $region47: #{shufflenetv2_backbone_fwd.14} parent=0 // pred_check_branch
    %42 = sbr.rel (0) target = $region49
  $region48: #{shufflenetv2_backbone_fwd.14} parent=0 // pred_region
    _
  $region49: #{shufflenetv2_backbone_fwd.14} parent=0 // pred_fallthru
    _
  %v44 = vld [vmem:[%s1] sm:$0xff]
  %v45 = vld [vmem:[%s1 + $0x8] sm:$0xff]
  %v46 = vld [vmem:[%s1 + $0x10] sm:$0xff]
  %v47 = vld [vmem:[%s1 + $0x18] sm:$0xff]
  %v48 = vld [vmem:[%s1 + $0x20] sm:$0xff]
  %v49 = vld [vmem:[%s1 + $0x28] sm:$0xff]
  %v50 = vld [vmem:[%s1 + $0x30] sm:$0xff]
  %v51 = vld [vmem:[%s1 + $0x38] sm:$0xff]
  %v52 = vld [vmem:[%s1 + $0x40] sm:$0xff]
  %v53 = vld [vmem:[%s1 + $0x48] sm:$0xff]
  %v54 = vld [vmem:[%s1 + $0x50] sm:$0xff]
  %v55 = vld [vmem:[%s1 + $0x58] sm:$0xff]
  %v56 = vld [vmem:[%s1 + $0x60] sm:$0xff]
  %v57 = vld [vmem:[%s1 + $0x68] sm:$0xff]
  %v58 = vld [vmem:[%s1 + $0x70] sm:$0xff]
  %v59 = vld [vmem:[%s1 + $0x78] sm:$0xff]
  %v60 = vld [vmem:[%s1 + $0x80] sm:$0xff]
  %v61 = vld [vmem:[%s1 + $0x88] sm:$0xff]
  %v62 = vld [vmem:[%s1 + $0x90] sm:$0xff]
  %v63 = vld [vmem:[%s1 + $0x98] sm:$0xff]
  %v64 = vld [vmem:[%s1 + $0xa0] sm:$0xff]
  %v65 = vld [vmem:[%s1 + $0xa8] sm:$0xff]
  %v66 = vld [vmem:[%s1 + $0xb0] sm:$0xff]
  %v67 = vld [vmem:[%s1 + $0xb8] sm:$0xff]
  %v68 = vld [vmem:[%s1 + $0xc0] sm:$0xff]
  %v69 = vld [vmem:[%s0] sm:$0xff]
  %v70 = vld [vmem:[%s0 + $0x8] sm:$0xff]
  %v71 = vld [vmem:[%s0 + $0x10] sm:$0xff]
  %v72 = vld [vmem:[%s0 + $0x18] sm:$0xff]
  %v73 = vld [vmem:[%s0 + $0x20] sm:$0xff]
  %v74 = vld [vmem:[%s0 + $0x28] sm:$0xff]
  %v75 = vld [vmem:[%s0 + $0x30] sm:$0xff]
  %v76 = vld [vmem:[%s0 + $0x38] sm:$0xff]
  %v77 = vld [vmem:[%s0 + $0x40] sm:$0xff]
  %v78 = vld [vmem:[%s0 + $0x48] sm:$0xff]
  %v79 = vld [vmem:[%s0 + $0x50] sm:$0xff]
  %v80 = vld [vmem:[%s0 + $0x58] sm:$0xff]
  %v81 = vld [vmem:[%s0 + $0x60] sm:$0xff]
  %v82 = vld [vmem:[%s0 + $0x68] sm:$0xff]
  %v83 = vld [vmem:[%s0 + $0x70] sm:$0xff]
  %v84 = vld [vmem:[%s0 + $0x78] sm:$0xff]
  %v85 = vld [vmem:[%s0 + $0x80] sm:$0xff]
  %v86 = vld [vmem:[%s0 + $0x88] sm:$0xff]
  %v87 = vld [vmem:[%s0 + $0x90] sm:$0xff]
  %v88 = vld [vmem:[%s0 + $0x98] sm:$0xff]
  %v89 = vld [vmem:[%s0 + $0xa0] sm:$0xff]
  %v90 = vld [vmem:[%s0 + $0xa8] sm:$0xff]
  %v91 = vld [vmem:[%s0 + $0xb0] sm:$0xff]
  %v92 = vld [vmem:[%s0 + $0xb8] sm:$0xff]
  %v93 = vld [vmem:[%s0 + $0xc0] sm:$0xff]
  %95 = vset.pattern.permute.xlu0 0
  %96 = vperm.xlu0 %95, %v44
  %v97 = vpop.permute.xlu0 %96
  %100 = vset.pattern.permute.xlu0 0
  %101 = vperm.xlu0 %100, %v45
  %v102 = vpop.permute.xlu0 %101
  %105 = vset.pattern.permute.xlu0 0
  %106 = vperm.xlu0 %105, %v46
  %v107 = vpop.permute.xlu0 %106
  %110 = vset.pattern.permute.xlu0 0
  %111 = vperm.xlu0 %110, %v47
  %v112 = vpop.permute.xlu0 %111
  %115 = vset.pattern.permute.xlu0 0
  %116 = vperm.xlu0 %115, %v48
  %v117 = vpop.permute.xlu0 %116
  %120 = vset.pattern.permute.xlu0 0
  %121 = vperm.xlu0 %120, %v49
  %v122 = vpop.permute.xlu0 %121
  %125 = vset.pattern.permute.xlu0 0
  %126 = vperm.xlu0 %125, %v50
  %v127 = vpop.permute.xlu0 %126
  %130 = vset.pattern.permute.xlu0 0
  %131 = vperm.xlu0 %130, %v51
  %v132 = vpop.permute.xlu0 %131
  %135 = vset.pattern.permute.xlu0 0
  %136 = vperm.xlu0 %135, %v52
  %v137 = vpop.permute.xlu0 %136
  %140 = vset.pattern.permute.xlu0 0
  %141 = vperm.xlu0 %140, %v53
  %v142 = vpop.permute.xlu0 %141
  %145 = vset.pattern.permute.xlu0 0
  %146 = vperm.xlu0 %145, %v54
  %v147 = vpop.permute.xlu0 %146
  %150 = vset.pattern.permute.xlu0 0
  %151 = vperm.xlu0 %150, %v55
  %v152 = vpop.permute.xlu0 %151
  %155 = vset.pattern.permute.xlu0 0
  %156 = vperm.xlu0 %155, %v56
  %v157 = vpop.permute.xlu0 %156
  %160 = vset.pattern.permute.xlu0 0
  %161 = vperm.xlu0 %160, %v57
  %v162 = vpop.permute.xlu0 %161
  %165 = vset.pattern.permute.xlu0 0
  %166 = vperm.xlu0 %165, %v58
  %v167 = vpop.permute.xlu0 %166
  %170 = vset.pattern.permute.xlu0 0
  %171 = vperm.xlu0 %170, %v59
  %v172 = vpop.permute.xlu0 %171
  %175 = vset.pattern.permute.xlu0 0
  %176 = vperm.xlu0 %175, %v60
  %v177 = vpop.permute.xlu0 %176
  %180 = vset.pattern.permute.xlu0 0
  %181 = vperm.xlu0 %180, %v61
  %v182 = vpop.permute.xlu0 %181
  %185 = vset.pattern.permute.xlu0 0
  %186 = vperm.xlu0 %185, %v62
  %v187 = vpop.permute.xlu0 %186
  %190 = vset.pattern.permute.xlu0 0
  %191 = vperm.xlu0 %190, %v63
  %v192 = vpop.permute.xlu0 %191
  %195 = vset.pattern.permute.xlu0 0
  %196 = vperm.xlu0 %195, %v64
  %v197 = vpop.permute.xlu0 %196
  %200 = vset.pattern.permute.xlu0 0
  %201 = vperm.xlu0 %200, %v65
  %v202 = vpop.permute.xlu0 %201
  %205 = vset.pattern.permute.xlu0 0
  %206 = vperm.xlu0 %205, %v66
  %v207 = vpop.permute.xlu0 %206
  %210 = vset.pattern.permute.xlu0 0
  %211 = vperm.xlu0 %210, %v67
  %v212 = vpop.permute.xlu0 %211
  %215 = vset.pattern.permute.xlu0 0
  %216 = vperm.xlu0 %215, %v68
  %v217 = vpop.permute.xlu0 %216
  %v219 = vmul.f32 %v69, %v97
  %v220 = vmul.f32 %v70, %v102
  %v221 = vmul.f32 %v71, %v107
  %v222 = vmul.f32 %v72, %v112
  %v223 = vmul.f32 %v73, %v117
  %v224 = vmul.f32 %v74, %v122
  %v225 = vmul.f32 %v75, %v127
  %v226 = vmul.f32 %v76, %v132
  %v227 = vmul.f32 %v77, %v137
  %v228 = vmul.f32 %v78, %v142
  %v229 = vmul.f32 %v79, %v147
  %v230 = vmul.f32 %v80, %v152
  %v231 = vmul.f32 %v81, %v157
  %v232 = vmul.f32 %v82, %v162
  %v233 = vmul.f32 %v83, %v167
  %v234 = vmul.f32 %v84, %v172
  %v235 = vmul.f32 %v85, %v177
  %v236 = vmul.f32 %v86, %v182
  %v237 = vmul.f32 %v87, %v187
  %v238 = vmul.f32 %v88, %v192
  %v239 = vmul.f32 %v89, %v197
  %v240 = vmul.f32 %v90, %v202
  %v241 = vmul.f32 %v91, %v207
  %v242 = vmul.f32 %v92, %v212
  %v243 = vmul.f32 %v93, %v217
  %vm244 = vcmask 130048
  %245 = vst.msk [vmem:[#allocation2] sm:$0xff] %vm244, 0.0
  %246 = vst.msk [vmem:[#allocation2 + $0x8] sm:$0xff] %vm244, 0.0
  %247 = vst.msk [vmem:[#allocation2 + $0xd8] sm:$0xff] %vm244, 0.0
  %248 = vst.msk [vmem:[#allocation2 + $0xe0] sm:$0xff] %vm244, 0.0
  %249 = vst.msk [vmem:[#allocation2 + $0x10] sm:$0xff] %vm244, %v219
  %250 = vst.msk [vmem:[#allocation2 + $0x18] sm:$0xff] %vm244, %v220
  %251 = vst.msk [vmem:[#allocation2 + $0x20] sm:$0xff] %vm244, %v221
  %252 = vst.msk [vmem:[#allocation2 + $0x28] sm:$0xff] %vm244, %v222
  %253 = vst.msk [vmem:[#allocation2 + $0x30] sm:$0xff] %vm244, %v223
  %254 = vst.msk [vmem:[#allocation2 + $0x38] sm:$0xff] %vm244, %v224
  %255 = vst.msk [vmem:[#allocation2 + $0x40] sm:$0xff] %vm244, %v225
  %256 = vst.msk [vmem:[#allocation2 + $0x48] sm:$0xff] %vm244, %v226
  %257 = vst.msk [vmem:[#allocation2 + $0x50] sm:$0xff] %vm244, %v227
  %258 = vst.msk [vmem:[#allocation2 + $0x58] sm:$0xff] %vm244, %v228
  %259 = vst.msk [vmem:[#allocation2 + $0x60] sm:$0xff] %vm244, %v229
  %260 = vst.msk [vmem:[#allocation2 + $0x68] sm:$0xff] %vm244, %v230
  %261 = vst.msk [vmem:[#allocation2 + $0x70] sm:$0xff] %vm244, %v231
  %262 = vst.msk [vmem:[#allocation2 + $0x78] sm:$0xff] %vm244, %v232
  %263 = vst.msk [vmem:[#allocation2 + $0x80] sm:$0xff] %vm244, %v233
  %264 = vst.msk [vmem:[#allocation2 + $0x88] sm:$0xff] %vm244, %v234
  %265 = vst.msk [vmem:[#allocation2 + $0x90] sm:$0xff] %vm244, %v235
  %266 = vst.msk [vmem:[#allocation2 + $0x98] sm:$0xff] %vm244, %v236
  %267 = vst.msk [vmem:[#allocation2 + $0xa0] sm:$0xff] %vm244, %v237
  %268 = vst.msk [vmem:[#allocation2 + $0xa8] sm:$0xff] %vm244, %v238
  %269 = vst.msk [vmem:[#allocation2 + $0xb0] sm:$0xff] %vm244, %v239
  %270 = vst.msk [vmem:[#allocation2 + $0xb8] sm:$0xff] %vm244, %v240
  %271 = vst.msk [vmem:[#allocation2 + $0xc0] sm:$0xff] %vm244, %v241
  %272 = vst.msk [vmem:[#allocation2 + $0xc8] sm:$0xff] %vm244, %v242
  %273 = vst.msk [vmem:[#allocation2 + $0xd0] sm:$0xff] %vm244, %v243
  %v274 = vld [vmem:[#allocation2 + $0x5] sm:$0xff]
  %v275 = vld [vmem:[#allocation2 + $0xd] sm:$0xff]
  %v276 = vld [vmem:[#allocation2 + $0x15] sm:$0xff]
  %v277 = vld [vmem:[#allocation2 + $0x1d] sm:$0xff]
  %v278 = vld [vmem:[#allocation2 + $0x25] sm:$0xff]
  %v279 = vld [vmem:[#allocation2 + $0x2d] sm:$0xff]
  %v280 = vld [vmem:[#allocation2 + $0x35] sm:$0xff]
  %v281 = vld [vmem:[#allocation2 + $0x3d] sm:$0xff]
  %v282 = vld [vmem:[#allocation2 + $0x45] sm:$0xff]
  %v283 = vld [vmem:[#allocation2 + $0x4d] sm:$0xff]
  %v284 = vld [vmem:[#allocation2 + $0x55] sm:$0xff]
  %v285 = vld [vmem:[#allocation2 + $0x5d] sm:$0xff]
  %v286 = vld [vmem:[#allocation2 + $0x65] sm:$0xff]
  %v287 = vld [vmem:[#allocation2 + $0x6d] sm:$0xff]
  %v288 = vld [vmem:[#allocation2 + $0x75] sm:$0xff]
  %v289 = vld [vmem:[#allocation2 + $0x7d] sm:$0xff]
  %v290 = vld [vmem:[#allocation2 + $0x85] sm:$0xff]
  %v291 = vld [vmem:[#allocation2 + $0x8d] sm:$0xff]
  %v292 = vld [vmem:[#allocation2 + $0x95] sm:$0xff]
  %v293 = vld [vmem:[#allocation2 + $0x9d] sm:$0xff]
  %v294 = vld [vmem:[#allocation2 + $0xa5] sm:$0xff]
  %v295 = vld [vmem:[#allocation2 + $0xad] sm:$0xff]
  %v296 = vld [vmem:[#allocation2 + $0xb5] sm:$0xff]
  %v297 = vld [vmem:[#allocation2 + $0xbd] sm:$0xff]
  %v298 = vld [vmem:[#allocation2 + $0xc5] sm:$0xff]
  %v299 = vld [vmem:[%s2] sm:$0x1]
  %v301 = vperm.slane %v299, 0
  %v303 = vmul.f32 %v274, %v301
  %v304 = vmul.f32 %v275, %v301
  %v305 = vmul.f32 %v276, %v301
  %v306 = vmul.f32 %v277, %v301
  %v307 = vmul.f32 %v278, %v301
  %v308 = vmul.f32 %v279, %v301
  %v309 = vmul.f32 %v280, %v301
  %v310 = vmul.f32 %v281, %v301
  %v311 = vmul.f32 %v282, %v301
  %v312 = vmul.f32 %v283, %v301
  %v313 = vmul.f32 %v284, %v301
  %v314 = vmul.f32 %v285, %v301
  %v315 = vmul.f32 %v286, %v301
  %v316 = vmul.f32 %v287, %v301
  %v317 = vmul.f32 %v288, %v301
  %v318 = vmul.f32 %v289, %v301
  %v319 = vmul.f32 %v290, %v301
  %v320 = vmul.f32 %v291, %v301
  %v321 = vmul.f32 %v292, %v301
  %v322 = vmul.f32 %v293, %v301
  %v323 = vmul.f32 %v294, %v301
  %v324 = vmul.f32 %v295, %v301
  %v325 = vmul.f32 %v296, %v301
  %v326 = vmul.f32 %v297, %v301
  %v327 = vmul.f32 %v298, %v301
  %v328 = vadd.f32 %v303, 0.0
  %v329 = vadd.f32 %v304, 0.0
  %v330 = vadd.f32 %v305, 0.0
  %v331 = vadd.f32 %v306, 0.0
  %v332 = vadd.f32 %v307, 0.0
  %v333 = vadd.f32 %v308, 0.0
  %v334 = vadd.f32 %v309, 0.0
  %v335 = vadd.f32 %v310, 0.0
  %v336 = vadd.f32 %v311, 0.0
  %v337 = vadd.f32 %v312, 0.0
  %v338 = vadd.f32 %v313, 0.0
  %v339 = vadd.f32 %v314, 0.0
  %v340 = vadd.f32 %v315, 0.0
  %v341 = vadd.f32 %v316, 0.0
  %v342 = vadd.f32 %v317, 0.0
  %v343 = vadd.f32 %v318, 0.0
  %v344 = vadd.f32 %v319, 0.0
  %v345 = vadd.f32 %v320, 0.0
  %v346 = vadd.f32 %v321, 0.0
  %v347 = vadd.f32 %v322, 0.0
  %v348 = vadd.f32 %v323, 0.0
  %v349 = vadd.f32 %v324, 0.0
  %v350 = vadd.f32 %v325, 0.0
  %v351 = vadd.f32 %v326, 0.0
  %v352 = vadd.f32 %v327, 0.0
  %v353 = vld [vmem:[#allocation2 + $0x6] sm:$0xff]
  %v354 = vld [vmem:[#allocation2 + $0xe] sm:$0xff]
  %v355 = vld [vmem:[#allocation2 + $0x16] sm:$0xff]
  %v356 = vld [vmem:[#allocation2 + $0x1e] sm:$0xff]
  %v357 = vld [vmem:[#allocation2 + $0x26] sm:$0xff]
  %v358 = vld [vmem:[#allocation2 + $0x2e] sm:$0xff]
  %v359 = vld [vmem:[#allocation2 + $0x36] sm:$0xff]
  %v360 = vld [vmem:[#allocation2 + $0x3e] sm:$0xff]
  %v361 = vld [vmem:[#allocation2 + $0x46] sm:$0xff]
  %v362 = vld [vmem:[#allocation2 + $0x4e] sm:$0xff]
  %v363 = vld [vmem:[#allocation2 + $0x56] sm:$0xff]
  %v364 = vld [vmem:[#allocation2 + $0x5e] sm:$0xff]
  %v365 = vld [vmem:[#allocation2 + $0x66] sm:$0xff]
  %v366 = vld [vmem:[#allocation2 + $0x6e] sm:$0xff]
  %v367 = vld [vmem:[#allocation2 + $0x76] sm:$0xff]
  %v368 = vld [vmem:[#allocation2 + $0x7e] sm:$0xff]
  %v369 = vld [vmem:[#allocation2 + $0x86] sm:$0xff]
  %v370 = vld [vmem:[#allocation2 + $0x8e] sm:$0xff]
  %v371 = vld [vmem:[#allocation2 + $0x96] sm:$0xff]
  %v372 = vld [vmem:[#allocation2 + $0x9e] sm:$0xff]
  %v373 = vld [vmem:[#allocation2 + $0xa6] sm:$0xff]
  %v374 = vld [vmem:[#allocation2 + $0xae] sm:$0xff]
  %v375 = vld [vmem:[#allocation2 + $0xb6] sm:$0xff]
  %v376 = vld [vmem:[#allocation2 + $0xbe] sm:$0xff]
  %v377 = vld [vmem:[#allocation2 + $0xc6] sm:$0xff]
  %s378 = scalar_lea.vmem %s2, 1
  %v379 = vld [vmem:[%s378] sm:$0x1]
  %v381 = vperm.slane %v379, 0
  %v383 = vmul.f32 %v353, %v381
  %v384 = vmul.f32 %v354, %v381
  %v385 = vmul.f32 %v355, %v381
  %v386 = vmul.f32 %v356, %v381
  %v387 = vmul.f32 %v357, %v381
  %v388 = vmul.f32 %v358, %v381
  %v389 = vmul.f32 %v359, %v381
  %v390 = vmul.f32 %v360, %v381
  %v391 = vmul.f32 %v361, %v381
  %v392 = vmul.f32 %v362, %v381
  %v393 = vmul.f32 %v363, %v381
  %v394 = vmul.f32 %v364, %v381
  %v395 = vmul.f32 %v365, %v381
  %v396 = vmul.f32 %v366, %v381
  %v397 = vmul.f32 %v367, %v381
  %v398 = vmul.f32 %v368, %v381
  %v399 = vmul.f32 %v369, %v381
  %v400 = vmul.f32 %v370, %v381
  %v401 = vmul.f32 %v371, %v381
  %v402 = vmul.f32 %v372, %v381
  %v403 = vmul.f32 %v373, %v381
  %v404 = vmul.f32 %v374, %v381
  %v405 = vmul.f32 %v375, %v381
  %v406 = vmul.f32 %v376, %v381
  %v407 = vmul.f32 %v377, %v381
  %v408 = vadd.f32 %v328, %v383
  %v409 = vadd.f32 %v329, %v384
  %v410 = vadd.f32 %v330, %v385
  %v411 = vadd.f32 %v331, %v386
  %v412 = vadd.f32 %v332, %v387
  %v413 = vadd.f32 %v333, %v388
  %v414 = vadd.f32 %v334, %v389
  %v415 = vadd.f32 %v335, %v390
  %v416 = vadd.f32 %v336, %v391
  %v417 = vadd.f32 %v337, %v392
  %v418 = vadd.f32 %v338, %v393
  %v419 = vadd.f32 %v339, %v394
  %v420 = vadd.f32 %v340, %v395
  %v421 = vadd.f32 %v341, %v396
  %v422 = vadd.f32 %v342, %v397
  %v423 = vadd.f32 %v343, %v398
  %v424 = vadd.f32 %v344, %v399
  %v425 = vadd.f32 %v345, %v400
  %v426 = vadd.f32 %v346, %v401
  %v427 = vadd.f32 %v347, %v402
  %v428 = vadd.f32 %v348, %v403
  %v429 = vadd.f32 %v349, %v404
  %v430 = vadd.f32 %v350, %v405
  %v431 = vadd.f32 %v351, %v406
  %v432 = vadd.f32 %v352, %v407
  %v433 = vld [vmem:[#allocation2 + $0x7] sm:$0xff]
  %v434 = vld [vmem:[#allocation2 + $0xf] sm:$0xff]
  %v435 = vld [vmem:[#allocation2 + $0x17] sm:$0xff]
  %v436 = vld [vmem:[#allocation2 + $0x1f] sm:$0xff]
  %v437 = vld [vmem:[#allocation2 + $0x27] sm:$0xff]
  %v438 = vld [vmem:[#allocation2 + $0x2f] sm:$0xff]
  %v439 = vld [vmem:[#allocation2 + $0x37] sm:$0xff]
  %v440 = vld [vmem:[#allocation2 + $0x3f] sm:$0xff]
  %v441 = vld [vmem:[#allocation2 + $0x47] sm:$0xff]
  %v442 = vld [vmem:[#allocation2 + $0x4f] sm:$0xff]
  %v443 = vld [vmem:[#allocation2 + $0x57] sm:$0xff]
  %v444 = vld [vmem:[#allocation2 + $0x5f] sm:$0xff]
  %v445 = vld [vmem:[#allocation2 + $0x67] sm:$0xff]
  %v446 = vld [vmem:[#allocation2 + $0x6f] sm:$0xff]
  %v447 = vld [vmem:[#allocation2 + $0x77] sm:$0xff]
  %v448 = vld [vmem:[#allocation2 + $0x7f] sm:$0xff]
  %v449 = vld [vmem:[#allocation2 + $0x87] sm:$0xff]
  %v450 = vld [vmem:[#allocation2 + $0x8f] sm:$0xff]
  %v451 = vld [vmem:[#allocation2 + $0x97] sm:$0xff]
  %v452 = vld [vmem:[#allocation2 + $0x9f] sm:$0xff]
  %v453 = vld [vmem:[#allocation2 + $0xa7] sm:$0xff]
  %v454 = vld [vmem:[#allocation2 + $0xaf] sm:$0xff]
  %v455 = vld [vmem:[#allocation2 + $0xb7] sm:$0xff]
  %v456 = vld [vmem:[#allocation2 + $0xbf] sm:$0xff]
  %v457 = vld [vmem:[#allocation2 + $0xc7] sm:$0xff]
  %s458 = scalar_lea.vmem %s2, 2
  %v459 = vld [vmem:[%s458] sm:$0x1]
  %v461 = vperm.slane %v459, 0
  %v463 = vmul.f32 %v433, %v461
  %v464 = vmul.f32 %v434, %v461
  %v465 = vmul.f32 %v435, %v461
  %v466 = vmul.f32 %v436, %v461
  %v467 = vmul.f32 %v437, %v461
  %v468 = vmul.f32 %v438, %v461
  %v469 = vmul.f32 %v439, %v461
  %v470 = vmul.f32 %v440, %v461
  %v471 = vmul.f32 %v441, %v461
  %v472 = vmul.f32 %v442, %v461
  %v473 = vmul.f32 %v443, %v461
  %v474 = vmul.f32 %v444, %v461
  %v475 = vmul.f32 %v445, %v461
  %v476 = vmul.f32 %v446, %v461
  %v477 = vmul.f32 %v447, %v461
  %v478 = vmul.f32 %v448, %v461
  %v479 = vmul.f32 %v449, %v461
  %v480 = vmul.f32 %v450, %v461
  %v481 = vmul.f32 %v451, %v461
  %v482 = vmul.f32 %v452, %v461
  %v483 = vmul.f32 %v453, %v461
  %v484 = vmul.f32 %v454, %v461
  %v485 = vmul.f32 %v455, %v461
  %v486 = vmul.f32 %v456, %v461
  %v487 = vmul.f32 %v457, %v461
  %v488 = vadd.f32 %v408, %v463
  %v489 = vadd.f32 %v409, %v464
  %v490 = vadd.f32 %v410, %v465
  %v491 = vadd.f32 %v411, %v466
  %v492 = vadd.f32 %v412, %v467
  %v493 = vadd.f32 %v413, %v468
  %v494 = vadd.f32 %v414, %v469
  %v495 = vadd.f32 %v415, %v470
  %v496 = vadd.f32 %v416, %v471
  %v497 = vadd.f32 %v417, %v472
  %v498 = vadd.f32 %v418, %v473
  %v499 = vadd.f32 %v419, %v474
  %v500 = vadd.f32 %v420, %v475
  %v501 = vadd.f32 %v421, %v476
  %v502 = vadd.f32 %v422, %v477
  %v503 = vadd.f32 %v423, %v478
  %v504 = vadd.f32 %v424, %v479
  %v505 = vadd.f32 %v425, %v480
  %v506 = vadd.f32 %v426, %v481
  %v507 = vadd.f32 %v427, %v482
  %v508 = vadd.f32 %v428, %v483
  %v509 = vadd.f32 %v429, %v484
  %v510 = vadd.f32 %v430, %v485
  %v511 = vadd.f32 %v431, %v486
  %v512 = vadd.f32 %v432, %v487
  %v513 = vld [vmem:[#allocation2 + $0xcf] sm:$0xff]
  %s514 = scalar_lea.vmem %s2, 3
  %v515 = vld [vmem:[%s514] sm:$0x1]
  %v517 = vperm.slane %v515, 0
  %v519 = vmul.f32 %v434, %v517
  %v520 = vmul.f32 %v435, %v517
  %v521 = vmul.f32 %v436, %v517
  %v522 = vmul.f32 %v437, %v517
  %v523 = vmul.f32 %v438, %v517
  %v524 = vmul.f32 %v439, %v517
  %v525 = vmul.f32 %v440, %v517
  %v526 = vmul.f32 %v441, %v517
  %v527 = vmul.f32 %v442, %v517
  %v528 = vmul.f32 %v443, %v517
  %v529 = vmul.f32 %v444, %v517
  %v530 = vmul.f32 %v445, %v517
  %v531 = vmul.f32 %v446, %v517
  %v532 = vmul.f32 %v447, %v517
  %v533 = vmul.f32 %v448, %v517
  %v534 = vmul.f32 %v449, %v517
  %v535 = vmul.f32 %v450, %v517
  %v536 = vmul.f32 %v451, %v517
  %v537 = vmul.f32 %v452, %v517
  %v538 = vmul.f32 %v453, %v517
  %v539 = vmul.f32 %v454, %v517
  %v540 = vmul.f32 %v455, %v517
  %v541 = vmul.f32 %v456, %v517
  %v542 = vmul.f32 %v457, %v517
  %v543 = vmul.f32 %v513, %v517
  %v544 = vadd.f32 %v488, %v519
  %v545 = vadd.f32 %v489, %v520
  %v546 = vadd.f32 %v490, %v521
  %v547 = vadd.f32 %v491, %v522
  %v548 = vadd.f32 %v492, %v523
  %v549 = vadd.f32 %v493, %v524
  %v550 = vadd.f32 %v494, %v525
  %v551 = vadd.f32 %v495, %v526
  %v552 = vadd.f32 %v496, %v527
  %v553 = vadd.f32 %v497, %v528
  %v554 = vadd.f32 %v498, %v529
  %v555 = vadd.f32 %v499, %v530
  %v556 = vadd.f32 %v500, %v531
  %v557 = vadd.f32 %v501, %v532
  %v558 = vadd.f32 %v502, %v533
  %v559 = vadd.f32 %v503, %v534
  %v560 = vadd.f32 %v504, %v535
  %v561 = vadd.f32 %v505, %v536
  %v562 = vadd.f32 %v506, %v537
  %v563 = vadd.f32 %v507, %v538
  %v564 = vadd.f32 %v508, %v539
  %v565 = vadd.f32 %v509, %v540
  %v566 = vadd.f32 %v510, %v541
  %v567 = vadd.f32 %v511, %v542
  %v568 = vadd.f32 %v512, %v543
  %v569 = vld [vmem:[#allocation2 + $0x10] sm:$0xff]
  %v570 = vld [vmem:[#allocation2 + $0x18] sm:$0xff]
  %v571 = vld [vmem:[#allocation2 + $0x20] sm:$0xff]
  %v572 = vld [vmem:[#allocation2 + $0x28] sm:$0xff]
  %v573 = vld [vmem:[#allocation2 + $0x30] sm:$0xff]
  %v574 = vld [vmem:[#allocation2 + $0x38] sm:$0xff]
  %v575 = vld [vmem:[#allocation2 + $0x40] sm:$0xff]
  %v576 = vld [vmem:[#allocation2 + $0x48] sm:$0xff]
  %v577 = vld [vmem:[#allocation2 + $0x50] sm:$0xff]
  %v578 = vld [vmem:[#allocation2 + $0x58] sm:$0xff]
  %v579 = vld [vmem:[#allocation2 + $0x60] sm:$0xff]
  %v580 = vld [vmem:[#allocation2 + $0x68] sm:$0xff]
  %v581 = vld [vmem:[#allocation2 + $0x70] sm:$0xff]
  %v582 = vld [vmem:[#allocation2 + $0x78] sm:$0xff]
  %v583 = vld [vmem:[#allocation2 + $0x80] sm:$0xff]
  %v584 = vld [vmem:[#allocation2 + $0x88] sm:$0xff]
  %v585 = vld [vmem:[#allocation2 + $0x90] sm:$0xff]
  %v586 = vld [vmem:[#allocation2 + $0x98] sm:$0xff]
  %v587 = vld [vmem:[#allocation2 + $0xa0] sm:$0xff]
  %v588 = vld [vmem:[#allocation2 + $0xa8] sm:$0xff]
  %v589 = vld [vmem:[#allocation2 + $0xb0] sm:$0xff]
  %v590 = vld [vmem:[#allocation2 + $0xb8] sm:$0xff]
  %v591 = vld [vmem:[#allocation2 + $0xc0] sm:$0xff]
  %v592 = vld [vmem:[#allocation2 + $0xc8] sm:$0xff]
  %v593 = vld [vmem:[#allocation2 + $0xd0] sm:$0xff]
  %s594 = scalar_lea.vmem %s2, 4
  %v595 = vld [vmem:[%s594] sm:$0x1]
  %v597 = vperm.slane %v595, 0
  %v599 = vmul.f32 %v569, %v597
  %v600 = vmul.f32 %v570, %v597
  %v601 = vmul.f32 %v571, %v597
  %v602 = vmul.f32 %v572, %v597
  %v603 = vmul.f32 %v573, %v597
  %v604 = vmul.f32 %v574, %v597
  %v605 = vmul.f32 %v575, %v597
  %v606 = vmul.f32 %v576, %v597
  %v607 = vmul.f32 %v577, %v597
  %v608 = vmul.f32 %v578, %v597
  %v609 = vmul.f32 %v579, %v597
  %v610 = vmul.f32 %v580, %v597
  %v611 = vmul.f32 %v581, %v597
  %v612 = vmul.f32 %v582, %v597
  %v613 = vmul.f32 %v583, %v597
  %v614 = vmul.f32 %v584, %v597
  %v615 = vmul.f32 %v585, %v597
  %v616 = vmul.f32 %v586, %v597
  %v617 = vmul.f32 %v587, %v597
  %v618 = vmul.f32 %v588, %v597
  %v619 = vmul.f32 %v589, %v597
  %v620 = vmul.f32 %v590, %v597
  %v621 = vmul.f32 %v591, %v597
  %v622 = vmul.f32 %v592, %v597
  %v623 = vmul.f32 %v593, %v597
  %v624 = vadd.f32 %v544, %v599
  %v625 = vadd.f32 %v545, %v600
  %v626 = vadd.f32 %v546, %v601
  %v627 = vadd.f32 %v547, %v602
  %v628 = vadd.f32 %v548, %v603
  %v629 = vadd.f32 %v549, %v604
  %v630 = vadd.f32 %v550, %v605
  %v631 = vadd.f32 %v551, %v606
  %v632 = vadd.f32 %v552, %v607
  %v633 = vadd.f32 %v553, %v608
  %v634 = vadd.f32 %v554, %v609
  %v635 = vadd.f32 %v555, %v610
  %v636 = vadd.f32 %v556, %v611
  %v637 = vadd.f32 %v557, %v612
  %v638 = vadd.f32 %v558, %v613
  %v639 = vadd.f32 %v559, %v614
  %v640 = vadd.f32 %v560, %v615
  %v641 = vadd.f32 %v561, %v616
  %v642 = vadd.f32 %v562, %v617
  %v643 = vadd.f32 %v563, %v618
  %v644 = vadd.f32 %v564, %v619
  %v645 = vadd.f32 %v565, %v620
  %v646 = vadd.f32 %v566, %v621
  %v647 = vadd.f32 %v567, %v622
  %v648 = vadd.f32 %v568, %v623
  %v649 = vld [vmem:[#allocation2 + $0x11] sm:$0xff]
  %v650 = vld [vmem:[#allocation2 + $0x19] sm:$0xff]
  %v651 = vld [vmem:[#allocation2 + $0x21] sm:$0xff]
  %v652 = vld [vmem:[#allocation2 + $0x29] sm:$0xff]
  %v653 = vld [vmem:[#allocation2 + $0x31] sm:$0xff]
  %v654 = vld [vmem:[#allocation2 + $0x39] sm:$0xff]
  %v655 = vld [vmem:[#allocation2 + $0x41] sm:$0xff]
  %v656 = vld [vmem:[#allocation2 + $0x49] sm:$0xff]
  %v657 = vld [vmem:[#allocation2 + $0x51] sm:$0xff]
  %v658 = vld [vmem:[#allocation2 + $0x59] sm:$0xff]
  %v659 = vld [vmem:[#allocation2 + $0x61] sm:$0xff]
  %v660 = vld [vmem:[#allocation2 + $0x69] sm:$0xff]
  %v661 = vld [vmem:[#allocation2 + $0x71] sm:$0xff]
  %v662 = vld [vmem:[#allocation2 + $0x79] sm:$0xff]
  %v663 = vld [vmem:[#allocation2 + $0x81] sm:$0xff]
  %v664 = vld [vmem:[#allocation2 + $0x89] sm:$0xff]
  %v665 = vld [vmem:[#allocation2 + $0x91] sm:$0xff]
  %v666 = vld [vmem:[#allocation2 + $0x99] sm:$0xff]
  %v667 = vld [vmem:[#allocation2 + $0xa1] sm:$0xff]
  %v668 = vld [vmem:[#allocation2 + $0xa9] sm:$0xff]
  %v669 = vld [vmem:[#allocation2 + $0xb1] sm:$0xff]
  %v670 = vld [vmem:[#allocation2 + $0xb9] sm:$0xff]
  %v671 = vld [vmem:[#allocation2 + $0xc1] sm:$0xff]
  %v672 = vld [vmem:[#allocation2 + $0xc9] sm:$0xff]
  %v673 = vld [vmem:[#allocation2 + $0xd1] sm:$0xff]
  %s674 = scalar_lea.vmem %s2, 5
  %v675 = vld [vmem:[%s674] sm:$0x1]
  %v677 = vperm.slane %v675, 0
  %v679 = vmul.f32 %v649, %v677
  %v680 = vmul.f32 %v650, %v677
  %v681 = vmul.f32 %v651, %v677
  %v682 = vmul.f32 %v652, %v677
  %v683 = vmul.f32 %v653, %v677
  %v684 = vmul.f32 %v654, %v677
  %v685 = vmul.f32 %v655, %v677
  %v686 = vmul.f32 %v656, %v677
  %v687 = vmul.f32 %v657, %v677
  %v688 = vmul.f32 %v658, %v677
  %v689 = vmul.f32 %v659, %v677
  %v690 = vmul.f32 %v660, %v677
  %v691 = vmul.f32 %v661, %v677
  %v692 = vmul.f32 %v662, %v677
  %v693 = vmul.f32 %v663, %v677
  %v694 = vmul.f32 %v664, %v677
  %v695 = vmul.f32 %v665, %v677
  %v696 = vmul.f32 %v666, %v677
  %v697 = vmul.f32 %v667, %v677
  %v698 = vmul.f32 %v668, %v677
  %v699 = vmul.f32 %v669, %v677
  %v700 = vmul.f32 %v670, %v677
  %v701 = vmul.f32 %v671, %v677
  %v702 = vmul.f32 %v672, %v677
  %v703 = vmul.f32 %v673, %v677
  %v704 = vadd.f32 %v624, %v679
  %v705 = vadd.f32 %v625, %v680
  %v706 = vadd.f32 %v626, %v681
  %v707 = vadd.f32 %v627, %v682
  %v708 = vadd.f32 %v628, %v683
  %v709 = vadd.f32 %v629, %v684
  %v710 = vadd.f32 %v630, %v685
  %v711 = vadd.f32 %v631, %v686
  %v712 = vadd.f32 %v632, %v687
  %v713 = vadd.f32 %v633, %v688
  %v714 = vadd.f32 %v634, %v689
  %v715 = vadd.f32 %v635, %v690
  %v716 = vadd.f32 %v636, %v691
  %v717 = vadd.f32 %v637, %v692
  %v718 = vadd.f32 %v638, %v693
  %v719 = vadd.f32 %v639, %v694
  %v720 = vadd.f32 %v640, %v695
  %v721 = vadd.f32 %v641, %v696
  %v722 = vadd.f32 %v642, %v697
  %v723 = vadd.f32 %v643, %v698
  %v724 = vadd.f32 %v644, %v699
  %v725 = vadd.f32 %v645, %v700
  %v726 = vadd.f32 %v646, %v701
  %v727 = vadd.f32 %v647, %v702
  %v728 = vadd.f32 %v648, %v703
  %v729 = vld [vmem:[#allocation2 + $0xd9] sm:$0xff]
  %s730 = scalar_lea.vmem %s2, 6
  %v731 = vld [vmem:[%s730] sm:$0x1]
  %v733 = vperm.slane %v731, 0
  %v735 = vmul.f32 %v650, %v733
  %v736 = vmul.f32 %v651, %v733
  %v737 = vmul.f32 %v652, %v733
  %v738 = vmul.f32 %v653, %v733
  %v739 = vmul.f32 %v654, %v733
  %v740 = vmul.f32 %v655, %v733
  %v741 = vmul.f32 %v656, %v733
  %v742 = vmul.f32 %v657, %v733
  %v743 = vmul.f32 %v658, %v733
  %v744 = vmul.f32 %v659, %v733
  %v745 = vmul.f32 %v660, %v733
  %v746 = vmul.f32 %v661, %v733
  %v747 = vmul.f32 %v662, %v733
  %v748 = vmul.f32 %v663, %v733
  %v749 = vmul.f32 %v664, %v733
  %v750 = vmul.f32 %v665, %v733
  %v751 = vmul.f32 %v666, %v733
  %v752 = vmul.f32 %v667, %v733
  %v753 = vmul.f32 %v668, %v733
  %v754 = vmul.f32 %v669, %v733
  %v755 = vmul.f32 %v670, %v733
  %v756 = vmul.f32 %v671, %v733
  %v757 = vmul.f32 %v672, %v733
  %v758 = vmul.f32 %v673, %v733
  %v759 = vmul.f32 %v729, %v733
  %v760 = vadd.f32 %v704, %v735
  %v761 = vadd.f32 %v705, %v736
  %v762 = vadd.f32 %v706, %v737
  %v763 = vadd.f32 %v707, %v738
  %v764 = vadd.f32 %v708, %v739
  %v765 = vadd.f32 %v709, %v740
  %v766 = vadd.f32 %v710, %v741
  %v767 = vadd.f32 %v711, %v742
  %v768 = vadd.f32 %v712, %v743
  %v769 = vadd.f32 %v713, %v744
  %v770 = vadd.f32 %v714, %v745
  %v771 = vadd.f32 %v715, %v746
  %v772 = vadd.f32 %v716, %v747
  %v773 = vadd.f32 %v717, %v748
  %v774 = vadd.f32 %v718, %v749
  %v775 = vadd.f32 %v719, %v750
  %v776 = vadd.f32 %v720, %v751
  %v777 = vadd.f32 %v721, %v752
  %v778 = vadd.f32 %v722, %v753
  %v779 = vadd.f32 %v723, %v754
  %v780 = vadd.f32 %v724, %v755
  %v781 = vadd.f32 %v725, %v756
  %v782 = vadd.f32 %v726, %v757
  %v783 = vadd.f32 %v727, %v758
  %v784 = vadd.f32 %v728, %v759
  %v785 = vld [vmem:[#allocation2 + $0x1a] sm:$0xff]
  %v786 = vld [vmem:[#allocation2 + $0x22] sm:$0xff]
  %v787 = vld [vmem:[#allocation2 + $0x2a] sm:$0xff]
  %v788 = vld [vmem:[#allocation2 + $0x32] sm:$0xff]
  %v789 = vld [vmem:[#allocation2 + $0x3a] sm:$0xff]
  %v790 = vld [vmem:[#allocation2 + $0x42] sm:$0xff]
  %v791 = vld [vmem:[#allocation2 + $0x4a] sm:$0xff]
  %v792 = vld [vmem:[#allocation2 + $0x52] sm:$0xff]
  %v793 = vld [vmem:[#allocation2 + $0x5a] sm:$0xff]
  %v794 = vld [vmem:[#allocation2 + $0x62] sm:$0xff]
  %v795 = vld [vmem:[#allocation2 + $0x6a] sm:$0xff]
  %v796 = vld [vmem:[#allocation2 + $0x72] sm:$0xff]
  %v797 = vld [vmem:[#allocation2 + $0x7a] sm:$0xff]
  %v798 = vld [vmem:[#allocation2 + $0x82] sm:$0xff]
  %v799 = vld [vmem:[#allocation2 + $0x8a] sm:$0xff]
  %v800 = vld [vmem:[#allocation2 + $0x92] sm:$0xff]
  %v801 = vld [vmem:[#allocation2 + $0x9a] sm:$0xff]
  %v802 = vld [vmem:[#allocation2 + $0xa2] sm:$0xff]
  %v803 = vld [vmem:[#allocation2 + $0xaa] sm:$0xff]
  %v804 = vld [vmem:[#allocation2 + $0xb2] sm:$0xff]
  %v805 = vld [vmem:[#allocation2 + $0xba] sm:$0xff]
  %v806 = vld [vmem:[#allocation2 + $0xc2] sm:$0xff]
  %v807 = vld [vmem:[#allocation2 + $0xca] sm:$0xff]
  %v808 = vld [vmem:[#allocation2 + $0xd2] sm:$0xff]
  %v809 = vld [vmem:[#allocation2 + $0xda] sm:$0xff]
  %s810 = scalar_lea.vmem %s2, 7
  %v811 = vld [vmem:[%s810] sm:$0x1]
  %v813 = vperm.slane %v811, 0
  %v815 = vmul.f32 %v785, %v813
  %v816 = vmul.f32 %v786, %v813
  %v817 = vmul.f32 %v787, %v813
  %v818 = vmul.f32 %v788, %v813
  %v819 = vmul.f32 %v789, %v813
  %v820 = vmul.f32 %v790, %v813
  %v821 = vmul.f32 %v791, %v813
  %v822 = vmul.f32 %v792, %v813
  %v823 = vmul.f32 %v793, %v813
  %v824 = vmul.f32 %v794, %v813
  %v825 = vmul.f32 %v795, %v813
  %v826 = vmul.f32 %v796, %v813
  %v827 = vmul.f32 %v797, %v813
  %v828 = vmul.f32 %v798, %v813
  %v829 = vmul.f32 %v799, %v813
  %v830 = vmul.f32 %v800, %v813
  %v831 = vmul.f32 %v801, %v813
  %v832 = vmul.f32 %v802, %v813
  %v833 = vmul.f32 %v803, %v813
  %v834 = vmul.f32 %v804, %v813
  %v835 = vmul.f32 %v805, %v813
  %v836 = vmul.f32 %v806, %v813
  %v837 = vmul.f32 %v807, %v813
  %v838 = vmul.f32 %v808, %v813
  %v839 = vmul.f32 %v809, %v813
  %v840 = vadd.f32 %v760, %v815
  %v841 = vadd.f32 %v761, %v816
  %v842 = vadd.f32 %v762, %v817
  %v843 = vadd.f32 %v763, %v818
  %v844 = vadd.f32 %v764, %v819
  %v845 = vadd.f32 %v765, %v820
  %v846 = vadd.f32 %v766, %v821
  %v847 = vadd.f32 %v767, %v822
  %v848 = vadd.f32 %v768, %v823
  %v849 = vadd.f32 %v769, %v824
  %v850 = vadd.f32 %v770, %v825
  %v851 = vadd.f32 %v771, %v826
  %v852 = vadd.f32 %v772, %v827
  %v853 = vadd.f32 %v773, %v828
  %v854 = vadd.f32 %v774, %v829
  %v855 = vadd.f32 %v775, %v830
  %v856 = vadd.f32 %v776, %v831
  %v857 = vadd.f32 %v777, %v832
  %v858 = vadd.f32 %v778, %v833
  %v859 = vadd.f32 %v779, %v834
  %v860 = vadd.f32 %v780, %v835
  %v861 = vadd.f32 %v781, %v836
  %v862 = vadd.f32 %v782, %v837
  %v863 = vadd.f32 %v783, %v838
  %v864 = vadd.f32 %v784, %v839
  %v865 = vld [vmem:[#allocation2 + $0x1b] sm:$0xff]
  %v866 = vld [vmem:[#allocation2 + $0x23] sm:$0xff]
  %v867 = vld [vmem:[#allocation2 + $0x2b] sm:$0xff]
  %v868 = vld [vmem:[#allocation2 + $0x33] sm:$0xff]
  %v869 = vld [vmem:[#allocation2 + $0x3b] sm:$0xff]
  %v870 = vld [vmem:[#allocation2 + $0x43] sm:$0xff]
  %v871 = vld [vmem:[#allocation2 + $0x4b] sm:$0xff]
  %v872 = vld [vmem:[#allocation2 + $0x53] sm:$0xff]
  %v873 = vld [vmem:[#allocation2 + $0x5b] sm:$0xff]
  %v874 = vld [vmem:[#allocation2 + $0x63] sm:$0xff]
  %v875 = vld [vmem:[#allocation2 + $0x6b] sm:$0xff]
  %v876 = vld [vmem:[#allocation2 + $0x73] sm:$0xff]
  %v877 = vld [vmem:[#allocation2 + $0x7b] sm:$0xff]
  %v878 = vld [vmem:[#allocation2 + $0x83] sm:$0xff]
  %v879 = vld [vmem:[#allocation2 + $0x8b] sm:$0xff]
  %v880 = vld [vmem:[#allocation2 + $0x93] sm:$0xff]
  %v881 = vld [vmem:[#allocation2 + $0x9b] sm:$0xff]
  %v882 = vld [vmem:[#allocation2 + $0xa3] sm:$0xff]
  %v883 = vld [vmem:[#allocation2 + $0xab] sm:$0xff]
  %v884 = vld [vmem:[#allocation2 + $0xb3] sm:$0xff]
  %v885 = vld [vmem:[#allocation2 + $0xbb] sm:$0xff]
  %v886 = vld [vmem:[#allocation2 + $0xc3] sm:$0xff]
  %v887 = vld [vmem:[#allocation2 + $0xcb] sm:$0xff]
  %v888 = vld [vmem:[#allocation2 + $0xd3] sm:$0xff]
  %v889 = vld [vmem:[#allocation2 + $0xdb] sm:$0xff]
  %s890 = scalar_lea.vmem %s2, 8
  %v891 = vld [vmem:[%s890] sm:$0x1]
  %v893 = vperm.slane %v891, 0
  %v895 = vmul.f32 %v865, %v893
  %v896 = vmul.f32 %v866, %v893
  %v897 = vmul.f32 %v867, %v893
  %v898 = vmul.f32 %v868, %v893
  %v899 = vmul.f32 %v869, %v893
  %v900 = vmul.f32 %v870, %v893
  %v901 = vmul.f32 %v871, %v893
  %v902 = vmul.f32 %v872, %v893
  %v903 = vmul.f32 %v873, %v893
  %v904 = vmul.f32 %v874, %v893
  %v905 = vmul.f32 %v875, %v893
  %v906 = vmul.f32 %v876, %v893
  %v907 = vmul.f32 %v877, %v893
  %v908 = vmul.f32 %v878, %v893
  %v909 = vmul.f32 %v879, %v893
  %v910 = vmul.f32 %v880, %v893
  %v911 = vmul.f32 %v881, %v893
  %v912 = vmul.f32 %v882, %v893
  %v913 = vmul.f32 %v883, %v893
  %v914 = vmul.f32 %v884, %v893
  %v915 = vmul.f32 %v885, %v893
  %v916 = vmul.f32 %v886, %v893
  %v917 = vmul.f32 %v887, %v893
  %v918 = vmul.f32 %v888, %v893
  %v919 = vmul.f32 %v889, %v893
  %v920 = vadd.f32 %v840, %v895
  %v921 = vadd.f32 %v841, %v896
  %v922 = vadd.f32 %v842, %v897
  %v923 = vadd.f32 %v843, %v898
  %v924 = vadd.f32 %v844, %v899
  %v925 = vadd.f32 %v845, %v900
  %v926 = vadd.f32 %v846, %v901
  %v927 = vadd.f32 %v847, %v902
  %v928 = vadd.f32 %v848, %v903
  %v929 = vadd.f32 %v849, %v904
  %v930 = vadd.f32 %v850, %v905
  %v931 = vadd.f32 %v851, %v906
  %v932 = vadd.f32 %v852, %v907
  %v933 = vadd.f32 %v853, %v908
  %v934 = vadd.f32 %v854, %v909
  %v935 = vadd.f32 %v855, %v910
  %v936 = vadd.f32 %v856, %v911
  %v937 = vadd.f32 %v857, %v912
  %v938 = vadd.f32 %v858, %v913
  %v939 = vadd.f32 %v859, %v914
  %v940 = vadd.f32 %v860, %v915
  %v941 = vadd.f32 %v861, %v916
  %v942 = vadd.f32 %v862, %v917
  %v943 = vadd.f32 %v863, %v918
  %v944 = vadd.f32 %v864, %v919
  %v945 = vld [vmem:[%s3] sm:$0x1]
  %v947 = vperm.slane %v945, 0
  %v949 = vadd.f32 %v920, %v947
  %v950 = vadd.f32 %v921, %v947
  %v951 = vadd.f32 %v922, %v947
  %v952 = vadd.f32 %v923, %v947
  %v953 = vadd.f32 %v924, %v947
  %v954 = vadd.f32 %v925, %v947
  %v955 = vadd.f32 %v926, %v947
  %v956 = vadd.f32 %v927, %v947
  %v957 = vadd.f32 %v928, %v947
  %v958 = vadd.f32 %v929, %v947
  %v959 = vadd.f32 %v930, %v947
  %v960 = vadd.f32 %v931, %v947
  %v961 = vadd.f32 %v932, %v947
  %v962 = vadd.f32 %v933, %v947
  %v963 = vadd.f32 %v934, %v947
  %v964 = vadd.f32 %v935, %v947
  %v965 = vadd.f32 %v936, %v947
  %v966 = vadd.f32 %v937, %v947
  %v967 = vadd.f32 %v938, %v947
  %v968 = vadd.f32 %v939, %v947
  %v969 = vadd.f32 %v940, %v947
  %v970 = vadd.f32 %v941, %v947
  %v971 = vadd.f32 %v942, %v947
  %v972 = vadd.f32 %v943, %v947
  %v973 = vadd.f32 %v944, %v947
  %v974 = vpack.c.bf16 %v950, %v949
  %v975 = vpack.c.bf16 %v952, %v951
  %v976 = vpack.c.bf16 %v954, %v953
  %v977 = vpack.c.bf16 %v956, %v955
  %v978 = vpack.c.bf16 %v958, %v957
  %v979 = vpack.c.bf16 %v960, %v959
  %v980 = vpack.c.bf16 %v962, %v961
  %v981 = vpack.c.bf16 %v964, %v963
  %v982 = vpack.c.bf16 %v966, %v965
  %v983 = vpack.c.bf16 %v968, %v967
  %v984 = vpack.c.bf16 %v970, %v969
  %v985 = vpack.c.bf16 %v972, %v971
  %v986 = vpack.c.bf16 %v973, %v973
  %v987 = vld [vmem:[%s4] sm:$0xf]
  %v988 = vld [vmem:[%s4 + $0x4] sm:$0xf]
  %v989 = vld [vmem:[%s5] sm:$0x1]
  %v991 = vperm.slane %v989, 0
  %v995 = vunpack.c.l.b16 %v987
  %v996 = vunpack.c.l.b16 %v988
  %v997 = vpack.c.b16 %v996, %v995
  %v1000 = vsel %vm244, %v974, 0
  %v1003 = vsel %vm244, %v975, 0
  %v1006 = vsel %vm244, %v976, 0
  %v1009 = vsel %vm244, %v977, 0
  %v1012 = vsel %vm244, %v978, 0
  %v1015 = vsel %vm244, %v979, 0
  %v1018 = vsel %vm244, %v980, 0
  %v1021 = vsel %vm244, %v981, 0
  %v1024 = vsel %vm244, %v982, 0
  %v1027 = vsel %vm244, %v983, 0
  %v1030 = vsel %vm244, %v984, 0
  %v1033 = vsel %vm244, %v985, 0
  %v1036 = vsel %vm244, %v986, 0
  %1038 = vmatpush.bf16.msra.mxu0 0
  %1039 = vmatpush.bf16.msra.mxu0 0
  %1040 = vmatpush.bf16.msra.mxu0 0
  %1041 = vmatpush.bf16.msra.mxu0 0
  %1042 = vmatpush.bf16.msra.mxu0 0
  %1043 = vmatpush.bf16.msra.mxu0 0
  %1044 = vmatpush.bf16.msra.mxu0 0
  %1045 = vmatpush.bf16.msra.mxu0 %v997
  %1046 = vmatmul.bf16.gmra.mxu0 %v1000
  %v1047 = vpop.f32.mrf.mxu0
  %v1048 = vadd.f32 %v991, %v1047
  %v1049 = vpop.f32.mrf.mxu0
  %v1050 = vadd.f32 %v991, %v1049
  %1051 = vmatmul.bf16.gmra.mxu0 %v1003
  %v1052 = vpop.f32.mrf.mxu0
  %v1053 = vadd.f32 %v991, %v1052
  %v1054 = vpop.f32.mrf.mxu0
  %v1055 = vadd.f32 %v991, %v1054
  %1056 = vmatmul.bf16.gmra.mxu0 %v1006
  %v1057 = vpop.f32.mrf.mxu0
  %v1058 = vadd.f32 %v991, %v1057
  %v1059 = vpop.f32.mrf.mxu0
  %v1060 = vadd.f32 %v991, %v1059
  %1061 = vmatmul.bf16.gmra.mxu0 %v1009
  %v1062 = vpop.f32.mrf.mxu0
  %v1063 = vadd.f32 %v991, %v1062
  %v1064 = vpop.f32.mrf.mxu0
  %v1065 = vadd.f32 %v991, %v1064
  %1066 = vmatmul.bf16.gmra.mxu0 %v1012
  %v1067 = vpop.f32.mrf.mxu0
  %v1068 = vadd.f32 %v991, %v1067
  %v1069 = vpop.f32.mrf.mxu0
  %v1070 = vadd.f32 %v991, %v1069
  %1071 = vmatmul.bf16.gmra.mxu0 %v1015
  %v1072 = vpop.f32.mrf.mxu0
  %v1073 = vadd.f32 %v991, %v1072
  %v1074 = vpop.f32.mrf.mxu0
  %v1075 = vadd.f32 %v991, %v1074
  %1076 = vmatmul.bf16.gmra.mxu0 %v1018
  %v1077 = vpop.f32.mrf.mxu0
  %v1078 = vadd.f32 %v991, %v1077
  %v1079 = vpop.f32.mrf.mxu0
  %v1080 = vadd.f32 %v991, %v1079
  %1081 = vmatmul.bf16.gmra.mxu0 %v1021
  %v1082 = vpop.f32.mrf.mxu0
  %v1083 = vadd.f32 %v991, %v1082
  %v1084 = vpop.f32.mrf.mxu0
  %v1085 = vadd.f32 %v991, %v1084
  %1086 = vmatmul.bf16.gmra.mxu0 %v1024
  %v1087 = vpop.f32.mrf.mxu0
  %v1088 = vadd.f32 %v991, %v1087
  %v1089 = vpop.f32.mrf.mxu0
  %v1090 = vadd.f32 %v991, %v1089
  %1091 = vmatmul.bf16.gmra.mxu0 %v1027
  %v1092 = vpop.f32.mrf.mxu0
  %v1093 = vadd.f32 %v991, %v1092
  %v1094 = vpop.f32.mrf.mxu0
  %v1095 = vadd.f32 %v991, %v1094
  %1096 = vmatmul.bf16.gmra.mxu0 %v1030
  %v1097 = vpop.f32.mrf.mxu0
  %v1098 = vadd.f32 %v991, %v1097
  %v1099 = vpop.f32.mrf.mxu0
  %v1100 = vadd.f32 %v991, %v1099
  %1101 = vmatmul.bf16.gmra.mxu0 %v1033
  %v1102 = vpop.f32.mrf.mxu0
  %v1103 = vadd.f32 %v991, %v1102
  %v1104 = vpop.f32.mrf.mxu0
  %v1105 = vadd.f32 %v991, %v1104
  %1106 = vmatmul.bf16.gmra.mxu0 %v1036
  %v1107 = vpop.f32.mrf.mxu0
  %v1108 = vadd.f32 %v991, %v1107
  %v1109 = vpop.f32.mrf.mxu0
  %1110 = vdwg.mxu0
  %v1111 = vmax.f32 %v1048, 0.0
  %v1112 = vmax.f32 %v1050, 0.0
  %v1113 = vmax.f32 %v1053, 0.0
  %v1114 = vmax.f32 %v1055, 0.0
  %v1115 = vmax.f32 %v1058, 0.0
  %v1116 = vmax.f32 %v1060, 0.0
  %v1117 = vmax.f32 %v1063, 0.0
  %v1118 = vmax.f32 %v1065, 0.0
  %v1119 = vmax.f32 %v1068, 0.0
  %v1120 = vmax.f32 %v1070, 0.0
  %v1121 = vmax.f32 %v1073, 0.0
  %v1122 = vmax.f32 %v1075, 0.0
  %v1123 = vmax.f32 %v1078, 0.0
  %v1124 = vmax.f32 %v1080, 0.0
  %v1125 = vmax.f32 %v1083, 0.0
  %v1126 = vmax.f32 %v1085, 0.0
  %v1127 = vmax.f32 %v1088, 0.0
  %v1128 = vmax.f32 %v1090, 0.0
  %v1129 = vmax.f32 %v1093, 0.0
  %v1130 = vmax.f32 %v1095, 0.0
  %v1131 = vmax.f32 %v1098, 0.0
  %v1132 = vmax.f32 %v1100, 0.0
  %v1133 = vmax.f32 %v1103, 0.0
  %v1134 = vmax.f32 %v1105, 0.0
  %v1135 = vmax.f32 %v1108, 0.0
  %1136 = vst.msk [vmem:[%s12] sm:$0xff] %vm244, %v1111
  %1137 = vst.msk [vmem:[%s12 + $0x8] sm:$0xff] %vm244, %v1112
  %1138 = vst.msk [vmem:[%s12 + $0x10] sm:$0xff] %vm244, %v1113
  %1139 = vst.msk [vmem:[%s12 + $0x18] sm:$0xff] %vm244, %v1114
  %1140 = vst.msk [vmem:[%s12 + $0x20] sm:$0xff] %vm244, %v1115
  %1141 = vst.msk [vmem:[%s12 + $0x28] sm:$0xff] %vm244, %v1116
  %1142 = vst.msk [vmem:[%s12 + $0x30] sm:$0xff] %vm244, %v1117
  %1143 = vst.msk [vmem:[%s12 + $0x38] sm:$0xff] %vm244, %v1118
  %1144 = vst.msk [vmem:[%s12 + $0x40] sm:$0xff] %vm244, %v1119
  %1145 = vst.msk [vmem:[%s12 + $0x48] sm:$0xff] %vm244, %v1120
  %1146 = vst.msk [vmem:[%s12 + $0x50] sm:$0xff] %vm244, %v1121
  %1147 = vst.msk [vmem:[%s12 + $0x58] sm:$0xff] %vm244, %v1122
  %1148 = vst.msk [vmem:[%s12 + $0x60] sm:$0xff] %vm244, %v1123
  %1149 = vst.msk [vmem:[%s12 + $0x68] sm:$0xff] %vm244, %v1124
  %1150 = vst.msk [vmem:[%s12 + $0x70] sm:$0xff] %vm244, %v1125
  %1151 = vst.msk [vmem:[%s12 + $0x78] sm:$0xff] %vm244, %v1126
  %1152 = vst.msk [vmem:[%s12 + $0x80] sm:$0xff] %vm244, %v1127
  %1153 = vst.msk [vmem:[%s12 + $0x88] sm:$0xff] %vm244, %v1128
  %1154 = vst.msk [vmem:[%s12 + $0x90] sm:$0xff] %vm244, %v1129
  %1155 = vst.msk [vmem:[%s12 + $0x98] sm:$0xff] %vm244, %v1130
  %1156 = vst.msk [vmem:[%s12 + $0xa0] sm:$0xff] %vm244, %v1131
  %1157 = vst.msk [vmem:[%s12 + $0xa8] sm:$0xff] %vm244, %v1132
  %1158 = vst.msk [vmem:[%s12 + $0xb0] sm:$0xff] %vm244, %v1133
  %1159 = vst.msk [vmem:[%s12 + $0xb8] sm:$0xff] %vm244, %v1134
  %1160 = vst.msk [vmem:[%s12 + $0xc0] sm:$0xff] %vm244, %v1135
  %v1161 = vpack.c.bf16 %v220, %v219
  %v1162 = vpack.c.bf16 %v222, %v221
  %v1163 = vpack.c.bf16 %v224, %v223
  %v1164 = vpack.c.bf16 %v226, %v225
  %v1165 = vpack.c.bf16 %v228, %v227
  %v1166 = vpack.c.bf16 %v230, %v229
  %v1167 = vpack.c.bf16 %v232, %v231
  %v1168 = vpack.c.bf16 %v234, %v233
  %v1169 = vpack.c.bf16 %v236, %v235
  %v1170 = vpack.c.bf16 %v238, %v237
  %v1171 = vpack.c.bf16 %v240, %v239
  %v1172 = vpack.c.bf16 %v242, %v241
  %v1173 = vpack.c.bf16 %v243, %v243
  %v1174 = vld [vmem:[%s6] sm:$0xf]
  %v1175 = vld [vmem:[%s6 + $0x4] sm:$0xf]
  %v1176 = vld [vmem:[%s7] sm:$0x1]
  %v1178 = vperm.slane %v1176, 0
  %v1182 = vunpack.c.l.b16 %v1174
  %v1183 = vunpack.c.l.b16 %v1175
  %v1184 = vpack.c.b16 %v1183, %v1182
  %v1187 = vsel %vm244, %v1161, 0
  %v1190 = vsel %vm244, %v1162, 0
  %v1193 = vsel %vm244, %v1163, 0
  %v1196 = vsel %vm244, %v1164, 0
  %v1199 = vsel %vm244, %v1165, 0
  %v1202 = vsel %vm244, %v1166, 0
  %v1205 = vsel %vm244, %v1167, 0
  %v1208 = vsel %vm244, %v1168, 0
  %v1211 = vsel %vm244, %v1169, 0
  %v1214 = vsel %vm244, %v1170, 0
  %v1217 = vsel %vm244, %v1171, 0
  %v1220 = vsel %vm244, %v1172, 0
  %v1223 = vsel %vm244, %v1173, 0
  %1225 = vmatpush.bf16.msra.mxu0 0
  %1226 = vmatpush.bf16.msra.mxu0 0
  %1227 = vmatpush.bf16.msra.mxu0 0
  %1228 = vmatpush.bf16.msra.mxu0 0
  %1229 = vmatpush.bf16.msra.mxu0 0
  %1230 = vmatpush.bf16.msra.mxu0 0
  %1231 = vmatpush.bf16.msra.mxu0 0
  %1232 = vmatpush.bf16.msra.mxu0 %v1184
  %1233 = vmatmul.bf16.gmra.mxu0 %v1187
  %v1234 = vpop.f32.mrf.mxu0
  %v1235 = vadd.f32 %v1178, %v1234
  %v1236 = vpop.f32.mrf.mxu0
  %v1237 = vadd.f32 %v1178, %v1236
  %1238 = vmatmul.bf16.gmra.mxu0 %v1190
  %v1239 = vpop.f32.mrf.mxu0
  %v1240 = vadd.f32 %v1178, %v1239
  %v1241 = vpop.f32.mrf.mxu0
  %v1242 = vadd.f32 %v1178, %v1241
  %1243 = vmatmul.bf16.gmra.mxu0 %v1193
  %v1244 = vpop.f32.mrf.mxu0
  %v1245 = vadd.f32 %v1178, %v1244
  %v1246 = vpop.f32.mrf.mxu0
  %v1247 = vadd.f32 %v1178, %v1246
  %1248 = vmatmul.bf16.gmra.mxu0 %v1196
  %v1249 = vpop.f32.mrf.mxu0
  %v1250 = vadd.f32 %v1178, %v1249
  %v1251 = vpop.f32.mrf.mxu0
  %v1252 = vadd.f32 %v1178, %v1251
  %1253 = vmatmul.bf16.gmra.mxu0 %v1199
  %v1254 = vpop.f32.mrf.mxu0
  %v1255 = vadd.f32 %v1178, %v1254
  %v1256 = vpop.f32.mrf.mxu0
  %v1257 = vadd.f32 %v1178, %v1256
  %1258 = vmatmul.bf16.gmra.mxu0 %v1202
  %v1259 = vpop.f32.mrf.mxu0
  %v1260 = vadd.f32 %v1178, %v1259
  %v1261 = vpop.f32.mrf.mxu0
  %v1262 = vadd.f32 %v1178, %v1261
  %1263 = vmatmul.bf16.gmra.mxu0 %v1205
  %v1264 = vpop.f32.mrf.mxu0
  %v1265 = vadd.f32 %v1178, %v1264
  %v1266 = vpop.f32.mrf.mxu0
  %v1267 = vadd.f32 %v1178, %v1266
  %1268 = vmatmul.bf16.gmra.mxu0 %v1208
  %v1269 = vpop.f32.mrf.mxu0
  %v1270 = vadd.f32 %v1178, %v1269
  %v1271 = vpop.f32.mrf.mxu0
  %v1272 = vadd.f32 %v1178, %v1271
  %1273 = vmatmul.bf16.gmra.mxu0 %v1211
  %v1274 = vpop.f32.mrf.mxu0
  %v1275 = vadd.f32 %v1178, %v1274
  %v1276 = vpop.f32.mrf.mxu0
  %v1277 = vadd.f32 %v1178, %v1276
  %1278 = vmatmul.bf16.gmra.mxu0 %v1214
  %v1279 = vpop.f32.mrf.mxu0
  %v1280 = vadd.f32 %v1178, %v1279
  %v1281 = vpop.f32.mrf.mxu0
  %v1282 = vadd.f32 %v1178, %v1281
  %1283 = vmatmul.bf16.gmra.mxu0 %v1217
  %v1284 = vpop.f32.mrf.mxu0
  %v1285 = vadd.f32 %v1178, %v1284
  %v1286 = vpop.f32.mrf.mxu0
  %v1287 = vadd.f32 %v1178, %v1286
  %1288 = vmatmul.bf16.gmra.mxu0 %v1220
  %v1289 = vpop.f32.mrf.mxu0
  %v1290 = vadd.f32 %v1178, %v1289
  %v1291 = vpop.f32.mrf.mxu0
  %v1292 = vadd.f32 %v1178, %v1291
  %1293 = vmatmul.bf16.gmra.mxu0 %v1223
  %v1294 = vpop.f32.mrf.mxu0
  %v1295 = vadd.f32 %v1178, %v1294
  %v1296 = vpop.f32.mrf.mxu0
  %1297 = vdwg.mxu0
  %v1298 = vmax.f32 %v1235, 0.0
  %v1299 = vmax.f32 %v1237, 0.0
  %v1300 = vmax.f32 %v1240, 0.0
  %v1301 = vmax.f32 %v1242, 0.0
  %v1302 = vmax.f32 %v1245, 0.0
  %v1303 = vmax.f32 %v1247, 0.0
  %v1304 = vmax.f32 %v1250, 0.0
  %v1305 = vmax.f32 %v1252, 0.0
  %v1306 = vmax.f32 %v1255, 0.0
  %v1307 = vmax.f32 %v1257, 0.0
  %v1308 = vmax.f32 %v1260, 0.0
  %v1309 = vmax.f32 %v1262, 0.0
  %v1310 = vmax.f32 %v1265, 0.0
  %v1311 = vmax.f32 %v1267, 0.0
  %v1312 = vmax.f32 %v1270, 0.0
  %v1313 = vmax.f32 %v1272, 0.0
  %v1314 = vmax.f32 %v1275, 0.0
  %v1315 = vmax.f32 %v1277, 0.0
  %v1316 = vmax.f32 %v1280, 0.0
  %v1317 = vmax.f32 %v1282, 0.0
  %v1318 = vmax.f32 %v1285, 0.0
  %v1319 = vmax.f32 %v1287, 0.0
  %v1320 = vmax.f32 %v1290, 0.0
  %v1321 = vmax.f32 %v1292, 0.0
  %v1322 = vmax.f32 %v1295, 0.0
  %v1323 = vmul.f32 %v1298, %v97
  %v1324 = vmul.f32 %v1299, %v102
  %v1325 = vmul.f32 %v1300, %v107
  %v1326 = vmul.f32 %v1301, %v112
  %v1327 = vmul.f32 %v1302, %v117
  %v1328 = vmul.f32 %v1303, %v122
  %v1329 = vmul.f32 %v1304, %v127
  %v1330 = vmul.f32 %v1305, %v132
  %v1331 = vmul.f32 %v1306, %v137
  %v1332 = vmul.f32 %v1307, %v142
  %v1333 = vmul.f32 %v1308, %v147
  %v1334 = vmul.f32 %v1309, %v152
  %v1335 = vmul.f32 %v1310, %v157
  %v1336 = vmul.f32 %v1311, %v162
  %v1337 = vmul.f32 %v1312, %v167
  %v1338 = vmul.f32 %v1313, %v172
  %v1339 = vmul.f32 %v1314, %v177
  %v1340 = vmul.f32 %v1315, %v182
  %v1341 = vmul.f32 %v1316, %v187
  %v1342 = vmul.f32 %v1317, %v192
  %v1343 = vmul.f32 %v1318, %v197
  %v1344 = vmul.f32 %v1319, %v202
  %v1345 = vmul.f32 %v1320, %v207
  %v1346 = vmul.f32 %v1321, %v212
  %v1347 = vmul.f32 %v1322, %v217
  %1348 = vst.msk [vmem:[#allocation3] sm:$0xff] %vm244, 0.0
  %1349 = vst.msk [vmem:[#allocation3 + $0x8] sm:$0xff] %vm244, 0.0
  %1350 = vst.msk [vmem:[#allocation3 + $0xd8] sm:$0xff] %vm244, 0.0
  %1351 = vst.msk [vmem:[#allocation3 + $0xe0] sm:$0xff] %vm244, 0.0
  %1352 = vst.msk [vmem:[#allocation3 + $0x10] sm:$0xff] %vm244, %v1323
  %1353 = vst.msk [vmem:[#allocation3 + $0x18] sm:$0xff] %vm244, %v1324
  %1354 = vst.msk [vmem:[#allocation3 + $0x20] sm:$0xff] %vm244, %v1325
  %1355 = vst.msk [vmem:[#allocation3 + $0x28] sm:$0xff] %vm244, %v1326
  %1356 = vst.msk [vmem:[#allocation3 + $0x30] sm:$0xff] %vm244, %v1327
  %1357 = vst.msk [vmem:[#allocation3 + $0x38] sm:$0xff] %vm244, %v1328
  %1358 = vst.msk [vmem:[#allocation3 + $0x40] sm:$0xff] %vm244, %v1329
  %1359 = vst.msk [vmem:[#allocation3 + $0x48] sm:$0xff] %vm244, %v1330
  %1360 = vst.msk [vmem:[#allocation3 + $0x50] sm:$0xff] %vm244, %v1331
  %1361 = vst.msk [vmem:[#allocation3 + $0x58] sm:$0xff] %vm244, %v1332
  %1362 = vst.msk [vmem:[#allocation3 + $0x60] sm:$0xff] %vm244, %v1333
  %1363 = vst.msk [vmem:[#allocation3 + $0x68] sm:$0xff] %vm244, %v1334
  %1364 = vst.msk [vmem:[#allocation3 + $0x70] sm:$0xff] %vm244, %v1335
  %1365 = vst.msk [vmem:[#allocation3 + $0x78] sm:$0xff] %vm244, %v1336
  %1366 = vst.msk [vmem:[#allocation3 + $0x80] sm:$0xff] %vm244, %v1337
  %1367 = vst.msk [vmem:[#allocation3 + $0x88] sm:$0xff] %vm244, %v1338
  %1368 = vst.msk [vmem:[#allocation3 + $0x90] sm:$0xff] %vm244, %v1339
  %1369 = vst.msk [vmem:[#allocation3 + $0x98] sm:$0xff] %vm244, %v1340
  %1370 = vst.msk [vmem:[#allocation3 + $0xa0] sm:$0xff] %vm244, %v1341
  %1371 = vst.msk [vmem:[#allocation3 + $0xa8] sm:$0xff] %vm244, %v1342
  %1372 = vst.msk [vmem:[#allocation3 + $0xb0] sm:$0xff] %vm244, %v1343
  %1373 = vst.msk [vmem:[#allocation3 + $0xb8] sm:$0xff] %vm244, %v1344
  %1374 = vst.msk [vmem:[#allocation3 + $0xc0] sm:$0xff] %vm244, %v1345
  %1375 = vst.msk [vmem:[#allocation3 + $0xc8] sm:$0xff] %vm244, %v1346
  %1376 = vst.msk [vmem:[#allocation3 + $0xd0] sm:$0xff] %vm244, %v1347
  %v1377 = vld [vmem:[#allocation3 + $0x5] sm:$0xff]
  %v1378 = vld [vmem:[#allocation3 + $0xd] sm:$0xff]
  %v1379 = vld [vmem:[#allocation3 + $0x15] sm:$0xff]
  %v1380 = vld [vmem:[#allocation3 + $0x1d] sm:$0xff]
  %v1381 = vld [vmem:[#allocation3 + $0x25] sm:$0xff]
  %v1382 = vld [vmem:[#allocation3 + $0x2d] sm:$0xff]
  %v1383 = vld [vmem:[#allocation3 + $0x35] sm:$0xff]
  %v1384 = vld [vmem:[#allocation3 + $0x3d] sm:$0xff]
  %v1385 = vld [vmem:[#allocation3 + $0x45] sm:$0xff]
  %v1386 = vld [vmem:[#allocation3 + $0x4d] sm:$0xff]
  %v1387 = vld [vmem:[#allocation3 + $0x55] sm:$0xff]
  %v1388 = vld [vmem:[#allocation3 + $0x5d] sm:$0xff]
  %v1389 = vld [vmem:[#allocation3 + $0x65] sm:$0xff]
  %v1390 = vld [vmem:[#allocation3 + $0x6d] sm:$0xff]
  %v1391 = vld [vmem:[#allocation3 + $0x75] sm:$0xff]
  %v1392 = vld [vmem:[#allocation3 + $0x7d] sm:$0xff]
  %v1393 = vld [vmem:[#allocation3 + $0x85] sm:$0xff]
  %v1394 = vld [vmem:[#allocation3 + $0x8d] sm:$0xff]
  %v1395 = vld [vmem:[#allocation3 + $0x95] sm:$0xff]
  %v1396 = vld [vmem:[#allocation3 + $0x9d] sm:$0xff]
  %v1397 = vld [vmem:[#allocation3 + $0xa5] sm:$0xff]
  %v1398 = vld [vmem:[#allocation3 + $0xad] sm:$0xff]
  %v1399 = vld [vmem:[#allocation3 + $0xb5] sm:$0xff]
  %v1400 = vld [vmem:[#allocation3 + $0xbd] sm:$0xff]
  %v1401 = vld [vmem:[#allocation3 + $0xc5] sm:$0xff]
  %v1402 = vld [vmem:[%s8] sm:$0x1]
  %v1404 = vperm.slane %v1402, 0
  %v1406 = vmul.f32 %v1377, %v1404
  %v1407 = vmul.f32 %v1378, %v1404
  %v1408 = vmul.f32 %v1379, %v1404
  %v1409 = vmul.f32 %v1380, %v1404
  %v1410 = vmul.f32 %v1381, %v1404
  %v1411 = vmul.f32 %v1382, %v1404
  %v1412 = vmul.f32 %v1383, %v1404
  %v1413 = vmul.f32 %v1384, %v1404
  %v1414 = vmul.f32 %v1385, %v1404
  %v1415 = vmul.f32 %v1386, %v1404
  %v1416 = vmul.f32 %v1387, %v1404
  %v1417 = vmul.f32 %v1388, %v1404
  %v1418 = vmul.f32 %v1389, %v1404
  %v1419 = vmul.f32 %v1390, %v1404
  %v1420 = vmul.f32 %v1391, %v1404
  %v1421 = vmul.f32 %v1392, %v1404
  %v1422 = vmul.f32 %v1393, %v1404
  %v1423 = vmul.f32 %v1394, %v1404
  %v1424 = vmul.f32 %v1395, %v1404
  %v1425 = vmul.f32 %v1396, %v1404
  %v1426 = vmul.f32 %v1397, %v1404
  %v1427 = vmul.f32 %v1398, %v1404
  %v1428 = vmul.f32 %v1399, %v1404
  %v1429 = vmul.f32 %v1400, %v1404
  %v1430 = vmul.f32 %v1401, %v1404
  %v1431 = vadd.f32 %v1406, 0.0
  %v1432 = vadd.f32 %v1407, 0.0
  %v1433 = vadd.f32 %v1408, 0.0
  %v1434 = vadd.f32 %v1409, 0.0
  %v1435 = vadd.f32 %v1410, 0.0
  %v1436 = vadd.f32 %v1411, 0.0
  %v1437 = vadd.f32 %v1412, 0.0
  %v1438 = vadd.f32 %v1413, 0.0
  %v1439 = vadd.f32 %v1414, 0.0
  %v1440 = vadd.f32 %v1415, 0.0
  %v1441 = vadd.f32 %v1416, 0.0
  %v1442 = vadd.f32 %v1417, 0.0
  %v1443 = vadd.f32 %v1418, 0.0
  %v1444 = vadd.f32 %v1419, 0.0
  %v1445 = vadd.f32 %v1420, 0.0
  %v1446 = vadd.f32 %v1421, 0.0
  %v1447 = vadd.f32 %v1422, 0.0
  %v1448 = vadd.f32 %v1423, 0.0
  %v1449 = vadd.f32 %v1424, 0.0
  %v1450 = vadd.f32 %v1425, 0.0
  %v1451 = vadd.f32 %v1426, 0.0
  %v1452 = vadd.f32 %v1427, 0.0
  %v1453 = vadd.f32 %v1428, 0.0
  %v1454 = vadd.f32 %v1429, 0.0
  %v1455 = vadd.f32 %v1430, 0.0
  %v1456 = vld [vmem:[#allocation3 + $0x6] sm:$0xff]
  %v1457 = vld [vmem:[#allocation3 + $0xe] sm:$0xff]
  %v1458 = vld [vmem:[#allocation3 + $0x16] sm:$0xff]
  %v1459 = vld [vmem:[#allocation3 + $0x1e] sm:$0xff]
  %v1460 = vld [vmem:[#allocation3 + $0x26] sm:$0xff]
  %v1461 = vld [vmem:[#allocation3 + $0x2e] sm:$0xff]
  %v1462 = vld [vmem:[#allocation3 + $0x36] sm:$0xff]
  %v1463 = vld [vmem:[#allocation3 + $0x3e] sm:$0xff]
  %v1464 = vld [vmem:[#allocation3 + $0x46] sm:$0xff]
  %v1465 = vld [vmem:[#allocation3 + $0x4e] sm:$0xff]
  %v1466 = vld [vmem:[#allocation3 + $0x56] sm:$0xff]
  %v1467 = vld [vmem:[#allocation3 + $0x5e] sm:$0xff]
  %v1468 = vld [vmem:[#allocation3 + $0x66] sm:$0xff]
  %v1469 = vld [vmem:[#allocation3 + $0x6e] sm:$0xff]
  %v1470 = vld [vmem:[#allocation3 + $0x76] sm:$0xff]
  %v1471 = vld [vmem:[#allocation3 + $0x7e] sm:$0xff]
  %v1472 = vld [vmem:[#allocation3 + $0x86] sm:$0xff]
  %v1473 = vld [vmem:[#allocation3 + $0x8e] sm:$0xff]
  %v1474 = vld [vmem:[#allocation3 + $0x96] sm:$0xff]
  %v1475 = vld [vmem:[#allocation3 + $0x9e] sm:$0xff]
  %v1476 = vld [vmem:[#allocation3 + $0xa6] sm:$0xff]
  %v1477 = vld [vmem:[#allocation3 + $0xae] sm:$0xff]
  %v1478 = vld [vmem:[#allocation3 + $0xb6] sm:$0xff]
  %v1479 = vld [vmem:[#allocation3 + $0xbe] sm:$0xff]
  %v1480 = vld [vmem:[#allocation3 + $0xc6] sm:$0xff]
  %s1481 = scalar_lea.vmem %s8, 1
  %v1482 = vld [vmem:[%s1481] sm:$0x1]
  %v1484 = vperm.slane %v1482, 0
  %v1486 = vmul.f32 %v1456, %v1484
  %v1487 = vmul.f32 %v1457, %v1484
  %v1488 = vmul.f32 %v1458, %v1484
  %v1489 = vmul.f32 %v1459, %v1484
  %v1490 = vmul.f32 %v1460, %v1484
  %v1491 = vmul.f32 %v1461, %v1484
  %v1492 = vmul.f32 %v1462, %v1484
  %v1493 = vmul.f32 %v1463, %v1484
  %v1494 = vmul.f32 %v1464, %v1484
  %v1495 = vmul.f32 %v1465, %v1484
  %v1496 = vmul.f32 %v1466, %v1484
  %v1497 = vmul.f32 %v1467, %v1484
  %v1498 = vmul.f32 %v1468, %v1484
  %v1499 = vmul.f32 %v1469, %v1484
  %v1500 = vmul.f32 %v1470, %v1484
  %v1501 = vmul.f32 %v1471, %v1484
  %v1502 = vmul.f32 %v1472, %v1484
  %v1503 = vmul.f32 %v1473, %v1484
  %v1504 = vmul.f32 %v1474, %v1484
  %v1505 = vmul.f32 %v1475, %v1484
  %v1506 = vmul.f32 %v1476, %v1484
  %v1507 = vmul.f32 %v1477, %v1484
  %v1508 = vmul.f32 %v1478, %v1484
  %v1509 = vmul.f32 %v1479, %v1484
  %v1510 = vmul.f32 %v1480, %v1484
  %v1511 = vadd.f32 %v1431, %v1486
  %v1512 = vadd.f32 %v1432, %v1487
  %v1513 = vadd.f32 %v1433, %v1488
  %v1514 = vadd.f32 %v1434, %v1489
  %v1515 = vadd.f32 %v1435, %v1490
  %v1516 = vadd.f32 %v1436, %v1491
  %v1517 = vadd.f32 %v1437, %v1492
  %v1518 = vadd.f32 %v1438, %v1493
  %v1519 = vadd.f32 %v1439, %v1494
  %v1520 = vadd.f32 %v1440, %v1495
  %v1521 = vadd.f32 %v1441, %v1496
  %v1522 = vadd.f32 %v1442, %v1497
  %v1523 = vadd.f32 %v1443, %v1498
  %v1524 = vadd.f32 %v1444, %v1499
  %v1525 = vadd.f32 %v1445, %v1500
  %v1526 = vadd.f32 %v1446, %v1501
  %v1527 = vadd.f32 %v1447, %v1502
  %v1528 = vadd.f32 %v1448, %v1503
  %v1529 = vadd.f32 %v1449, %v1504
  %v1530 = vadd.f32 %v1450, %v1505
  %v1531 = vadd.f32 %v1451, %v1506
  %v1532 = vadd.f32 %v1452, %v1507
  %v1533 = vadd.f32 %v1453, %v1508
  %v1534 = vadd.f32 %v1454, %v1509
  %v1535 = vadd.f32 %v1455, %v1510
  %v1536 = vld [vmem:[#allocation3 + $0x7] sm:$0xff]
  %v1537 = vld [vmem:[#allocation3 + $0xf] sm:$0xff]
  %v1538 = vld [vmem:[#allocation3 + $0x17] sm:$0xff]
  %v1539 = vld [vmem:[#allocation3 + $0x1f] sm:$0xff]
  %v1540 = vld [vmem:[#allocation3 + $0x27] sm:$0xff]
  %v1541 = vld [vmem:[#allocation3 + $0x2f] sm:$0xff]
  %v1542 = vld [vmem:[#allocation3 + $0x37] sm:$0xff]
  %v1543 = vld [vmem:[#allocation3 + $0x3f] sm:$0xff]
  %v1544 = vld [vmem:[#allocation3 + $0x47] sm:$0xff]
  %v1545 = vld [vmem:[#allocation3 + $0x4f] sm:$0xff]
  %v1546 = vld [vmem:[#allocation3 + $0x57] sm:$0xff]
  %v1547 = vld [vmem:[#allocation3 + $0x5f] sm:$0xff]
  %v1548 = vld [vmem:[#allocation3 + $0x67] sm:$0xff]
  %v1549 = vld [vmem:[#allocation3 + $0x6f] sm:$0xff]
  %v1550 = vld [vmem:[#allocation3 + $0x77] sm:$0xff]
  %v1551 = vld [vmem:[#allocation3 + $0x7f] sm:$0xff]
  %v1552 = vld [vmem:[#allocation3 + $0x87] sm:$0xff]
  %v1553 = vld [vmem:[#allocation3 + $0x8f] sm:$0xff]
  %v1554 = vld [vmem:[#allocation3 + $0x97] sm:$0xff]
  %v1555 = vld [vmem:[#allocation3 + $0x9f] sm:$0xff]
  %v1556 = vld [vmem:[#allocation3 + $0xa7] sm:$0xff]
  %v1557 = vld [vmem:[#allocation3 + $0xaf] sm:$0xff]
  %v1558 = vld [vmem:[#allocation3 + $0xb7] sm:$0xff]
  %v1559 = vld [vmem:[#allocation3 + $0xbf] sm:$0xff]
  %v1560 = vld [vmem:[#allocation3 + $0xc7] sm:$0xff]
  %s1561 = scalar_lea.vmem %s8, 2
  %v1562 = vld [vmem:[%s1561] sm:$0x1]
  %v1564 = vperm.slane %v1562, 0
  %v1566 = vmul.f32 %v1536, %v1564
  %v1567 = vmul.f32 %v1537, %v1564
  %v1568 = vmul.f32 %v1538, %v1564
  %v1569 = vmul.f32 %v1539, %v1564
  %v1570 = vmul.f32 %v1540, %v1564
  %v1571 = vmul.f32 %v1541, %v1564
  %v1572 = vmul.f32 %v1542, %v1564
  %v1573 = vmul.f32 %v1543, %v1564
  %v1574 = vmul.f32 %v1544, %v1564
  %v1575 = vmul.f32 %v1545, %v1564
  %v1576 = vmul.f32 %v1546, %v1564
  %v1577 = vmul.f32 %v1547, %v1564
  %v1578 = vmul.f32 %v1548, %v1564
  %v1579 = vmul.f32 %v1549, %v1564
  %v1580 = vmul.f32 %v1550, %v1564
  %v1581 = vmul.f32 %v1551, %v1564
  %v1582 = vmul.f32 %v1552, %v1564
  %v1583 = vmul.f32 %v1553, %v1564
  %v1584 = vmul.f32 %v1554, %v1564
  %v1585 = vmul.f32 %v1555, %v1564
  %v1586 = vmul.f32 %v1556, %v1564
  %v1587 = vmul.f32 %v1557, %v1564
  %v1588 = vmul.f32 %v1558, %v1564
  %v1589 = vmul.f32 %v1559, %v1564
  %v1590 = vmul.f32 %v1560, %v1564
  %v1591 = vadd.f32 %v1511, %v1566
  %v1592 = vadd.f32 %v1512, %v1567
  %v1593 = vadd.f32 %v1513, %v1568
  %v1594 = vadd.f32 %v1514, %v1569
  %v1595 = vadd.f32 %v1515, %v1570
  %v1596 = vadd.f32 %v1516, %v1571
  %v1597 = vadd.f32 %v1517, %v1572
  %v1598 = vadd.f32 %v1518, %v1573
  %v1599 = vadd.f32 %v1519, %v1574
  %v1600 = vadd.f32 %v1520, %v1575
  %v1601 = vadd.f32 %v1521, %v1576
  %v1602 = vadd.f32 %v1522, %v1577
  %v1603 = vadd.f32 %v1523, %v1578
  %v1604 = vadd.f32 %v1524, %v1579
  %v1605 = vadd.f32 %v1525, %v1580
  %v1606 = vadd.f32 %v1526, %v1581
  %v1607 = vadd.f32 %v1527, %v1582
  %v1608 = vadd.f32 %v1528, %v1583
  %v1609 = vadd.f32 %v1529, %v1584
  %v1610 = vadd.f32 %v1530, %v1585
  %v1611 = vadd.f32 %v1531, %v1586
  %v1612 = vadd.f32 %v1532, %v1587
  %v1613 = vadd.f32 %v1533, %v1588
  %v1614 = vadd.f32 %v1534, %v1589
  %v1615 = vadd.f32 %v1535, %v1590
  %v1616 = vld [vmem:[#allocation3 + $0xcf] sm:$0xff]
  %s1617 = scalar_lea.vmem %s8, 3
  %v1618 = vld [vmem:[%s1617] sm:$0x1]
  %v1620 = vperm.slane %v1618, 0
  %v1622 = vmul.f32 %v1537, %v1620
  %v1623 = vmul.f32 %v1538, %v1620
  %v1624 = vmul.f32 %v1539, %v1620
  %v1625 = vmul.f32 %v1540, %v1620
  %v1626 = vmul.f32 %v1541, %v1620
  %v1627 = vmul.f32 %v1542, %v1620
  %v1628 = vmul.f32 %v1543, %v1620
  %v1629 = vmul.f32 %v1544, %v1620
  %v1630 = vmul.f32 %v1545, %v1620
  %v1631 = vmul.f32 %v1546, %v1620
  %v1632 = vmul.f32 %v1547, %v1620
  %v1633 = vmul.f32 %v1548, %v1620
  %v1634 = vmul.f32 %v1549, %v1620
  %v1635 = vmul.f32 %v1550, %v1620
  %v1636 = vmul.f32 %v1551, %v1620
  %v1637 = vmul.f32 %v1552, %v1620
  %v1638 = vmul.f32 %v1553, %v1620
  %v1639 = vmul.f32 %v1554, %v1620
  %v1640 = vmul.f32 %v1555, %v1620
  %v1641 = vmul.f32 %v1556, %v1620
  %v1642 = vmul.f32 %v1557, %v1620
  %v1643 = vmul.f32 %v1558, %v1620
  %v1644 = vmul.f32 %v1559, %v1620
  %v1645 = vmul.f32 %v1560, %v1620
  %v1646 = vmul.f32 %v1616, %v1620
  %v1647 = vadd.f32 %v1591, %v1622
  %v1648 = vadd.f32 %v1592, %v1623
  %v1649 = vadd.f32 %v1593, %v1624
  %v1650 = vadd.f32 %v1594, %v1625
  %v1651 = vadd.f32 %v1595, %v1626
  %v1652 = vadd.f32 %v1596, %v1627
  %v1653 = vadd.f32 %v1597, %v1628
  %v1654 = vadd.f32 %v1598, %v1629
  %v1655 = vadd.f32 %v1599, %v1630
  %v1656 = vadd.f32 %v1600, %v1631
  %v1657 = vadd.f32 %v1601, %v1632
  %v1658 = vadd.f32 %v1602, %v1633
  %v1659 = vadd.f32 %v1603, %v1634
  %v1660 = vadd.f32 %v1604, %v1635
  %v1661 = vadd.f32 %v1605, %v1636
  %v1662 = vadd.f32 %v1606, %v1637
  %v1663 = vadd.f32 %v1607, %v1638
  %v1664 = vadd.f32 %v1608, %v1639
  %v1665 = vadd.f32 %v1609, %v1640
  %v1666 = vadd.f32 %v1610, %v1641
  %v1667 = vadd.f32 %v1611, %v1642
  %v1668 = vadd.f32 %v1612, %v1643
  %v1669 = vadd.f32 %v1613, %v1644
  %v1670 = vadd.f32 %v1614, %v1645
  %v1671 = vadd.f32 %v1615, %v1646
  %v1672 = vld [vmem:[#allocation3 + $0x10] sm:$0xff]
  %v1673 = vld [vmem:[#allocation3 + $0x18] sm:$0xff]
  %v1674 = vld [vmem:[#allocation3 + $0x20] sm:$0xff]
  %v1675 = vld [vmem:[#allocation3 + $0x28] sm:$0xff]
  %v1676 = vld [vmem:[#allocation3 + $0x30] sm:$0xff]
  %v1677 = vld [vmem:[#allocation3 + $0x38] sm:$0xff]
  %v1678 = vld [vmem:[#allocation3 + $0x40] sm:$0xff]
  %v1679 = vld [vmem:[#allocation3 + $0x48] sm:$0xff]
  %v1680 = vld [vmem:[#allocation3 + $0x50] sm:$0xff]
  %v1681 = vld [vmem:[#allocation3 + $0x58] sm:$0xff]
  %v1682 = vld [vmem:[#allocation3 + $0x60] sm:$0xff]
  %v1683 = vld [vmem:[#allocation3 + $0x68] sm:$0xff]
  %v1684 = vld [vmem:[#allocation3 + $0x70] sm:$0xff]
  %v1685 = vld [vmem:[#allocation3 + $0x78] sm:$0xff]
  %v1686 = vld [vmem:[#allocation3 + $0x80] sm:$0xff]
  %v1687 = vld [vmem:[#allocation3 + $0x88] sm:$0xff]
  %v1688 = vld [vmem:[#allocation3 + $0x90] sm:$0xff]
  %v1689 = vld [vmem:[#allocation3 + $0x98] sm:$0xff]
  %v1690 = vld [vmem:[#allocation3 + $0xa0] sm:$0xff]
  %v1691 = vld [vmem:[#allocation3 + $0xa8] sm:$0xff]
  %v1692 = vld [vmem:[#allocation3 + $0xb0] sm:$0xff]
  %v1693 = vld [vmem:[#allocation3 + $0xb8] sm:$0xff]
  %v1694 = vld [vmem:[#allocation3 + $0xc0] sm:$0xff]
  %v1695 = vld [vmem:[#allocation3 + $0xc8] sm:$0xff]
  %v1696 = vld [vmem:[#allocation3 + $0xd0] sm:$0xff]
  %s1697 = scalar_lea.vmem %s8, 4
  %v1698 = vld [vmem:[%s1697] sm:$0x1]
  %v1700 = vperm.slane %v1698, 0
  %v1702 = vmul.f32 %v1672, %v1700
  %v1703 = vmul.f32 %v1673, %v1700
  %v1704 = vmul.f32 %v1674, %v1700
  %v1705 = vmul.f32 %v1675, %v1700
  %v1706 = vmul.f32 %v1676, %v1700
  %v1707 = vmul.f32 %v1677, %v1700
  %v1708 = vmul.f32 %v1678, %v1700
  %v1709 = vmul.f32 %v1679, %v1700
  %v1710 = vmul.f32 %v1680, %v1700
  %v1711 = vmul.f32 %v1681, %v1700
  %v1712 = vmul.f32 %v1682, %v1700
  %v1713 = vmul.f32 %v1683, %v1700
  %v1714 = vmul.f32 %v1684, %v1700
  %v1715 = vmul.f32 %v1685, %v1700
  %v1716 = vmul.f32 %v1686, %v1700
  %v1717 = vmul.f32 %v1687, %v1700
  %v1718 = vmul.f32 %v1688, %v1700
  %v1719 = vmul.f32 %v1689, %v1700
  %v1720 = vmul.f32 %v1690, %v1700
  %v1721 = vmul.f32 %v1691, %v1700
  %v1722 = vmul.f32 %v1692, %v1700
  %v1723 = vmul.f32 %v1693, %v1700
  %v1724 = vmul.f32 %v1694, %v1700
  %v1725 = vmul.f32 %v1695, %v1700
  %v1726 = vmul.f32 %v1696, %v1700
  %v1727 = vadd.f32 %v1647, %v1702
  %v1728 = vadd.f32 %v1648, %v1703
  %v1729 = vadd.f32 %v1649, %v1704
  %v1730 = vadd.f32 %v1650, %v1705
  %v1731 = vadd.f32 %v1651, %v1706
  %v1732 = vadd.f32 %v1652, %v1707
  %v1733 = vadd.f32 %v1653, %v1708
  %v1734 = vadd.f32 %v1654, %v1709
  %v1735 = vadd.f32 %v1655, %v1710
  %v1736 = vadd.f32 %v1656, %v1711
  %v1737 = vadd.f32 %v1657, %v1712
  %v1738 = vadd.f32 %v1658, %v1713
  %v1739 = vadd.f32 %v1659, %v1714
  %v1740 = vadd.f32 %v1660, %v1715
  %v1741 = vadd.f32 %v1661, %v1716
  %v1742 = vadd.f32 %v1662, %v1717
  %v1743 = vadd.f32 %v1663, %v1718
  %v1744 = vadd.f32 %v1664, %v1719
  %v1745 = vadd.f32 %v1665, %v1720
  %v1746 = vadd.f32 %v1666, %v1721
  %v1747 = vadd.f32 %v1667, %v1722
  %v1748 = vadd.f32 %v1668, %v1723
  %v1749 = vadd.f32 %v1669, %v1724
  %v1750 = vadd.f32 %v1670, %v1725
  %v1751 = vadd.f32 %v1671, %v1726
  %v1752 = vld [vmem:[#allocation3 + $0x11] sm:$0xff]
  %v1753 = vld [vmem:[#allocation3 + $0x19] sm:$0xff]
  %v1754 = vld [vmem:[#allocation3 + $0x21] sm:$0xff]
  %v1755 = vld [vmem:[#allocation3 + $0x29] sm:$0xff]
  %v1756 = vld [vmem:[#allocation3 + $0x31] sm:$0xff]
  %v1757 = vld [vmem:[#allocation3 + $0x39] sm:$0xff]
  %v1758 = vld [vmem:[#allocation3 + $0x41] sm:$0xff]
  %v1759 = vld [vmem:[#allocation3 + $0x49] sm:$0xff]
  %v1760 = vld [vmem:[#allocation3 + $0x51] sm:$0xff]
  %v1761 = vld [vmem:[#allocation3 + $0x59] sm:$0xff]
  %v1762 = vld [vmem:[#allocation3 + $0x61] sm:$0xff]
  %v1763 = vld [vmem:[#allocation3 + $0x69] sm:$0xff]
  %v1764 = vld [vmem:[#allocation3 + $0x71] sm:$0xff]
  %v1765 = vld [vmem:[#allocation3 + $0x79] sm:$0xff]
  %v1766 = vld [vmem:[#allocation3 + $0x81] sm:$0xff]
  %v1767 = vld [vmem:[#allocation3 + $0x89] sm:$0xff]
  %v1768 = vld [vmem:[#allocation3 + $0x91] sm:$0xff]
  %v1769 = vld [vmem:[#allocation3 + $0x99] sm:$0xff]
  %v1770 = vld [vmem:[#allocation3 + $0xa1] sm:$0xff]
  %v1771 = vld [vmem:[#allocation3 + $0xa9] sm:$0xff]
  %v1772 = vld [vmem:[#allocation3 + $0xb1] sm:$0xff]
  %v1773 = vld [vmem:[#allocation3 + $0xb9] sm:$0xff]
  %v1774 = vld [vmem:[#allocation3 + $0xc1] sm:$0xff]
  %v1775 = vld [vmem:[#allocation3 + $0xc9] sm:$0xff]
  %v1776 = vld [vmem:[#allocation3 + $0xd1] sm:$0xff]
  %s1777 = scalar_lea.vmem %s8, 5
  %v1778 = vld [vmem:[%s1777] sm:$0x1]
  %v1780 = vperm.slane %v1778, 0
  %v1782 = vmul.f32 %v1752, %v1780
  %v1783 = vmul.f32 %v1753, %v1780
  %v1784 = vmul.f32 %v1754, %v1780
  %v1785 = vmul.f32 %v1755, %v1780
  %v1786 = vmul.f32 %v1756, %v1780
  %v1787 = vmul.f32 %v1757, %v1780
  %v1788 = vmul.f32 %v1758, %v1780
  %v1789 = vmul.f32 %v1759, %v1780
  %v1790 = vmul.f32 %v1760, %v1780
  %v1791 = vmul.f32 %v1761, %v1780
  %v1792 = vmul.f32 %v1762, %v1780
  %v1793 = vmul.f32 %v1763, %v1780
  %v1794 = vmul.f32 %v1764, %v1780
  %v1795 = vmul.f32 %v1765, %v1780
  %v1796 = vmul.f32 %v1766, %v1780
  %v1797 = vmul.f32 %v1767, %v1780
  %v1798 = vmul.f32 %v1768, %v1780
  %v1799 = vmul.f32 %v1769, %v1780
  %v1800 = vmul.f32 %v1770, %v1780
  %v1801 = vmul.f32 %v1771, %v1780
  %v1802 = vmul.f32 %v1772, %v1780
  %v1803 = vmul.f32 %v1773, %v1780
  %v1804 = vmul.f32 %v1774, %v1780
  %v1805 = vmul.f32 %v1775, %v1780
  %v1806 = vmul.f32 %v1776, %v1780
  %v1807 = vadd.f32 %v1727, %v1782
  %v1808 = vadd.f32 %v1728, %v1783
  %v1809 = vadd.f32 %v1729, %v1784
  %v1810 = vadd.f32 %v1730, %v1785
  %v1811 = vadd.f32 %v1731, %v1786
  %v1812 = vadd.f32 %v1732, %v1787
  %v1813 = vadd.f32 %v1733, %v1788
  %v1814 = vadd.f32 %v1734, %v1789
  %v1815 = vadd.f32 %v1735, %v1790
  %v1816 = vadd.f32 %v1736, %v1791
  %v1817 = vadd.f32 %v1737, %v1792
  %v1818 = vadd.f32 %v1738, %v1793
  %v1819 = vadd.f32 %v1739, %v1794
  %v1820 = vadd.f32 %v1740, %v1795
  %v1821 = vadd.f32 %v1741, %v1796
  %v1822 = vadd.f32 %v1742, %v1797
  %v1823 = vadd.f32 %v1743, %v1798
  %v1824 = vadd.f32 %v1744, %v1799
  %v1825 = vadd.f32 %v1745, %v1800
  %v1826 = vadd.f32 %v1746, %v1801
  %v1827 = vadd.f32 %v1747, %v1802
  %v1828 = vadd.f32 %v1748, %v1803
  %v1829 = vadd.f32 %v1749, %v1804
  %v1830 = vadd.f32 %v1750, %v1805
  %v1831 = vadd.f32 %v1751, %v1806
  %v1832 = vld [vmem:[#allocation3 + $0xd9] sm:$0xff]
  %s1833 = scalar_lea.vmem %s8, 6
  %v1834 = vld [vmem:[%s1833] sm:$0x1]
  %v1836 = vperm.slane %v1834, 0
  %v1838 = vmul.f32 %v1753, %v1836
  %v1839 = vmul.f32 %v1754, %v1836
  %v1840 = vmul.f32 %v1755, %v1836
  %v1841 = vmul.f32 %v1756, %v1836
  %v1842 = vmul.f32 %v1757, %v1836
  %v1843 = vmul.f32 %v1758, %v1836
  %v1844 = vmul.f32 %v1759, %v1836
  %v1845 = vmul.f32 %v1760, %v1836
  %v1846 = vmul.f32 %v1761, %v1836
  %v1847 = vmul.f32 %v1762, %v1836
  %v1848 = vmul.f32 %v1763, %v1836
  %v1849 = vmul.f32 %v1764, %v1836
  %v1850 = vmul.f32 %v1765, %v1836
  %v1851 = vmul.f32 %v1766, %v1836
  %v1852 = vmul.f32 %v1767, %v1836
  %v1853 = vmul.f32 %v1768, %v1836
  %v1854 = vmul.f32 %v1769, %v1836
  %v1855 = vmul.f32 %v1770, %v1836
  %v1856 = vmul.f32 %v1771, %v1836
  %v1857 = vmul.f32 %v1772, %v1836
  %v1858 = vmul.f32 %v1773, %v1836
  %v1859 = vmul.f32 %v1774, %v1836
  %v1860 = vmul.f32 %v1775, %v1836
  %v1861 = vmul.f32 %v1776, %v1836
  %v1862 = vmul.f32 %v1832, %v1836
  %v1863 = vadd.f32 %v1807, %v1838
  %v1864 = vadd.f32 %v1808, %v1839
  %v1865 = vadd.f32 %v1809, %v1840
  %v1866 = vadd.f32 %v1810, %v1841
  %v1867 = vadd.f32 %v1811, %v1842
  %v1868 = vadd.f32 %v1812, %v1843
  %v1869 = vadd.f32 %v1813, %v1844
  %v1870 = vadd.f32 %v1814, %v1845
  %v1871 = vadd.f32 %v1815, %v1846
  %v1872 = vadd.f32 %v1816, %v1847
  %v1873 = vadd.f32 %v1817, %v1848
  %v1874 = vadd.f32 %v1818, %v1849
  %v1875 = vadd.f32 %v1819, %v1850
  %v1876 = vadd.f32 %v1820, %v1851
  %v1877 = vadd.f32 %v1821, %v1852
  %v1878 = vadd.f32 %v1822, %v1853
  %v1879 = vadd.f32 %v1823, %v1854
  %v1880 = vadd.f32 %v1824, %v1855
  %v1881 = vadd.f32 %v1825, %v1856
  %v1882 = vadd.f32 %v1826, %v1857
  %v1883 = vadd.f32 %v1827, %v1858
  %v1884 = vadd.f32 %v1828, %v1859
  %v1885 = vadd.f32 %v1829, %v1860
  %v1886 = vadd.f32 %v1830, %v1861
  %v1887 = vadd.f32 %v1831, %v1862
  %v1888 = vld [vmem:[#allocation3 + $0x1a] sm:$0xff]
  %v1889 = vld [vmem:[#allocation3 + $0x22] sm:$0xff]
  %v1890 = vld [vmem:[#allocation3 + $0x2a] sm:$0xff]
  %v1891 = vld [vmem:[#allocation3 + $0x32] sm:$0xff]
  %v1892 = vld [vmem:[#allocation3 + $0x3a] sm:$0xff]
  %v1893 = vld [vmem:[#allocation3 + $0x42] sm:$0xff]
  %v1894 = vld [vmem:[#allocation3 + $0x4a] sm:$0xff]
  %v1895 = vld [vmem:[#allocation3 + $0x52] sm:$0xff]
  %v1896 = vld [vmem:[#allocation3 + $0x5a] sm:$0xff]
  %v1897 = vld [vmem:[#allocation3 + $0x62] sm:$0xff]
  %v1898 = vld [vmem:[#allocation3 + $0x6a] sm:$0xff]
  %v1899 = vld [vmem:[#allocation3 + $0x72] sm:$0xff]
  %v1900 = vld [vmem:[#allocation3 + $0x7a] sm:$0xff]
  %v1901 = vld [vmem:[#allocation3 + $0x82] sm:$0xff]
  %v1902 = vld [vmem:[#allocation3 + $0x8a] sm:$0xff]
  %v1903 = vld [vmem:[#allocation3 + $0x92] sm:$0xff]
  %v1904 = vld [vmem:[#allocation3 + $0x9a] sm:$0xff]
  %v1905 = vld [vmem:[#allocation3 + $0xa2] sm:$0xff]
  %v1906 = vld [vmem:[#allocation3 + $0xaa] sm:$0xff]
  %v1907 = vld [vmem:[#allocation3 + $0xb2] sm:$0xff]
  %v1908 = vld [vmem:[#allocation3 + $0xba] sm:$0xff]
  %v1909 = vld [vmem:[#allocation3 + $0xc2] sm:$0xff]
  %v1910 = vld [vmem:[#allocation3 + $0xca] sm:$0xff]
  %v1911 = vld [vmem:[#allocation3 + $0xd2] sm:$0xff]
  %v1912 = vld [vmem:[#allocation3 + $0xda] sm:$0xff]
  %s1913 = scalar_lea.vmem %s8, 7
  %v1914 = vld [vmem:[%s1913] sm:$0x1]
  %v1916 = vperm.slane %v1914, 0
  %v1918 = vmul.f32 %v1888, %v1916
  %v1919 = vmul.f32 %v1889, %v1916
  %v1920 = vmul.f32 %v1890, %v1916
  %v1921 = vmul.f32 %v1891, %v1916
  %v1922 = vmul.f32 %v1892, %v1916
  %v1923 = vmul.f32 %v1893, %v1916
  %v1924 = vmul.f32 %v1894, %v1916
  %v1925 = vmul.f32 %v1895, %v1916
  %v1926 = vmul.f32 %v1896, %v1916
  %v1927 = vmul.f32 %v1897, %v1916
  %v1928 = vmul.f32 %v1898, %v1916
  %v1929 = vmul.f32 %v1899, %v1916
  %v1930 = vmul.f32 %v1900, %v1916
  %v1931 = vmul.f32 %v1901, %v1916
  %v1932 = vmul.f32 %v1902, %v1916
  %v1933 = vmul.f32 %v1903, %v1916
  %v1934 = vmul.f32 %v1904, %v1916
  %v1935 = vmul.f32 %v1905, %v1916
  %v1936 = vmul.f32 %v1906, %v1916
  %v1937 = vmul.f32 %v1907, %v1916
  %v1938 = vmul.f32 %v1908, %v1916
  %v1939 = vmul.f32 %v1909, %v1916
  %v1940 = vmul.f32 %v1910, %v1916
  %v1941 = vmul.f32 %v1911, %v1916
  %v1942 = vmul.f32 %v1912, %v1916
  %v1943 = vadd.f32 %v1863, %v1918
  %v1944 = vadd.f32 %v1864, %v1919
  %v1945 = vadd.f32 %v1865, %v1920
  %v1946 = vadd.f32 %v1866, %v1921
  %v1947 = vadd.f32 %v1867, %v1922
  %v1948 = vadd.f32 %v1868, %v1923
  %v1949 = vadd.f32 %v1869, %v1924
  %v1950 = vadd.f32 %v1870, %v1925
  %v1951 = vadd.f32 %v1871, %v1926
  %v1952 = vadd.f32 %v1872, %v1927
  %v1953 = vadd.f32 %v1873, %v1928
  %v1954 = vadd.f32 %v1874, %v1929
  %v1955 = vadd.f32 %v1875, %v1930
  %v1956 = vadd.f32 %v1876, %v1931
  %v1957 = vadd.f32 %v1877, %v1932
  %v1958 = vadd.f32 %v1878, %v1933
  %v1959 = vadd.f32 %v1879, %v1934
  %v1960 = vadd.f32 %v1880, %v1935
  %v1961 = vadd.f32 %v1881, %v1936
  %v1962 = vadd.f32 %v1882, %v1937
  %v1963 = vadd.f32 %v1883, %v1938
  %v1964 = vadd.f32 %v1884, %v1939
  %v1965 = vadd.f32 %v1885, %v1940
  %v1966 = vadd.f32 %v1886, %v1941
  %v1967 = vadd.f32 %v1887, %v1942
  %v1968 = vld [vmem:[#allocation3 + $0x1b] sm:$0xff]
  %v1969 = vld [vmem:[#allocation3 + $0x23] sm:$0xff]
  %v1970 = vld [vmem:[#allocation3 + $0x2b] sm:$0xff]
  %v1971 = vld [vmem:[#allocation3 + $0x33] sm:$0xff]
  %v1972 = vld [vmem:[#allocation3 + $0x3b] sm:$0xff]
  %v1973 = vld [vmem:[#allocation3 + $0x43] sm:$0xff]
  %v1974 = vld [vmem:[#allocation3 + $0x4b] sm:$0xff]
  %v1975 = vld [vmem:[#allocation3 + $0x53] sm:$0xff]
  %v1976 = vld [vmem:[#allocation3 + $0x5b] sm:$0xff]
  %v1977 = vld [vmem:[#allocation3 + $0x63] sm:$0xff]
  %v1978 = vld [vmem:[#allocation3 + $0x6b] sm:$0xff]
  %v1979 = vld [vmem:[#allocation3 + $0x73] sm:$0xff]
  %v1980 = vld [vmem:[#allocation3 + $0x7b] sm:$0xff]
  %v1981 = vld [vmem:[#allocation3 + $0x83] sm:$0xff]
  %v1982 = vld [vmem:[#allocation3 + $0x8b] sm:$0xff]
  %v1983 = vld [vmem:[#allocation3 + $0x93] sm:$0xff]
  %v1984 = vld [vmem:[#allocation3 + $0x9b] sm:$0xff]
  %v1985 = vld [vmem:[#allocation3 + $0xa3] sm:$0xff]
  %v1986 = vld [vmem:[#allocation3 + $0xab] sm:$0xff]
  %v1987 = vld [vmem:[#allocation3 + $0xb3] sm:$0xff]
  %v1988 = vld [vmem:[#allocation3 + $0xbb] sm:$0xff]
  %v1989 = vld [vmem:[#allocation3 + $0xc3] sm:$0xff]
  %v1990 = vld [vmem:[#allocation3 + $0xcb] sm:$0xff]
  %v1991 = vld [vmem:[#allocation3 + $0xd3] sm:$0xff]
  %v1992 = vld [vmem:[#allocation3 + $0xdb] sm:$0xff]
  %s1993 = scalar_lea.vmem %s8, 8
  %v1994 = vld [vmem:[%s1993] sm:$0x1]
  %v1996 = vperm.slane %v1994, 0
  %v1998 = vmul.f32 %v1968, %v1996
  %v1999 = vmul.f32 %v1969, %v1996
  %v2000 = vmul.f32 %v1970, %v1996
  %v2001 = vmul.f32 %v1971, %v1996
  %v2002 = vmul.f32 %v1972, %v1996
  %v2003 = vmul.f32 %v1973, %v1996
  %v2004 = vmul.f32 %v1974, %v1996
  %v2005 = vmul.f32 %v1975, %v1996
  %v2006 = vmul.f32 %v1976, %v1996
  %v2007 = vmul.f32 %v1977, %v1996
  %v2008 = vmul.f32 %v1978, %v1996
  %v2009 = vmul.f32 %v1979, %v1996
  %v2010 = vmul.f32 %v1980, %v1996
  %v2011 = vmul.f32 %v1981, %v1996
  %v2012 = vmul.f32 %v1982, %v1996
  %v2013 = vmul.f32 %v1983, %v1996
  %v2014 = vmul.f32 %v1984, %v1996
  %v2015 = vmul.f32 %v1985, %v1996
  %v2016 = vmul.f32 %v1986, %v1996
  %v2017 = vmul.f32 %v1987, %v1996
  %v2018 = vmul.f32 %v1988, %v1996
  %v2019 = vmul.f32 %v1989, %v1996
  %v2020 = vmul.f32 %v1990, %v1996
  %v2021 = vmul.f32 %v1991, %v1996
  %v2022 = vmul.f32 %v1992, %v1996
  %v2023 = vadd.f32 %v1943, %v1998
  %v2024 = vadd.f32 %v1944, %v1999
  %v2025 = vadd.f32 %v1945, %v2000
  %v2026 = vadd.f32 %v1946, %v2001
  %v2027 = vadd.f32 %v1947, %v2002
  %v2028 = vadd.f32 %v1948, %v2003
  %v2029 = vadd.f32 %v1949, %v2004
  %v2030 = vadd.f32 %v1950, %v2005
  %v2031 = vadd.f32 %v1951, %v2006
  %v2032 = vadd.f32 %v1952, %v2007
  %v2033 = vadd.f32 %v1953, %v2008
  %v2034 = vadd.f32 %v1954, %v2009
  %v2035 = vadd.f32 %v1955, %v2010
  %v2036 = vadd.f32 %v1956, %v2011
  %v2037 = vadd.f32 %v1957, %v2012
  %v2038 = vadd.f32 %v1958, %v2013
  %v2039 = vadd.f32 %v1959, %v2014
  %v2040 = vadd.f32 %v1960, %v2015
  %v2041 = vadd.f32 %v1961, %v2016
  %v2042 = vadd.f32 %v1962, %v2017
  %v2043 = vadd.f32 %v1963, %v2018
  %v2044 = vadd.f32 %v1964, %v2019
  %v2045 = vadd.f32 %v1965, %v2020
  %v2046 = vadd.f32 %v1966, %v2021
  %v2047 = vadd.f32 %v1967, %v2022
  %v2048 = vld [vmem:[%s9] sm:$0x1]
  %v2050 = vperm.slane %v2048, 0
  %v2052 = vadd.f32 %v2023, %v2050
  %v2053 = vadd.f32 %v2024, %v2050
  %v2054 = vadd.f32 %v2025, %v2050
  %v2055 = vadd.f32 %v2026, %v2050
  %v2056 = vadd.f32 %v2027, %v2050
  %v2057 = vadd.f32 %v2028, %v2050
  %v2058 = vadd.f32 %v2029, %v2050
  %v2059 = vadd.f32 %v2030, %v2050
  %v2060 = vadd.f32 %v2031, %v2050
  %v2061 = vadd.f32 %v2032, %v2050
  %v2062 = vadd.f32 %v2033, %v2050
  %v2063 = vadd.f32 %v2034, %v2050
  %v2064 = vadd.f32 %v2035, %v2050
  %v2065 = vadd.f32 %v2036, %v2050
  %v2066 = vadd.f32 %v2037, %v2050
  %v2067 = vadd.f32 %v2038, %v2050
  %v2068 = vadd.f32 %v2039, %v2050
  %v2069 = vadd.f32 %v2040, %v2050
  %v2070 = vadd.f32 %v2041, %v2050
  %v2071 = vadd.f32 %v2042, %v2050
  %v2072 = vadd.f32 %v2043, %v2050
  %v2073 = vadd.f32 %v2044, %v2050
  %v2074 = vadd.f32 %v2045, %v2050
  %v2075 = vadd.f32 %v2046, %v2050
  %v2076 = vadd.f32 %v2047, %v2050
  %v2077 = vpack.c.bf16 %v2053, %v2052
  %v2078 = vpack.c.bf16 %v2055, %v2054
  %v2079 = vpack.c.bf16 %v2057, %v2056
  %v2080 = vpack.c.bf16 %v2059, %v2058
  %v2081 = vpack.c.bf16 %v2061, %v2060
  %v2082 = vpack.c.bf16 %v2063, %v2062
  %v2083 = vpack.c.bf16 %v2065, %v2064
  %v2084 = vpack.c.bf16 %v2067, %v2066
  %v2085 = vpack.c.bf16 %v2069, %v2068
  %v2086 = vpack.c.bf16 %v2071, %v2070
  %v2087 = vpack.c.bf16 %v2073, %v2072
  %v2088 = vpack.c.bf16 %v2075, %v2074
  %v2089 = vpack.c.bf16 %v2076, %v2076
  %v2090 = vld [vmem:[%s10] sm:$0xf]
  %v2091 = vld [vmem:[%s10 + $0x4] sm:$0xf]
  %v2092 = vld [vmem:[%s11] sm:$0x1]
  %v2094 = vperm.slane %v2092, 0
  %v2098 = vunpack.c.l.b16 %v2090
  %v2099 = vunpack.c.l.b16 %v2091
  %v2100 = vpack.c.b16 %v2099, %v2098
  %v2103 = vsel %vm244, %v2077, 0
  %v2106 = vsel %vm244, %v2078, 0
  %v2109 = vsel %vm244, %v2079, 0
  %v2112 = vsel %vm244, %v2080, 0
  %v2115 = vsel %vm244, %v2081, 0
  %v2118 = vsel %vm244, %v2082, 0
  %v2121 = vsel %vm244, %v2083, 0
  %v2124 = vsel %vm244, %v2084, 0
  %v2127 = vsel %vm244, %v2085, 0
  %v2130 = vsel %vm244, %v2086, 0
  %v2133 = vsel %vm244, %v2087, 0
  %v2136 = vsel %vm244, %v2088, 0
  %v2139 = vsel %vm244, %v2089, 0
  %2141 = vmatpush.bf16.msra.mxu0 0
  %2142 = vmatpush.bf16.msra.mxu0 0
  %2143 = vmatpush.bf16.msra.mxu0 0
  %2144 = vmatpush.bf16.msra.mxu0 0
  %2145 = vmatpush.bf16.msra.mxu0 0
  %2146 = vmatpush.bf16.msra.mxu0 0
  %2147 = vmatpush.bf16.msra.mxu0 0
  %2148 = vmatpush.bf16.msra.mxu0 %v2100
  %2149 = vmatmul.bf16.gmra.mxu0 %v2103
  %v2150 = vpop.f32.mrf.mxu0
  %v2151 = vadd.f32 %v2094, %v2150
  %v2152 = vpop.f32.mrf.mxu0
  %v2153 = vadd.f32 %v2094, %v2152
  %2154 = vmatmul.bf16.gmra.mxu0 %v2106
  %v2155 = vpop.f32.mrf.mxu0
  %v2156 = vadd.f32 %v2094, %v2155
  %v2157 = vpop.f32.mrf.mxu0
  %v2158 = vadd.f32 %v2094, %v2157
  %2159 = vmatmul.bf16.gmra.mxu0 %v2109
  %v2160 = vpop.f32.mrf.mxu0
  %v2161 = vadd.f32 %v2094, %v2160
  %v2162 = vpop.f32.mrf.mxu0
  %v2163 = vadd.f32 %v2094, %v2162
  %2164 = vmatmul.bf16.gmra.mxu0 %v2112
  %v2165 = vpop.f32.mrf.mxu0
  %v2166 = vadd.f32 %v2094, %v2165
  %v2167 = vpop.f32.mrf.mxu0
  %v2168 = vadd.f32 %v2094, %v2167
  %2169 = vmatmul.bf16.gmra.mxu0 %v2115
  %v2170 = vpop.f32.mrf.mxu0
  %v2171 = vadd.f32 %v2094, %v2170
  %v2172 = vpop.f32.mrf.mxu0
  %v2173 = vadd.f32 %v2094, %v2172
  %2174 = vmatmul.bf16.gmra.mxu0 %v2118
  %v2175 = vpop.f32.mrf.mxu0
  %v2176 = vadd.f32 %v2094, %v2175
  %v2177 = vpop.f32.mrf.mxu0
  %v2178 = vadd.f32 %v2094, %v2177
  %2179 = vmatmul.bf16.gmra.mxu0 %v2121
  %v2180 = vpop.f32.mrf.mxu0
  %v2181 = vadd.f32 %v2094, %v2180
  %v2182 = vpop.f32.mrf.mxu0
  %v2183 = vadd.f32 %v2094, %v2182
  %2184 = vmatmul.bf16.gmra.mxu0 %v2124
  %v2185 = vpop.f32.mrf.mxu0
  %v2186 = vadd.f32 %v2094, %v2185
  %v2187 = vpop.f32.mrf.mxu0
  %v2188 = vadd.f32 %v2094, %v2187
  %2189 = vmatmul.bf16.gmra.mxu0 %v2127
  %v2190 = vpop.f32.mrf.mxu0
  %v2191 = vadd.f32 %v2094, %v2190
  %v2192 = vpop.f32.mrf.mxu0
  %v2193 = vadd.f32 %v2094, %v2192
  %2194 = vmatmul.bf16.gmra.mxu0 %v2130
  %v2195 = vpop.f32.mrf.mxu0
  %v2196 = vadd.f32 %v2094, %v2195
  %v2197 = vpop.f32.mrf.mxu0
  %v2198 = vadd.f32 %v2094, %v2197
  %2199 = vmatmul.bf16.gmra.mxu0 %v2133
  %v2200 = vpop.f32.mrf.mxu0
  %v2201 = vadd.f32 %v2094, %v2200
  %v2202 = vpop.f32.mrf.mxu0
  %v2203 = vadd.f32 %v2094, %v2202
  %2204 = vmatmul.bf16.gmra.mxu0 %v2136
  %v2205 = vpop.f32.mrf.mxu0
  %v2206 = vadd.f32 %v2094, %v2205
  %v2207 = vpop.f32.mrf.mxu0
  %v2208 = vadd.f32 %v2094, %v2207
  %2209 = vmatmul.bf16.gmra.mxu0 %v2139
  %v2210 = vpop.f32.mrf.mxu0
  %v2211 = vadd.f32 %v2094, %v2210
  %v2212 = vpop.f32.mrf.mxu0
  %2213 = vdwg.mxu0
  %v2214 = vmax.f32 %v2151, 0.0
  %v2215 = vmax.f32 %v2153, 0.0
  %v2216 = vmax.f32 %v2156, 0.0
  %v2217 = vmax.f32 %v2158, 0.0
  %v2218 = vmax.f32 %v2161, 0.0
  %v2219 = vmax.f32 %v2163, 0.0
  %v2220 = vmax.f32 %v2166, 0.0
  %v2221 = vmax.f32 %v2168, 0.0
  %v2222 = vmax.f32 %v2171, 0.0
  %v2223 = vmax.f32 %v2173, 0.0
  %v2224 = vmax.f32 %v2176, 0.0
  %v2225 = vmax.f32 %v2178, 0.0
  %v2226 = vmax.f32 %v2181, 0.0
  %v2227 = vmax.f32 %v2183, 0.0
  %v2228 = vmax.f32 %v2186, 0.0
  %v2229 = vmax.f32 %v2188, 0.0
  %v2230 = vmax.f32 %v2191, 0.0
  %v2231 = vmax.f32 %v2193, 0.0
  %v2232 = vmax.f32 %v2196, 0.0
  %v2233 = vmax.f32 %v2198, 0.0
  %v2234 = vmax.f32 %v2201, 0.0
  %v2235 = vmax.f32 %v2203, 0.0
  %v2236 = vmax.f32 %v2206, 0.0
  %v2237 = vmax.f32 %v2208, 0.0
  %v2238 = vmax.f32 %v2211, 0.0
  %2239 = vst.msk [vmem:[%s13] sm:$0xff] %vm244, %v2214
  %2240 = vst.msk [vmem:[%s13 + $0x8] sm:$0xff] %vm244, %v2215
  %2241 = vst.msk [vmem:[%s13 + $0x10] sm:$0xff] %vm244, %v2216
  %2242 = vst.msk [vmem:[%s13 + $0x18] sm:$0xff] %vm244, %v2217
  %2243 = vst.msk [vmem:[%s13 + $0x20] sm:$0xff] %vm244, %v2218
  %2244 = vst.msk [vmem:[%s13 + $0x28] sm:$0xff] %vm244, %v2219
  %2245 = vst.msk [vmem:[%s13 + $0x30] sm:$0xff] %vm244, %v2220
  %2246 = vst.msk [vmem:[%s13 + $0x38] sm:$0xff] %vm244, %v2221
  %2247 = vst.msk [vmem:[%s13 + $0x40] sm:$0xff] %vm244, %v2222
  %2248 = vst.msk [vmem:[%s13 + $0x48] sm:$0xff] %vm244, %v2223
  %2249 = vst.msk [vmem:[%s13 + $0x50] sm:$0xff] %vm244, %v2224
  %2250 = vst.msk [vmem:[%s13 + $0x58] sm:$0xff] %vm244, %v2225
  %2251 = vst.msk [vmem:[%s13 + $0x60] sm:$0xff] %vm244, %v2226
  %2252 = vst.msk [vmem:[%s13 + $0x68] sm:$0xff] %vm244, %v2227
  %2253 = vst.msk [vmem:[%s13 + $0x70] sm:$0xff] %vm244, %v2228
  %2254 = vst.msk [vmem:[%s13 + $0x78] sm:$0xff] %vm244, %v2229
  %2255 = vst.msk [vmem:[%s13 + $0x80] sm:$0xff] %vm244, %v2230
  %2256 = vst.msk [vmem:[%s13 + $0x88] sm:$0xff] %vm244, %v2231
  %2257 = vst.msk [vmem:[%s13 + $0x90] sm:$0xff] %vm244, %v2232
  %2258 = vst.msk [vmem:[%s13 + $0x98] sm:$0xff] %vm244, %v2233
  %2259 = vst.msk [vmem:[%s13 + $0xa0] sm:$0xff] %vm244, %v2234
  %2260 = vst.msk [vmem:[%s13 + $0xa8] sm:$0xff] %vm244, %v2235
  %2261 = vst.msk [vmem:[%s13 + $0xb0] sm:$0xff] %vm244, %v2236
  %2262 = vst.msk [vmem:[%s13 + $0xb8] sm:$0xff] %vm244, %v2237
  %2263 = vst.msk [vmem:[%s13 + $0xc0] sm:$0xff] %vm244, %v2238
  // Predicated region
  $region50: #{shufflenetv2_backbone_fwd.14} parent=0 // pred_check
    _
  $region51: #{shufflenetv2_backbone_fwd.14} parent=0 // pred_check_branch
    %2265 = sbr.rel (0) target = $region53
  $region52: #{shufflenetv2_backbone_fwd.14} parent=0 // pred_region
    _
  $region53: #{shufflenetv2_backbone_fwd.14} parent=0 // pred_fallthru
    _
  // Predicated region
  $region54: #{shufflenetv2_backbone_fwd.14} parent=0 // pred_check
    _
  $region55: #{shufflenetv2_backbone_fwd.14} parent=0 // pred_check_branch
    %2267 = sbr.rel (0) target = $region57
  $region56: #{shufflenetv2_backbone_fwd.14} parent=0 // pred_region
    _
  $region57: #{shufflenetv2_backbone_fwd.14} parent=0 // pred_fallthru
    _
  // Predicated region
  $region58: #{shufflenetv2_backbone_fwd.14} parent=0 // pred_check
    _
  $region59: #{shufflenetv2_backbone_fwd.14} parent=0 // pred_check_branch
    %2269 = sbr.rel (0) target = $region61
  $region60: #{shufflenetv2_backbone_fwd.14} parent=0 // pred_region
    _
  $region61: #{shufflenetv2_backbone_fwd.14} parent=0 // pred_fallthru
    _
  // Predicated region
  $region62: #{shufflenetv2_backbone_fwd.14} parent=0 // pred_check
    _
  $region63: #{shufflenetv2_backbone_fwd.14} parent=0 // pred_check_branch
    %2271 = sbr.rel (0) target = $region65
  $region64: #{shufflenetv2_backbone_fwd.14} parent=0 // pred_region
    _
  $region65: #{shufflenetv2_backbone_fwd.14} parent=0 // pred_fallthru
    _

// kernel: shufflenetv2_backbone_fwd.18
$region0: #{shufflenetv2_backbone_fwd.18}
  #allocation0 [shape = 'u32[]', space=smem, size = 0x4, offset = 0x4, fixed_abs, tag = 'smem constant byte address 0x4 - core index']
  #allocation1 [shape = 'u32[72,128]{1,0:T(1,128)}', space=vmem, size = 0x9000, scoped, tag = 'internal scratch']
  #allocation2 [shape = 'f32[88,32]{1,0:T(8,128)}', space=vmem, size = 0xb000, scoped, tag = 'scratch operand']
  #allocation3 [shape = 'f32[88,32]{1,0:T(8,128)}', space=vmem, size = 0xb000, scoped, tag = 'scratch operand']
  %s0 = inlined_call_operand.vmem [shape: f32[72,32], index: 0, kind: input, shape index: {}]
  %s1 = inlined_call_operand.vmem [shape: f32[72,1], index: 1, kind: input, shape index: {}]
  %s2 = inlined_call_operand.vmem [shape: f32[9,1,32], index: 2, kind: input, shape index: {}]
  %s3 = inlined_call_operand.vmem [shape: f32[1,32], index: 3, kind: input, shape index: {}]
  %s4 = inlined_call_operand.vmem [shape: bf16[32,32], index: 4, kind: input, shape index: {}]
  %s5 = inlined_call_operand.vmem [shape: f32[1,32], index: 5, kind: input, shape index: {}]
  %s6 = inlined_call_operand.vmem [shape: bf16[32,32], index: 6, kind: input, shape index: {}]
  %s7 = inlined_call_operand.vmem [shape: f32[1,32], index: 7, kind: input, shape index: {}]
  %s8 = inlined_call_operand.vmem [shape: f32[9,1,32], index: 8, kind: input, shape index: {}]
  %s9 = inlined_call_operand.vmem [shape: f32[1,32], index: 9, kind: input, shape index: {}]
  %s10 = inlined_call_operand.vmem [shape: bf16[32,32], index: 10, kind: input, shape index: {}]
  %s11 = inlined_call_operand.vmem [shape: f32[1,32], index: 11, kind: input, shape index: {}]
  %s12 = inlined_call_operand.vmem [shape: f32[72,32], index: 12, kind: output, shape index: {0}]
  %s13 = inlined_call_operand.vmem [shape: f32[72,32], index: 13, kind: output, shape index: {1}]
  %14 = xla_tuple %s12, %s13
  %s15 = sld [smem:[#allocation0]]
  $region66: #{shufflenetv2_backbone_fwd.18} parent=0
    _
  %s17 = ssub.s32 1, %s15
  %s18 = scalar_select 0, %s17, %s15
  // Predicated region
  $region2: #{shufflenetv2_backbone_fwd.18} parent=0 // pred_check
    _
  $region3: #{shufflenetv2_backbone_fwd.18} parent=0 // pred_check_branch
    %20 = sbr.rel (0) target = $region5
  $region4: #{shufflenetv2_backbone_fwd.18} parent=0 // pred_region
    _
  $region5: #{shufflenetv2_backbone_fwd.18} parent=0 // pred_fallthru
    _
  // Predicated region
  $region6: #{shufflenetv2_backbone_fwd.18} parent=0 // pred_check
    _
  $region7: #{shufflenetv2_backbone_fwd.18} parent=0 // pred_check_branch
    %22 = sbr.rel (0) target = $region9
  $region8: #{shufflenetv2_backbone_fwd.18} parent=0 // pred_region
    _
  $region9: #{shufflenetv2_backbone_fwd.18} parent=0 // pred_fallthru
    _
  // Predicated region
  $region10: #{shufflenetv2_backbone_fwd.18} parent=0 // pred_check
    _
  $region11: #{shufflenetv2_backbone_fwd.18} parent=0 // pred_check_branch
    %24 = sbr.rel (0) target = $region13
  $region12: #{shufflenetv2_backbone_fwd.18} parent=0 // pred_region
    _
  $region13: #{shufflenetv2_backbone_fwd.18} parent=0 // pred_fallthru
    _
  // Predicated region
  $region14: #{shufflenetv2_backbone_fwd.18} parent=0 // pred_check
    _
  $region15: #{shufflenetv2_backbone_fwd.18} parent=0 // pred_check_branch
    %26 = sbr.rel (0) target = $region17
  $region16: #{shufflenetv2_backbone_fwd.18} parent=0 // pred_region
    _
  $region17: #{shufflenetv2_backbone_fwd.18} parent=0 // pred_fallthru
    _
  // Predicated region
  $region18: #{shufflenetv2_backbone_fwd.18} parent=0 // pred_check
    _
  $region19: #{shufflenetv2_backbone_fwd.18} parent=0 // pred_check_branch
    %28 = sbr.rel (0) target = $region21
  $region20: #{shufflenetv2_backbone_fwd.18} parent=0 // pred_region
    _
  $region21: #{shufflenetv2_backbone_fwd.18} parent=0 // pred_fallthru
    _
  // Predicated region
  $region22: #{shufflenetv2_backbone_fwd.18} parent=0 // pred_check
    _
  $region23: #{shufflenetv2_backbone_fwd.18} parent=0 // pred_check_branch
    %30 = sbr.rel (0) target = $region25
  $region24: #{shufflenetv2_backbone_fwd.18} parent=0 // pred_region
    _
  $region25: #{shufflenetv2_backbone_fwd.18} parent=0 // pred_fallthru
    _
  // Predicated region
  $region26: #{shufflenetv2_backbone_fwd.18} parent=0 // pred_check
    _
  $region27: #{shufflenetv2_backbone_fwd.18} parent=0 // pred_check_branch
    %32 = sbr.rel (0) target = $region29
  $region28: #{shufflenetv2_backbone_fwd.18} parent=0 // pred_region
    _
  $region29: #{shufflenetv2_backbone_fwd.18} parent=0 // pred_fallthru
    _
  // Predicated region
  $region30: #{shufflenetv2_backbone_fwd.18} parent=0 // pred_check
    _
  $region31: #{shufflenetv2_backbone_fwd.18} parent=0 // pred_check_branch
    %34 = sbr.rel (0) target = $region33
  $region32: #{shufflenetv2_backbone_fwd.18} parent=0 // pred_region
    _
  $region33: #{shufflenetv2_backbone_fwd.18} parent=0 // pred_fallthru
    _
  // Predicated region
  $region34: #{shufflenetv2_backbone_fwd.18} parent=0 // pred_check
    _
  $region35: #{shufflenetv2_backbone_fwd.18} parent=0 // pred_check_branch
    %36 = sbr.rel (0) target = $region37
  $region36: #{shufflenetv2_backbone_fwd.18} parent=0 // pred_region
    _
  $region37: #{shufflenetv2_backbone_fwd.18} parent=0 // pred_fallthru
    _
  // Predicated region
  $region38: #{shufflenetv2_backbone_fwd.18} parent=0 // pred_check
    _
  $region39: #{shufflenetv2_backbone_fwd.18} parent=0 // pred_check_branch
    %38 = sbr.rel (0) target = $region41
  $region40: #{shufflenetv2_backbone_fwd.18} parent=0 // pred_region
    _
  $region41: #{shufflenetv2_backbone_fwd.18} parent=0 // pred_fallthru
    _
  // Predicated region
  $region42: #{shufflenetv2_backbone_fwd.18} parent=0 // pred_check
    _
  $region43: #{shufflenetv2_backbone_fwd.18} parent=0 // pred_check_branch
    %40 = sbr.rel (0) target = $region45
  $region44: #{shufflenetv2_backbone_fwd.18} parent=0 // pred_region
    _
  $region45: #{shufflenetv2_backbone_fwd.18} parent=0 // pred_fallthru
    _
  // Predicated region
  $region46: #{shufflenetv2_backbone_fwd.18} parent=0 // pred_check
    _
  $region47: #{shufflenetv2_backbone_fwd.18} parent=0 // pred_check_branch
    %42 = sbr.rel (0) target = $region49
  $region48: #{shufflenetv2_backbone_fwd.18} parent=0 // pred_region
    _
  $region49: #{shufflenetv2_backbone_fwd.18} parent=0 // pred_fallthru
    _
  %v44 = vld [vmem:[%s1] sm:$0xff]
  %v45 = vld [vmem:[%s1 + $0x8] sm:$0xff]
  %v46 = vld [vmem:[%s1 + $0x10] sm:$0xff]
  %v47 = vld [vmem:[%s1 + $0x18] sm:$0xff]
  %v48 = vld [vmem:[%s1 + $0x20] sm:$0xff]
  %v49 = vld [vmem:[%s1 + $0x28] sm:$0xff]
  %v50 = vld [vmem:[%s1 + $0x30] sm:$0xff]
  %v51 = vld [vmem:[%s1 + $0x38] sm:$0xff]
  %v52 = vld [vmem:[%s1 + $0x40] sm:$0xff]
  %v53 = vld [vmem:[%s0] sm:$0xff]
  %v54 = vld [vmem:[%s0 + $0x8] sm:$0xff]
  %v55 = vld [vmem:[%s0 + $0x10] sm:$0xff]
  %v56 = vld [vmem:[%s0 + $0x18] sm:$0xff]
  %v57 = vld [vmem:[%s0 + $0x20] sm:$0xff]
  %v58 = vld [vmem:[%s0 + $0x28] sm:$0xff]
  %v59 = vld [vmem:[%s0 + $0x30] sm:$0xff]
  %v60 = vld [vmem:[%s0 + $0x38] sm:$0xff]
  %v61 = vld [vmem:[%s0 + $0x40] sm:$0xff]
  %63 = vset.pattern.permute.xlu0 0
  %64 = vperm.xlu0 %63, %v44
  %v65 = vpop.permute.xlu0 %64
  %68 = vset.pattern.permute.xlu0 0
  %69 = vperm.xlu0 %68, %v45
  %v70 = vpop.permute.xlu0 %69
  %73 = vset.pattern.permute.xlu0 0
  %74 = vperm.xlu0 %73, %v46
  %v75 = vpop.permute.xlu0 %74
  %78 = vset.pattern.permute.xlu0 0
  %79 = vperm.xlu0 %78, %v47
  %v80 = vpop.permute.xlu0 %79
  %83 = vset.pattern.permute.xlu0 0
  %84 = vperm.xlu0 %83, %v48
  %v85 = vpop.permute.xlu0 %84
  %88 = vset.pattern.permute.xlu0 0
  %89 = vperm.xlu0 %88, %v49
  %v90 = vpop.permute.xlu0 %89
  %93 = vset.pattern.permute.xlu0 0
  %94 = vperm.xlu0 %93, %v50
  %v95 = vpop.permute.xlu0 %94
  %98 = vset.pattern.permute.xlu0 0
  %99 = vperm.xlu0 %98, %v51
  %v100 = vpop.permute.xlu0 %99
  %103 = vset.pattern.permute.xlu0 0
  %104 = vperm.xlu0 %103, %v52
  %v105 = vpop.permute.xlu0 %104
  %v107 = vmul.f32 %v53, %v65
  %v108 = vmul.f32 %v54, %v70
  %v109 = vmul.f32 %v55, %v75
  %v110 = vmul.f32 %v56, %v80
  %v111 = vmul.f32 %v57, %v85
  %v112 = vmul.f32 %v58, %v90
  %v113 = vmul.f32 %v59, %v95
  %v114 = vmul.f32 %v60, %v100
  %v115 = vmul.f32 %v61, %v105
  %vm116 = vcmask 261120
  %117 = vst.msk [vmem:[#allocation2] sm:$0xff] %vm116, 0.0
  %118 = vst.msk [vmem:[#allocation2 + $0x50] sm:$0xff] %vm116, 0.0
  %119 = vst.msk [vmem:[#allocation2 + $0x8] sm:$0xff] %vm116, %v107
  %120 = vst.msk [vmem:[#allocation2 + $0x10] sm:$0xff] %vm116, %v108
  %121 = vst.msk [vmem:[#allocation2 + $0x18] sm:$0xff] %vm116, %v109
  %122 = vst.msk [vmem:[#allocation2 + $0x20] sm:$0xff] %vm116, %v110
  %123 = vst.msk [vmem:[#allocation2 + $0x28] sm:$0xff] %vm116, %v111
  %124 = vst.msk [vmem:[#allocation2 + $0x30] sm:$0xff] %vm116, %v112
  %125 = vst.msk [vmem:[#allocation2 + $0x38] sm:$0xff] %vm116, %v113
  %126 = vst.msk [vmem:[#allocation2 + $0x40] sm:$0xff] %vm116, %v114
  %127 = vst.msk [vmem:[#allocation2 + $0x48] sm:$0xff] %vm116, %v115
  %v128 = vld [vmem:[#allocation2 + $0x1] sm:$0xff]
  %v129 = vld [vmem:[#allocation2 + $0x9] sm:$0xff]
  %v130 = vld [vmem:[#allocation2 + $0x11] sm:$0xff]
  %v131 = vld [vmem:[#allocation2 + $0x19] sm:$0xff]
  %v132 = vld [vmem:[#allocation2 + $0x21] sm:$0xff]
  %v133 = vld [vmem:[#allocation2 + $0x29] sm:$0xff]
  %v134 = vld [vmem:[#allocation2 + $0x31] sm:$0xff]
  %v135 = vld [vmem:[#allocation2 + $0x39] sm:$0xff]
  %v136 = vld [vmem:[#allocation2 + $0x41] sm:$0xff]
  %v137 = vld [vmem:[%s2] sm:$0x1]
  %v139 = vperm.slane %v137, 0
  %v141 = vmul.f32 %v128, %v139
  %v142 = vmul.f32 %v129, %v139
  %v143 = vmul.f32 %v130, %v139
  %v144 = vmul.f32 %v131, %v139
  %v145 = vmul.f32 %v132, %v139
  %v146 = vmul.f32 %v133, %v139
  %v147 = vmul.f32 %v134, %v139
  %v148 = vmul.f32 %v135, %v139
  %v149 = vmul.f32 %v136, %v139
  %v150 = vadd.f32 %v141, 0.0
  %v151 = vadd.f32 %v142, 0.0
  %v152 = vadd.f32 %v143, 0.0
  %v153 = vadd.f32 %v144, 0.0
  %v154 = vadd.f32 %v145, 0.0
  %v155 = vadd.f32 %v146, 0.0
  %v156 = vadd.f32 %v147, 0.0
  %v157 = vadd.f32 %v148, 0.0
  %v158 = vadd.f32 %v149, 0.0
  %v159 = vld [vmem:[#allocation2 + $0x2] sm:$0xff]
  %v160 = vld [vmem:[#allocation2 + $0xa] sm:$0xff]
  %v161 = vld [vmem:[#allocation2 + $0x12] sm:$0xff]
  %v162 = vld [vmem:[#allocation2 + $0x1a] sm:$0xff]
  %v163 = vld [vmem:[#allocation2 + $0x22] sm:$0xff]
  %v164 = vld [vmem:[#allocation2 + $0x2a] sm:$0xff]
  %v165 = vld [vmem:[#allocation2 + $0x32] sm:$0xff]
  %v166 = vld [vmem:[#allocation2 + $0x3a] sm:$0xff]
  %v167 = vld [vmem:[#allocation2 + $0x42] sm:$0xff]
  %s168 = scalar_lea.vmem %s2, 1
  %v169 = vld [vmem:[%s168] sm:$0x1]
  %v171 = vperm.slane %v169, 0
  %v173 = vmul.f32 %v159, %v171
  %v174 = vmul.f32 %v160, %v171
  %v175 = vmul.f32 %v161, %v171
  %v176 = vmul.f32 %v162, %v171
  %v177 = vmul.f32 %v163, %v171
  %v178 = vmul.f32 %v164, %v171
  %v179 = vmul.f32 %v165, %v171
  %v180 = vmul.f32 %v166, %v171
  %v181 = vmul.f32 %v167, %v171
  %v182 = vadd.f32 %v150, %v173
  %v183 = vadd.f32 %v151, %v174
  %v184 = vadd.f32 %v152, %v175
  %v185 = vadd.f32 %v153, %v176
  %v186 = vadd.f32 %v154, %v177
  %v187 = vadd.f32 %v155, %v178
  %v188 = vadd.f32 %v156, %v179
  %v189 = vadd.f32 %v157, %v180
  %v190 = vadd.f32 %v158, %v181
  %v191 = vld [vmem:[#allocation2 + $0x3] sm:$0xff]
  %v192 = vld [vmem:[#allocation2 + $0xb] sm:$0xff]
  %v193 = vld [vmem:[#allocation2 + $0x13] sm:$0xff]
  %v194 = vld [vmem:[#allocation2 + $0x1b] sm:$0xff]
  %v195 = vld [vmem:[#allocation2 + $0x23] sm:$0xff]
  %v196 = vld [vmem:[#allocation2 + $0x2b] sm:$0xff]
  %v197 = vld [vmem:[#allocation2 + $0x33] sm:$0xff]
  %v198 = vld [vmem:[#allocation2 + $0x3b] sm:$0xff]
  %v199 = vld [vmem:[#allocation2 + $0x43] sm:$0xff]
  %s200 = scalar_lea.vmem %s2, 2
  %v201 = vld [vmem:[%s200] sm:$0x1]
  %v203 = vperm.slane %v201, 0
  %v205 = vmul.f32 %v191, %v203
  %v206 = vmul.f32 %v192, %v203
  %v207 = vmul.f32 %v193, %v203
  %v208 = vmul.f32 %v194, %v203
  %v209 = vmul.f32 %v195, %v203
  %v210 = vmul.f32 %v196, %v203
  %v211 = vmul.f32 %v197, %v203
  %v212 = vmul.f32 %v198, %v203
  %v213 = vmul.f32 %v199, %v203
  %v214 = vadd.f32 %v182, %v205
  %v215 = vadd.f32 %v183, %v206
  %v216 = vadd.f32 %v184, %v207
  %v217 = vadd.f32 %v185, %v208
  %v218 = vadd.f32 %v186, %v209
  %v219 = vadd.f32 %v187, %v210
  %v220 = vadd.f32 %v188, %v211
  %v221 = vadd.f32 %v189, %v212
  %v222 = vadd.f32 %v190, %v213
  %v223 = vld [vmem:[#allocation2 + $0x7] sm:$0xff]
  %v224 = vld [vmem:[#allocation2 + $0xf] sm:$0xff]
  %v225 = vld [vmem:[#allocation2 + $0x17] sm:$0xff]
  %v226 = vld [vmem:[#allocation2 + $0x1f] sm:$0xff]
  %v227 = vld [vmem:[#allocation2 + $0x27] sm:$0xff]
  %v228 = vld [vmem:[#allocation2 + $0x2f] sm:$0xff]
  %v229 = vld [vmem:[#allocation2 + $0x37] sm:$0xff]
  %v230 = vld [vmem:[#allocation2 + $0x3f] sm:$0xff]
  %v231 = vld [vmem:[#allocation2 + $0x47] sm:$0xff]
  %s232 = scalar_lea.vmem %s2, 3
  %v233 = vld [vmem:[%s232] sm:$0x1]
  %v235 = vperm.slane %v233, 0
  %v237 = vmul.f32 %v223, %v235
  %v238 = vmul.f32 %v224, %v235
  %v239 = vmul.f32 %v225, %v235
  %v240 = vmul.f32 %v226, %v235
  %v241 = vmul.f32 %v227, %v235
  %v242 = vmul.f32 %v228, %v235
  %v243 = vmul.f32 %v229, %v235
  %v244 = vmul.f32 %v230, %v235
  %v245 = vmul.f32 %v231, %v235
  %v246 = vadd.f32 %v214, %v237
  %v247 = vadd.f32 %v215, %v238
  %v248 = vadd.f32 %v216, %v239
  %v249 = vadd.f32 %v217, %v240
  %v250 = vadd.f32 %v218, %v241
  %v251 = vadd.f32 %v219, %v242
  %v252 = vadd.f32 %v220, %v243
  %v253 = vadd.f32 %v221, %v244
  %v254 = vadd.f32 %v222, %v245
  %v255 = vld [vmem:[#allocation2 + $0x8] sm:$0xff]
  %v256 = vld [vmem:[#allocation2 + $0x10] sm:$0xff]
  %v257 = vld [vmem:[#allocation2 + $0x18] sm:$0xff]
  %v258 = vld [vmem:[#allocation2 + $0x20] sm:$0xff]
  %v259 = vld [vmem:[#allocation2 + $0x28] sm:$0xff]
  %v260 = vld [vmem:[#allocation2 + $0x30] sm:$0xff]
  %v261 = vld [vmem:[#allocation2 + $0x38] sm:$0xff]
  %v262 = vld [vmem:[#allocation2 + $0x40] sm:$0xff]
  %v263 = vld [vmem:[#allocation2 + $0x48] sm:$0xff]
  %s264 = scalar_lea.vmem %s2, 4
  %v265 = vld [vmem:[%s264] sm:$0x1]
  %v267 = vperm.slane %v265, 0
  %v269 = vmul.f32 %v255, %v267
  %v270 = vmul.f32 %v256, %v267
  %v271 = vmul.f32 %v257, %v267
  %v272 = vmul.f32 %v258, %v267
  %v273 = vmul.f32 %v259, %v267
  %v274 = vmul.f32 %v260, %v267
  %v275 = vmul.f32 %v261, %v267
  %v276 = vmul.f32 %v262, %v267
  %v277 = vmul.f32 %v263, %v267
  %v278 = vadd.f32 %v246, %v269
  %v279 = vadd.f32 %v247, %v270
  %v280 = vadd.f32 %v248, %v271
  %v281 = vadd.f32 %v249, %v272
  %v282 = vadd.f32 %v250, %v273
  %v283 = vadd.f32 %v251, %v274
  %v284 = vadd.f32 %v252, %v275
  %v285 = vadd.f32 %v253, %v276
  %v286 = vadd.f32 %v254, %v277
  %v287 = vld [vmem:[#allocation2 + $0x49] sm:$0xff]
  %s288 = scalar_lea.vmem %s2, 5
  %v289 = vld [vmem:[%s288] sm:$0x1]
  %v291 = vperm.slane %v289, 0
  %v293 = vmul.f32 %v129, %v291
  %v294 = vmul.f32 %v130, %v291
  %v295 = vmul.f32 %v131, %v291
  %v296 = vmul.f32 %v132, %v291
  %v297 = vmul.f32 %v133, %v291
  %v298 = vmul.f32 %v134, %v291
  %v299 = vmul.f32 %v135, %v291
  %v300 = vmul.f32 %v136, %v291
  %v301 = vmul.f32 %v287, %v291
  %v302 = vadd.f32 %v278, %v293
  %v303 = vadd.f32 %v279, %v294
  %v304 = vadd.f32 %v280, %v295
  %v305 = vadd.f32 %v281, %v296
  %v306 = vadd.f32 %v282, %v297
  %v307 = vadd.f32 %v283, %v298
  %v308 = vadd.f32 %v284, %v299
  %v309 = vadd.f32 %v285, %v300
  %v310 = vadd.f32 %v286, %v301
  %v311 = vld [vmem:[#allocation2 + $0xd] sm:$0xff]
  %v312 = vld [vmem:[#allocation2 + $0x15] sm:$0xff]
  %v313 = vld [vmem:[#allocation2 + $0x1d] sm:$0xff]
  %v314 = vld [vmem:[#allocation2 + $0x25] sm:$0xff]
  %v315 = vld [vmem:[#allocation2 + $0x2d] sm:$0xff]
  %v316 = vld [vmem:[#allocation2 + $0x35] sm:$0xff]
  %v317 = vld [vmem:[#allocation2 + $0x3d] sm:$0xff]
  %v318 = vld [vmem:[#allocation2 + $0x45] sm:$0xff]
  %v319 = vld [vmem:[#allocation2 + $0x4d] sm:$0xff]
  %s320 = scalar_lea.vmem %s2, 6
  %v321 = vld [vmem:[%s320] sm:$0x1]
  %v323 = vperm.slane %v321, 0
  %v325 = vmul.f32 %v311, %v323
  %v326 = vmul.f32 %v312, %v323
  %v327 = vmul.f32 %v313, %v323
  %v328 = vmul.f32 %v314, %v323
  %v329 = vmul.f32 %v315, %v323
  %v330 = vmul.f32 %v316, %v323
  %v331 = vmul.f32 %v317, %v323
  %v332 = vmul.f32 %v318, %v323
  %v333 = vmul.f32 %v319, %v323
  %v334 = vadd.f32 %v302, %v325
  %v335 = vadd.f32 %v303, %v326
  %v336 = vadd.f32 %v304, %v327
  %v337 = vadd.f32 %v305, %v328
  %v338 = vadd.f32 %v306, %v329
  %v339 = vadd.f32 %v307, %v330
  %v340 = vadd.f32 %v308, %v331
  %v341 = vadd.f32 %v309, %v332
  %v342 = vadd.f32 %v310, %v333
  %v343 = vld [vmem:[#allocation2 + $0xe] sm:$0xff]
  %v344 = vld [vmem:[#allocation2 + $0x16] sm:$0xff]
  %v345 = vld [vmem:[#allocation2 + $0x1e] sm:$0xff]
  %v346 = vld [vmem:[#allocation2 + $0x26] sm:$0xff]
  %v347 = vld [vmem:[#allocation2 + $0x2e] sm:$0xff]
  %v348 = vld [vmem:[#allocation2 + $0x36] sm:$0xff]
  %v349 = vld [vmem:[#allocation2 + $0x3e] sm:$0xff]
  %v350 = vld [vmem:[#allocation2 + $0x46] sm:$0xff]
  %v351 = vld [vmem:[#allocation2 + $0x4e] sm:$0xff]
  %s352 = scalar_lea.vmem %s2, 7
  %v353 = vld [vmem:[%s352] sm:$0x1]
  %v355 = vperm.slane %v353, 0
  %v357 = vmul.f32 %v343, %v355
  %v358 = vmul.f32 %v344, %v355
  %v359 = vmul.f32 %v345, %v355
  %v360 = vmul.f32 %v346, %v355
  %v361 = vmul.f32 %v347, %v355
  %v362 = vmul.f32 %v348, %v355
  %v363 = vmul.f32 %v349, %v355
  %v364 = vmul.f32 %v350, %v355
  %v365 = vmul.f32 %v351, %v355
  %v366 = vadd.f32 %v334, %v357
  %v367 = vadd.f32 %v335, %v358
  %v368 = vadd.f32 %v336, %v359
  %v369 = vadd.f32 %v337, %v360
  %v370 = vadd.f32 %v338, %v361
  %v371 = vadd.f32 %v339, %v362
  %v372 = vadd.f32 %v340, %v363
  %v373 = vadd.f32 %v341, %v364
  %v374 = vadd.f32 %v342, %v365
  %v375 = vld [vmem:[#allocation2 + $0x4f] sm:$0xff]
  %s376 = scalar_lea.vmem %s2, 8
  %v377 = vld [vmem:[%s376] sm:$0x1]
  %v379 = vperm.slane %v377, 0
  %v381 = vmul.f32 %v224, %v379
  %v382 = vmul.f32 %v225, %v379
  %v383 = vmul.f32 %v226, %v379
  %v384 = vmul.f32 %v227, %v379
  %v385 = vmul.f32 %v228, %v379
  %v386 = vmul.f32 %v229, %v379
  %v387 = vmul.f32 %v230, %v379
  %v388 = vmul.f32 %v231, %v379
  %v389 = vmul.f32 %v375, %v379
  %v390 = vadd.f32 %v366, %v381
  %v391 = vadd.f32 %v367, %v382
  %v392 = vadd.f32 %v368, %v383
  %v393 = vadd.f32 %v369, %v384
  %v394 = vadd.f32 %v370, %v385
  %v395 = vadd.f32 %v371, %v386
  %v396 = vadd.f32 %v372, %v387
  %v397 = vadd.f32 %v373, %v388
  %v398 = vadd.f32 %v374, %v389
  %v399 = vld [vmem:[%s3] sm:$0x1]
  %v401 = vperm.slane %v399, 0
  %v403 = vadd.f32 %v390, %v401
  %v404 = vadd.f32 %v391, %v401
  %v405 = vadd.f32 %v392, %v401
  %v406 = vadd.f32 %v393, %v401
  %v407 = vadd.f32 %v394, %v401
  %v408 = vadd.f32 %v395, %v401
  %v409 = vadd.f32 %v396, %v401
  %v410 = vadd.f32 %v397, %v401
  %v411 = vadd.f32 %v398, %v401
  %v412 = vpack.c.bf16 %v404, %v403
  %v413 = vpack.c.bf16 %v406, %v405
  %v414 = vpack.c.bf16 %v408, %v407
  %v415 = vpack.c.bf16 %v410, %v409
  %v416 = vpack.c.bf16 %v411, %v411
  %v417 = vld [vmem:[%s4] sm:$0xf]
  %v418 = vld [vmem:[%s4 + $0x4] sm:$0xf]
  %v419 = vld [vmem:[%s4 + $0x8] sm:$0xf]
  %v420 = vld [vmem:[%s4 + $0xc] sm:$0xf]
  %v421 = vld [vmem:[%s5] sm:$0x1]
  %v423 = vperm.slane %v421, 0
  %v429 = vunpack.c.l.b16 %v417
  %v430 = vunpack.c.l.b16 %v418
  %v431 = vunpack.c.l.b16 %v419
  %v432 = vunpack.c.l.b16 %v420
  %v433 = vpack.c.b16 %v430, %v429
  %v434 = vpack.c.b16 %v432, %v431
  %v438 = vsel %vm116, %v412, 0
  %v441 = vsel %vm116, %v413, 0
  %v444 = vsel %vm116, %v414, 0
  %v447 = vsel %vm116, %v415, 0
  %v450 = vsel %vm116, %v416, 0
  %452 = vmatpush.bf16.msra.mxu0 0
  %453 = vmatpush.bf16.msra.mxu0 0
  %454 = vmatpush.bf16.msra.mxu0 0
  %455 = vmatpush.bf16.msra.mxu0 0
  %456 = vmatpush.bf16.msra.mxu0 0
  %457 = vmatpush.bf16.msra.mxu0 0
  %458 = vmatpush.bf16.msra.mxu0 %v434
  %459 = vmatpush.bf16.msra.mxu0 %v433
  %460 = vmatmul.bf16.gmra.mxu0 %v438
  %v461 = vpop.f32.mrf.mxu0
  %v462 = vadd.f32 %v423, %v461
  %v463 = vpop.f32.mrf.mxu0
  %v464 = vadd.f32 %v423, %v463
  %465 = vmatmul.bf16.gmra.mxu0 %v441
  %v466 = vpop.f32.mrf.mxu0
  %v467 = vadd.f32 %v423, %v466
  %v468 = vpop.f32.mrf.mxu0
  %v469 = vadd.f32 %v423, %v468
  %470 = vmatmul.bf16.gmra.mxu0 %v444
  %v471 = vpop.f32.mrf.mxu0
  %v472 = vadd.f32 %v423, %v471
  %v473 = vpop.f32.mrf.mxu0
  %v474 = vadd.f32 %v423, %v473
  %475 = vmatmul.bf16.gmra.mxu0 %v447
  %v476 = vpop.f32.mrf.mxu0
  %v477 = vadd.f32 %v423, %v476
  %v478 = vpop.f32.mrf.mxu0
  %v479 = vadd.f32 %v423, %v478
  %480 = vmatmul.bf16.gmra.mxu0 %v450
  %v481 = vpop.f32.mrf.mxu0
  %v482 = vadd.f32 %v423, %v481
  %v483 = vpop.f32.mrf.mxu0
  %484 = vdwg.mxu0
  %v485 = vmax.f32 %v462, 0.0
  %v486 = vmax.f32 %v464, 0.0
  %v487 = vmax.f32 %v467, 0.0
  %v488 = vmax.f32 %v469, 0.0
  %v489 = vmax.f32 %v472, 0.0
  %v490 = vmax.f32 %v474, 0.0
  %v491 = vmax.f32 %v477, 0.0
  %v492 = vmax.f32 %v479, 0.0
  %v493 = vmax.f32 %v482, 0.0
  %494 = vst.msk [vmem:[%s12] sm:$0xff] %vm116, %v485
  %495 = vst.msk [vmem:[%s12 + $0x8] sm:$0xff] %vm116, %v486
  %496 = vst.msk [vmem:[%s12 + $0x10] sm:$0xff] %vm116, %v487
  %497 = vst.msk [vmem:[%s12 + $0x18] sm:$0xff] %vm116, %v488
  %498 = vst.msk [vmem:[%s12 + $0x20] sm:$0xff] %vm116, %v489
  %499 = vst.msk [vmem:[%s12 + $0x28] sm:$0xff] %vm116, %v490
  %500 = vst.msk [vmem:[%s12 + $0x30] sm:$0xff] %vm116, %v491
  %501 = vst.msk [vmem:[%s12 + $0x38] sm:$0xff] %vm116, %v492
  %502 = vst.msk [vmem:[%s12 + $0x40] sm:$0xff] %vm116, %v493
  %v503 = vpack.c.bf16 %v108, %v107
  %v504 = vpack.c.bf16 %v110, %v109
  %v505 = vpack.c.bf16 %v112, %v111
  %v506 = vpack.c.bf16 %v114, %v113
  %v507 = vpack.c.bf16 %v115, %v115
  %v508 = vld [vmem:[%s6] sm:$0xf]
  %v509 = vld [vmem:[%s6 + $0x4] sm:$0xf]
  %v510 = vld [vmem:[%s6 + $0x8] sm:$0xf]
  %v511 = vld [vmem:[%s6 + $0xc] sm:$0xf]
  %v512 = vld [vmem:[%s7] sm:$0x1]
  %v514 = vperm.slane %v512, 0
  %v520 = vunpack.c.l.b16 %v508
  %v521 = vunpack.c.l.b16 %v509
  %v522 = vunpack.c.l.b16 %v510
  %v523 = vunpack.c.l.b16 %v511
  %v524 = vpack.c.b16 %v521, %v520
  %v525 = vpack.c.b16 %v523, %v522
  %v529 = vsel %vm116, %v503, 0
  %v532 = vsel %vm116, %v504, 0
  %v535 = vsel %vm116, %v505, 0
  %v538 = vsel %vm116, %v506, 0
  %v541 = vsel %vm116, %v507, 0
  %543 = vmatpush.bf16.msra.mxu0 0
  %544 = vmatpush.bf16.msra.mxu0 0
  %545 = vmatpush.bf16.msra.mxu0 0
  %546 = vmatpush.bf16.msra.mxu0 0
  %547 = vmatpush.bf16.msra.mxu0 0
  %548 = vmatpush.bf16.msra.mxu0 0
  %549 = vmatpush.bf16.msra.mxu0 %v525
  %550 = vmatpush.bf16.msra.mxu0 %v524
  %551 = vmatmul.bf16.gmra.mxu0 %v529
  %v552 = vpop.f32.mrf.mxu0
  %v553 = vadd.f32 %v514, %v552
  %v554 = vpop.f32.mrf.mxu0
  %v555 = vadd.f32 %v514, %v554
  %556 = vmatmul.bf16.gmra.mxu0 %v532
  %v557 = vpop.f32.mrf.mxu0
  %v558 = vadd.f32 %v514, %v557
  %v559 = vpop.f32.mrf.mxu0
  %v560 = vadd.f32 %v514, %v559
  %561 = vmatmul.bf16.gmra.mxu0 %v535
  %v562 = vpop.f32.mrf.mxu0
  %v563 = vadd.f32 %v514, %v562
  %v564 = vpop.f32.mrf.mxu0
  %v565 = vadd.f32 %v514, %v564
  %566 = vmatmul.bf16.gmra.mxu0 %v538
  %v567 = vpop.f32.mrf.mxu0
  %v568 = vadd.f32 %v514, %v567
  %v569 = vpop.f32.mrf.mxu0
  %v570 = vadd.f32 %v514, %v569
  %571 = vmatmul.bf16.gmra.mxu0 %v541
  %v572 = vpop.f32.mrf.mxu0
  %v573 = vadd.f32 %v514, %v572
  %v574 = vpop.f32.mrf.mxu0
  %575 = vdwg.mxu0
  %v576 = vmax.f32 %v553, 0.0
  %v577 = vmax.f32 %v555, 0.0
  %v578 = vmax.f32 %v558, 0.0
  %v579 = vmax.f32 %v560, 0.0
  %v580 = vmax.f32 %v563, 0.0
  %v581 = vmax.f32 %v565, 0.0
  %v582 = vmax.f32 %v568, 0.0
  %v583 = vmax.f32 %v570, 0.0
  %v584 = vmax.f32 %v573, 0.0
  %v585 = vmul.f32 %v576, %v65
  %v586 = vmul.f32 %v577, %v70
  %v587 = vmul.f32 %v578, %v75
  %v588 = vmul.f32 %v579, %v80
  %v589 = vmul.f32 %v580, %v85
  %v590 = vmul.f32 %v581, %v90
  %v591 = vmul.f32 %v582, %v95
  %v592 = vmul.f32 %v583, %v100
  %v593 = vmul.f32 %v584, %v105
  %594 = vst.msk [vmem:[#allocation3] sm:$0xff] %vm116, 0.0
  %595 = vst.msk [vmem:[#allocation3 + $0x50] sm:$0xff] %vm116, 0.0
  %596 = vst.msk [vmem:[#allocation3 + $0x8] sm:$0xff] %vm116, %v585
  %597 = vst.msk [vmem:[#allocation3 + $0x10] sm:$0xff] %vm116, %v586
  %598 = vst.msk [vmem:[#allocation3 + $0x18] sm:$0xff] %vm116, %v587
  %599 = vst.msk [vmem:[#allocation3 + $0x20] sm:$0xff] %vm116, %v588
  %600 = vst.msk [vmem:[#allocation3 + $0x28] sm:$0xff] %vm116, %v589
  %601 = vst.msk [vmem:[#allocation3 + $0x30] sm:$0xff] %vm116, %v590
  %602 = vst.msk [vmem:[#allocation3 + $0x38] sm:$0xff] %vm116, %v591
  %603 = vst.msk [vmem:[#allocation3 + $0x40] sm:$0xff] %vm116, %v592
  %604 = vst.msk [vmem:[#allocation3 + $0x48] sm:$0xff] %vm116, %v593
  %v605 = vld [vmem:[#allocation3 + $0x1] sm:$0xff]
  %v606 = vld [vmem:[#allocation3 + $0x9] sm:$0xff]
  %v607 = vld [vmem:[#allocation3 + $0x11] sm:$0xff]
  %v608 = vld [vmem:[#allocation3 + $0x19] sm:$0xff]
  %v609 = vld [vmem:[#allocation3 + $0x21] sm:$0xff]
  %v610 = vld [vmem:[#allocation3 + $0x29] sm:$0xff]
  %v611 = vld [vmem:[#allocation3 + $0x31] sm:$0xff]
  %v612 = vld [vmem:[#allocation3 + $0x39] sm:$0xff]
  %v613 = vld [vmem:[#allocation3 + $0x41] sm:$0xff]
  %v614 = vld [vmem:[%s8] sm:$0x1]
  %v616 = vperm.slane %v614, 0
  %v618 = vmul.f32 %v605, %v616
  %v619 = vmul.f32 %v606, %v616
  %v620 = vmul.f32 %v607, %v616
  %v621 = vmul.f32 %v608, %v616
  %v622 = vmul.f32 %v609, %v616
  %v623 = vmul.f32 %v610, %v616
  %v624 = vmul.f32 %v611, %v616
  %v625 = vmul.f32 %v612, %v616
  %v626 = vmul.f32 %v613, %v616
  %v627 = vadd.f32 %v618, 0.0
  %v628 = vadd.f32 %v619, 0.0
  %v629 = vadd.f32 %v620, 0.0
  %v630 = vadd.f32 %v621, 0.0
  %v631 = vadd.f32 %v622, 0.0
  %v632 = vadd.f32 %v623, 0.0
  %v633 = vadd.f32 %v624, 0.0
  %v634 = vadd.f32 %v625, 0.0
  %v635 = vadd.f32 %v626, 0.0
  %v636 = vld [vmem:[#allocation3 + $0x2] sm:$0xff]
  %v637 = vld [vmem:[#allocation3 + $0xa] sm:$0xff]
  %v638 = vld [vmem:[#allocation3 + $0x12] sm:$0xff]
  %v639 = vld [vmem:[#allocation3 + $0x1a] sm:$0xff]
  %v640 = vld [vmem:[#allocation3 + $0x22] sm:$0xff]
  %v641 = vld [vmem:[#allocation3 + $0x2a] sm:$0xff]
  %v642 = vld [vmem:[#allocation3 + $0x32] sm:$0xff]
  %v643 = vld [vmem:[#allocation3 + $0x3a] sm:$0xff]
  %v644 = vld [vmem:[#allocation3 + $0x42] sm:$0xff]
  %s645 = scalar_lea.vmem %s8, 1
  %v646 = vld [vmem:[%s645] sm:$0x1]
  %v648 = vperm.slane %v646, 0
  %v650 = vmul.f32 %v636, %v648
  %v651 = vmul.f32 %v637, %v648
  %v652 = vmul.f32 %v638, %v648
  %v653 = vmul.f32 %v639, %v648
  %v654 = vmul.f32 %v640, %v648
  %v655 = vmul.f32 %v641, %v648
  %v656 = vmul.f32 %v642, %v648
  %v657 = vmul.f32 %v643, %v648
  %v658 = vmul.f32 %v644, %v648
  %v659 = vadd.f32 %v627, %v650
  %v660 = vadd.f32 %v628, %v651
  %v661 = vadd.f32 %v629, %v652
  %v662 = vadd.f32 %v630, %v653
  %v663 = vadd.f32 %v631, %v654
  %v664 = vadd.f32 %v632, %v655
  %v665 = vadd.f32 %v633, %v656
  %v666 = vadd.f32 %v634, %v657
  %v667 = vadd.f32 %v635, %v658
  %v668 = vld [vmem:[#allocation3 + $0x3] sm:$0xff]
  %v669 = vld [vmem:[#allocation3 + $0xb] sm:$0xff]
  %v670 = vld [vmem:[#allocation3 + $0x13] sm:$0xff]
  %v671 = vld [vmem:[#allocation3 + $0x1b] sm:$0xff]
  %v672 = vld [vmem:[#allocation3 + $0x23] sm:$0xff]
  %v673 = vld [vmem:[#allocation3 + $0x2b] sm:$0xff]
  %v674 = vld [vmem:[#allocation3 + $0x33] sm:$0xff]
  %v675 = vld [vmem:[#allocation3 + $0x3b] sm:$0xff]
  %v676 = vld [vmem:[#allocation3 + $0x43] sm:$0xff]
  %s677 = scalar_lea.vmem %s8, 2
  %v678 = vld [vmem:[%s677] sm:$0x1]
  %v680 = vperm.slane %v678, 0
  %v682 = vmul.f32 %v668, %v680
  %v683 = vmul.f32 %v669, %v680
  %v684 = vmul.f32 %v670, %v680
  %v685 = vmul.f32 %v671, %v680
  %v686 = vmul.f32 %v672, %v680
  %v687 = vmul.f32 %v673, %v680
  %v688 = vmul.f32 %v674, %v680
  %v689 = vmul.f32 %v675, %v680
  %v690 = vmul.f32 %v676, %v680
  %v691 = vadd.f32 %v659, %v682
  %v692 = vadd.f32 %v660, %v683
  %v693 = vadd.f32 %v661, %v684
  %v694 = vadd.f32 %v662, %v685
  %v695 = vadd.f32 %v663, %v686
  %v696 = vadd.f32 %v664, %v687
  %v697 = vadd.f32 %v665, %v688
  %v698 = vadd.f32 %v666, %v689
  %v699 = vadd.f32 %v667, %v690
  %v700 = vld [vmem:[#allocation3 + $0x7] sm:$0xff]
  %v701 = vld [vmem:[#allocation3 + $0xf] sm:$0xff]
  %v702 = vld [vmem:[#allocation3 + $0x17] sm:$0xff]
  %v703 = vld [vmem:[#allocation3 + $0x1f] sm:$0xff]
  %v704 = vld [vmem:[#allocation3 + $0x27] sm:$0xff]
  %v705 = vld [vmem:[#allocation3 + $0x2f] sm:$0xff]
  %v706 = vld [vmem:[#allocation3 + $0x37] sm:$0xff]
  %v707 = vld [vmem:[#allocation3 + $0x3f] sm:$0xff]
  %v708 = vld [vmem:[#allocation3 + $0x47] sm:$0xff]
  %s709 = scalar_lea.vmem %s8, 3
  %v710 = vld [vmem:[%s709] sm:$0x1]
  %v712 = vperm.slane %v710, 0
  %v714 = vmul.f32 %v700, %v712
  %v715 = vmul.f32 %v701, %v712
  %v716 = vmul.f32 %v702, %v712
  %v717 = vmul.f32 %v703, %v712
  %v718 = vmul.f32 %v704, %v712
  %v719 = vmul.f32 %v705, %v712
  %v720 = vmul.f32 %v706, %v712
  %v721 = vmul.f32 %v707, %v712
  %v722 = vmul.f32 %v708, %v712
  %v723 = vadd.f32 %v691, %v714
  %v724 = vadd.f32 %v692, %v715
  %v725 = vadd.f32 %v693, %v716
  %v726 = vadd.f32 %v694, %v717
  %v727 = vadd.f32 %v695, %v718
  %v728 = vadd.f32 %v696, %v719
  %v729 = vadd.f32 %v697, %v720
  %v730 = vadd.f32 %v698, %v721
  %v731 = vadd.f32 %v699, %v722
  %v732 = vld [vmem:[#allocation3 + $0x8] sm:$0xff]
  %v733 = vld [vmem:[#allocation3 + $0x10] sm:$0xff]
  %v734 = vld [vmem:[#allocation3 + $0x18] sm:$0xff]
  %v735 = vld [vmem:[#allocation3 + $0x20] sm:$0xff]
  %v736 = vld [vmem:[#allocation3 + $0x28] sm:$0xff]
  %v737 = vld [vmem:[#allocation3 + $0x30] sm:$0xff]
  %v738 = vld [vmem:[#allocation3 + $0x38] sm:$0xff]
  %v739 = vld [vmem:[#allocation3 + $0x40] sm:$0xff]
  %v740 = vld [vmem:[#allocation3 + $0x48] sm:$0xff]
  %s741 = scalar_lea.vmem %s8, 4
  %v742 = vld [vmem:[%s741] sm:$0x1]
  %v744 = vperm.slane %v742, 0
  %v746 = vmul.f32 %v732, %v744
  %v747 = vmul.f32 %v733, %v744
  %v748 = vmul.f32 %v734, %v744
  %v749 = vmul.f32 %v735, %v744
  %v750 = vmul.f32 %v736, %v744
  %v751 = vmul.f32 %v737, %v744
  %v752 = vmul.f32 %v738, %v744
  %v753 = vmul.f32 %v739, %v744
  %v754 = vmul.f32 %v740, %v744
  %v755 = vadd.f32 %v723, %v746
  %v756 = vadd.f32 %v724, %v747
  %v757 = vadd.f32 %v725, %v748
  %v758 = vadd.f32 %v726, %v749
  %v759 = vadd.f32 %v727, %v750
  %v760 = vadd.f32 %v728, %v751
  %v761 = vadd.f32 %v729, %v752
  %v762 = vadd.f32 %v730, %v753
  %v763 = vadd.f32 %v731, %v754
  %v764 = vld [vmem:[#allocation3 + $0x49] sm:$0xff]
  %s765 = scalar_lea.vmem %s8, 5
  %v766 = vld [vmem:[%s765] sm:$0x1]
  %v768 = vperm.slane %v766, 0
  %v770 = vmul.f32 %v606, %v768
  %v771 = vmul.f32 %v607, %v768
  %v772 = vmul.f32 %v608, %v768
  %v773 = vmul.f32 %v609, %v768
  %v774 = vmul.f32 %v610, %v768
  %v775 = vmul.f32 %v611, %v768
  %v776 = vmul.f32 %v612, %v768
  %v777 = vmul.f32 %v613, %v768
  %v778 = vmul.f32 %v764, %v768
  %v779 = vadd.f32 %v755, %v770
  %v780 = vadd.f32 %v756, %v771
  %v781 = vadd.f32 %v757, %v772
  %v782 = vadd.f32 %v758, %v773
  %v783 = vadd.f32 %v759, %v774
  %v784 = vadd.f32 %v760, %v775
  %v785 = vadd.f32 %v761, %v776
  %v786 = vadd.f32 %v762, %v777
  %v787 = vadd.f32 %v763, %v778
  %v788 = vld [vmem:[#allocation3 + $0xd] sm:$0xff]
  %v789 = vld [vmem:[#allocation3 + $0x15] sm:$0xff]
  %v790 = vld [vmem:[#allocation3 + $0x1d] sm:$0xff]
  %v791 = vld [vmem:[#allocation3 + $0x25] sm:$0xff]
  %v792 = vld [vmem:[#allocation3 + $0x2d] sm:$0xff]
  %v793 = vld [vmem:[#allocation3 + $0x35] sm:$0xff]
  %v794 = vld [vmem:[#allocation3 + $0x3d] sm:$0xff]
  %v795 = vld [vmem:[#allocation3 + $0x45] sm:$0xff]
  %v796 = vld [vmem:[#allocation3 + $0x4d] sm:$0xff]
  %s797 = scalar_lea.vmem %s8, 6
  %v798 = vld [vmem:[%s797] sm:$0x1]
  %v800 = vperm.slane %v798, 0
  %v802 = vmul.f32 %v788, %v800
  %v803 = vmul.f32 %v789, %v800
  %v804 = vmul.f32 %v790, %v800
  %v805 = vmul.f32 %v791, %v800
  %v806 = vmul.f32 %v792, %v800
  %v807 = vmul.f32 %v793, %v800
  %v808 = vmul.f32 %v794, %v800
  %v809 = vmul.f32 %v795, %v800
  %v810 = vmul.f32 %v796, %v800
  %v811 = vadd.f32 %v779, %v802
  %v812 = vadd.f32 %v780, %v803
  %v813 = vadd.f32 %v781, %v804
  %v814 = vadd.f32 %v782, %v805
  %v815 = vadd.f32 %v783, %v806
  %v816 = vadd.f32 %v784, %v807
  %v817 = vadd.f32 %v785, %v808
  %v818 = vadd.f32 %v786, %v809
  %v819 = vadd.f32 %v787, %v810
  %v820 = vld [vmem:[#allocation3 + $0xe] sm:$0xff]
  %v821 = vld [vmem:[#allocation3 + $0x16] sm:$0xff]
  %v822 = vld [vmem:[#allocation3 + $0x1e] sm:$0xff]
  %v823 = vld [vmem:[#allocation3 + $0x26] sm:$0xff]
  %v824 = vld [vmem:[#allocation3 + $0x2e] sm:$0xff]
  %v825 = vld [vmem:[#allocation3 + $0x36] sm:$0xff]
  %v826 = vld [vmem:[#allocation3 + $0x3e] sm:$0xff]
  %v827 = vld [vmem:[#allocation3 + $0x46] sm:$0xff]
  %v828 = vld [vmem:[#allocation3 + $0x4e] sm:$0xff]
  %s829 = scalar_lea.vmem %s8, 7
  %v830 = vld [vmem:[%s829] sm:$0x1]
  %v832 = vperm.slane %v830, 0
  %v834 = vmul.f32 %v820, %v832
  %v835 = vmul.f32 %v821, %v832
  %v836 = vmul.f32 %v822, %v832
  %v837 = vmul.f32 %v823, %v832
  %v838 = vmul.f32 %v824, %v832
  %v839 = vmul.f32 %v825, %v832
  %v840 = vmul.f32 %v826, %v832
  %v841 = vmul.f32 %v827, %v832
  %v842 = vmul.f32 %v828, %v832
  %v843 = vadd.f32 %v811, %v834
  %v844 = vadd.f32 %v812, %v835
  %v845 = vadd.f32 %v813, %v836
  %v846 = vadd.f32 %v814, %v837
  %v847 = vadd.f32 %v815, %v838
  %v848 = vadd.f32 %v816, %v839
  %v849 = vadd.f32 %v817, %v840
  %v850 = vadd.f32 %v818, %v841
  %v851 = vadd.f32 %v819, %v842
  %v852 = vld [vmem:[#allocation3 + $0x4f] sm:$0xff]
  %s853 = scalar_lea.vmem %s8, 8
  %v854 = vld [vmem:[%s853] sm:$0x1]
  %v856 = vperm.slane %v854, 0
  %v858 = vmul.f32 %v701, %v856
  %v859 = vmul.f32 %v702, %v856
  %v860 = vmul.f32 %v703, %v856
  %v861 = vmul.f32 %v704, %v856
  %v862 = vmul.f32 %v705, %v856
  %v863 = vmul.f32 %v706, %v856
  %v864 = vmul.f32 %v707, %v856
  %v865 = vmul.f32 %v708, %v856
  %v866 = vmul.f32 %v852, %v856
  %v867 = vadd.f32 %v843, %v858
  %v868 = vadd.f32 %v844, %v859
  %v869 = vadd.f32 %v845, %v860
  %v870 = vadd.f32 %v846, %v861
  %v871 = vadd.f32 %v847, %v862
  %v872 = vadd.f32 %v848, %v863
  %v873 = vadd.f32 %v849, %v864
  %v874 = vadd.f32 %v850, %v865
  %v875 = vadd.f32 %v851, %v866
  %v876 = vld [vmem:[%s9] sm:$0x1]
  %v878 = vperm.slane %v876, 0
  %v880 = vadd.f32 %v867, %v878
  %v881 = vadd.f32 %v868, %v878
  %v882 = vadd.f32 %v869, %v878
  %v883 = vadd.f32 %v870, %v878
  %v884 = vadd.f32 %v871, %v878
  %v885 = vadd.f32 %v872, %v878
  %v886 = vadd.f32 %v873, %v878
  %v887 = vadd.f32 %v874, %v878
  %v888 = vadd.f32 %v875, %v878
  %v889 = vpack.c.bf16 %v881, %v880
  %v890 = vpack.c.bf16 %v883, %v882
  %v891 = vpack.c.bf16 %v885, %v884
  %v892 = vpack.c.bf16 %v887, %v886
  %v893 = vpack.c.bf16 %v888, %v888
  %v894 = vld [vmem:[%s10] sm:$0xf]
  %v895 = vld [vmem:[%s10 + $0x4] sm:$0xf]
  %v896 = vld [vmem:[%s10 + $0x8] sm:$0xf]
  %v897 = vld [vmem:[%s10 + $0xc] sm:$0xf]
  %v898 = vld [vmem:[%s11] sm:$0x1]
  %v900 = vperm.slane %v898, 0
  %v906 = vunpack.c.l.b16 %v894
  %v907 = vunpack.c.l.b16 %v895
  %v908 = vunpack.c.l.b16 %v896
  %v909 = vunpack.c.l.b16 %v897
  %v910 = vpack.c.b16 %v907, %v906
  %v911 = vpack.c.b16 %v909, %v908
  %v915 = vsel %vm116, %v889, 0
  %v918 = vsel %vm116, %v890, 0
  %v921 = vsel %vm116, %v891, 0
  %v924 = vsel %vm116, %v892, 0
  %v927 = vsel %vm116, %v893, 0
  %929 = vmatpush.bf16.msra.mxu0 0
  %930 = vmatpush.bf16.msra.mxu0 0
  %931 = vmatpush.bf16.msra.mxu0 0
  %932 = vmatpush.bf16.msra.mxu0 0
  %933 = vmatpush.bf16.msra.mxu0 0
  %934 = vmatpush.bf16.msra.mxu0 0
  %935 = vmatpush.bf16.msra.mxu0 %v911
  %936 = vmatpush.bf16.msra.mxu0 %v910
  %937 = vmatmul.bf16.gmra.mxu0 %v915
  %v938 = vpop.f32.mrf.mxu0
  %v939 = vadd.f32 %v900, %v938
  %v940 = vpop.f32.mrf.mxu0
  %v941 = vadd.f32 %v900, %v940
  %942 = vmatmul.bf16.gmra.mxu0 %v918
  %v943 = vpop.f32.mrf.mxu0
  %v944 = vadd.f32 %v900, %v943
  %v945 = vpop.f32.mrf.mxu0
  %v946 = vadd.f32 %v900, %v945
  %947 = vmatmul.bf16.gmra.mxu0 %v921
  %v948 = vpop.f32.mrf.mxu0
  %v949 = vadd.f32 %v900, %v948
  %v950 = vpop.f32.mrf.mxu0
  %v951 = vadd.f32 %v900, %v950
  %952 = vmatmul.bf16.gmra.mxu0 %v924
  %v953 = vpop.f32.mrf.mxu0
  %v954 = vadd.f32 %v900, %v953
  %v955 = vpop.f32.mrf.mxu0
  %v956 = vadd.f32 %v900, %v955
  %957 = vmatmul.bf16.gmra.mxu0 %v927
  %v958 = vpop.f32.mrf.mxu0
  %v959 = vadd.f32 %v900, %v958
  %v960 = vpop.f32.mrf.mxu0
  %961 = vdwg.mxu0
  %v962 = vmax.f32 %v939, 0.0
  %v963 = vmax.f32 %v941, 0.0
  %v964 = vmax.f32 %v944, 0.0
  %v965 = vmax.f32 %v946, 0.0
  %v966 = vmax.f32 %v949, 0.0
  %v967 = vmax.f32 %v951, 0.0
  %v968 = vmax.f32 %v954, 0.0
  %v969 = vmax.f32 %v956, 0.0
  %v970 = vmax.f32 %v959, 0.0
  %971 = vst.msk [vmem:[%s13] sm:$0xff] %vm116, %v962
  %972 = vst.msk [vmem:[%s13 + $0x8] sm:$0xff] %vm116, %v963
  %973 = vst.msk [vmem:[%s13 + $0x10] sm:$0xff] %vm116, %v964
  %974 = vst.msk [vmem:[%s13 + $0x18] sm:$0xff] %vm116, %v965
  %975 = vst.msk [vmem:[%s13 + $0x20] sm:$0xff] %vm116, %v966
  %976 = vst.msk [vmem:[%s13 + $0x28] sm:$0xff] %vm116, %v967
  %977 = vst.msk [vmem:[%s13 + $0x30] sm:$0xff] %vm116, %v968
  %978 = vst.msk [vmem:[%s13 + $0x38] sm:$0xff] %vm116, %v969
  %979 = vst.msk [vmem:[%s13 + $0x40] sm:$0xff] %vm116, %v970
  // Predicated region
  $region50: #{shufflenetv2_backbone_fwd.18} parent=0 // pred_check
    _
  $region51: #{shufflenetv2_backbone_fwd.18} parent=0 // pred_check_branch
    %981 = sbr.rel (0) target = $region53
  $region52: #{shufflenetv2_backbone_fwd.18} parent=0 // pred_region
    _
  $region53: #{shufflenetv2_backbone_fwd.18} parent=0 // pred_fallthru
    _
  // Predicated region
  $region54: #{shufflenetv2_backbone_fwd.18} parent=0 // pred_check
    _
  $region55: #{shufflenetv2_backbone_fwd.18} parent=0 // pred_check_branch
    %983 = sbr.rel (0) target = $region57
  $region56: #{shufflenetv2_backbone_fwd.18} parent=0 // pred_region
    _
  $region57: #{shufflenetv2_backbone_fwd.18} parent=0 // pred_fallthru
    _
  // Predicated region
  $region58: #{shufflenetv2_backbone_fwd.18} parent=0 // pred_check
    _
  $region59: #{shufflenetv2_backbone_fwd.18} parent=0 // pred_check_branch
    %985 = sbr.rel (0) target = $region61
  $region60: #{shufflenetv2_backbone_fwd.18} parent=0 // pred_region
    _
  $region61: #{shufflenetv2_backbone_fwd.18} parent=0 // pred_fallthru
    _
  // Predicated region
  $region62: #{shufflenetv2_backbone_fwd.18} parent=0 // pred_check
    _
  $region63: #{shufflenetv2_backbone_fwd.18} parent=0 // pred_check_branch
    %987 = sbr.rel (0) target = $region65
  $region64: #{shufflenetv2_backbone_fwd.18} parent=0 // pred_region
    _
  $region65: #{shufflenetv2_backbone_fwd.18} parent=0 // pred_fallthru
    _

// kernel: shufflenetv2_backbone_fwd.13
$region0: #{shufflenetv2_backbone_fwd.13}
  #allocation0 [shape = 'u32[]', space=smem, size = 0x4, offset = 0x4, fixed_abs, tag = 'smem constant byte address 0x4 - core index']
  #allocation1 [shape = 'u32[72,128]{1,0:T(1,128)}', space=vmem, size = 0x9000, scoped, tag = 'internal scratch']
  #allocation2 [shape = 'f32[696,16]{1,0:T(8,128)}', space=vmem, size = 0x57000, scoped, tag = 'scratch operand']
  %s0 = inlined_call_operand.vmem [shape: f32[648,27], index: 0, kind: input, shape index: {}]
  %s1 = inlined_call_operand.vmem [shape: f32[648,1], index: 1, kind: input, shape index: {}]
  %s2 = inlined_call_operand.vmem [shape: bf16[27,16], index: 2, kind: input, shape index: {}]
  %s3 = inlined_call_operand.vmem [shape: f32[1,16], index: 3, kind: input, shape index: {}]
  %s4 = inlined_call_operand.vmem [shape: f32[648,16], index: 4, kind: output, shape index: {}]
  %s5 = sld [smem:[#allocation0]]
  $region26: #{shufflenetv2_backbone_fwd.13} parent=0
    _
  %s7 = ssub.s32 1, %s5
  %s8 = scalar_select 0, %s7, %s5
  // Predicated region
  $region2: #{shufflenetv2_backbone_fwd.13} parent=0 // pred_check
    _
  $region3: #{shufflenetv2_backbone_fwd.13} parent=0 // pred_check_branch
    %10 = sbr.rel (0) target = $region5
  $region4: #{shufflenetv2_backbone_fwd.13} parent=0 // pred_region
    _
  $region5: #{shufflenetv2_backbone_fwd.13} parent=0 // pred_fallthru
    _
  // Predicated region
  $region6: #{shufflenetv2_backbone_fwd.13} parent=0 // pred_check
    _
  $region7: #{shufflenetv2_backbone_fwd.13} parent=0 // pred_check_branch
    %12 = sbr.rel (0) target = $region9
  $region8: #{shufflenetv2_backbone_fwd.13} parent=0 // pred_region
    _
  $region9: #{shufflenetv2_backbone_fwd.13} parent=0 // pred_fallthru
    _
  // Predicated region
  $region10: #{shufflenetv2_backbone_fwd.13} parent=0 // pred_check
    _
  $region11: #{shufflenetv2_backbone_fwd.13} parent=0 // pred_check_branch
    %14 = sbr.rel (0) target = $region13
  $region12: #{shufflenetv2_backbone_fwd.13} parent=0 // pred_region
    _
  $region13: #{shufflenetv2_backbone_fwd.13} parent=0 // pred_fallthru
    _
  // Predicated region
  $region14: #{shufflenetv2_backbone_fwd.13} parent=0 // pred_check
    _
  $region15: #{shufflenetv2_backbone_fwd.13} parent=0 // pred_check_branch
    %16 = sbr.rel (0) target = $region17
  $region16: #{shufflenetv2_backbone_fwd.13} parent=0 // pred_region
    _
  $region17: #{shufflenetv2_backbone_fwd.13} parent=0 // pred_fallthru
    _
  %v18 = vld [vmem:[%s1] sm:$0xff]
  %v19 = vld [vmem:[%s1 + $0x8] sm:$0xff]
  %v20 = vld [vmem:[%s1 + $0x10] sm:$0xff]
  %v21 = vld [vmem:[%s1 + $0x18] sm:$0xff]
  %v22 = vld [vmem:[%s1 + $0x20] sm:$0xff]
  %v23 = vld [vmem:[%s1 + $0x28] sm:$0xff]
  %v24 = vld [vmem:[%s1 + $0x30] sm:$0xff]
  %v25 = vld [vmem:[%s1 + $0x38] sm:$0xff]
  %v26 = vld [vmem:[%s1 + $0x40] sm:$0xff]
  %v27 = vld [vmem:[%s1 + $0x48] sm:$0xff]
  %v28 = vld [vmem:[%s1 + $0x50] sm:$0xff]
  %v29 = vld [vmem:[%s1 + $0x58] sm:$0xff]
  %v30 = vld [vmem:[%s1 + $0x60] sm:$0xff]
  %v31 = vld [vmem:[%s1 + $0x68] sm:$0xff]
  %v32 = vld [vmem:[%s1 + $0x70] sm:$0xff]
  %v33 = vld [vmem:[%s1 + $0x78] sm:$0xff]
  %v34 = vld [vmem:[%s1 + $0x80] sm:$0xff]
  %v35 = vld [vmem:[%s1 + $0x88] sm:$0xff]
  %v36 = vld [vmem:[%s1 + $0x90] sm:$0xff]
  %v37 = vld [vmem:[%s1 + $0x98] sm:$0xff]
  %v38 = vld [vmem:[%s1 + $0xa0] sm:$0xff]
  %v39 = vld [vmem:[%s1 + $0xa8] sm:$0xff]
  %v40 = vld [vmem:[%s1 + $0xb0] sm:$0xff]
  %v41 = vld [vmem:[%s1 + $0xb8] sm:$0xff]
  %v42 = vld [vmem:[%s1 + $0xc0] sm:$0xff]
  %v43 = vld [vmem:[%s1 + $0xc8] sm:$0xff]
  %v44 = vld [vmem:[%s1 + $0xd0] sm:$0xff]
  %v45 = vld [vmem:[%s1 + $0xd8] sm:$0xff]
  %v46 = vld [vmem:[%s1 + $0xe0] sm:$0xff]
  %v47 = vld [vmem:[%s1 + $0xe8] sm:$0xff]
  %v48 = vld [vmem:[%s1 + $0xf0] sm:$0xff]
  %v49 = vld [vmem:[%s1 + $0xf8] sm:$0xff]
  %v50 = vld [vmem:[%s1 + $0x100] sm:$0xff]
  %v51 = vld [vmem:[%s1 + $0x108] sm:$0xff]
  %v52 = vld [vmem:[%s1 + $0x110] sm:$0xff]
  %v53 = vld [vmem:[%s1 + $0x118] sm:$0xff]
  %v54 = vld [vmem:[%s1 + $0x120] sm:$0xff]
  %v55 = vld [vmem:[%s1 + $0x128] sm:$0xff]
  %v56 = vld [vmem:[%s1 + $0x130] sm:$0xff]
  %v57 = vld [vmem:[%s1 + $0x138] sm:$0xff]
  %v58 = vld [vmem:[%s1 + $0x140] sm:$0xff]
  %v59 = vld [vmem:[%s1 + $0x148] sm:$0xff]
  %v60 = vld [vmem:[%s1 + $0x150] sm:$0xff]
  %v61 = vld [vmem:[%s1 + $0x158] sm:$0xff]
  %v62 = vld [vmem:[%s1 + $0x160] sm:$0xff]
  %v63 = vld [vmem:[%s1 + $0x168] sm:$0xff]
  %v64 = vld [vmem:[%s1 + $0x170] sm:$0xff]
  %v65 = vld [vmem:[%s1 + $0x178] sm:$0xff]
  %v66 = vld [vmem:[%s1 + $0x180] sm:$0xff]
  %v67 = vld [vmem:[%s1 + $0x188] sm:$0xff]
  %v68 = vld [vmem:[%s1 + $0x190] sm:$0xff]
  %v69 = vld [vmem:[%s1 + $0x198] sm:$0xff]
  %v70 = vld [vmem:[%s1 + $0x1a0] sm:$0xff]
  %v71 = vld [vmem:[%s1 + $0x1a8] sm:$0xff]
  %v72 = vld [vmem:[%s1 + $0x1b0] sm:$0xff]
  %v73 = vld [vmem:[%s1 + $0x1b8] sm:$0xff]
  %v74 = vld [vmem:[%s1 + $0x1c0] sm:$0xff]
  %v75 = vld [vmem:[%s1 + $0x1c8] sm:$0xff]
  %v76 = vld [vmem:[%s1 + $0x1d0] sm:$0xff]
  %v77 = vld [vmem:[%s1 + $0x1d8] sm:$0xff]
  %v78 = vld [vmem:[%s1 + $0x1e0] sm:$0xff]
  %v79 = vld [vmem:[%s1 + $0x1e8] sm:$0xff]
  %v80 = vld [vmem:[%s1 + $0x1f0] sm:$0xff]
  %v81 = vld [vmem:[%s1 + $0x1f8] sm:$0xff]
  %v82 = vld [vmem:[%s1 + $0x200] sm:$0xff]
  %v83 = vld [vmem:[%s1 + $0x208] sm:$0xff]
  %v84 = vld [vmem:[%s1 + $0x210] sm:$0xff]
  %v85 = vld [vmem:[%s1 + $0x218] sm:$0xff]
  %v86 = vld [vmem:[%s1 + $0x220] sm:$0xff]
  %v87 = vld [vmem:[%s1 + $0x228] sm:$0xff]
  %v88 = vld [vmem:[%s1 + $0x230] sm:$0xff]
  %v89 = vld [vmem:[%s1 + $0x238] sm:$0xff]
  %v90 = vld [vmem:[%s1 + $0x240] sm:$0xff]
  %v91 = vld [vmem:[%s1 + $0x248] sm:$0xff]
  %v92 = vld [vmem:[%s1 + $0x250] sm:$0xff]
  %v93 = vld [vmem:[%s1 + $0x258] sm:$0xff]
  %v94 = vld [vmem:[%s1 + $0x260] sm:$0xff]
  %v95 = vld [vmem:[%s1 + $0x268] sm:$0xff]
  %v96 = vld [vmem:[%s1 + $0x270] sm:$0xff]
  %v97 = vld [vmem:[%s1 + $0x278] sm:$0xff]
  %v98 = vld [vmem:[%s1 + $0x280] sm:$0xff]
  %v99 = vld [vmem:[%s0] sm:$0xff]
  %v100 = vld [vmem:[%s0 + $0x8] sm:$0xff]
  %v101 = vld [vmem:[%s0 + $0x10] sm:$0xff]
  %v102 = vld [vmem:[%s0 + $0x18] sm:$0xff]
  %v103 = vld [vmem:[%s0 + $0x20] sm:$0xff]
  %v104 = vld [vmem:[%s0 + $0x28] sm:$0xff]
  %v105 = vld [vmem:[%s0 + $0x30] sm:$0xff]
  %v106 = vld [vmem:[%s0 + $0x38] sm:$0xff]
  %v107 = vld [vmem:[%s0 + $0x40] sm:$0xff]
  %v108 = vld [vmem:[%s0 + $0x48] sm:$0xff]
  %v109 = vld [vmem:[%s0 + $0x50] sm:$0xff]
  %v110 = vld [vmem:[%s0 + $0x58] sm:$0xff]
  %v111 = vld [vmem:[%s0 + $0x60] sm:$0xff]
  %v112 = vld [vmem:[%s0 + $0x68] sm:$0xff]
  %v113 = vld [vmem:[%s0 + $0x70] sm:$0xff]
  %v114 = vld [vmem:[%s0 + $0x78] sm:$0xff]
  %v115 = vld [vmem:[%s0 + $0x80] sm:$0xff]
  %v116 = vld [vmem:[%s0 + $0x88] sm:$0xff]
  %v117 = vld [vmem:[%s0 + $0x90] sm:$0xff]
  %v118 = vld [vmem:[%s0 + $0x98] sm:$0xff]
  %v119 = vld [vmem:[%s0 + $0xa0] sm:$0xff]
  %v120 = vld [vmem:[%s0 + $0xa8] sm:$0xff]
  %v121 = vld [vmem:[%s0 + $0xb0] sm:$0xff]
  %v122 = vld [vmem:[%s0 + $0xb8] sm:$0xff]
  %v123 = vld [vmem:[%s0 + $0xc0] sm:$0xff]
  %v124 = vld [vmem:[%s0 + $0xc8] sm:$0xff]
  %v125 = vld [vmem:[%s0 + $0xd0] sm:$0xff]
  %v126 = vld [vmem:[%s0 + $0xd8] sm:$0xff]
  %v127 = vld [vmem:[%s0 + $0xe0] sm:$0xff]
  %v128 = vld [vmem:[%s0 + $0xe8] sm:$0xff]
  %v129 = vld [vmem:[%s0 + $0xf0] sm:$0xff]
  %v130 = vld [vmem:[%s0 + $0xf8] sm:$0xff]
  %v131 = vld [vmem:[%s0 + $0x100] sm:$0xff]
  %v132 = vld [vmem:[%s0 + $0x108] sm:$0xff]
  %v133 = vld [vmem:[%s0 + $0x110] sm:$0xff]
  %v134 = vld [vmem:[%s0 + $0x118] sm:$0xff]
  %v135 = vld [vmem:[%s0 + $0x120] sm:$0xff]
  %v136 = vld [vmem:[%s0 + $0x128] sm:$0xff]
  %v137 = vld [vmem:[%s0 + $0x130] sm:$0xff]
  %v138 = vld [vmem:[%s0 + $0x138] sm:$0xff]
  %v139 = vld [vmem:[%s0 + $0x140] sm:$0xff]
  %v140 = vld [vmem:[%s0 + $0x148] sm:$0xff]
  %v141 = vld [vmem:[%s0 + $0x150] sm:$0xff]
  %v142 = vld [vmem:[%s0 + $0x158] sm:$0xff]
  %v143 = vld [vmem:[%s0 + $0x160] sm:$0xff]
  %v144 = vld [vmem:[%s0 + $0x168] sm:$0xff]
  %v145 = vld [vmem:[%s0 + $0x170] sm:$0xff]
  %v146 = vld [vmem:[%s0 + $0x178] sm:$0xff]
  %v147 = vld [vmem:[%s0 + $0x180] sm:$0xff]
  %v148 = vld [vmem:[%s0 + $0x188] sm:$0xff]
  %v149 = vld [vmem:[%s0 + $0x190] sm:$0xff]
  %v150 = vld [vmem:[%s0 + $0x198] sm:$0xff]
  %v151 = vld [vmem:[%s0 + $0x1a0] sm:$0xff]
  %v152 = vld [vmem:[%s0 + $0x1a8] sm:$0xff]
  %v153 = vld [vmem:[%s0 + $0x1b0] sm:$0xff]
  %v154 = vld [vmem:[%s0 + $0x1b8] sm:$0xff]
  %v155 = vld [vmem:[%s0 + $0x1c0] sm:$0xff]
  %v156 = vld [vmem:[%s0 + $0x1c8] sm:$0xff]
  %v157 = vld [vmem:[%s0 + $0x1d0] sm:$0xff]
  %v158 = vld [vmem:[%s0 + $0x1d8] sm:$0xff]
  %v159 = vld [vmem:[%s0 + $0x1e0] sm:$0xff]
  %v160 = vld [vmem:[%s0 + $0x1e8] sm:$0xff]
  %v161 = vld [vmem:[%s0 + $0x1f0] sm:$0xff]
  %v162 = vld [vmem:[%s0 + $0x1f8] sm:$0xff]
  %v163 = vld [vmem:[%s0 + $0x200] sm:$0xff]
  %v164 = vld [vmem:[%s0 + $0x208] sm:$0xff]
  %v165 = vld [vmem:[%s0 + $0x210] sm:$0xff]
  %v166 = vld [vmem:[%s0 + $0x218] sm:$0xff]
  %v167 = vld [vmem:[%s0 + $0x220] sm:$0xff]
  %v168 = vld [vmem:[%s0 + $0x228] sm:$0xff]
  %v169 = vld [vmem:[%s0 + $0x230] sm:$0xff]
  %v170 = vld [vmem:[%s0 + $0x238] sm:$0xff]
  %v171 = vld [vmem:[%s0 + $0x240] sm:$0xff]
  %v172 = vld [vmem:[%s0 + $0x248] sm:$0xff]
  %v173 = vld [vmem:[%s0 + $0x250] sm:$0xff]
  %v174 = vld [vmem:[%s0 + $0x258] sm:$0xff]
  %v175 = vld [vmem:[%s0 + $0x260] sm:$0xff]
  %v176 = vld [vmem:[%s0 + $0x268] sm:$0xff]
  %v177 = vld [vmem:[%s0 + $0x270] sm:$0xff]
  %v178 = vld [vmem:[%s0 + $0x278] sm:$0xff]
  %v179 = vld [vmem:[%s0 + $0x280] sm:$0xff]
  %v180 = vpack.c.bf16 %v100, %v99
  %v181 = vpack.c.bf16 %v102, %v101
  %v182 = vpack.c.bf16 %v104, %v103
  %v183 = vpack.c.bf16 %v106, %v105
  %v184 = vpack.c.bf16 %v108, %v107
  %v185 = vpack.c.bf16 %v110, %v109
  %v186 = vpack.c.bf16 %v112, %v111
  %v187 = vpack.c.bf16 %v114, %v113
  %v188 = vpack.c.bf16 %v116, %v115
  %v189 = vpack.c.bf16 %v118, %v117
  %v190 = vpack.c.bf16 %v120, %v119
  %v191 = vpack.c.bf16 %v122, %v121
  %v192 = vpack.c.bf16 %v124, %v123
  %v193 = vpack.c.bf16 %v126, %v125
  %v194 = vpack.c.bf16 %v128, %v127
  %v195 = vpack.c.bf16 %v130, %v129
  %v196 = vpack.c.bf16 %v132, %v131
  %v197 = vpack.c.bf16 %v134, %v133
  %v198 = vpack.c.bf16 %v136, %v135
  %v199 = vpack.c.bf16 %v138, %v137
  %v200 = vpack.c.bf16 %v140, %v139
  %v201 = vpack.c.bf16 %v142, %v141
  %v202 = vpack.c.bf16 %v144, %v143
  %v203 = vpack.c.bf16 %v146, %v145
  %v204 = vpack.c.bf16 %v148, %v147
  %v205 = vpack.c.bf16 %v150, %v149
  %v206 = vpack.c.bf16 %v152, %v151
  %v207 = vpack.c.bf16 %v154, %v153
  %v208 = vpack.c.bf16 %v156, %v155
  %v209 = vpack.c.bf16 %v158, %v157
  %v210 = vpack.c.bf16 %v160, %v159
  %v211 = vpack.c.bf16 %v162, %v161
  %v212 = vpack.c.bf16 %v164, %v163
  %v213 = vpack.c.bf16 %v166, %v165
  %v214 = vpack.c.bf16 %v168, %v167
  %v215 = vpack.c.bf16 %v170, %v169
  %v216 = vpack.c.bf16 %v172, %v171
  %v217 = vpack.c.bf16 %v174, %v173
  %v218 = vpack.c.bf16 %v176, %v175
  %v219 = vpack.c.bf16 %v178, %v177
  %v220 = vpack.c.bf16 %v179, %v179
  %v221 = vld [vmem:[%s2] sm:$0xf]
  %v222 = vld [vmem:[%s2 + $0x4] sm:$0xf]
  %v223 = vld [vmem:[%s2 + $0x8] sm:$0xf]
  %v224 = vld [vmem:[%s2 + $0xc] sm:$0x3]
  %v225 = vld [vmem:[%s3] sm:$0x1]
  %v227 = vperm.slane %v225, 0
  %v233 = vunpack.c.l.b16 %v221
  %v234 = vunpack.c.l.b16 %v222
  %v235 = vunpack.c.l.b16 %v223
  %v236 = vunpack.c.l.b16 %v224
  %v237 = vpack.c.b16 %v234, %v233
  %v238 = vpack.c.b16 %v236, %v235
  %vm240 = vcmask 220160
  %v242 = vsel %vm240, %v180, 0
  %v245 = vsel %vm240, %v181, 0
  %v248 = vsel %vm240, %v182, 0
  %v251 = vsel %vm240, %v183, 0
  %v254 = vsel %vm240, %v184, 0
  %v257 = vsel %vm240, %v185, 0
  %v260 = vsel %vm240, %v186, 0
  %v263 = vsel %vm240, %v187, 0
  %v266 = vsel %vm240, %v188, 0
  %v269 = vsel %vm240, %v189, 0
  %v272 = vsel %vm240, %v190, 0
  %v275 = vsel %vm240, %v191, 0
  %v278 = vsel %vm240, %v192, 0
  %v281 = vsel %vm240, %v193, 0
  %v284 = vsel %vm240, %v194, 0
  %v287 = vsel %vm240, %v195, 0
  %v290 = vsel %vm240, %v196, 0
  %v293 = vsel %vm240, %v197, 0
  %v296 = vsel %vm240, %v198, 0
  %v299 = vsel %vm240, %v199, 0
  %v302 = vsel %vm240, %v200, 0
  %v305 = vsel %vm240, %v201, 0
  %v308 = vsel %vm240, %v202, 0
  %v311 = vsel %vm240, %v203, 0
  %v314 = vsel %vm240, %v204, 0
  %v317 = vsel %vm240, %v205, 0
  %v320 = vsel %vm240, %v206, 0
  %v323 = vsel %vm240, %v207, 0
  %v326 = vsel %vm240, %v208, 0
  %v329 = vsel %vm240, %v209, 0
  %v332 = vsel %vm240, %v210, 0
  %v335 = vsel %vm240, %v211, 0
  %v338 = vsel %vm240, %v212, 0
  %v341 = vsel %vm240, %v213, 0
  %v344 = vsel %vm240, %v214, 0
  %v347 = vsel %vm240, %v215, 0
  %v350 = vsel %vm240, %v216, 0
  %v353 = vsel %vm240, %v217, 0
  %v356 = vsel %vm240, %v218, 0
  %v359 = vsel %vm240, %v219, 0
  %v362 = vsel %vm240, %v220, 0
  %vm364 = vcmask 1044480
  %vm365 = vcmask 1045504
  %v366 = vsel %vm364, 4294967295, 65535
  %v367 = vsel %vm365, %v366, 0
  %v369 = vand.u32 %v238, %v367
  %371 = vmatpush.bf16.msra.mxu0 0
  %372 = vmatpush.bf16.msra.mxu0 0
  %373 = vmatpush.bf16.msra.mxu0 0
  %374 = vmatpush.bf16.msra.mxu0 0
  %375 = vmatpush.bf16.msra.mxu0 0
  %376 = vmatpush.bf16.msra.mxu0 0
  %377 = vmatpush.bf16.msra.mxu0 %v369
  %378 = vmatpush.bf16.msra.mxu0 %v237
  %379 = vmatmul.bf16.gmra.mxu0 %v242
  %v380 = vpop.f32.mrf.mxu0
  %v381 = vadd.f32 %v227, %v380
  %v382 = vpop.f32.mrf.mxu0
  %v383 = vadd.f32 %v227, %v382
  %384 = vmatmul.bf16.gmra.mxu0 %v245
  %v385 = vpop.f32.mrf.mxu0
  %v386 = vadd.f32 %v227, %v385
  %v387 = vpop.f32.mrf.mxu0
  %v388 = vadd.f32 %v227, %v387
  %389 = vmatmul.bf16.gmra.mxu0 %v248
  %v390 = vpop.f32.mrf.mxu0
  %v391 = vadd.f32 %v227, %v390
  %v392 = vpop.f32.mrf.mxu0
  %v393 = vadd.f32 %v227, %v392
  %394 = vmatmul.bf16.gmra.mxu0 %v251
  %v395 = vpop.f32.mrf.mxu0
  %v396 = vadd.f32 %v227, %v395
  %v397 = vpop.f32.mrf.mxu0
  %v398 = vadd.f32 %v227, %v397
  %399 = vmatmul.bf16.gmra.mxu0 %v254
  %v400 = vpop.f32.mrf.mxu0
  %v401 = vadd.f32 %v227, %v400
  %v402 = vpop.f32.mrf.mxu0
  %v403 = vadd.f32 %v227, %v402
  %404 = vmatmul.bf16.gmra.mxu0 %v257
  %v405 = vpop.f32.mrf.mxu0
  %v406 = vadd.f32 %v227, %v405
  %v407 = vpop.f32.mrf.mxu0
  %v408 = vadd.f32 %v227, %v407
  %409 = vmatmul.bf16.gmra.mxu0 %v260
  %v410 = vpop.f32.mrf.mxu0
  %v411 = vadd.f32 %v227, %v410
  %v412 = vpop.f32.mrf.mxu0
  %v413 = vadd.f32 %v227, %v412
  %414 = vmatmul.bf16.gmra.mxu0 %v263
  %v415 = vpop.f32.mrf.mxu0
  %v416 = vadd.f32 %v227, %v415
  %v417 = vpop.f32.mrf.mxu0
  %v418 = vadd.f32 %v227, %v417
  %419 = vmatmul.bf16.gmra.mxu0 %v266
  %v420 = vpop.f32.mrf.mxu0
  %v421 = vadd.f32 %v227, %v420
  %v422 = vpop.f32.mrf.mxu0
  %v423 = vadd.f32 %v227, %v422
  %424 = vmatmul.bf16.gmra.mxu0 %v269
  %v425 = vpop.f32.mrf.mxu0
  %v426 = vadd.f32 %v227, %v425
  %v427 = vpop.f32.mrf.mxu0
  %v428 = vadd.f32 %v227, %v427
  %429 = vmatmul.bf16.gmra.mxu0 %v272
  %v430 = vpop.f32.mrf.mxu0
  %v431 = vadd.f32 %v227, %v430
  %v432 = vpop.f32.mrf.mxu0
  %v433 = vadd.f32 %v227, %v432
  %434 = vmatmul.bf16.gmra.mxu0 %v275
  %v435 = vpop.f32.mrf.mxu0
  %v436 = vadd.f32 %v227, %v435
  %v437 = vpop.f32.mrf.mxu0
  %v438 = vadd.f32 %v227, %v437
  %439 = vmatmul.bf16.gmra.mxu0 %v278
  %v440 = vpop.f32.mrf.mxu0
  %v441 = vadd.f32 %v227, %v440
  %v442 = vpop.f32.mrf.mxu0
  %v443 = vadd.f32 %v227, %v442
  %444 = vmatmul.bf16.gmra.mxu0 %v281
  %v445 = vpop.f32.mrf.mxu0
  %v446 = vadd.f32 %v227, %v445
  %v447 = vpop.f32.mrf.mxu0
  %v448 = vadd.f32 %v227, %v447
  %449 = vmatmul.bf16.gmra.mxu0 %v284
  %v450 = vpop.f32.mrf.mxu0
  %v451 = vadd.f32 %v227, %v450
  %v452 = vpop.f32.mrf.mxu0
  %v453 = vadd.f32 %v227, %v452
  %454 = vmatmul.bf16.gmra.mxu0 %v287
  %v455 = vpop.f32.mrf.mxu0
  %v456 = vadd.f32 %v227, %v455
  %v457 = vpop.f32.mrf.mxu0
  %v458 = vadd.f32 %v227, %v457
  %459 = vmatmul.bf16.gmra.mxu0 %v290
  %v460 = vpop.f32.mrf.mxu0
  %v461 = vadd.f32 %v227, %v460
  %v462 = vpop.f32.mrf.mxu0
  %v463 = vadd.f32 %v227, %v462
  %464 = vmatmul.bf16.gmra.mxu0 %v293
  %v465 = vpop.f32.mrf.mxu0
  %v466 = vadd.f32 %v227, %v465
  %v467 = vpop.f32.mrf.mxu0
  %v468 = vadd.f32 %v227, %v467
  %469 = vmatmul.bf16.gmra.mxu0 %v296
  %v470 = vpop.f32.mrf.mxu0
  %v471 = vadd.f32 %v227, %v470
  %v472 = vpop.f32.mrf.mxu0
  %v473 = vadd.f32 %v227, %v472
  %474 = vmatmul.bf16.gmra.mxu0 %v299
  %v475 = vpop.f32.mrf.mxu0
  %v476 = vadd.f32 %v227, %v475
  %v477 = vpop.f32.mrf.mxu0
  %v478 = vadd.f32 %v227, %v477
  %479 = vmatmul.bf16.gmra.mxu0 %v302
  %v480 = vpop.f32.mrf.mxu0
  %v481 = vadd.f32 %v227, %v480
  %v482 = vpop.f32.mrf.mxu0
  %v483 = vadd.f32 %v227, %v482
  %484 = vmatmul.bf16.gmra.mxu0 %v305
  %v485 = vpop.f32.mrf.mxu0
  %v486 = vadd.f32 %v227, %v485
  %v487 = vpop.f32.mrf.mxu0
  %v488 = vadd.f32 %v227, %v487
  %489 = vmatmul.bf16.gmra.mxu0 %v308
  %v490 = vpop.f32.mrf.mxu0
  %v491 = vadd.f32 %v227, %v490
  %v492 = vpop.f32.mrf.mxu0
  %v493 = vadd.f32 %v227, %v492
  %494 = vmatmul.bf16.gmra.mxu0 %v311
  %v495 = vpop.f32.mrf.mxu0
  %v496 = vadd.f32 %v227, %v495
  %v497 = vpop.f32.mrf.mxu0
  %v498 = vadd.f32 %v227, %v497
  %499 = vmatmul.bf16.gmra.mxu0 %v314
  %v500 = vpop.f32.mrf.mxu0
  %v501 = vadd.f32 %v227, %v500
  %v502 = vpop.f32.mrf.mxu0
  %v503 = vadd.f32 %v227, %v502
  %504 = vmatmul.bf16.gmra.mxu0 %v317
  %v505 = vpop.f32.mrf.mxu0
  %v506 = vadd.f32 %v227, %v505
  %v507 = vpop.f32.mrf.mxu0
  %v508 = vadd.f32 %v227, %v507
  %509 = vmatmul.bf16.gmra.mxu0 %v320
  %v510 = vpop.f32.mrf.mxu0
  %v511 = vadd.f32 %v227, %v510
  %v512 = vpop.f32.mrf.mxu0
  %v513 = vadd.f32 %v227, %v512
  %514 = vmatmul.bf16.gmra.mxu0 %v323
  %v515 = vpop.f32.mrf.mxu0
  %v516 = vadd.f32 %v227, %v515
  %v517 = vpop.f32.mrf.mxu0
  %v518 = vadd.f32 %v227, %v517
  %519 = vmatmul.bf16.gmra.mxu0 %v326
  %v520 = vpop.f32.mrf.mxu0
  %v521 = vadd.f32 %v227, %v520
  %v522 = vpop.f32.mrf.mxu0
  %v523 = vadd.f32 %v227, %v522
  %524 = vmatmul.bf16.gmra.mxu0 %v329
  %v525 = vpop.f32.mrf.mxu0
  %v526 = vadd.f32 %v227, %v525
  %v527 = vpop.f32.mrf.mxu0
  %v528 = vadd.f32 %v227, %v527
  %529 = vmatmul.bf16.gmra.mxu0 %v332
  %v530 = vpop.f32.mrf.mxu0
  %v531 = vadd.f32 %v227, %v530
  %v532 = vpop.f32.mrf.mxu0
  %v533 = vadd.f32 %v227, %v532
  %534 = vmatmul.bf16.gmra.mxu0 %v335
  %v535 = vpop.f32.mrf.mxu0
  %v536 = vadd.f32 %v227, %v535
  %v537 = vpop.f32.mrf.mxu0
  %v538 = vadd.f32 %v227, %v537
  %539 = vmatmul.bf16.gmra.mxu0 %v338
  %v540 = vpop.f32.mrf.mxu0
  %v541 = vadd.f32 %v227, %v540
  %v542 = vpop.f32.mrf.mxu0
  %v543 = vadd.f32 %v227, %v542
  %544 = vmatmul.bf16.gmra.mxu0 %v341
  %v545 = vpop.f32.mrf.mxu0
  %v546 = vadd.f32 %v227, %v545
  %v547 = vpop.f32.mrf.mxu0
  %v548 = vadd.f32 %v227, %v547
  %549 = vmatmul.bf16.gmra.mxu0 %v344
  %v550 = vpop.f32.mrf.mxu0
  %v551 = vadd.f32 %v227, %v550
  %v552 = vpop.f32.mrf.mxu0
  %v553 = vadd.f32 %v227, %v552
  %554 = vmatmul.bf16.gmra.mxu0 %v347
  %v555 = vpop.f32.mrf.mxu0
  %v556 = vadd.f32 %v227, %v555
  %v557 = vpop.f32.mrf.mxu0
  %v558 = vadd.f32 %v227, %v557
  %559 = vmatmul.bf16.gmra.mxu0 %v350
  %v560 = vpop.f32.mrf.mxu0
  %v561 = vadd.f32 %v227, %v560
  %v562 = vpop.f32.mrf.mxu0
  %v563 = vadd.f32 %v227, %v562
  %564 = vmatmul.bf16.gmra.mxu0 %v353
  %v565 = vpop.f32.mrf.mxu0
  %v566 = vadd.f32 %v227, %v565
  %v567 = vpop.f32.mrf.mxu0
  %v568 = vadd.f32 %v227, %v567
  %569 = vmatmul.bf16.gmra.mxu0 %v356
  %v570 = vpop.f32.mrf.mxu0
  %v571 = vadd.f32 %v227, %v570
  %v572 = vpop.f32.mrf.mxu0
  %v573 = vadd.f32 %v227, %v572
  %574 = vmatmul.bf16.gmra.mxu0 %v359
  %v575 = vpop.f32.mrf.mxu0
  %v576 = vadd.f32 %v227, %v575
  %v577 = vpop.f32.mrf.mxu0
  %v578 = vadd.f32 %v227, %v577
  %579 = vmatmul.bf16.gmra.mxu0 %v362
  %v580 = vpop.f32.mrf.mxu0
  %v581 = vadd.f32 %v227, %v580
  %v582 = vpop.f32.mrf.mxu0
  %583 = vdwg.mxu0
  %v584 = vmax.f32 %v381, 0.0
  %v585 = vmax.f32 %v383, 0.0
  %v586 = vmax.f32 %v386, 0.0
  %v587 = vmax.f32 %v388, 0.0
  %v588 = vmax.f32 %v391, 0.0
  %v589 = vmax.f32 %v393, 0.0
  %v590 = vmax.f32 %v396, 0.0
  %v591 = vmax.f32 %v398, 0.0
  %v592 = vmax.f32 %v401, 0.0
  %v593 = vmax.f32 %v403, 0.0
  %v594 = vmax.f32 %v406, 0.0
  %v595 = vmax.f32 %v408, 0.0
  %v596 = vmax.f32 %v411, 0.0
  %v597 = vmax.f32 %v413, 0.0
  %v598 = vmax.f32 %v416, 0.0
  %v599 = vmax.f32 %v418, 0.0
  %v600 = vmax.f32 %v421, 0.0
  %v601 = vmax.f32 %v423, 0.0
  %v602 = vmax.f32 %v426, 0.0
  %v603 = vmax.f32 %v428, 0.0
  %v604 = vmax.f32 %v431, 0.0
  %v605 = vmax.f32 %v433, 0.0
  %v606 = vmax.f32 %v436, 0.0
  %v607 = vmax.f32 %v438, 0.0
  %v608 = vmax.f32 %v441, 0.0
  %v609 = vmax.f32 %v443, 0.0
  %v610 = vmax.f32 %v446, 0.0
  %v611 = vmax.f32 %v448, 0.0
  %v612 = vmax.f32 %v451, 0.0
  %v613 = vmax.f32 %v453, 0.0
  %v614 = vmax.f32 %v456, 0.0
  %v615 = vmax.f32 %v458, 0.0
  %v616 = vmax.f32 %v461, 0.0
  %v617 = vmax.f32 %v463, 0.0
  %v618 = vmax.f32 %v466, 0.0
  %v619 = vmax.f32 %v468, 0.0
  %v620 = vmax.f32 %v471, 0.0
  %v621 = vmax.f32 %v473, 0.0
  %v622 = vmax.f32 %v476, 0.0
  %v623 = vmax.f32 %v478, 0.0
  %v624 = vmax.f32 %v481, 0.0
  %v625 = vmax.f32 %v483, 0.0
  %v626 = vmax.f32 %v486, 0.0
  %v627 = vmax.f32 %v488, 0.0
  %v628 = vmax.f32 %v491, 0.0
  %v629 = vmax.f32 %v493, 0.0
  %v630 = vmax.f32 %v496, 0.0
  %v631 = vmax.f32 %v498, 0.0
  %v632 = vmax.f32 %v501, 0.0
  %v633 = vmax.f32 %v503, 0.0
  %v634 = vmax.f32 %v506, 0.0
  %v635 = vmax.f32 %v508, 0.0
  %v636 = vmax.f32 %v511, 0.0
  %v637 = vmax.f32 %v513, 0.0
  %v638 = vmax.f32 %v516, 0.0
  %v639 = vmax.f32 %v518, 0.0
  %v640 = vmax.f32 %v521, 0.0
  %v641 = vmax.f32 %v523, 0.0
  %v642 = vmax.f32 %v526, 0.0
  %v643 = vmax.f32 %v528, 0.0
  %v644 = vmax.f32 %v531, 0.0
  %v645 = vmax.f32 %v533, 0.0
  %v646 = vmax.f32 %v536, 0.0
  %v647 = vmax.f32 %v538, 0.0
  %v648 = vmax.f32 %v541, 0.0
  %v649 = vmax.f32 %v543, 0.0
  %v650 = vmax.f32 %v546, 0.0
  %v651 = vmax.f32 %v548, 0.0
  %v652 = vmax.f32 %v551, 0.0
  %v653 = vmax.f32 %v553, 0.0
  %v654 = vmax.f32 %v556, 0.0
  %v655 = vmax.f32 %v558, 0.0
  %v656 = vmax.f32 %v561, 0.0
  %v657 = vmax.f32 %v563, 0.0
  %v658 = vmax.f32 %v566, 0.0
  %v659 = vmax.f32 %v568, 0.0
  %v660 = vmax.f32 %v571, 0.0
  %v661 = vmax.f32 %v573, 0.0
  %v662 = vmax.f32 %v576, 0.0
  %v663 = vmax.f32 %v578, 0.0
  %v664 = vmax.f32 %v581, 0.0
  %666 = vset.pattern.permute.xlu0 0
  %667 = vperm.xlu0 %666, %v18
  %v668 = vpop.permute.xlu0 %667
  %671 = vset.pattern.permute.xlu0 0
  %672 = vperm.xlu0 %671, %v19
  %v673 = vpop.permute.xlu0 %672
  %676 = vset.pattern.permute.xlu0 0
  %677 = vperm.xlu0 %676, %v20
  %v678 = vpop.permute.xlu0 %677
  %681 = vset.pattern.permute.xlu0 0
  %682 = vperm.xlu0 %681, %v21
  %v683 = vpop.permute.xlu0 %682
  %686 = vset.pattern.permute.xlu0 0
  %687 = vperm.xlu0 %686, %v22
  %v688 = vpop.permute.xlu0 %687
  %691 = vset.pattern.permute.xlu0 0
  %692 = vperm.xlu0 %691, %v23
  %v693 = vpop.permute.xlu0 %692
  %696 = vset.pattern.permute.xlu0 0
  %697 = vperm.xlu0 %696, %v24
  %v698 = vpop.permute.xlu0 %697
  %701 = vset.pattern.permute.xlu0 0
  %702 = vperm.xlu0 %701, %v25
  %v703 = vpop.permute.xlu0 %702
  %706 = vset.pattern.permute.xlu0 0
  %707 = vperm.xlu0 %706, %v26
  %v708 = vpop.permute.xlu0 %707
  %711 = vset.pattern.permute.xlu0 0
  %712 = vperm.xlu0 %711, %v27
  %v713 = vpop.permute.xlu0 %712
  %716 = vset.pattern.permute.xlu0 0
  %717 = vperm.xlu0 %716, %v28
  %v718 = vpop.permute.xlu0 %717
  %721 = vset.pattern.permute.xlu0 0
  %722 = vperm.xlu0 %721, %v29
  %v723 = vpop.permute.xlu0 %722
  %726 = vset.pattern.permute.xlu0 0
  %727 = vperm.xlu0 %726, %v30
  %v728 = vpop.permute.xlu0 %727
  %731 = vset.pattern.permute.xlu0 0
  %732 = vperm.xlu0 %731, %v31
  %v733 = vpop.permute.xlu0 %732
  %736 = vset.pattern.permute.xlu0 0
  %737 = vperm.xlu0 %736, %v32
  %v738 = vpop.permute.xlu0 %737
  %741 = vset.pattern.permute.xlu0 0
  %742 = vperm.xlu0 %741, %v33
  %v743 = vpop.permute.xlu0 %742
  %746 = vset.pattern.permute.xlu0 0
  %747 = vperm.xlu0 %746, %v34
  %v748 = vpop.permute.xlu0 %747
  %751 = vset.pattern.permute.xlu0 0
  %752 = vperm.xlu0 %751, %v35
  %v753 = vpop.permute.xlu0 %752
  %756 = vset.pattern.permute.xlu0 0
  %757 = vperm.xlu0 %756, %v36
  %v758 = vpop.permute.xlu0 %757
  %761 = vset.pattern.permute.xlu0 0
  %762 = vperm.xlu0 %761, %v37
  %v763 = vpop.permute.xlu0 %762
  %766 = vset.pattern.permute.xlu0 0
  %767 = vperm.xlu0 %766, %v38
  %v768 = vpop.permute.xlu0 %767
  %771 = vset.pattern.permute.xlu0 0
  %772 = vperm.xlu0 %771, %v39
  %v773 = vpop.permute.xlu0 %772
  %776 = vset.pattern.permute.xlu0 0
  %777 = vperm.xlu0 %776, %v40
  %v778 = vpop.permute.xlu0 %777
  %781 = vset.pattern.permute.xlu0 0
  %782 = vperm.xlu0 %781, %v41
  %v783 = vpop.permute.xlu0 %782
  %786 = vset.pattern.permute.xlu0 0
  %787 = vperm.xlu0 %786, %v42
  %v788 = vpop.permute.xlu0 %787
  %791 = vset.pattern.permute.xlu0 0
  %792 = vperm.xlu0 %791, %v43
  %v793 = vpop.permute.xlu0 %792
  %796 = vset.pattern.permute.xlu0 0
  %797 = vperm.xlu0 %796, %v44
  %v798 = vpop.permute.xlu0 %797
  %801 = vset.pattern.permute.xlu0 0
  %802 = vperm.xlu0 %801, %v45
  %v803 = vpop.permute.xlu0 %802
  %806 = vset.pattern.permute.xlu0 0
  %807 = vperm.xlu0 %806, %v46
  %v808 = vpop.permute.xlu0 %807
  %811 = vset.pattern.permute.xlu0 0
  %812 = vperm.xlu0 %811, %v47
  %v813 = vpop.permute.xlu0 %812
  %816 = vset.pattern.permute.xlu0 0
  %817 = vperm.xlu0 %816, %v48
  %v818 = vpop.permute.xlu0 %817
  %821 = vset.pattern.permute.xlu0 0
  %822 = vperm.xlu0 %821, %v49
  %v823 = vpop.permute.xlu0 %822
  %826 = vset.pattern.permute.xlu0 0
  %827 = vperm.xlu0 %826, %v50
  %v828 = vpop.permute.xlu0 %827
  %831 = vset.pattern.permute.xlu0 0
  %832 = vperm.xlu0 %831, %v51
  %v833 = vpop.permute.xlu0 %832
  %836 = vset.pattern.permute.xlu0 0
  %837 = vperm.xlu0 %836, %v52
  %v838 = vpop.permute.xlu0 %837
  %841 = vset.pattern.permute.xlu0 0
  %842 = vperm.xlu0 %841, %v53
  %v843 = vpop.permute.xlu0 %842
  %846 = vset.pattern.permute.xlu0 0
  %847 = vperm.xlu0 %846, %v54
  %v848 = vpop.permute.xlu0 %847
  %851 = vset.pattern.permute.xlu0 0
  %852 = vperm.xlu0 %851, %v55
  %v853 = vpop.permute.xlu0 %852
  %856 = vset.pattern.permute.xlu0 0
  %857 = vperm.xlu0 %856, %v56
  %v858 = vpop.permute.xlu0 %857
  %861 = vset.pattern.permute.xlu0 0
  %862 = vperm.xlu0 %861, %v57
  %v863 = vpop.permute.xlu0 %862
  %866 = vset.pattern.permute.xlu0 0
  %867 = vperm.xlu0 %866, %v58
  %v868 = vpop.permute.xlu0 %867
  %871 = vset.pattern.permute.xlu0 0
  %872 = vperm.xlu0 %871, %v59
  %v873 = vpop.permute.xlu0 %872
  %876 = vset.pattern.permute.xlu0 0
  %877 = vperm.xlu0 %876, %v60
  %v878 = vpop.permute.xlu0 %877
  %881 = vset.pattern.permute.xlu0 0
  %882 = vperm.xlu0 %881, %v61
  %v883 = vpop.permute.xlu0 %882
  %886 = vset.pattern.permute.xlu0 0
  %887 = vperm.xlu0 %886, %v62
  %v888 = vpop.permute.xlu0 %887
  %891 = vset.pattern.permute.xlu0 0
  %892 = vperm.xlu0 %891, %v63
  %v893 = vpop.permute.xlu0 %892
  %896 = vset.pattern.permute.xlu0 0
  %897 = vperm.xlu0 %896, %v64
  %v898 = vpop.permute.xlu0 %897
  %901 = vset.pattern.permute.xlu0 0
  %902 = vperm.xlu0 %901, %v65
  %v903 = vpop.permute.xlu0 %902
  %906 = vset.pattern.permute.xlu0 0
  %907 = vperm.xlu0 %906, %v66
  %v908 = vpop.permute.xlu0 %907
  %911 = vset.pattern.permute.xlu0 0
  %912 = vperm.xlu0 %911, %v67
  %v913 = vpop.permute.xlu0 %912
  %916 = vset.pattern.permute.xlu0 0
  %917 = vperm.xlu0 %916, %v68
  %v918 = vpop.permute.xlu0 %917
  %921 = vset.pattern.permute.xlu0 0
  %922 = vperm.xlu0 %921, %v69
  %v923 = vpop.permute.xlu0 %922
  %926 = vset.pattern.permute.xlu0 0
  %927 = vperm.xlu0 %926, %v70
  %v928 = vpop.permute.xlu0 %927
  %931 = vset.pattern.permute.xlu0 0
  %932 = vperm.xlu0 %931, %v71
  %v933 = vpop.permute.xlu0 %932
  %936 = vset.pattern.permute.xlu0 0
  %937 = vperm.xlu0 %936, %v72
  %v938 = vpop.permute.xlu0 %937
  %941 = vset.pattern.permute.xlu0 0
  %942 = vperm.xlu0 %941, %v73
  %v943 = vpop.permute.xlu0 %942
  %946 = vset.pattern.permute.xlu0 0
  %947 = vperm.xlu0 %946, %v74
  %v948 = vpop.permute.xlu0 %947
  %951 = vset.pattern.permute.xlu0 0
  %952 = vperm.xlu0 %951, %v75
  %v953 = vpop.permute.xlu0 %952
  %956 = vset.pattern.permute.xlu0 0
  %957 = vperm.xlu0 %956, %v76
  %v958 = vpop.permute.xlu0 %957
  %961 = vset.pattern.permute.xlu0 0
  %962 = vperm.xlu0 %961, %v77
  %v963 = vpop.permute.xlu0 %962
  %966 = vset.pattern.permute.xlu0 0
  %967 = vperm.xlu0 %966, %v78
  %v968 = vpop.permute.xlu0 %967
  %971 = vset.pattern.permute.xlu0 0
  %972 = vperm.xlu0 %971, %v79
  %v973 = vpop.permute.xlu0 %972
  %976 = vset.pattern.permute.xlu0 0
  %977 = vperm.xlu0 %976, %v80
  %v978 = vpop.permute.xlu0 %977
  %981 = vset.pattern.permute.xlu0 0
  %982 = vperm.xlu0 %981, %v81
  %v983 = vpop.permute.xlu0 %982
  %986 = vset.pattern.permute.xlu0 0
  %987 = vperm.xlu0 %986, %v82
  %v988 = vpop.permute.xlu0 %987
  %991 = vset.pattern.permute.xlu0 0
  %992 = vperm.xlu0 %991, %v83
  %v993 = vpop.permute.xlu0 %992
  %996 = vset.pattern.permute.xlu0 0
  %997 = vperm.xlu0 %996, %v84
  %v998 = vpop.permute.xlu0 %997
  %1001 = vset.pattern.permute.xlu0 0
  %1002 = vperm.xlu0 %1001, %v85
  %v1003 = vpop.permute.xlu0 %1002
  %1006 = vset.pattern.permute.xlu0 0
  %1007 = vperm.xlu0 %1006, %v86
  %v1008 = vpop.permute.xlu0 %1007
  %1011 = vset.pattern.permute.xlu0 0
  %1012 = vperm.xlu0 %1011, %v87
  %v1013 = vpop.permute.xlu0 %1012
  %1016 = vset.pattern.permute.xlu0 0
  %1017 = vperm.xlu0 %1016, %v88
  %v1018 = vpop.permute.xlu0 %1017
  %1021 = vset.pattern.permute.xlu0 0
  %1022 = vperm.xlu0 %1021, %v89
  %v1023 = vpop.permute.xlu0 %1022
  %1026 = vset.pattern.permute.xlu0 0
  %1027 = vperm.xlu0 %1026, %v90
  %v1028 = vpop.permute.xlu0 %1027
  %1031 = vset.pattern.permute.xlu0 0
  %1032 = vperm.xlu0 %1031, %v91
  %v1033 = vpop.permute.xlu0 %1032
  %1036 = vset.pattern.permute.xlu0 0
  %1037 = vperm.xlu0 %1036, %v92
  %v1038 = vpop.permute.xlu0 %1037
  %1041 = vset.pattern.permute.xlu0 0
  %1042 = vperm.xlu0 %1041, %v93
  %v1043 = vpop.permute.xlu0 %1042
  %1046 = vset.pattern.permute.xlu0 0
  %1047 = vperm.xlu0 %1046, %v94
  %v1048 = vpop.permute.xlu0 %1047
  %1051 = vset.pattern.permute.xlu0 0
  %1052 = vperm.xlu0 %1051, %v95
  %v1053 = vpop.permute.xlu0 %1052
  %1056 = vset.pattern.permute.xlu0 0
  %1057 = vperm.xlu0 %1056, %v96
  %v1058 = vpop.permute.xlu0 %1057
  %1061 = vset.pattern.permute.xlu0 0
  %1062 = vperm.xlu0 %1061, %v97
  %v1063 = vpop.permute.xlu0 %1062
  %1066 = vset.pattern.permute.xlu0 0
  %1067 = vperm.xlu0 %1066, %v98
  %v1068 = vpop.permute.xlu0 %1067
  %v1070 = vmul.f32 %v584, %v668
  %v1071 = vmul.f32 %v585, %v673
  %v1072 = vmul.f32 %v586, %v678
  %v1073 = vmul.f32 %v587, %v683
  %v1074 = vmul.f32 %v588, %v688
  %v1075 = vmul.f32 %v589, %v693
  %v1076 = vmul.f32 %v590, %v698
  %v1077 = vmul.f32 %v591, %v703
  %v1078 = vmul.f32 %v592, %v708
  %v1079 = vmul.f32 %v593, %v713
  %v1080 = vmul.f32 %v594, %v718
  %v1081 = vmul.f32 %v595, %v723
  %v1082 = vmul.f32 %v596, %v728
  %v1083 = vmul.f32 %v597, %v733
  %v1084 = vmul.f32 %v598, %v738
  %v1085 = vmul.f32 %v599, %v743
  %v1086 = vmul.f32 %v600, %v748
  %v1087 = vmul.f32 %v601, %v753
  %v1088 = vmul.f32 %v602, %v758
  %v1089 = vmul.f32 %v603, %v763
  %v1090 = vmul.f32 %v604, %v768
  %v1091 = vmul.f32 %v605, %v773
  %v1092 = vmul.f32 %v606, %v778
  %v1093 = vmul.f32 %v607, %v783
  %v1094 = vmul.f32 %v608, %v788
  %v1095 = vmul.f32 %v609, %v793
  %v1096 = vmul.f32 %v610, %v798
  %v1097 = vmul.f32 %v611, %v803
  %v1098 = vmul.f32 %v612, %v808
  %v1099 = vmul.f32 %v613, %v813
  %v1100 = vmul.f32 %v614, %v818
  %v1101 = vmul.f32 %v615, %v823
  %v1102 = vmul.f32 %v616, %v828
  %v1103 = vmul.f32 %v617, %v833
  %v1104 = vmul.f32 %v618, %v838
  %v1105 = vmul.f32 %v619, %v843
  %v1106 = vmul.f32 %v620, %v848
  %v1107 = vmul.f32 %v621, %v853
  %v1108 = vmul.f32 %v622, %v858
  %v1109 = vmul.f32 %v623, %v863
  %v1110 = vmul.f32 %v624, %v868
  %v1111 = vmul.f32 %v625, %v873
  %v1112 = vmul.f32 %v626, %v878
  %v1113 = vmul.f32 %v627, %v883
  %v1114 = vmul.f32 %v628, %v888
  %v1115 = vmul.f32 %v629, %v893
  %v1116 = vmul.f32 %v630, %v898
  %v1117 = vmul.f32 %v631, %v903
  %v1118 = vmul.f32 %v632, %v908
  %v1119 = vmul.f32 %v633, %v913
  %v1120 = vmul.f32 %v634, %v918
  %v1121 = vmul.f32 %v635, %v923
  %v1122 = vmul.f32 %v636, %v928
  %v1123 = vmul.f32 %v637, %v933
  %v1124 = vmul.f32 %v638, %v938
  %v1125 = vmul.f32 %v639, %v943
  %v1126 = vmul.f32 %v640, %v948
  %v1127 = vmul.f32 %v641, %v953
  %v1128 = vmul.f32 %v642, %v958
  %v1129 = vmul.f32 %v643, %v963
  %v1130 = vmul.f32 %v644, %v968
  %v1131 = vmul.f32 %v645, %v973
  %v1132 = vmul.f32 %v646, %v978
  %v1133 = vmul.f32 %v647, %v983
  %v1134 = vmul.f32 %v648, %v988
  %v1135 = vmul.f32 %v649, %v993
  %v1136 = vmul.f32 %v650, %v998
  %v1137 = vmul.f32 %v651, %v1003
  %v1138 = vmul.f32 %v652, %v1008
  %v1139 = vmul.f32 %v653, %v1013
  %v1140 = vmul.f32 %v654, %v1018
  %v1141 = vmul.f32 %v655, %v1023
  %v1142 = vmul.f32 %v656, %v1028
  %v1143 = vmul.f32 %v657, %v1033
  %v1144 = vmul.f32 %v658, %v1038
  %v1145 = vmul.f32 %v659, %v1043
  %v1146 = vmul.f32 %v660, %v1048
  %v1147 = vmul.f32 %v661, %v1053
  %v1148 = vmul.f32 %v662, %v1058
  %v1149 = vmul.f32 %v663, %v1063
  %v1150 = vmul.f32 %v664, %v1068
  %v1151 = vsub.f32 %v18, 1.0
  %v1152 = vsub.f32 %v19, 1.0
  %v1153 = vsub.f32 %v20, 1.0
  %v1154 = vsub.f32 %v21, 1.0
  %v1155 = vsub.f32 %v22, 1.0
  %v1156 = vsub.f32 %v23, 1.0
  %v1157 = vsub.f32 %v24, 1.0
  %v1158 = vsub.f32 %v25, 1.0
  %v1159 = vsub.f32 %v26, 1.0
  %v1160 = vsub.f32 %v27, 1.0
  %v1161 = vsub.f32 %v28, 1.0
  %v1162 = vsub.f32 %v29, 1.0
  %v1163 = vsub.f32 %v30, 1.0
  %v1164 = vsub.f32 %v31, 1.0
  %v1165 = vsub.f32 %v32, 1.0
  %v1166 = vsub.f32 %v33, 1.0
  %v1167 = vsub.f32 %v34, 1.0
  %v1168 = vsub.f32 %v35, 1.0
  %v1169 = vsub.f32 %v36, 1.0
  %v1170 = vsub.f32 %v37, 1.0
  %v1171 = vsub.f32 %v38, 1.0
  %v1172 = vsub.f32 %v39, 1.0
  %v1173 = vsub.f32 %v40, 1.0
  %v1174 = vsub.f32 %v41, 1.0
  %v1175 = vsub.f32 %v42, 1.0
  %v1176 = vsub.f32 %v43, 1.0
  %v1177 = vsub.f32 %v44, 1.0
  %v1178 = vsub.f32 %v45, 1.0
  %v1179 = vsub.f32 %v46, 1.0
  %v1180 = vsub.f32 %v47, 1.0
  %v1181 = vsub.f32 %v48, 1.0
  %v1182 = vsub.f32 %v49, 1.0
  %v1183 = vsub.f32 %v50, 1.0
  %v1184 = vsub.f32 %v51, 1.0
  %v1185 = vsub.f32 %v52, 1.0
  %v1186 = vsub.f32 %v53, 1.0
  %v1187 = vsub.f32 %v54, 1.0
  %v1188 = vsub.f32 %v55, 1.0
  %v1189 = vsub.f32 %v56, 1.0
  %v1190 = vsub.f32 %v57, 1.0
  %v1191 = vsub.f32 %v58, 1.0
  %v1192 = vsub.f32 %v59, 1.0
  %v1193 = vsub.f32 %v60, 1.0
  %v1194 = vsub.f32 %v61, 1.0
  %v1195 = vsub.f32 %v62, 1.0
  %v1196 = vsub.f32 %v63, 1.0
  %v1197 = vsub.f32 %v64, 1.0
  %v1198 = vsub.f32 %v65, 1.0
  %v1199 = vsub.f32 %v66, 1.0
  %v1200 = vsub.f32 %v67, 1.0
  %v1201 = vsub.f32 %v68, 1.0
  %v1202 = vsub.f32 %v69, 1.0
  %v1203 = vsub.f32 %v70, 1.0
  %v1204 = vsub.f32 %v71, 1.0
  %v1205 = vsub.f32 %v72, 1.0
  %v1206 = vsub.f32 %v73, 1.0
  %v1207 = vsub.f32 %v74, 1.0
  %v1208 = vsub.f32 %v75, 1.0
  %v1209 = vsub.f32 %v76, 1.0
  %v1210 = vsub.f32 %v77, 1.0
  %v1211 = vsub.f32 %v78, 1.0
  %v1212 = vsub.f32 %v79, 1.0
  %v1213 = vsub.f32 %v80, 1.0
  %v1214 = vsub.f32 %v81, 1.0
  %v1215 = vsub.f32 %v82, 1.0
  %v1216 = vsub.f32 %v83, 1.0
  %v1217 = vsub.f32 %v84, 1.0
  %v1218 = vsub.f32 %v85, 1.0
  %v1219 = vsub.f32 %v86, 1.0
  %v1220 = vsub.f32 %v87, 1.0
  %v1221 = vsub.f32 %v88, 1.0
  %v1222 = vsub.f32 %v89, 1.0
  %v1223 = vsub.f32 %v90, 1.0
  %v1224 = vsub.f32 %v91, 1.0
  %v1225 = vsub.f32 %v92, 1.0
  %v1226 = vsub.f32 %v93, 1.0
  %v1227 = vsub.f32 %v94, 1.0
  %v1228 = vsub.f32 %v95, 1.0
  %v1229 = vsub.f32 %v96, 1.0
  %v1230 = vsub.f32 %v97, 1.0
  %v1231 = vsub.f32 %v98, 1.0
  %v1232 = vmul.f32 %v1151, 1e+30
  %v1233 = vmul.f32 %v1152, 1e+30
  %v1234 = vmul.f32 %v1153, 1e+30
  %v1235 = vmul.f32 %v1154, 1e+30
  %v1236 = vmul.f32 %v1155, 1e+30
  %v1237 = vmul.f32 %v1156, 1e+30
  %v1238 = vmul.f32 %v1157, 1e+30
  %v1239 = vmul.f32 %v1158, 1e+30
  %v1240 = vmul.f32 %v1159, 1e+30
  %v1241 = vmul.f32 %v1160, 1e+30
  %v1242 = vmul.f32 %v1161, 1e+30
  %v1243 = vmul.f32 %v1162, 1e+30
  %v1244 = vmul.f32 %v1163, 1e+30
  %v1245 = vmul.f32 %v1164, 1e+30
  %v1246 = vmul.f32 %v1165, 1e+30
  %v1247 = vmul.f32 %v1166, 1e+30
  %v1248 = vmul.f32 %v1167, 1e+30
  %v1249 = vmul.f32 %v1168, 1e+30
  %v1250 = vmul.f32 %v1169, 1e+30
  %v1251 = vmul.f32 %v1170, 1e+30
  %v1252 = vmul.f32 %v1171, 1e+30
  %v1253 = vmul.f32 %v1172, 1e+30
  %v1254 = vmul.f32 %v1173, 1e+30
  %v1255 = vmul.f32 %v1174, 1e+30
  %v1256 = vmul.f32 %v1175, 1e+30
  %v1257 = vmul.f32 %v1176, 1e+30
  %v1258 = vmul.f32 %v1177, 1e+30
  %v1259 = vmul.f32 %v1178, 1e+30
  %v1260 = vmul.f32 %v1179, 1e+30
  %v1261 = vmul.f32 %v1180, 1e+30
  %v1262 = vmul.f32 %v1181, 1e+30
  %v1263 = vmul.f32 %v1182, 1e+30
  %v1264 = vmul.f32 %v1183, 1e+30
  %v1265 = vmul.f32 %v1184, 1e+30
  %v1266 = vmul.f32 %v1185, 1e+30
  %v1267 = vmul.f32 %v1186, 1e+30
  %v1268 = vmul.f32 %v1187, 1e+30
  %v1269 = vmul.f32 %v1188, 1e+30
  %v1270 = vmul.f32 %v1189, 1e+30
  %v1271 = vmul.f32 %v1190, 1e+30
  %v1272 = vmul.f32 %v1191, 1e+30
  %v1273 = vmul.f32 %v1192, 1e+30
  %v1274 = vmul.f32 %v1193, 1e+30
  %v1275 = vmul.f32 %v1194, 1e+30
  %v1276 = vmul.f32 %v1195, 1e+30
  %v1277 = vmul.f32 %v1196, 1e+30
  %v1278 = vmul.f32 %v1197, 1e+30
  %v1279 = vmul.f32 %v1198, 1e+30
  %v1280 = vmul.f32 %v1199, 1e+30
  %v1281 = vmul.f32 %v1200, 1e+30
  %v1282 = vmul.f32 %v1201, 1e+30
  %v1283 = vmul.f32 %v1202, 1e+30
  %v1284 = vmul.f32 %v1203, 1e+30
  %v1285 = vmul.f32 %v1204, 1e+30
  %v1286 = vmul.f32 %v1205, 1e+30
  %v1287 = vmul.f32 %v1206, 1e+30
  %v1288 = vmul.f32 %v1207, 1e+30
  %v1289 = vmul.f32 %v1208, 1e+30
  %v1290 = vmul.f32 %v1209, 1e+30
  %v1291 = vmul.f32 %v1210, 1e+30
  %v1292 = vmul.f32 %v1211, 1e+30
  %v1293 = vmul.f32 %v1212, 1e+30
  %v1294 = vmul.f32 %v1213, 1e+30
  %v1295 = vmul.f32 %v1214, 1e+30
  %v1296 = vmul.f32 %v1215, 1e+30
  %v1297 = vmul.f32 %v1216, 1e+30
  %v1298 = vmul.f32 %v1217, 1e+30
  %v1299 = vmul.f32 %v1218, 1e+30
  %v1300 = vmul.f32 %v1219, 1e+30
  %v1301 = vmul.f32 %v1220, 1e+30
  %v1302 = vmul.f32 %v1221, 1e+30
  %v1303 = vmul.f32 %v1222, 1e+30
  %v1304 = vmul.f32 %v1223, 1e+30
  %v1305 = vmul.f32 %v1224, 1e+30
  %v1306 = vmul.f32 %v1225, 1e+30
  %v1307 = vmul.f32 %v1226, 1e+30
  %v1308 = vmul.f32 %v1227, 1e+30
  %v1309 = vmul.f32 %v1228, 1e+30
  %v1310 = vmul.f32 %v1229, 1e+30
  %v1311 = vmul.f32 %v1230, 1e+30
  %v1312 = vmul.f32 %v1231, 1e+30
  %1314 = vset.pattern.permute.xlu0 0
  %1315 = vperm.xlu0 %1314, %v1232
  %v1316 = vpop.permute.xlu0 %1315
  %1319 = vset.pattern.permute.xlu0 0
  %1320 = vperm.xlu0 %1319, %v1233
  %v1321 = vpop.permute.xlu0 %1320
  %1324 = vset.pattern.permute.xlu0 0
  %1325 = vperm.xlu0 %1324, %v1234
  %v1326 = vpop.permute.xlu0 %1325
  %1329 = vset.pattern.permute.xlu0 0
  %1330 = vperm.xlu0 %1329, %v1235
  %v1331 = vpop.permute.xlu0 %1330
  %1334 = vset.pattern.permute.xlu0 0
  %1335 = vperm.xlu0 %1334, %v1236
  %v1336 = vpop.permute.xlu0 %1335
  %1339 = vset.pattern.permute.xlu0 0
  %1340 = vperm.xlu0 %1339, %v1237
  %v1341 = vpop.permute.xlu0 %1340
  %1344 = vset.pattern.permute.xlu0 0
  %1345 = vperm.xlu0 %1344, %v1238
  %v1346 = vpop.permute.xlu0 %1345
  %1349 = vset.pattern.permute.xlu0 0
  %1350 = vperm.xlu0 %1349, %v1239
  %v1351 = vpop.permute.xlu0 %1350
  %1354 = vset.pattern.permute.xlu0 0
  %1355 = vperm.xlu0 %1354, %v1240
  %v1356 = vpop.permute.xlu0 %1355
  %1359 = vset.pattern.permute.xlu0 0
  %1360 = vperm.xlu0 %1359, %v1241
  %v1361 = vpop.permute.xlu0 %1360
  %1364 = vset.pattern.permute.xlu0 0
  %1365 = vperm.xlu0 %1364, %v1242
  %v1366 = vpop.permute.xlu0 %1365
  %1369 = vset.pattern.permute.xlu0 0
  %1370 = vperm.xlu0 %1369, %v1243
  %v1371 = vpop.permute.xlu0 %1370
  %1374 = vset.pattern.permute.xlu0 0
  %1375 = vperm.xlu0 %1374, %v1244
  %v1376 = vpop.permute.xlu0 %1375
  %1379 = vset.pattern.permute.xlu0 0
  %1380 = vperm.xlu0 %1379, %v1245
  %v1381 = vpop.permute.xlu0 %1380
  %1384 = vset.pattern.permute.xlu0 0
  %1385 = vperm.xlu0 %1384, %v1246
  %v1386 = vpop.permute.xlu0 %1385
  %1389 = vset.pattern.permute.xlu0 0
  %1390 = vperm.xlu0 %1389, %v1247
  %v1391 = vpop.permute.xlu0 %1390
  %1394 = vset.pattern.permute.xlu0 0
  %1395 = vperm.xlu0 %1394, %v1248
  %v1396 = vpop.permute.xlu0 %1395
  %1399 = vset.pattern.permute.xlu0 0
  %1400 = vperm.xlu0 %1399, %v1249
  %v1401 = vpop.permute.xlu0 %1400
  %1404 = vset.pattern.permute.xlu0 0
  %1405 = vperm.xlu0 %1404, %v1250
  %v1406 = vpop.permute.xlu0 %1405
  %1409 = vset.pattern.permute.xlu0 0
  %1410 = vperm.xlu0 %1409, %v1251
  %v1411 = vpop.permute.xlu0 %1410
  %1414 = vset.pattern.permute.xlu0 0
  %1415 = vperm.xlu0 %1414, %v1252
  %v1416 = vpop.permute.xlu0 %1415
  %1419 = vset.pattern.permute.xlu0 0
  %1420 = vperm.xlu0 %1419, %v1253
  %v1421 = vpop.permute.xlu0 %1420
  %1424 = vset.pattern.permute.xlu0 0
  %1425 = vperm.xlu0 %1424, %v1254
  %v1426 = vpop.permute.xlu0 %1425
  %1429 = vset.pattern.permute.xlu0 0
  %1430 = vperm.xlu0 %1429, %v1255
  %v1431 = vpop.permute.xlu0 %1430
  %1434 = vset.pattern.permute.xlu0 0
  %1435 = vperm.xlu0 %1434, %v1256
  %v1436 = vpop.permute.xlu0 %1435
  %1439 = vset.pattern.permute.xlu0 0
  %1440 = vperm.xlu0 %1439, %v1257
  %v1441 = vpop.permute.xlu0 %1440
  %1444 = vset.pattern.permute.xlu0 0
  %1445 = vperm.xlu0 %1444, %v1258
  %v1446 = vpop.permute.xlu0 %1445
  %1449 = vset.pattern.permute.xlu0 0
  %1450 = vperm.xlu0 %1449, %v1259
  %v1451 = vpop.permute.xlu0 %1450
  %1454 = vset.pattern.permute.xlu0 0
  %1455 = vperm.xlu0 %1454, %v1260
  %v1456 = vpop.permute.xlu0 %1455
  %1459 = vset.pattern.permute.xlu0 0
  %1460 = vperm.xlu0 %1459, %v1261
  %v1461 = vpop.permute.xlu0 %1460
  %1464 = vset.pattern.permute.xlu0 0
  %1465 = vperm.xlu0 %1464, %v1262
  %v1466 = vpop.permute.xlu0 %1465
  %1469 = vset.pattern.permute.xlu0 0
  %1470 = vperm.xlu0 %1469, %v1263
  %v1471 = vpop.permute.xlu0 %1470
  %1474 = vset.pattern.permute.xlu0 0
  %1475 = vperm.xlu0 %1474, %v1264
  %v1476 = vpop.permute.xlu0 %1475
  %1479 = vset.pattern.permute.xlu0 0
  %1480 = vperm.xlu0 %1479, %v1265
  %v1481 = vpop.permute.xlu0 %1480
  %1484 = vset.pattern.permute.xlu0 0
  %1485 = vperm.xlu0 %1484, %v1266
  %v1486 = vpop.permute.xlu0 %1485
  %1489 = vset.pattern.permute.xlu0 0
  %1490 = vperm.xlu0 %1489, %v1267
  %v1491 = vpop.permute.xlu0 %1490
  %1494 = vset.pattern.permute.xlu0 0
  %1495 = vperm.xlu0 %1494, %v1268
  %v1496 = vpop.permute.xlu0 %1495
  %1499 = vset.pattern.permute.xlu0 0
  %1500 = vperm.xlu0 %1499, %v1269
  %v1501 = vpop.permute.xlu0 %1500
  %1504 = vset.pattern.permute.xlu0 0
  %1505 = vperm.xlu0 %1504, %v1270
  %v1506 = vpop.permute.xlu0 %1505
  %1509 = vset.pattern.permute.xlu0 0
  %1510 = vperm.xlu0 %1509, %v1271
  %v1511 = vpop.permute.xlu0 %1510
  %1514 = vset.pattern.permute.xlu0 0
  %1515 = vperm.xlu0 %1514, %v1272
  %v1516 = vpop.permute.xlu0 %1515
  %1519 = vset.pattern.permute.xlu0 0
  %1520 = vperm.xlu0 %1519, %v1273
  %v1521 = vpop.permute.xlu0 %1520
  %1524 = vset.pattern.permute.xlu0 0
  %1525 = vperm.xlu0 %1524, %v1274
  %v1526 = vpop.permute.xlu0 %1525
  %1529 = vset.pattern.permute.xlu0 0
  %1530 = vperm.xlu0 %1529, %v1275
  %v1531 = vpop.permute.xlu0 %1530
  %1534 = vset.pattern.permute.xlu0 0
  %1535 = vperm.xlu0 %1534, %v1276
  %v1536 = vpop.permute.xlu0 %1535
  %1539 = vset.pattern.permute.xlu0 0
  %1540 = vperm.xlu0 %1539, %v1277
  %v1541 = vpop.permute.xlu0 %1540
  %1544 = vset.pattern.permute.xlu0 0
  %1545 = vperm.xlu0 %1544, %v1278
  %v1546 = vpop.permute.xlu0 %1545
  %1549 = vset.pattern.permute.xlu0 0
  %1550 = vperm.xlu0 %1549, %v1279
  %v1551 = vpop.permute.xlu0 %1550
  %1554 = vset.pattern.permute.xlu0 0
  %1555 = vperm.xlu0 %1554, %v1280
  %v1556 = vpop.permute.xlu0 %1555
  %1559 = vset.pattern.permute.xlu0 0
  %1560 = vperm.xlu0 %1559, %v1281
  %v1561 = vpop.permute.xlu0 %1560
  %1564 = vset.pattern.permute.xlu0 0
  %1565 = vperm.xlu0 %1564, %v1282
  %v1566 = vpop.permute.xlu0 %1565
  %1569 = vset.pattern.permute.xlu0 0
  %1570 = vperm.xlu0 %1569, %v1283
  %v1571 = vpop.permute.xlu0 %1570
  %1574 = vset.pattern.permute.xlu0 0
  %1575 = vperm.xlu0 %1574, %v1284
  %v1576 = vpop.permute.xlu0 %1575
  %1579 = vset.pattern.permute.xlu0 0
  %1580 = vperm.xlu0 %1579, %v1285
  %v1581 = vpop.permute.xlu0 %1580
  %1584 = vset.pattern.permute.xlu0 0
  %1585 = vperm.xlu0 %1584, %v1286
  %v1586 = vpop.permute.xlu0 %1585
  %1589 = vset.pattern.permute.xlu0 0
  %1590 = vperm.xlu0 %1589, %v1287
  %v1591 = vpop.permute.xlu0 %1590
  %1594 = vset.pattern.permute.xlu0 0
  %1595 = vperm.xlu0 %1594, %v1288
  %v1596 = vpop.permute.xlu0 %1595
  %1599 = vset.pattern.permute.xlu0 0
  %1600 = vperm.xlu0 %1599, %v1289
  %v1601 = vpop.permute.xlu0 %1600
  %1604 = vset.pattern.permute.xlu0 0
  %1605 = vperm.xlu0 %1604, %v1290
  %v1606 = vpop.permute.xlu0 %1605
  %1609 = vset.pattern.permute.xlu0 0
  %1610 = vperm.xlu0 %1609, %v1291
  %v1611 = vpop.permute.xlu0 %1610
  %1614 = vset.pattern.permute.xlu0 0
  %1615 = vperm.xlu0 %1614, %v1292
  %v1616 = vpop.permute.xlu0 %1615
  %1619 = vset.pattern.permute.xlu0 0
  %1620 = vperm.xlu0 %1619, %v1293
  %v1621 = vpop.permute.xlu0 %1620
  %1624 = vset.pattern.permute.xlu0 0
  %1625 = vperm.xlu0 %1624, %v1294
  %v1626 = vpop.permute.xlu0 %1625
  %1629 = vset.pattern.permute.xlu0 0
  %1630 = vperm.xlu0 %1629, %v1295
  %v1631 = vpop.permute.xlu0 %1630
  %1634 = vset.pattern.permute.xlu0 0
  %1635 = vperm.xlu0 %1634, %v1296
  %v1636 = vpop.permute.xlu0 %1635
  %1639 = vset.pattern.permute.xlu0 0
  %1640 = vperm.xlu0 %1639, %v1297
  %v1641 = vpop.permute.xlu0 %1640
  %1644 = vset.pattern.permute.xlu0 0
  %1645 = vperm.xlu0 %1644, %v1298
  %v1646 = vpop.permute.xlu0 %1645
  %1649 = vset.pattern.permute.xlu0 0
  %1650 = vperm.xlu0 %1649, %v1299
  %v1651 = vpop.permute.xlu0 %1650
  %1654 = vset.pattern.permute.xlu0 0
  %1655 = vperm.xlu0 %1654, %v1300
  %v1656 = vpop.permute.xlu0 %1655
  %1659 = vset.pattern.permute.xlu0 0
  %1660 = vperm.xlu0 %1659, %v1301
  %v1661 = vpop.permute.xlu0 %1660
  %1664 = vset.pattern.permute.xlu0 0
  %1665 = vperm.xlu0 %1664, %v1302
  %v1666 = vpop.permute.xlu0 %1665
  %1669 = vset.pattern.permute.xlu0 0
  %1670 = vperm.xlu0 %1669, %v1303
  %v1671 = vpop.permute.xlu0 %1670
  %1674 = vset.pattern.permute.xlu0 0
  %1675 = vperm.xlu0 %1674, %v1304
  %v1676 = vpop.permute.xlu0 %1675
  %1679 = vset.pattern.permute.xlu0 0
  %1680 = vperm.xlu0 %1679, %v1305
  %v1681 = vpop.permute.xlu0 %1680
  %1684 = vset.pattern.permute.xlu0 0
  %1685 = vperm.xlu0 %1684, %v1306
  %v1686 = vpop.permute.xlu0 %1685
  %1689 = vset.pattern.permute.xlu0 0
  %1690 = vperm.xlu0 %1689, %v1307
  %v1691 = vpop.permute.xlu0 %1690
  %1694 = vset.pattern.permute.xlu0 0
  %1695 = vperm.xlu0 %1694, %v1308
  %v1696 = vpop.permute.xlu0 %1695
  %1699 = vset.pattern.permute.xlu0 0
  %1700 = vperm.xlu0 %1699, %v1309
  %v1701 = vpop.permute.xlu0 %1700
  %1704 = vset.pattern.permute.xlu0 0
  %1705 = vperm.xlu0 %1704, %v1310
  %v1706 = vpop.permute.xlu0 %1705
  %1709 = vset.pattern.permute.xlu0 0
  %1710 = vperm.xlu0 %1709, %v1311
  %v1711 = vpop.permute.xlu0 %1710
  %1714 = vset.pattern.permute.xlu0 0
  %1715 = vperm.xlu0 %1714, %v1312
  %v1716 = vpop.permute.xlu0 %1715
  %v1718 = vadd.f32 %v1070, %v1316
  %v1719 = vadd.f32 %v1071, %v1321
  %v1720 = vadd.f32 %v1072, %v1326
  %v1721 = vadd.f32 %v1073, %v1331
  %v1722 = vadd.f32 %v1074, %v1336
  %v1723 = vadd.f32 %v1075, %v1341
  %v1724 = vadd.f32 %v1076, %v1346
  %v1725 = vadd.f32 %v1077, %v1351
  %v1726 = vadd.f32 %v1078, %v1356
  %v1727 = vadd.f32 %v1079, %v1361
  %v1728 = vadd.f32 %v1080, %v1366
  %v1729 = vadd.f32 %v1081, %v1371
  %v1730 = vadd.f32 %v1082, %v1376
  %v1731 = vadd.f32 %v1083, %v1381
  %v1732 = vadd.f32 %v1084, %v1386
  %v1733 = vadd.f32 %v1085, %v1391
  %v1734 = vadd.f32 %v1086, %v1396
  %v1735 = vadd.f32 %v1087, %v1401
  %v1736 = vadd.f32 %v1088, %v1406
  %v1737 = vadd.f32 %v1089, %v1411
  %v1738 = vadd.f32 %v1090, %v1416
  %v1739 = vadd.f32 %v1091, %v1421
  %v1740 = vadd.f32 %v1092, %v1426
  %v1741 = vadd.f32 %v1093, %v1431
  %v1742 = vadd.f32 %v1094, %v1436
  %v1743 = vadd.f32 %v1095, %v1441
  %v1744 = vadd.f32 %v1096, %v1446
  %v1745 = vadd.f32 %v1097, %v1451
  %v1746 = vadd.f32 %v1098, %v1456
  %v1747 = vadd.f32 %v1099, %v1461
  %v1748 = vadd.f32 %v1100, %v1466
  %v1749 = vadd.f32 %v1101, %v1471
  %v1750 = vadd.f32 %v1102, %v1476
  %v1751 = vadd.f32 %v1103, %v1481
  %v1752 = vadd.f32 %v1104, %v1486
  %v1753 = vadd.f32 %v1105, %v1491
  %v1754 = vadd.f32 %v1106, %v1496
  %v1755 = vadd.f32 %v1107, %v1501
  %v1756 = vadd.f32 %v1108, %v1506
  %v1757 = vadd.f32 %v1109, %v1511
  %v1758 = vadd.f32 %v1110, %v1516
  %v1759 = vadd.f32 %v1111, %v1521
  %v1760 = vadd.f32 %v1112, %v1526
  %v1761 = vadd.f32 %v1113, %v1531
  %v1762 = vadd.f32 %v1114, %v1536
  %v1763 = vadd.f32 %v1115, %v1541
  %v1764 = vadd.f32 %v1116, %v1546
  %v1765 = vadd.f32 %v1117, %v1551
  %v1766 = vadd.f32 %v1118, %v1556
  %v1767 = vadd.f32 %v1119, %v1561
  %v1768 = vadd.f32 %v1120, %v1566
  %v1769 = vadd.f32 %v1121, %v1571
  %v1770 = vadd.f32 %v1122, %v1576
  %v1771 = vadd.f32 %v1123, %v1581
  %v1772 = vadd.f32 %v1124, %v1586
  %v1773 = vadd.f32 %v1125, %v1591
  %v1774 = vadd.f32 %v1126, %v1596
  %v1775 = vadd.f32 %v1127, %v1601
  %v1776 = vadd.f32 %v1128, %v1606
  %v1777 = vadd.f32 %v1129, %v1611
  %v1778 = vadd.f32 %v1130, %v1616
  %v1779 = vadd.f32 %v1131, %v1621
  %v1780 = vadd.f32 %v1132, %v1626
  %v1781 = vadd.f32 %v1133, %v1631
  %v1782 = vadd.f32 %v1134, %v1636
  %v1783 = vadd.f32 %v1135, %v1641
  %v1784 = vadd.f32 %v1136, %v1646
  %v1785 = vadd.f32 %v1137, %v1651
  %v1786 = vadd.f32 %v1138, %v1656
  %v1787 = vadd.f32 %v1139, %v1661
  %v1788 = vadd.f32 %v1140, %v1666
  %v1789 = vadd.f32 %v1141, %v1671
  %v1790 = vadd.f32 %v1142, %v1676
  %v1791 = vadd.f32 %v1143, %v1681
  %v1792 = vadd.f32 %v1144, %v1686
  %v1793 = vadd.f32 %v1145, %v1691
  %v1794 = vadd.f32 %v1146, %v1696
  %v1795 = vadd.f32 %v1147, %v1701
  %v1796 = vadd.f32 %v1148, %v1706
  %v1797 = vadd.f32 %v1149, %v1711
  %v1798 = vadd.f32 %v1150, %v1716
  %vm1799 = vcmask 130048
  %1800 = vst.msk [vmem:[#allocation2] sm:$0xff] %vm1799, -1e+30
  %1801 = vst.msk [vmem:[#allocation2 + $0x8] sm:$0xff] %vm1799, -1e+30
  %1802 = vst.msk [vmem:[#allocation2 + $0x10] sm:$0xff] %vm1799, -1e+30
  %1803 = vst.msk [vmem:[#allocation2 + $0x2a0] sm:$0xff] %vm1799, -1e+30
  %1804 = vst.msk [vmem:[#allocation2 + $0x2a8] sm:$0xff] %vm1799, -1e+30
  %1805 = vst.msk [vmem:[#allocation2 + $0x2b0] sm:$0xff] %vm1799, -1e+30
  %1806 = vst.msk [vmem:[#allocation2 + $0x18] sm:$0xff] %vm1799, %v1718
  %1807 = vst.msk [vmem:[#allocation2 + $0x20] sm:$0xff] %vm1799, %v1719
  %1808 = vst.msk [vmem:[#allocation2 + $0x28] sm:$0xff] %vm1799, %v1720
  %1809 = vst.msk [vmem:[#allocation2 + $0x30] sm:$0xff] %vm1799, %v1721
  %1810 = vst.msk [vmem:[#allocation2 + $0x38] sm:$0xff] %vm1799, %v1722
  %1811 = vst.msk [vmem:[#allocation2 + $0x40] sm:$0xff] %vm1799, %v1723
  %1812 = vst.msk [vmem:[#allocation2 + $0x48] sm:$0xff] %vm1799, %v1724
  %1813 = vst.msk [vmem:[#allocation2 + $0x50] sm:$0xff] %vm1799, %v1725
  %1814 = vst.msk [vmem:[#allocation2 + $0x58] sm:$0xff] %vm1799, %v1726
  %1815 = vst.msk [vmem:[#allocation2 + $0x60] sm:$0xff] %vm1799, %v1727
  %1816 = vst.msk [vmem:[#allocation2 + $0x68] sm:$0xff] %vm1799, %v1728
  %1817 = vst.msk [vmem:[#allocation2 + $0x70] sm:$0xff] %vm1799, %v1729
  %1818 = vst.msk [vmem:[#allocation2 + $0x78] sm:$0xff] %vm1799, %v1730
  %1819 = vst.msk [vmem:[#allocation2 + $0x80] sm:$0xff] %vm1799, %v1731
  %1820 = vst.msk [vmem:[#allocation2 + $0x88] sm:$0xff] %vm1799, %v1732
  %1821 = vst.msk [vmem:[#allocation2 + $0x90] sm:$0xff] %vm1799, %v1733
  %1822 = vst.msk [vmem:[#allocation2 + $0x98] sm:$0xff] %vm1799, %v1734
  %1823 = vst.msk [vmem:[#allocation2 + $0xa0] sm:$0xff] %vm1799, %v1735
  %1824 = vst.msk [vmem:[#allocation2 + $0xa8] sm:$0xff] %vm1799, %v1736
  %1825 = vst.msk [vmem:[#allocation2 + $0xb0] sm:$0xff] %vm1799, %v1737
  %1826 = vst.msk [vmem:[#allocation2 + $0xb8] sm:$0xff] %vm1799, %v1738
  %1827 = vst.msk [vmem:[#allocation2 + $0xc0] sm:$0xff] %vm1799, %v1739
  %1828 = vst.msk [vmem:[#allocation2 + $0xc8] sm:$0xff] %vm1799, %v1740
  %1829 = vst.msk [vmem:[#allocation2 + $0xd0] sm:$0xff] %vm1799, %v1741
  %1830 = vst.msk [vmem:[#allocation2 + $0xd8] sm:$0xff] %vm1799, %v1742
  %1831 = vst.msk [vmem:[#allocation2 + $0xe0] sm:$0xff] %vm1799, %v1743
  %1832 = vst.msk [vmem:[#allocation2 + $0xe8] sm:$0xff] %vm1799, %v1744
  %1833 = vst.msk [vmem:[#allocation2 + $0xf0] sm:$0xff] %vm1799, %v1745
  %1834 = vst.msk [vmem:[#allocation2 + $0xf8] sm:$0xff] %vm1799, %v1746
  %1835 = vst.msk [vmem:[#allocation2 + $0x100] sm:$0xff] %vm1799, %v1747
  %1836 = vst.msk [vmem:[#allocation2 + $0x108] sm:$0xff] %vm1799, %v1748
  %1837 = vst.msk [vmem:[#allocation2 + $0x110] sm:$0xff] %vm1799, %v1749
  %1838 = vst.msk [vmem:[#allocation2 + $0x118] sm:$0xff] %vm1799, %v1750
  %1839 = vst.msk [vmem:[#allocation2 + $0x120] sm:$0xff] %vm1799, %v1751
  %1840 = vst.msk [vmem:[#allocation2 + $0x128] sm:$0xff] %vm1799, %v1752
  %1841 = vst.msk [vmem:[#allocation2 + $0x130] sm:$0xff] %vm1799, %v1753
  %1842 = vst.msk [vmem:[#allocation2 + $0x138] sm:$0xff] %vm1799, %v1754
  %1843 = vst.msk [vmem:[#allocation2 + $0x140] sm:$0xff] %vm1799, %v1755
  %1844 = vst.msk [vmem:[#allocation2 + $0x148] sm:$0xff] %vm1799, %v1756
  %1845 = vst.msk [vmem:[#allocation2 + $0x150] sm:$0xff] %vm1799, %v1757
  %1846 = vst.msk [vmem:[#allocation2 + $0x158] sm:$0xff] %vm1799, %v1758
  %1847 = vst.msk [vmem:[#allocation2 + $0x160] sm:$0xff] %vm1799, %v1759
  %1848 = vst.msk [vmem:[#allocation2 + $0x168] sm:$0xff] %vm1799, %v1760
  %1849 = vst.msk [vmem:[#allocation2 + $0x170] sm:$0xff] %vm1799, %v1761
  %1850 = vst.msk [vmem:[#allocation2 + $0x178] sm:$0xff] %vm1799, %v1762
  %1851 = vst.msk [vmem:[#allocation2 + $0x180] sm:$0xff] %vm1799, %v1763
  %1852 = vst.msk [vmem:[#allocation2 + $0x188] sm:$0xff] %vm1799, %v1764
  %1853 = vst.msk [vmem:[#allocation2 + $0x190] sm:$0xff] %vm1799, %v1765
  %1854 = vst.msk [vmem:[#allocation2 + $0x198] sm:$0xff] %vm1799, %v1766
  %1855 = vst.msk [vmem:[#allocation2 + $0x1a0] sm:$0xff] %vm1799, %v1767
  %1856 = vst.msk [vmem:[#allocation2 + $0x1a8] sm:$0xff] %vm1799, %v1768
  %1857 = vst.msk [vmem:[#allocation2 + $0x1b0] sm:$0xff] %vm1799, %v1769
  %1858 = vst.msk [vmem:[#allocation2 + $0x1b8] sm:$0xff] %vm1799, %v1770
  %1859 = vst.msk [vmem:[#allocation2 + $0x1c0] sm:$0xff] %vm1799, %v1771
  %1860 = vst.msk [vmem:[#allocation2 + $0x1c8] sm:$0xff] %vm1799, %v1772
  %1861 = vst.msk [vmem:[#allocation2 + $0x1d0] sm:$0xff] %vm1799, %v1773
  %1862 = vst.msk [vmem:[#allocation2 + $0x1d8] sm:$0xff] %vm1799, %v1774
  %1863 = vst.msk [vmem:[#allocation2 + $0x1e0] sm:$0xff] %vm1799, %v1775
  %1864 = vst.msk [vmem:[#allocation2 + $0x1e8] sm:$0xff] %vm1799, %v1776
  %1865 = vst.msk [vmem:[#allocation2 + $0x1f0] sm:$0xff] %vm1799, %v1777
  %1866 = vst.msk [vmem:[#allocation2 + $0x1f8] sm:$0xff] %vm1799, %v1778
  %1867 = vst.msk [vmem:[#allocation2 + $0x200] sm:$0xff] %vm1799, %v1779
  %1868 = vst.msk [vmem:[#allocation2 + $0x208] sm:$0xff] %vm1799, %v1780
  %1869 = vst.msk [vmem:[#allocation2 + $0x210] sm:$0xff] %vm1799, %v1781
  %1870 = vst.msk [vmem:[#allocation2 + $0x218] sm:$0xff] %vm1799, %v1782
  %1871 = vst.msk [vmem:[#allocation2 + $0x220] sm:$0xff] %vm1799, %v1783
  %1872 = vst.msk [vmem:[#allocation2 + $0x228] sm:$0xff] %vm1799, %v1784
  %1873 = vst.msk [vmem:[#allocation2 + $0x230] sm:$0xff] %vm1799, %v1785
  %1874 = vst.msk [vmem:[#allocation2 + $0x238] sm:$0xff] %vm1799, %v1786
  %1875 = vst.msk [vmem:[#allocation2 + $0x240] sm:$0xff] %vm1799, %v1787
  %1876 = vst.msk [vmem:[#allocation2 + $0x248] sm:$0xff] %vm1799, %v1788
  %1877 = vst.msk [vmem:[#allocation2 + $0x250] sm:$0xff] %vm1799, %v1789
  %1878 = vst.msk [vmem:[#allocation2 + $0x258] sm:$0xff] %vm1799, %v1790
  %1879 = vst.msk [vmem:[#allocation2 + $0x260] sm:$0xff] %vm1799, %v1791
  %1880 = vst.msk [vmem:[#allocation2 + $0x268] sm:$0xff] %vm1799, %v1792
  %1881 = vst.msk [vmem:[#allocation2 + $0x270] sm:$0xff] %vm1799, %v1793
  %1882 = vst.msk [vmem:[#allocation2 + $0x278] sm:$0xff] %vm1799, %v1794
  %1883 = vst.msk [vmem:[#allocation2 + $0x280] sm:$0xff] %vm1799, %v1795
  %1884 = vst.msk [vmem:[#allocation2 + $0x288] sm:$0xff] %vm1799, %v1796
  %1885 = vst.msk [vmem:[#allocation2 + $0x290] sm:$0xff] %vm1799, %v1797
  %1886 = vst.msk [vmem:[#allocation2 + $0x298] sm:$0xff] %vm1799, %v1798
  %v1887 = vld [vmem:[#allocation2 + $0x5] sm:$0xff]
  %v1888 = vld [vmem:[#allocation2 + $0xd] sm:$0xff]
  %v1889 = vld [vmem:[#allocation2 + $0x15] sm:$0xff]
  %v1890 = vld [vmem:[#allocation2 + $0x1d] sm:$0xff]
  %v1891 = vld [vmem:[#allocation2 + $0x25] sm:$0xff]
  %v1892 = vld [vmem:[#allocation2 + $0x2d] sm:$0xff]
  %v1893 = vld [vmem:[#allocation2 + $0x35] sm:$0xff]
  %v1894 = vld [vmem:[#allocation2 + $0x3d] sm:$0xff]
  %v1895 = vld [vmem:[#allocation2 + $0x45] sm:$0xff]
  %v1896 = vld [vmem:[#allocation2 + $0x4d] sm:$0xff]
  %v1897 = vld [vmem:[#allocation2 + $0x55] sm:$0xff]
  %v1898 = vld [vmem:[#allocation2 + $0x5d] sm:$0xff]
  %v1899 = vld [vmem:[#allocation2 + $0x65] sm:$0xff]
  %v1900 = vld [vmem:[#allocation2 + $0x6d] sm:$0xff]
  %v1901 = vld [vmem:[#allocation2 + $0x75] sm:$0xff]
  %v1902 = vld [vmem:[#allocation2 + $0x7d] sm:$0xff]
  %v1903 = vld [vmem:[#allocation2 + $0x85] sm:$0xff]
  %v1904 = vld [vmem:[#allocation2 + $0x8d] sm:$0xff]
  %v1905 = vld [vmem:[#allocation2 + $0x95] sm:$0xff]
  %v1906 = vld [vmem:[#allocation2 + $0x9d] sm:$0xff]
  %v1907 = vld [vmem:[#allocation2 + $0xa5] sm:$0xff]
  %v1908 = vld [vmem:[#allocation2 + $0xad] sm:$0xff]
  %v1909 = vld [vmem:[#allocation2 + $0xb5] sm:$0xff]
  %v1910 = vld [vmem:[#allocation2 + $0xbd] sm:$0xff]
  %v1911 = vld [vmem:[#allocation2 + $0xc5] sm:$0xff]
  %v1912 = vld [vmem:[#allocation2 + $0xcd] sm:$0xff]
  %v1913 = vld [vmem:[#allocation2 + $0xd5] sm:$0xff]
  %v1914 = vld [vmem:[#allocation2 + $0xdd] sm:$0xff]
  %v1915 = vld [vmem:[#allocation2 + $0xe5] sm:$0xff]
  %v1916 = vld [vmem:[#allocation2 + $0xed] sm:$0xff]
  %v1917 = vld [vmem:[#allocation2 + $0xf5] sm:$0xff]
  %v1918 = vld [vmem:[#allocation2 + $0xfd] sm:$0xff]
  %v1919 = vld [vmem:[#allocation2 + $0x105] sm:$0xff]
  %v1920 = vld [vmem:[#allocation2 + $0x10d] sm:$0xff]
  %v1921 = vld [vmem:[#allocation2 + $0x115] sm:$0xff]
  %v1922 = vld [vmem:[#allocation2 + $0x11d] sm:$0xff]
  %v1923 = vld [vmem:[#allocation2 + $0x125] sm:$0xff]
  %v1924 = vld [vmem:[#allocation2 + $0x12d] sm:$0xff]
  %v1925 = vld [vmem:[#allocation2 + $0x135] sm:$0xff]
  %v1926 = vld [vmem:[#allocation2 + $0x13d] sm:$0xff]
  %v1927 = vld [vmem:[#allocation2 + $0x145] sm:$0xff]
  %v1928 = vld [vmem:[#allocation2 + $0x14d] sm:$0xff]
  %v1929 = vld [vmem:[#allocation2 + $0x155] sm:$0xff]
  %v1930 = vld [vmem:[#allocation2 + $0x15d] sm:$0xff]
  %v1931 = vld [vmem:[#allocation2 + $0x165] sm:$0xff]
  %v1932 = vld [vmem:[#allocation2 + $0x16d] sm:$0xff]
  %v1933 = vld [vmem:[#allocation2 + $0x175] sm:$0xff]
  %v1934 = vld [vmem:[#allocation2 + $0x17d] sm:$0xff]
  %v1935 = vld [vmem:[#allocation2 + $0x185] sm:$0xff]
  %v1936 = vld [vmem:[#allocation2 + $0x18d] sm:$0xff]
  %v1937 = vld [vmem:[#allocation2 + $0x195] sm:$0xff]
  %v1938 = vld [vmem:[#allocation2 + $0x19d] sm:$0xff]
  %v1939 = vld [vmem:[#allocation2 + $0x1a5] sm:$0xff]
  %v1940 = vld [vmem:[#allocation2 + $0x1ad] sm:$0xff]
  %v1941 = vld [vmem:[#allocation2 + $0x1b5] sm:$0xff]
  %v1942 = vld [vmem:[#allocation2 + $0x1bd] sm:$0xff]
  %v1943 = vld [vmem:[#allocation2 + $0x1c5] sm:$0xff]
  %v1944 = vld [vmem:[#allocation2 + $0x1cd] sm:$0xff]
  %v1945 = vld [vmem:[#allocation2 + $0x1d5] sm:$0xff]
  %v1946 = vld [vmem:[#allocation2 + $0x1dd] sm:$0xff]
  %v1947 = vld [vmem:[#allocation2 + $0x1e5] sm:$0xff]
  %v1948 = vld [vmem:[#allocation2 + $0x1ed] sm:$0xff]
  %v1949 = vld [vmem:[#allocation2 + $0x1f5] sm:$0xff]
  %v1950 = vld [vmem:[#allocation2 + $0x1fd] sm:$0xff]
  %v1951 = vld [vmem:[#allocation2 + $0x205] sm:$0xff]
  %v1952 = vld [vmem:[#allocation2 + $0x20d] sm:$0xff]
  %v1953 = vld [vmem:[#allocation2 + $0x215] sm:$0xff]
  %v1954 = vld [vmem:[#allocation2 + $0x21d] sm:$0xff]
  %v1955 = vld [vmem:[#allocation2 + $0x225] sm:$0xff]
  %v1956 = vld [vmem:[#allocation2 + $0x22d] sm:$0xff]
  %v1957 = vld [vmem:[#allocation2 + $0x235] sm:$0xff]
  %v1958 = vld [vmem:[#allocation2 + $0x23d] sm:$0xff]
  %v1959 = vld [vmem:[#allocation2 + $0x245] sm:$0xff]
  %v1960 = vld [vmem:[#allocation2 + $0x24d] sm:$0xff]
  %v1961 = vld [vmem:[#allocation2 + $0x255] sm:$0xff]
  %v1962 = vld [vmem:[#allocation2 + $0x25d] sm:$0xff]
  %v1963 = vld [vmem:[#allocation2 + $0x265] sm:$0xff]
  %v1964 = vld [vmem:[#allocation2 + $0x26d] sm:$0xff]
  %v1965 = vld [vmem:[#allocation2 + $0x275] sm:$0xff]
  %v1966 = vld [vmem:[#allocation2 + $0x27d] sm:$0xff]
  %v1967 = vld [vmem:[#allocation2 + $0x285] sm:$0xff]
  %v1968 = vmax.f32 %v1887, -1e+30
  %v1969 = vmax.f32 %v1888, -1e+30
  %v1970 = vmax.f32 %v1889, -1e+30
  %v1971 = vmax.f32 %v1890, -1e+30
  %v1972 = vmax.f32 %v1891, -1e+30
  %v1973 = vmax.f32 %v1892, -1e+30
  %v1974 = vmax.f32 %v1893, -1e+30
  %v1975 = vmax.f32 %v1894, -1e+30
  %v1976 = vmax.f32 %v1895, -1e+30
  %v1977 = vmax.f32 %v1896, -1e+30
  %v1978 = vmax.f32 %v1897, -1e+30
  %v1979 = vmax.f32 %v1898, -1e+30
  %v1980 = vmax.f32 %v1899, -1e+30
  %v1981 = vmax.f32 %v1900, -1e+30
  %v1982 = vmax.f32 %v1901, -1e+30
  %v1983 = vmax.f32 %v1902, -1e+30
  %v1984 = vmax.f32 %v1903, -1e+30
  %v1985 = vmax.f32 %v1904, -1e+30
  %v1986 = vmax.f32 %v1905, -1e+30
  %v1987 = vmax.f32 %v1906, -1e+30
  %v1988 = vmax.f32 %v1907, -1e+30
  %v1989 = vmax.f32 %v1908, -1e+30
  %v1990 = vmax.f32 %v1909, -1e+30
  %v1991 = vmax.f32 %v1910, -1e+30
  %v1992 = vmax.f32 %v1911, -1e+30
  %v1993 = vmax.f32 %v1912, -1e+30
  %v1994 = vmax.f32 %v1913, -1e+30
  %v1995 = vmax.f32 %v1914, -1e+30
  %v1996 = vmax.f32 %v1915, -1e+30
  %v1997 = vmax.f32 %v1916, -1e+30
  %v1998 = vmax.f32 %v1917, -1e+30
  %v1999 = vmax.f32 %v1918, -1e+30
  %v2000 = vmax.f32 %v1919, -1e+30
  %v2001 = vmax.f32 %v1920, -1e+30
  %v2002 = vmax.f32 %v1921, -1e+30
  %v2003 = vmax.f32 %v1922, -1e+30
  %v2004 = vmax.f32 %v1923, -1e+30
  %v2005 = vmax.f32 %v1924, -1e+30
  %v2006 = vmax.f32 %v1925, -1e+30
  %v2007 = vmax.f32 %v1926, -1e+30
  %v2008 = vmax.f32 %v1927, -1e+30
  %v2009 = vmax.f32 %v1928, -1e+30
  %v2010 = vmax.f32 %v1929, -1e+30
  %v2011 = vmax.f32 %v1930, -1e+30
  %v2012 = vmax.f32 %v1931, -1e+30
  %v2013 = vmax.f32 %v1932, -1e+30
  %v2014 = vmax.f32 %v1933, -1e+30
  %v2015 = vmax.f32 %v1934, -1e+30
  %v2016 = vmax.f32 %v1935, -1e+30
  %v2017 = vmax.f32 %v1936, -1e+30
  %v2018 = vmax.f32 %v1937, -1e+30
  %v2019 = vmax.f32 %v1938, -1e+30
  %v2020 = vmax.f32 %v1939, -1e+30
  %v2021 = vmax.f32 %v1940, -1e+30
  %v2022 = vmax.f32 %v1941, -1e+30
  %v2023 = vmax.f32 %v1942, -1e+30
  %v2024 = vmax.f32 %v1943, -1e+30
  %v2025 = vmax.f32 %v1944, -1e+30
  %v2026 = vmax.f32 %v1945, -1e+30
  %v2027 = vmax.f32 %v1946, -1e+30
  %v2028 = vmax.f32 %v1947, -1e+30
  %v2029 = vmax.f32 %v1948, -1e+30
  %v2030 = vmax.f32 %v1949, -1e+30
  %v2031 = vmax.f32 %v1950, -1e+30
  %v2032 = vmax.f32 %v1951, -1e+30
  %v2033 = vmax.f32 %v1952, -1e+30
  %v2034 = vmax.f32 %v1953, -1e+30
  %v2035 = vmax.f32 %v1954, -1e+30
  %v2036 = vmax.f32 %v1955, -1e+30
  %v2037 = vmax.f32 %v1956, -1e+30
  %v2038 = vmax.f32 %v1957, -1e+30
  %v2039 = vmax.f32 %v1958, -1e+30
  %v2040 = vmax.f32 %v1959, -1e+30
  %v2041 = vmax.f32 %v1960, -1e+30
  %v2042 = vmax.f32 %v1961, -1e+30
  %v2043 = vmax.f32 %v1962, -1e+30
  %v2044 = vmax.f32 %v1963, -1e+30
  %v2045 = vmax.f32 %v1964, -1e+30
  %v2046 = vmax.f32 %v1965, -1e+30
  %v2047 = vmax.f32 %v1966, -1e+30
  %v2048 = vmax.f32 %v1967, -1e+30
  %v2049 = vld [vmem:[#allocation2 + $0x6] sm:$0xff]
  %v2050 = vld [vmem:[#allocation2 + $0xe] sm:$0xff]
  %v2051 = vld [vmem:[#allocation2 + $0x16] sm:$0xff]
  %v2052 = vld [vmem:[#allocation2 + $0x1e] sm:$0xff]
  %v2053 = vld [vmem:[#allocation2 + $0x26] sm:$0xff]
  %v2054 = vld [vmem:[#allocation2 + $0x2e] sm:$0xff]
  %v2055 = vld [vmem:[#allocation2 + $0x36] sm:$0xff]
  %v2056 = vld [vmem:[#allocation2 + $0x3e] sm:$0xff]
  %v2057 = vld [vmem:[#allocation2 + $0x46] sm:$0xff]
  %v2058 = vld [vmem:[#allocation2 + $0x4e] sm:$0xff]
  %v2059 = vld [vmem:[#allocation2 + $0x56] sm:$0xff]
  %v2060 = vld [vmem:[#allocation2 + $0x5e] sm:$0xff]
  %v2061 = vld [vmem:[#allocation2 + $0x66] sm:$0xff]
  %v2062 = vld [vmem:[#allocation2 + $0x6e] sm:$0xff]
  %v2063 = vld [vmem:[#allocation2 + $0x76] sm:$0xff]
  %v2064 = vld [vmem:[#allocation2 + $0x7e] sm:$0xff]
  %v2065 = vld [vmem:[#allocation2 + $0x86] sm:$0xff]
  %v2066 = vld [vmem:[#allocation2 + $0x8e] sm:$0xff]
  %v2067 = vld [vmem:[#allocation2 + $0x96] sm:$0xff]
  %v2068 = vld [vmem:[#allocation2 + $0x9e] sm:$0xff]
  %v2069 = vld [vmem:[#allocation2 + $0xa6] sm:$0xff]
  %v2070 = vld [vmem:[#allocation2 + $0xae] sm:$0xff]
  %v2071 = vld [vmem:[#allocation2 + $0xb6] sm:$0xff]
  %v2072 = vld [vmem:[#allocation2 + $0xbe] sm:$0xff]
  %v2073 = vld [vmem:[#allocation2 + $0xc6] sm:$0xff]
  %v2074 = vld [vmem:[#allocation2 + $0xce] sm:$0xff]
  %v2075 = vld [vmem:[#allocation2 + $0xd6] sm:$0xff]
  %v2076 = vld [vmem:[#allocation2 + $0xde] sm:$0xff]
  %v2077 = vld [vmem:[#allocation2 + $0xe6] sm:$0xff]
  %v2078 = vld [vmem:[#allocation2 + $0xee] sm:$0xff]
  %v2079 = vld [vmem:[#allocation2 + $0xf6] sm:$0xff]
  %v2080 = vld [vmem:[#allocation2 + $0xfe] sm:$0xff]
  %v2081 = vld [vmem:[#allocation2 + $0x106] sm:$0xff]
  %v2082 = vld [vmem:[#allocation2 + $0x10e] sm:$0xff]
  %v2083 = vld [vmem:[#allocation2 + $0x116] sm:$0xff]
  %v2084 = vld [vmem:[#allocation2 + $0x11e] sm:$0xff]
  %v2085 = vld [vmem:[#allocation2 + $0x126] sm:$0xff]
  %v2086 = vld [vmem:[#allocation2 + $0x12e] sm:$0xff]
  %v2087 = vld [vmem:[#allocation2 + $0x136] sm:$0xff]
  %v2088 = vld [vmem:[#allocation2 + $0x13e] sm:$0xff]
  %v2089 = vld [vmem:[#allocation2 + $0x146] sm:$0xff]
  %v2090 = vld [vmem:[#allocation2 + $0x14e] sm:$0xff]
  %v2091 = vld [vmem:[#allocation2 + $0x156] sm:$0xff]
  %v2092 = vld [vmem:[#allocation2 + $0x15e] sm:$0xff]
  %v2093 = vld [vmem:[#allocation2 + $0x166] sm:$0xff]
  %v2094 = vld [vmem:[#allocation2 + $0x16e] sm:$0xff]
  %v2095 = vld [vmem:[#allocation2 + $0x176] sm:$0xff]
  %v2096 = vld [vmem:[#allocation2 + $0x17e] sm:$0xff]
  %v2097 = vld [vmem:[#allocation2 + $0x186] sm:$0xff]
  %v2098 = vld [vmem:[#allocation2 + $0x18e] sm:$0xff]
  %v2099 = vld [vmem:[#allocation2 + $0x196] sm:$0xff]
  %v2100 = vld [vmem:[#allocation2 + $0x19e] sm:$0xff]
  %v2101 = vld [vmem:[#allocation2 + $0x1a6] sm:$0xff]
  %v2102 = vld [vmem:[#allocation2 + $0x1ae] sm:$0xff]
  %v2103 = vld [vmem:[#allocation2 + $0x1b6] sm:$0xff]
  %v2104 = vld [vmem:[#allocation2 + $0x1be] sm:$0xff]
  %v2105 = vld [vmem:[#allocation2 + $0x1c6] sm:$0xff]
  %v2106 = vld [vmem:[#allocation2 + $0x1ce] sm:$0xff]
  %v2107 = vld [vmem:[#allocation2 + $0x1d6] sm:$0xff]
  %v2108 = vld [vmem:[#allocation2 + $0x1de] sm:$0xff]
  %v2109 = vld [vmem:[#allocation2 + $0x1e6] sm:$0xff]
  %v2110 = vld [vmem:[#allocation2 + $0x1ee] sm:$0xff]
  %v2111 = vld [vmem:[#allocation2 + $0x1f6] sm:$0xff]
  %v2112 = vld [vmem:[#allocation2 + $0x1fe] sm:$0xff]
  %v2113 = vld [vmem:[#allocation2 + $0x206] sm:$0xff]
  %v2114 = vld [vmem:[#allocation2 + $0x20e] sm:$0xff]
  %v2115 = vld [vmem:[#allocation2 + $0x216] sm:$0xff]
  %v2116 = vld [vmem:[#allocation2 + $0x21e] sm:$0xff]
  %v2117 = vld [vmem:[#allocation2 + $0x226] sm:$0xff]
  %v2118 = vld [vmem:[#allocation2 + $0x22e] sm:$0xff]
  %v2119 = vld [vmem:[#allocation2 + $0x236] sm:$0xff]
  %v2120 = vld [vmem:[#allocation2 + $0x23e] sm:$0xff]
  %v2121 = vld [vmem:[#allocation2 + $0x246] sm:$0xff]
  %v2122 = vld [vmem:[#allocation2 + $0x24e] sm:$0xff]
  %v2123 = vld [vmem:[#allocation2 + $0x256] sm:$0xff]
  %v2124 = vld [vmem:[#allocation2 + $0x25e] sm:$0xff]
  %v2125 = vld [vmem:[#allocation2 + $0x266] sm:$0xff]
  %v2126 = vld [vmem:[#allocation2 + $0x26e] sm:$0xff]
  %v2127 = vld [vmem:[#allocation2 + $0x276] sm:$0xff]
  %v2128 = vld [vmem:[#allocation2 + $0x27e] sm:$0xff]
  %v2129 = vld [vmem:[#allocation2 + $0x286] sm:$0xff]
  %v2130 = vmax.f32 %v1968, %v2049
  %v2131 = vmax.f32 %v1969, %v2050
  %v2132 = vmax.f32 %v1970, %v2051
  %v2133 = vmax.f32 %v1971, %v2052
  %v2134 = vmax.f32 %v1972, %v2053
  %v2135 = vmax.f32 %v1973, %v2054
  %v2136 = vmax.f32 %v1974, %v2055
  %v2137 = vmax.f32 %v1975, %v2056
  %v2138 = vmax.f32 %v1976, %v2057
  %v2139 = vmax.f32 %v1977, %v2058
  %v2140 = vmax.f32 %v1978, %v2059
  %v2141 = vmax.f32 %v1979, %v2060
  %v2142 = vmax.f32 %v1980, %v2061
  %v2143 = vmax.f32 %v1981, %v2062
  %v2144 = vmax.f32 %v1982, %v2063
  %v2145 = vmax.f32 %v1983, %v2064
  %v2146 = vmax.f32 %v1984, %v2065
  %v2147 = vmax.f32 %v1985, %v2066
  %v2148 = vmax.f32 %v1986, %v2067
  %v2149 = vmax.f32 %v1987, %v2068
  %v2150 = vmax.f32 %v1988, %v2069
  %v2151 = vmax.f32 %v1989, %v2070
  %v2152 = vmax.f32 %v1990, %v2071
  %v2153 = vmax.f32 %v1991, %v2072
  %v2154 = vmax.f32 %v1992, %v2073
  %v2155 = vmax.f32 %v1993, %v2074
  %v2156 = vmax.f32 %v1994, %v2075
  %v2157 = vmax.f32 %v1995, %v2076
  %v2158 = vmax.f32 %v1996, %v2077
  %v2159 = vmax.f32 %v1997, %v2078
  %v2160 = vmax.f32 %v1998, %v2079
  %v2161 = vmax.f32 %v1999, %v2080
  %v2162 = vmax.f32 %v2000, %v2081
  %v2163 = vmax.f32 %v2001, %v2082
  %v2164 = vmax.f32 %v2002, %v2083
  %v2165 = vmax.f32 %v2003, %v2084
  %v2166 = vmax.f32 %v2004, %v2085
  %v2167 = vmax.f32 %v2005, %v2086
  %v2168 = vmax.f32 %v2006, %v2087
  %v2169 = vmax.f32 %v2007, %v2088
  %v2170 = vmax.f32 %v2008, %v2089
  %v2171 = vmax.f32 %v2009, %v2090
  %v2172 = vmax.f32 %v2010, %v2091
  %v2173 = vmax.f32 %v2011, %v2092
  %v2174 = vmax.f32 %v2012, %v2093
  %v2175 = vmax.f32 %v2013, %v2094
  %v2176 = vmax.f32 %v2014, %v2095
  %v2177 = vmax.f32 %v2015, %v2096
  %v2178 = vmax.f32 %v2016, %v2097
  %v2179 = vmax.f32 %v2017, %v2098
  %v2180 = vmax.f32 %v2018, %v2099
  %v2181 = vmax.f32 %v2019, %v2100
  %v2182 = vmax.f32 %v2020, %v2101
  %v2183 = vmax.f32 %v2021, %v2102
  %v2184 = vmax.f32 %v2022, %v2103
  %v2185 = vmax.f32 %v2023, %v2104
  %v2186 = vmax.f32 %v2024, %v2105
  %v2187 = vmax.f32 %v2025, %v2106
  %v2188 = vmax.f32 %v2026, %v2107
  %v2189 = vmax.f32 %v2027, %v2108
  %v2190 = vmax.f32 %v2028, %v2109
  %v2191 = vmax.f32 %v2029, %v2110
  %v2192 = vmax.f32 %v2030, %v2111
  %v2193 = vmax.f32 %v2031, %v2112
  %v2194 = vmax.f32 %v2032, %v2113
  %v2195 = vmax.f32 %v2033, %v2114
  %v2196 = vmax.f32 %v2034, %v2115
  %v2197 = vmax.f32 %v2035, %v2116
  %v2198 = vmax.f32 %v2036, %v2117
  %v2199 = vmax.f32 %v2037, %v2118
  %v2200 = vmax.f32 %v2038, %v2119
  %v2201 = vmax.f32 %v2039, %v2120
  %v2202 = vmax.f32 %v2040, %v2121
  %v2203 = vmax.f32 %v2041, %v2122
  %v2204 = vmax.f32 %v2042, %v2123
  %v2205 = vmax.f32 %v2043, %v2124
  %v2206 = vmax.f32 %v2044, %v2125
  %v2207 = vmax.f32 %v2045, %v2126
  %v2208 = vmax.f32 %v2046, %v2127
  %v2209 = vmax.f32 %v2047, %v2128
  %v2210 = vmax.f32 %v2048, %v2129
  %v2211 = vld [vmem:[#allocation2 + $0x7] sm:$0xff]
  %v2212 = vld [vmem:[#allocation2 + $0xf] sm:$0xff]
  %v2213 = vld [vmem:[#allocation2 + $0x17] sm:$0xff]
  %v2214 = vld [vmem:[#allocation2 + $0x1f] sm:$0xff]
  %v2215 = vld [vmem:[#allocation2 + $0x27] sm:$0xff]
  %v2216 = vld [vmem:[#allocation2 + $0x2f] sm:$0xff]
  %v2217 = vld [vmem:[#allocation2 + $0x37] sm:$0xff]
  %v2218 = vld [vmem:[#allocation2 + $0x3f] sm:$0xff]
  %v2219 = vld [vmem:[#allocation2 + $0x47] sm:$0xff]
  %v2220 = vld [vmem:[#allocation2 + $0x4f] sm:$0xff]
  %v2221 = vld [vmem:[#allocation2 + $0x57] sm:$0xff]
  %v2222 = vld [vmem:[#allocation2 + $0x5f] sm:$0xff]
  %v2223 = vld [vmem:[#allocation2 + $0x67] sm:$0xff]
  %v2224 = vld [vmem:[#allocation2 + $0x6f] sm:$0xff]
  %v2225 = vld [vmem:[#allocation2 + $0x77] sm:$0xff]
  %v2226 = vld [vmem:[#allocation2 + $0x7f] sm:$0xff]
  %v2227 = vld [vmem:[#allocation2 + $0x87] sm:$0xff]
  %v2228 = vld [vmem:[#allocation2 + $0x8f] sm:$0xff]
  %v2229 = vld [vmem:[#allocation2 + $0x97] sm:$0xff]
  %v2230 = vld [vmem:[#allocation2 + $0x9f] sm:$0xff]
  %v2231 = vld [vmem:[#allocation2 + $0xa7] sm:$0xff]
  %v2232 = vld [vmem:[#allocation2 + $0xaf] sm:$0xff]
  %v2233 = vld [vmem:[#allocation2 + $0xb7] sm:$0xff]
  %v2234 = vld [vmem:[#allocation2 + $0xbf] sm:$0xff]
  %v2235 = vld [vmem:[#allocation2 + $0xc7] sm:$0xff]
  %v2236 = vld [vmem:[#allocation2 + $0xcf] sm:$0xff]
  %v2237 = vld [vmem:[#allocation2 + $0xd7] sm:$0xff]
  %v2238 = vld [vmem:[#allocation2 + $0xdf] sm:$0xff]
  %v2239 = vld [vmem:[#allocation2 + $0xe7] sm:$0xff]
  %v2240 = vld [vmem:[#allocation2 + $0xef] sm:$0xff]
  %v2241 = vld [vmem:[#allocation2 + $0xf7] sm:$0xff]
  %v2242 = vld [vmem:[#allocation2 + $0xff] sm:$0xff]
  %v2243 = vld [vmem:[#allocation2 + $0x107] sm:$0xff]
  %v2244 = vld [vmem:[#allocation2 + $0x10f] sm:$0xff]
  %v2245 = vld [vmem:[#allocation2 + $0x117] sm:$0xff]
  %v2246 = vld [vmem:[#allocation2 + $0x11f] sm:$0xff]
  %v2247 = vld [vmem:[#allocation2 + $0x127] sm:$0xff]
  %v2248 = vld [vmem:[#allocation2 + $0x12f] sm:$0xff]
  %v2249 = vld [vmem:[#allocation2 + $0x137] sm:$0xff]
  %v2250 = vld [vmem:[#allocation2 + $0x13f] sm:$0xff]
  %v2251 = vld [vmem:[#allocation2 + $0x147] sm:$0xff]
  %v2252 = vld [vmem:[#allocation2 + $0x14f] sm:$0xff]
  %v2253 = vld [vmem:[#allocation2 + $0x157] sm:$0xff]
  %v2254 = vld [vmem:[#allocation2 + $0x15f] sm:$0xff]
  %v2255 = vld [vmem:[#allocation2 + $0x167] sm:$0xff]
  %v2256 = vld [vmem:[#allocation2 + $0x16f] sm:$0xff]
  %v2257 = vld [vmem:[#allocation2 + $0x177] sm:$0xff]
  %v2258 = vld [vmem:[#allocation2 + $0x17f] sm:$0xff]
  %v2259 = vld [vmem:[#allocation2 + $0x187] sm:$0xff]
  %v2260 = vld [vmem:[#allocation2 + $0x18f] sm:$0xff]
  %v2261 = vld [vmem:[#allocation2 + $0x197] sm:$0xff]
  %v2262 = vld [vmem:[#allocation2 + $0x19f] sm:$0xff]
  %v2263 = vld [vmem:[#allocation2 + $0x1a7] sm:$0xff]
  %v2264 = vld [vmem:[#allocation2 + $0x1af] sm:$0xff]
  %v2265 = vld [vmem:[#allocation2 + $0x1b7] sm:$0xff]
  %v2266 = vld [vmem:[#allocation2 + $0x1bf] sm:$0xff]
  %v2267 = vld [vmem:[#allocation2 + $0x1c7] sm:$0xff]
  %v2268 = vld [vmem:[#allocation2 + $0x1cf] sm:$0xff]
  %v2269 = vld [vmem:[#allocation2 + $0x1d7] sm:$0xff]
  %v2270 = vld [vmem:[#allocation2 + $0x1df] sm:$0xff]
  %v2271 = vld [vmem:[#allocation2 + $0x1e7] sm:$0xff]
  %v2272 = vld [vmem:[#allocation2 + $0x1ef] sm:$0xff]
  %v2273 = vld [vmem:[#allocation2 + $0x1f7] sm:$0xff]
  %v2274 = vld [vmem:[#allocation2 + $0x1ff] sm:$0xff]
  %v2275 = vld [vmem:[#allocation2 + $0x207] sm:$0xff]
  %v2276 = vld [vmem:[#allocation2 + $0x20f] sm:$0xff]
  %v2277 = vld [vmem:[#allocation2 + $0x217] sm:$0xff]
  %v2278 = vld [vmem:[#allocation2 + $0x21f] sm:$0xff]
  %v2279 = vld [vmem:[#allocation2 + $0x227] sm:$0xff]
  %v2280 = vld [vmem:[#allocation2 + $0x22f] sm:$0xff]
  %v2281 = vld [vmem:[#allocation2 + $0x237] sm:$0xff]
  %v2282 = vld [vmem:[#allocation2 + $0x23f] sm:$0xff]
  %v2283 = vld [vmem:[#allocation2 + $0x247] sm:$0xff]
  %v2284 = vld [vmem:[#allocation2 + $0x24f] sm:$0xff]
  %v2285 = vld [vmem:[#allocation2 + $0x257] sm:$0xff]
  %v2286 = vld [vmem:[#allocation2 + $0x25f] sm:$0xff]
  %v2287 = vld [vmem:[#allocation2 + $0x267] sm:$0xff]
  %v2288 = vld [vmem:[#allocation2 + $0x26f] sm:$0xff]
  %v2289 = vld [vmem:[#allocation2 + $0x277] sm:$0xff]
  %v2290 = vld [vmem:[#allocation2 + $0x27f] sm:$0xff]
  %v2291 = vld [vmem:[#allocation2 + $0x287] sm:$0xff]
  %v2292 = vmax.f32 %v2130, %v2211
  %v2293 = vmax.f32 %v2131, %v2212
  %v2294 = vmax.f32 %v2132, %v2213
  %v2295 = vmax.f32 %v2133, %v2214
  %v2296 = vmax.f32 %v2134, %v2215
  %v2297 = vmax.f32 %v2135, %v2216
  %v2298 = vmax.f32 %v2136, %v2217
  %v2299 = vmax.f32 %v2137, %v2218
  %v2300 = vmax.f32 %v2138, %v2219
  %v2301 = vmax.f32 %v2139, %v2220
  %v2302 = vmax.f32 %v2140, %v2221
  %v2303 = vmax.f32 %v2141, %v2222
  %v2304 = vmax.f32 %v2142, %v2223
  %v2305 = vmax.f32 %v2143, %v2224
  %v2306 = vmax.f32 %v2144, %v2225
  %v2307 = vmax.f32 %v2145, %v2226
  %v2308 = vmax.f32 %v2146, %v2227
  %v2309 = vmax.f32 %v2147, %v2228
  %v2310 = vmax.f32 %v2148, %v2229
  %v2311 = vmax.f32 %v2149, %v2230
  %v2312 = vmax.f32 %v2150, %v2231
  %v2313 = vmax.f32 %v2151, %v2232
  %v2314 = vmax.f32 %v2152, %v2233
  %v2315 = vmax.f32 %v2153, %v2234
  %v2316 = vmax.f32 %v2154, %v2235
  %v2317 = vmax.f32 %v2155, %v2236
  %v2318 = vmax.f32 %v2156, %v2237
  %v2319 = vmax.f32 %v2157, %v2238
  %v2320 = vmax.f32 %v2158, %v2239
  %v2321 = vmax.f32 %v2159, %v2240
  %v2322 = vmax.f32 %v2160, %v2241
  %v2323 = vmax.f32 %v2161, %v2242
  %v2324 = vmax.f32 %v2162, %v2243
  %v2325 = vmax.f32 %v2163, %v2244
  %v2326 = vmax.f32 %v2164, %v2245
  %v2327 = vmax.f32 %v2165, %v2246
  %v2328 = vmax.f32 %v2166, %v2247
  %v2329 = vmax.f32 %v2167, %v2248
  %v2330 = vmax.f32 %v2168, %v2249
  %v2331 = vmax.f32 %v2169, %v2250
  %v2332 = vmax.f32 %v2170, %v2251
  %v2333 = vmax.f32 %v2171, %v2252
  %v2334 = vmax.f32 %v2172, %v2253
  %v2335 = vmax.f32 %v2173, %v2254
  %v2336 = vmax.f32 %v2174, %v2255
  %v2337 = vmax.f32 %v2175, %v2256
  %v2338 = vmax.f32 %v2176, %v2257
  %v2339 = vmax.f32 %v2177, %v2258
  %v2340 = vmax.f32 %v2178, %v2259
  %v2341 = vmax.f32 %v2179, %v2260
  %v2342 = vmax.f32 %v2180, %v2261
  %v2343 = vmax.f32 %v2181, %v2262
  %v2344 = vmax.f32 %v2182, %v2263
  %v2345 = vmax.f32 %v2183, %v2264
  %v2346 = vmax.f32 %v2184, %v2265
  %v2347 = vmax.f32 %v2185, %v2266
  %v2348 = vmax.f32 %v2186, %v2267
  %v2349 = vmax.f32 %v2187, %v2268
  %v2350 = vmax.f32 %v2188, %v2269
  %v2351 = vmax.f32 %v2189, %v2270
  %v2352 = vmax.f32 %v2190, %v2271
  %v2353 = vmax.f32 %v2191, %v2272
  %v2354 = vmax.f32 %v2192, %v2273
  %v2355 = vmax.f32 %v2193, %v2274
  %v2356 = vmax.f32 %v2194, %v2275
  %v2357 = vmax.f32 %v2195, %v2276
  %v2358 = vmax.f32 %v2196, %v2277
  %v2359 = vmax.f32 %v2197, %v2278
  %v2360 = vmax.f32 %v2198, %v2279
  %v2361 = vmax.f32 %v2199, %v2280
  %v2362 = vmax.f32 %v2200, %v2281
  %v2363 = vmax.f32 %v2201, %v2282
  %v2364 = vmax.f32 %v2202, %v2283
  %v2365 = vmax.f32 %v2203, %v2284
  %v2366 = vmax.f32 %v2204, %v2285
  %v2367 = vmax.f32 %v2205, %v2286
  %v2368 = vmax.f32 %v2206, %v2287
  %v2369 = vmax.f32 %v2207, %v2288
  %v2370 = vmax.f32 %v2208, %v2289
  %v2371 = vmax.f32 %v2209, %v2290
  %v2372 = vmax.f32 %v2210, %v2291
  %v2373 = vld [vmem:[#allocation2 + $0x28f] sm:$0xff]
  %v2374 = vld [vmem:[#allocation2 + $0x297] sm:$0xff]
  %v2375 = vmax.f32 %v2292, %v2213
  %v2376 = vmax.f32 %v2293, %v2214
  %v2377 = vmax.f32 %v2294, %v2215
  %v2378 = vmax.f32 %v2295, %v2216
  %v2379 = vmax.f32 %v2296, %v2217
  %v2380 = vmax.f32 %v2297, %v2218
  %v2381 = vmax.f32 %v2298, %v2219
  %v2382 = vmax.f32 %v2299, %v2220
  %v2383 = vmax.f32 %v2300, %v2221
  %v2384 = vmax.f32 %v2301, %v2222
  %v2385 = vmax.f32 %v2302, %v2223
  %v2386 = vmax.f32 %v2303, %v2224
  %v2387 = vmax.f32 %v2304, %v2225
  %v2388 = vmax.f32 %v2305, %v2226
  %v2389 = vmax.f32 %v2306, %v2227
  %v2390 = vmax.f32 %v2307, %v2228
  %v2391 = vmax.f32 %v2308, %v2229
  %v2392 = vmax.f32 %v2309, %v2230
  %v2393 = vmax.f32 %v2310, %v2231
  %v2394 = vmax.f32 %v2311, %v2232
  %v2395 = vmax.f32 %v2312, %v2233
  %v2396 = vmax.f32 %v2313, %v2234
  %v2397 = vmax.f32 %v2314, %v2235
  %v2398 = vmax.f32 %v2315, %v2236
  %v2399 = vmax.f32 %v2316, %v2237
  %v2400 = vmax.f32 %v2317, %v2238
  %v2401 = vmax.f32 %v2318, %v2239
  %v2402 = vmax.f32 %v2319, %v2240
  %v2403 = vmax.f32 %v2320, %v2241
  %v2404 = vmax.f32 %v2321, %v2242
  %v2405 = vmax.f32 %v2322, %v2243
  %v2406 = vmax.f32 %v2323, %v2244
  %v2407 = vmax.f32 %v2324, %v2245
  %v2408 = vmax.f32 %v2325, %v2246
  %v2409 = vmax.f32 %v2326, %v2247
  %v2410 = vmax.f32 %v2327, %v2248
  %v2411 = vmax.f32 %v2328, %v2249
  %v2412 = vmax.f32 %v2329, %v2250
  %v2413 = vmax.f32 %v2330, %v2251
  %v2414 = vmax.f32 %v2331, %v2252
  %v2415 = vmax.f32 %v2332, %v2253
  %v2416 = vmax.f32 %v2333, %v2254
  %v2417 = vmax.f32 %v2334, %v2255
  %v2418 = vmax.f32 %v2335, %v2256
  %v2419 = vmax.f32 %v2336, %v2257
  %v2420 = vmax.f32 %v2337, %v2258
  %v2421 = vmax.f32 %v2338, %v2259
  %v2422 = vmax.f32 %v2339, %v2260
  %v2423 = vmax.f32 %v2340, %v2261
  %v2424 = vmax.f32 %v2341, %v2262
  %v2425 = vmax.f32 %v2342, %v2263
  %v2426 = vmax.f32 %v2343, %v2264
  %v2427 = vmax.f32 %v2344, %v2265
  %v2428 = vmax.f32 %v2345, %v2266
  %v2429 = vmax.f32 %v2346, %v2267
  %v2430 = vmax.f32 %v2347, %v2268
  %v2431 = vmax.f32 %v2348, %v2269
  %v2432 = vmax.f32 %v2349, %v2270
  %v2433 = vmax.f32 %v2350, %v2271
  %v2434 = vmax.f32 %v2351, %v2272
  %v2435 = vmax.f32 %v2352, %v2273
  %v2436 = vmax.f32 %v2353, %v2274
  %v2437 = vmax.f32 %v2354, %v2275
  %v2438 = vmax.f32 %v2355, %v2276
  %v2439 = vmax.f32 %v2356, %v2277
  %v2440 = vmax.f32 %v2357, %v2278
  %v2441 = vmax.f32 %v2358, %v2279
  %v2442 = vmax.f32 %v2359, %v2280
  %v2443 = vmax.f32 %v2360, %v2281
  %v2444 = vmax.f32 %v2361, %v2282
  %v2445 = vmax.f32 %v2362, %v2283
  %v2446 = vmax.f32 %v2363, %v2284
  %v2447 = vmax.f32 %v2364, %v2285
  %v2448 = vmax.f32 %v2365, %v2286
  %v2449 = vmax.f32 %v2366, %v2287
  %v2450 = vmax.f32 %v2367, %v2288
  %v2451 = vmax.f32 %v2368, %v2289
  %v2452 = vmax.f32 %v2369, %v2290
  %v2453 = vmax.f32 %v2370, %v2291
  %v2454 = vmax.f32 %v2371, %v2373
  %v2455 = vmax.f32 %v2372, %v2374
  %v2456 = vld [vmem:[#allocation2 + $0x18] sm:$0xff]
  %v2457 = vld [vmem:[#allocation2 + $0x20] sm:$0xff]
  %v2458 = vld [vmem:[#allocation2 + $0x28] sm:$0xff]
  %v2459 = vld [vmem:[#allocation2 + $0x30] sm:$0xff]
  %v2460 = vld [vmem:[#allocation2 + $0x38] sm:$0xff]
  %v2461 = vld [vmem:[#allocation2 + $0x40] sm:$0xff]
  %v2462 = vld [vmem:[#allocation2 + $0x48] sm:$0xff]
  %v2463 = vld [vmem:[#allocation2 + $0x50] sm:$0xff]
  %v2464 = vld [vmem:[#allocation2 + $0x58] sm:$0xff]
  %v2465 = vld [vmem:[#allocation2 + $0x60] sm:$0xff]
  %v2466 = vld [vmem:[#allocation2 + $0x68] sm:$0xff]
  %v2467 = vld [vmem:[#allocation2 + $0x70] sm:$0xff]
  %v2468 = vld [vmem:[#allocation2 + $0x78] sm:$0xff]
  %v2469 = vld [vmem:[#allocation2 + $0x80] sm:$0xff]
  %v2470 = vld [vmem:[#allocation2 + $0x88] sm:$0xff]
  %v2471 = vld [vmem:[#allocation2 + $0x90] sm:$0xff]
  %v2472 = vld [vmem:[#allocation2 + $0x98] sm:$0xff]
  %v2473 = vld [vmem:[#allocation2 + $0xa0] sm:$0xff]
  %v2474 = vld [vmem:[#allocation2 + $0xa8] sm:$0xff]
  %v2475 = vld [vmem:[#allocation2 + $0xb0] sm:$0xff]
  %v2476 = vld [vmem:[#allocation2 + $0xb8] sm:$0xff]
  %v2477 = vld [vmem:[#allocation2 + $0xc0] sm:$0xff]
  %v2478 = vld [vmem:[#allocation2 + $0xc8] sm:$0xff]
  %v2479 = vld [vmem:[#allocation2 + $0xd0] sm:$0xff]
  %v2480 = vld [vmem:[#allocation2 + $0xd8] sm:$0xff]
  %v2481 = vld [vmem:[#allocation2 + $0xe0] sm:$0xff]
  %v2482 = vld [vmem:[#allocation2 + $0xe8] sm:$0xff]
  %v2483 = vld [vmem:[#allocation2 + $0xf0] sm:$0xff]
  %v2484 = vld [vmem:[#allocation2 + $0xf8] sm:$0xff]
  %v2485 = vld [vmem:[#allocation2 + $0x100] sm:$0xff]
  %v2486 = vld [vmem:[#allocation2 + $0x108] sm:$0xff]
  %v2487 = vld [vmem:[#allocation2 + $0x110] sm:$0xff]
  %v2488 = vld [vmem:[#allocation2 + $0x118] sm:$0xff]
  %v2489 = vld [vmem:[#allocation2 + $0x120] sm:$0xff]
  %v2490 = vld [vmem:[#allocation2 + $0x128] sm:$0xff]
  %v2491 = vld [vmem:[#allocation2 + $0x130] sm:$0xff]
  %v2492 = vld [vmem:[#allocation2 + $0x138] sm:$0xff]
  %v2493 = vld [vmem:[#allocation2 + $0x140] sm:$0xff]
  %v2494 = vld [vmem:[#allocation2 + $0x148] sm:$0xff]
  %v2495 = vld [vmem:[#allocation2 + $0x150] sm:$0xff]
  %v2496 = vld [vmem:[#allocation2 + $0x158] sm:$0xff]
  %v2497 = vld [vmem:[#allocation2 + $0x160] sm:$0xff]
  %v2498 = vld [vmem:[#allocation2 + $0x168] sm:$0xff]
  %v2499 = vld [vmem:[#allocation2 + $0x170] sm:$0xff]
  %v2500 = vld [vmem:[#allocation2 + $0x178] sm:$0xff]
  %v2501 = vld [vmem:[#allocation2 + $0x180] sm:$0xff]
  %v2502 = vld [vmem:[#allocation2 + $0x188] sm:$0xff]
  %v2503 = vld [vmem:[#allocation2 + $0x190] sm:$0xff]
  %v2504 = vld [vmem:[#allocation2 + $0x198] sm:$0xff]
  %v2505 = vld [vmem:[#allocation2 + $0x1a0] sm:$0xff]
  %v2506 = vld [vmem:[#allocation2 + $0x1a8] sm:$0xff]
  %v2507 = vld [vmem:[#allocation2 + $0x1b0] sm:$0xff]
  %v2508 = vld [vmem:[#allocation2 + $0x1b8] sm:$0xff]
  %v2509 = vld [vmem:[#allocation2 + $0x1c0] sm:$0xff]
  %v2510 = vld [vmem:[#allocation2 + $0x1c8] sm:$0xff]
  %v2511 = vld [vmem:[#allocation2 + $0x1d0] sm:$0xff]
  %v2512 = vld [vmem:[#allocation2 + $0x1d8] sm:$0xff]
  %v2513 = vld [vmem:[#allocation2 + $0x1e0] sm:$0xff]
  %v2514 = vld [vmem:[#allocation2 + $0x1e8] sm:$0xff]
  %v2515 = vld [vmem:[#allocation2 + $0x1f0] sm:$0xff]
  %v2516 = vld [vmem:[#allocation2 + $0x1f8] sm:$0xff]
  %v2517 = vld [vmem:[#allocation2 + $0x200] sm:$0xff]
  %v2518 = vld [vmem:[#allocation2 + $0x208] sm:$0xff]
  %v2519 = vld [vmem:[#allocation2 + $0x210] sm:$0xff]
  %v2520 = vld [vmem:[#allocation2 + $0x218] sm:$0xff]
  %v2521 = vld [vmem:[#allocation2 + $0x220] sm:$0xff]
  %v2522 = vld [vmem:[#allocation2 + $0x228] sm:$0xff]
  %v2523 = vld [vmem:[#allocation2 + $0x230] sm:$0xff]
  %v2524 = vld [vmem:[#allocation2 + $0x238] sm:$0xff]
  %v2525 = vld [vmem:[#allocation2 + $0x240] sm:$0xff]
  %v2526 = vld [vmem:[#allocation2 + $0x248] sm:$0xff]
  %v2527 = vld [vmem:[#allocation2 + $0x250] sm:$0xff]
  %v2528 = vld [vmem:[#allocation2 + $0x258] sm:$0xff]
  %v2529 = vld [vmem:[#allocation2 + $0x260] sm:$0xff]
  %v2530 = vld [vmem:[#allocation2 + $0x268] sm:$0xff]
  %v2531 = vld [vmem:[#allocation2 + $0x270] sm:$0xff]
  %v2532 = vld [vmem:[#allocation2 + $0x278] sm:$0xff]
  %v2533 = vld [vmem:[#allocation2 + $0x280] sm:$0xff]
  %v2534 = vld [vmem:[#allocation2 + $0x288] sm:$0xff]
  %v2535 = vld [vmem:[#allocation2 + $0x290] sm:$0xff]
  %v2536 = vld [vmem:[#allocation2 + $0x298] sm:$0xff]
  %v2537 = vmax.f32 %v2375, %v2456
  %v2538 = vmax.f32 %v2376, %v2457
  %v2539 = vmax.f32 %v2377, %v2458
  %v2540 = vmax.f32 %v2378, %v2459
  %v2541 = vmax.f32 %v2379, %v2460
  %v2542 = vmax.f32 %v2380, %v2461
  %v2543 = vmax.f32 %v2381, %v2462
  %v2544 = vmax.f32 %v2382, %v2463
  %v2545 = vmax.f32 %v2383, %v2464
  %v2546 = vmax.f32 %v2384, %v2465
  %v2547 = vmax.f32 %v2385, %v2466
  %v2548 = vmax.f32 %v2386, %v2467
  %v2549 = vmax.f32 %v2387, %v2468
  %v2550 = vmax.f32 %v2388, %v2469
  %v2551 = vmax.f32 %v2389, %v2470
  %v2552 = vmax.f32 %v2390, %v2471
  %v2553 = vmax.f32 %v2391, %v2472
  %v2554 = vmax.f32 %v2392, %v2473
  %v2555 = vmax.f32 %v2393, %v2474
  %v2556 = vmax.f32 %v2394, %v2475
  %v2557 = vmax.f32 %v2395, %v2476
  %v2558 = vmax.f32 %v2396, %v2477
  %v2559 = vmax.f32 %v2397, %v2478
  %v2560 = vmax.f32 %v2398, %v2479
  %v2561 = vmax.f32 %v2399, %v2480
  %v2562 = vmax.f32 %v2400, %v2481
  %v2563 = vmax.f32 %v2401, %v2482
  %v2564 = vmax.f32 %v2402, %v2483
  %v2565 = vmax.f32 %v2403, %v2484
  %v2566 = vmax.f32 %v2404, %v2485
  %v2567 = vmax.f32 %v2405, %v2486
  %v2568 = vmax.f32 %v2406, %v2487
  %v2569 = vmax.f32 %v2407, %v2488
  %v2570 = vmax.f32 %v2408, %v2489
  %v2571 = vmax.f32 %v2409, %v2490
  %v2572 = vmax.f32 %v2410, %v2491
  %v2573 = vmax.f32 %v2411, %v2492
  %v2574 = vmax.f32 %v2412, %v2493
  %v2575 = vmax.f32 %v2413, %v2494
  %v2576 = vmax.f32 %v2414, %v2495
  %v2577 = vmax.f32 %v2415, %v2496
  %v2578 = vmax.f32 %v2416, %v2497
  %v2579 = vmax.f32 %v2417, %v2498
  %v2580 = vmax.f32 %v2418, %v2499
  %v2581 = vmax.f32 %v2419, %v2500
  %v2582 = vmax.f32 %v2420, %v2501
  %v2583 = vmax.f32 %v2421, %v2502
  %v2584 = vmax.f32 %v2422, %v2503
  %v2585 = vmax.f32 %v2423, %v2504
  %v2586 = vmax.f32 %v2424, %v2505
  %v2587 = vmax.f32 %v2425, %v2506
  %v2588 = vmax.f32 %v2426, %v2507
  %v2589 = vmax.f32 %v2427, %v2508
  %v2590 = vmax.f32 %v2428, %v2509
  %v2591 = vmax.f32 %v2429, %v2510
  %v2592 = vmax.f32 %v2430, %v2511
  %v2593 = vmax.f32 %v2431, %v2512
  %v2594 = vmax.f32 %v2432, %v2513
  %v2595 = vmax.f32 %v2433, %v2514
  %v2596 = vmax.f32 %v2434, %v2515
  %v2597 = vmax.f32 %v2435, %v2516
  %v2598 = vmax.f32 %v2436, %v2517
  %v2599 = vmax.f32 %v2437, %v2518
  %v2600 = vmax.f32 %v2438, %v2519
  %v2601 = vmax.f32 %v2439, %v2520
  %v2602 = vmax.f32 %v2440, %v2521
  %v2603 = vmax.f32 %v2441, %v2522
  %v2604 = vmax.f32 %v2442, %v2523
  %v2605 = vmax.f32 %v2443, %v2524
  %v2606 = vmax.f32 %v2444, %v2525
  %v2607 = vmax.f32 %v2445, %v2526
  %v2608 = vmax.f32 %v2446, %v2527
  %v2609 = vmax.f32 %v2447, %v2528
  %v2610 = vmax.f32 %v2448, %v2529
  %v2611 = vmax.f32 %v2449, %v2530
  %v2612 = vmax.f32 %v2450, %v2531
  %v2613 = vmax.f32 %v2451, %v2532
  %v2614 = vmax.f32 %v2452, %v2533
  %v2615 = vmax.f32 %v2453, %v2534
  %v2616 = vmax.f32 %v2454, %v2535
  %v2617 = vmax.f32 %v2455, %v2536
  %v2618 = vld [vmem:[#allocation2 + $0x19] sm:$0xff]
  %v2619 = vld [vmem:[#allocation2 + $0x21] sm:$0xff]
  %v2620 = vld [vmem:[#allocation2 + $0x29] sm:$0xff]
  %v2621 = vld [vmem:[#allocation2 + $0x31] sm:$0xff]
  %v2622 = vld [vmem:[#allocation2 + $0x39] sm:$0xff]
  %v2623 = vld [vmem:[#allocation2 + $0x41] sm:$0xff]
  %v2624 = vld [vmem:[#allocation2 + $0x49] sm:$0xff]
  %v2625 = vld [vmem:[#allocation2 + $0x51] sm:$0xff]
  %v2626 = vld [vmem:[#allocation2 + $0x59] sm:$0xff]
  %v2627 = vld [vmem:[#allocation2 + $0x61] sm:$0xff]
  %v2628 = vld [vmem:[#allocation2 + $0x69] sm:$0xff]
  %v2629 = vld [vmem:[#allocation2 + $0x71] sm:$0xff]
  %v2630 = vld [vmem:[#allocation2 + $0x79] sm:$0xff]
  %v2631 = vld [vmem:[#allocation2 + $0x81] sm:$0xff]
  %v2632 = vld [vmem:[#allocation2 + $0x89] sm:$0xff]
  %v2633 = vld [vmem:[#allocation2 + $0x91] sm:$0xff]
  %v2634 = vld [vmem:[#allocation2 + $0x99] sm:$0xff]
  %v2635 = vld [vmem:[#allocation2 + $0xa1] sm:$0xff]
  %v2636 = vld [vmem:[#allocation2 + $0xa9] sm:$0xff]
  %v2637 = vld [vmem:[#allocation2 + $0xb1] sm:$0xff]
  %v2638 = vld [vmem:[#allocation2 + $0xb9] sm:$0xff]
  %v2639 = vld [vmem:[#allocation2 + $0xc1] sm:$0xff]
  %v2640 = vld [vmem:[#allocation2 + $0xc9] sm:$0xff]
  %v2641 = vld [vmem:[#allocation2 + $0xd1] sm:$0xff]
  %v2642 = vld [vmem:[#allocation2 + $0xd9] sm:$0xff]
  %v2643 = vld [vmem:[#allocation2 + $0xe1] sm:$0xff]
  %v2644 = vld [vmem:[#allocation2 + $0xe9] sm:$0xff]
  %v2645 = vld [vmem:[#allocation2 + $0xf1] sm:$0xff]
  %v2646 = vld [vmem:[#allocation2 + $0xf9] sm:$0xff]
  %v2647 = vld [vmem:[#allocation2 + $0x101] sm:$0xff]
  %v2648 = vld [vmem:[#allocation2 + $0x109] sm:$0xff]
  %v2649 = vld [vmem:[#allocation2 + $0x111] sm:$0xff]
  %v2650 = vld [vmem:[#allocation2 + $0x119] sm:$0xff]
  %v2651 = vld [vmem:[#allocation2 + $0x121] sm:$0xff]
  %v2652 = vld [vmem:[#allocation2 + $0x129] sm:$0xff]
  %v2653 = vld [vmem:[#allocation2 + $0x131] sm:$0xff]
  %v2654 = vld [vmem:[#allocation2 + $0x139] sm:$0xff]
  %v2655 = vld [vmem:[#allocation2 + $0x141] sm:$0xff]
  %v2656 = vld [vmem:[#allocation2 + $0x149] sm:$0xff]
  %v2657 = vld [vmem:[#allocation2 + $0x151] sm:$0xff]
  %v2658 = vld [vmem:[#allocation2 + $0x159] sm:$0xff]
  %v2659 = vld [vmem:[#allocation2 + $0x161] sm:$0xff]
  %v2660 = vld [vmem:[#allocation2 + $0x169] sm:$0xff]
  %v2661 = vld [vmem:[#allocation2 + $0x171] sm:$0xff]
  %v2662 = vld [vmem:[#allocation2 + $0x179] sm:$0xff]
  %v2663 = vld [vmem:[#allocation2 + $0x181] sm:$0xff]
  %v2664 = vld [vmem:[#allocation2 + $0x189] sm:$0xff]
  %v2665 = vld [vmem:[#allocation2 + $0x191] sm:$0xff]
  %v2666 = vld [vmem:[#allocation2 + $0x199] sm:$0xff]
  %v2667 = vld [vmem:[#allocation2 + $0x1a1] sm:$0xff]
  %v2668 = vld [vmem:[#allocation2 + $0x1a9] sm:$0xff]
  %v2669 = vld [vmem:[#allocation2 + $0x1b1] sm:$0xff]
  %v2670 = vld [vmem:[#allocation2 + $0x1b9] sm:$0xff]
  %v2671 = vld [vmem:[#allocation2 + $0x1c1] sm:$0xff]
  %v2672 = vld [vmem:[#allocation2 + $0x1c9] sm:$0xff]
  %v2673 = vld [vmem:[#allocation2 + $0x1d1] sm:$0xff]
  %v2674 = vld [vmem:[#allocation2 + $0x1d9] sm:$0xff]
  %v2675 = vld [vmem:[#allocation2 + $0x1e1] sm:$0xff]
  %v2676 = vld [vmem:[#allocation2 + $0x1e9] sm:$0xff]
  %v2677 = vld [vmem:[#allocation2 + $0x1f1] sm:$0xff]
  %v2678 = vld [vmem:[#allocation2 + $0x1f9] sm:$0xff]
  %v2679 = vld [vmem:[#allocation2 + $0x201] sm:$0xff]
  %v2680 = vld [vmem:[#allocation2 + $0x209] sm:$0xff]
  %v2681 = vld [vmem:[#allocation2 + $0x211] sm:$0xff]
  %v2682 = vld [vmem:[#allocation2 + $0x219] sm:$0xff]
  %v2683 = vld [vmem:[#allocation2 + $0x221] sm:$0xff]
  %v2684 = vld [vmem:[#allocation2 + $0x229] sm:$0xff]
  %v2685 = vld [vmem:[#allocation2 + $0x231] sm:$0xff]
  %v2686 = vld [vmem:[#allocation2 + $0x239] sm:$0xff]
  %v2687 = vld [vmem:[#allocation2 + $0x241] sm:$0xff]
  %v2688 = vld [vmem:[#allocation2 + $0x249] sm:$0xff]
  %v2689 = vld [vmem:[#allocation2 + $0x251] sm:$0xff]
  %v2690 = vld [vmem:[#allocation2 + $0x259] sm:$0xff]
  %v2691 = vld [vmem:[#allocation2 + $0x261] sm:$0xff]
  %v2692 = vld [vmem:[#allocation2 + $0x269] sm:$0xff]
  %v2693 = vld [vmem:[#allocation2 + $0x271] sm:$0xff]
  %v2694 = vld [vmem:[#allocation2 + $0x279] sm:$0xff]
  %v2695 = vld [vmem:[#allocation2 + $0x281] sm:$0xff]
  %v2696 = vld [vmem:[#allocation2 + $0x289] sm:$0xff]
  %v2697 = vld [vmem:[#allocation2 + $0x291] sm:$0xff]
  %v2698 = vld [vmem:[#allocation2 + $0x299] sm:$0xff]
  %v2699 = vmax.f32 %v2537, %v2618
  %v2700 = vmax.f32 %v2538, %v2619
  %v2701 = vmax.f32 %v2539, %v2620
  %v2702 = vmax.f32 %v2540, %v2621
  %v2703 = vmax.f32 %v2541, %v2622
  %v2704 = vmax.f32 %v2542, %v2623
  %v2705 = vmax.f32 %v2543, %v2624
  %v2706 = vmax.f32 %v2544, %v2625
  %v2707 = vmax.f32 %v2545, %v2626
  %v2708 = vmax.f32 %v2546, %v2627
  %v2709 = vmax.f32 %v2547, %v2628
  %v2710 = vmax.f32 %v2548, %v2629
  %v2711 = vmax.f32 %v2549, %v2630
  %v2712 = vmax.f32 %v2550, %v2631
  %v2713 = vmax.f32 %v2551, %v2632
  %v2714 = vmax.f32 %v2552, %v2633
  %v2715 = vmax.f32 %v2553, %v2634
  %v2716 = vmax.f32 %v2554, %v2635
  %v2717 = vmax.f32 %v2555, %v2636
  %v2718 = vmax.f32 %v2556, %v2637
  %v2719 = vmax.f32 %v2557, %v2638
  %v2720 = vmax.f32 %v2558, %v2639
  %v2721 = vmax.f32 %v2559, %v2640
  %v2722 = vmax.f32 %v2560, %v2641
  %v2723 = vmax.f32 %v2561, %v2642
  %v2724 = vmax.f32 %v2562, %v2643
  %v2725 = vmax.f32 %v2563, %v2644
  %v2726 = vmax.f32 %v2564, %v2645
  %v2727 = vmax.f32 %v2565, %v2646
  %v2728 = vmax.f32 %v2566, %v2647
  %v2729 = vmax.f32 %v2567, %v2648
  %v2730 = vmax.f32 %v2568, %v2649
  %v2731 = vmax.f32 %v2569, %v2650
  %v2732 = vmax.f32 %v2570, %v2651
  %v2733 = vmax.f32 %v2571, %v2652
  %v2734 = vmax.f32 %v2572, %v2653
  %v2735 = vmax.f32 %v2573, %v2654
  %v2736 = vmax.f32 %v2574, %v2655
  %v2737 = vmax.f32 %v2575, %v2656
  %v2738 = vmax.f32 %v2576, %v2657
  %v2739 = vmax.f32 %v2577, %v2658
  %v2740 = vmax.f32 %v2578, %v2659
  %v2741 = vmax.f32 %v2579, %v2660
  %v2742 = vmax.f32 %v2580, %v2661
  %v2743 = vmax.f32 %v2581, %v2662
  %v2744 = vmax.f32 %v2582, %v2663
  %v2745 = vmax.f32 %v2583, %v2664
  %v2746 = vmax.f32 %v2584, %v2665
  %v2747 = vmax.f32 %v2585, %v2666
  %v2748 = vmax.f32 %v2586, %v2667
  %v2749 = vmax.f32 %v2587, %v2668
  %v2750 = vmax.f32 %v2588, %v2669
  %v2751 = vmax.f32 %v2589, %v2670
  %v2752 = vmax.f32 %v2590, %v2671
  %v2753 = vmax.f32 %v2591, %v2672
  %v2754 = vmax.f32 %v2592, %v2673
  %v2755 = vmax.f32 %v2593, %v2674
  %v2756 = vmax.f32 %v2594, %v2675
  %v2757 = vmax.f32 %v2595, %v2676
  %v2758 = vmax.f32 %v2596, %v2677
  %v2759 = vmax.f32 %v2597, %v2678
  %v2760 = vmax.f32 %v2598, %v2679
  %v2761 = vmax.f32 %v2599, %v2680
  %v2762 = vmax.f32 %v2600, %v2681
  %v2763 = vmax.f32 %v2601, %v2682
  %v2764 = vmax.f32 %v2602, %v2683
  %v2765 = vmax.f32 %v2603, %v2684
  %v2766 = vmax.f32 %v2604, %v2685
  %v2767 = vmax.f32 %v2605, %v2686
  %v2768 = vmax.f32 %v2606, %v2687
  %v2769 = vmax.f32 %v2607, %v2688
  %v2770 = vmax.f32 %v2608, %v2689
  %v2771 = vmax.f32 %v2609, %v2690
  %v2772 = vmax.f32 %v2610, %v2691
  %v2773 = vmax.f32 %v2611, %v2692
  %v2774 = vmax.f32 %v2612, %v2693
  %v2775 = vmax.f32 %v2613, %v2694
  %v2776 = vmax.f32 %v2614, %v2695
  %v2777 = vmax.f32 %v2615, %v2696
  %v2778 = vmax.f32 %v2616, %v2697
  %v2779 = vmax.f32 %v2617, %v2698
  %v2780 = vld [vmem:[#allocation2 + $0x2a1] sm:$0xff]
  %v2781 = vld [vmem:[#allocation2 + $0x2a9] sm:$0xff]
  %v2782 = vmax.f32 %v2699, %v2620
  %v2783 = vmax.f32 %v2700, %v2621
  %v2784 = vmax.f32 %v2701, %v2622
  %v2785 = vmax.f32 %v2702, %v2623
  %v2786 = vmax.f32 %v2703, %v2624
  %v2787 = vmax.f32 %v2704, %v2625
  %v2788 = vmax.f32 %v2705, %v2626
  %v2789 = vmax.f32 %v2706, %v2627
  %v2790 = vmax.f32 %v2707, %v2628
  %v2791 = vmax.f32 %v2708, %v2629
  %v2792 = vmax.f32 %v2709, %v2630
  %v2793 = vmax.f32 %v2710, %v2631
  %v2794 = vmax.f32 %v2711, %v2632
  %v2795 = vmax.f32 %v2712, %v2633
  %v2796 = vmax.f32 %v2713, %v2634
  %v2797 = vmax.f32 %v2714, %v2635
  %v2798 = vmax.f32 %v2715, %v2636
  %v2799 = vmax.f32 %v2716, %v2637
  %v2800 = vmax.f32 %v2717, %v2638
  %v2801 = vmax.f32 %v2718, %v2639
  %v2802 = vmax.f32 %v2719, %v2640
  %v2803 = vmax.f32 %v2720, %v2641
  %v2804 = vmax.f32 %v2721, %v2642
  %v2805 = vmax.f32 %v2722, %v2643
  %v2806 = vmax.f32 %v2723, %v2644
  %v2807 = vmax.f32 %v2724, %v2645
  %v2808 = vmax.f32 %v2725, %v2646
  %v2809 = vmax.f32 %v2726, %v2647
  %v2810 = vmax.f32 %v2727, %v2648
  %v2811 = vmax.f32 %v2728, %v2649
  %v2812 = vmax.f32 %v2729, %v2650
  %v2813 = vmax.f32 %v2730, %v2651
  %v2814 = vmax.f32 %v2731, %v2652
  %v2815 = vmax.f32 %v2732, %v2653
  %v2816 = vmax.f32 %v2733, %v2654
  %v2817 = vmax.f32 %v2734, %v2655
  %v2818 = vmax.f32 %v2735, %v2656
  %v2819 = vmax.f32 %v2736, %v2657
  %v2820 = vmax.f32 %v2737, %v2658
  %v2821 = vmax.f32 %v2738, %v2659
  %v2822 = vmax.f32 %v2739, %v2660
  %v2823 = vmax.f32 %v2740, %v2661
  %v2824 = vmax.f32 %v2741, %v2662
  %v2825 = vmax.f32 %v2742, %v2663
  %v2826 = vmax.f32 %v2743, %v2664
  %v2827 = vmax.f32 %v2744, %v2665
  %v2828 = vmax.f32 %v2745, %v2666
  %v2829 = vmax.f32 %v2746, %v2667
  %v2830 = vmax.f32 %v2747, %v2668
  %v2831 = vmax.f32 %v2748, %v2669
  %v2832 = vmax.f32 %v2749, %v2670
  %v2833 = vmax.f32 %v2750, %v2671
  %v2834 = vmax.f32 %v2751, %v2672
  %v2835 = vmax.f32 %v2752, %v2673
  %v2836 = vmax.f32 %v2753, %v2674
  %v2837 = vmax.f32 %v2754, %v2675
  %v2838 = vmax.f32 %v2755, %v2676
  %v2839 = vmax.f32 %v2756, %v2677
  %v2840 = vmax.f32 %v2757, %v2678
  %v2841 = vmax.f32 %v2758, %v2679
  %v2842 = vmax.f32 %v2759, %v2680
  %v2843 = vmax.f32 %v2760, %v2681
  %v2844 = vmax.f32 %v2761, %v2682
  %v2845 = vmax.f32 %v2762, %v2683
  %v2846 = vmax.f32 %v2763, %v2684
  %v2847 = vmax.f32 %v2764, %v2685
  %v2848 = vmax.f32 %v2765, %v2686
  %v2849 = vmax.f32 %v2766, %v2687
  %v2850 = vmax.f32 %v2767, %v2688
  %v2851 = vmax.f32 %v2768, %v2689
  %v2852 = vmax.f32 %v2769, %v2690
  %v2853 = vmax.f32 %v2770, %v2691
  %v2854 = vmax.f32 %v2771, %v2692
  %v2855 = vmax.f32 %v2772, %v2693
  %v2856 = vmax.f32 %v2773, %v2694
  %v2857 = vmax.f32 %v2774, %v2695
  %v2858 = vmax.f32 %v2775, %v2696
  %v2859 = vmax.f32 %v2776, %v2697
  %v2860 = vmax.f32 %v2777, %v2698
  %v2861 = vmax.f32 %v2778, %v2780
  %v2862 = vmax.f32 %v2779, %v2781
  %v2863 = vld [vmem:[#allocation2 + $0x2a] sm:$0xff]
  %v2864 = vld [vmem:[#allocation2 + $0x32] sm:$0xff]
  %v2865 = vld [vmem:[#allocation2 + $0x3a] sm:$0xff]
  %v2866 = vld [vmem:[#allocation2 + $0x42] sm:$0xff]
  %v2867 = vld [vmem:[#allocation2 + $0x4a] sm:$0xff]
  %v2868 = vld [vmem:[#allocation2 + $0x52] sm:$0xff]
  %v2869 = vld [vmem:[#allocation2 + $0x5a] sm:$0xff]
  %v2870 = vld [vmem:[#allocation2 + $0x62] sm:$0xff]
  %v2871 = vld [vmem:[#allocation2 + $0x6a] sm:$0xff]
  %v2872 = vld [vmem:[#allocation2 + $0x72] sm:$0xff]
  %v2873 = vld [vmem:[#allocation2 + $0x7a] sm:$0xff]
  %v2874 = vld [vmem:[#allocation2 + $0x82] sm:$0xff]
  %v2875 = vld [vmem:[#allocation2 + $0x8a] sm:$0xff]
  %v2876 = vld [vmem:[#allocation2 + $0x92] sm:$0xff]
  %v2877 = vld [vmem:[#allocation2 + $0x9a] sm:$0xff]
  %v2878 = vld [vmem:[#allocation2 + $0xa2] sm:$0xff]
  %v2879 = vld [vmem:[#allocation2 + $0xaa] sm:$0xff]
  %v2880 = vld [vmem:[#allocation2 + $0xb2] sm:$0xff]
  %v2881 = vld [vmem:[#allocation2 + $0xba] sm:$0xff]
  %v2882 = vld [vmem:[#allocation2 + $0xc2] sm:$0xff]
  %v2883 = vld [vmem:[#allocation2 + $0xca] sm:$0xff]
  %v2884 = vld [vmem:[#allocation2 + $0xd2] sm:$0xff]
  %v2885 = vld [vmem:[#allocation2 + $0xda] sm:$0xff]
  %v2886 = vld [vmem:[#allocation2 + $0xe2] sm:$0xff]
  %v2887 = vld [vmem:[#allocation2 + $0xea] sm:$0xff]
  %v2888 = vld [vmem:[#allocation2 + $0xf2] sm:$0xff]
  %v2889 = vld [vmem:[#allocation2 + $0xfa] sm:$0xff]
  %v2890 = vld [vmem:[#allocation2 + $0x102] sm:$0xff]
  %v2891 = vld [vmem:[#allocation2 + $0x10a] sm:$0xff]
  %v2892 = vld [vmem:[#allocation2 + $0x112] sm:$0xff]
  %v2893 = vld [vmem:[#allocation2 + $0x11a] sm:$0xff]
  %v2894 = vld [vmem:[#allocation2 + $0x122] sm:$0xff]
  %v2895 = vld [vmem:[#allocation2 + $0x12a] sm:$0xff]
  %v2896 = vld [vmem:[#allocation2 + $0x132] sm:$0xff]
  %v2897 = vld [vmem:[#allocation2 + $0x13a] sm:$0xff]
  %v2898 = vld [vmem:[#allocation2 + $0x142] sm:$0xff]
  %v2899 = vld [vmem:[#allocation2 + $0x14a] sm:$0xff]
  %v2900 = vld [vmem:[#allocation2 + $0x152] sm:$0xff]
  %v2901 = vld [vmem:[#allocation2 + $0x15a] sm:$0xff]
  %v2902 = vld [vmem:[#allocation2 + $0x162] sm:$0xff]
  %v2903 = vld [vmem:[#allocation2 + $0x16a] sm:$0xff]
  %v2904 = vld [vmem:[#allocation2 + $0x172] sm:$0xff]
  %v2905 = vld [vmem:[#allocation2 + $0x17a] sm:$0xff]
  %v2906 = vld [vmem:[#allocation2 + $0x182] sm:$0xff]
  %v2907 = vld [vmem:[#allocation2 + $0x18a] sm:$0xff]
  %v2908 = vld [vmem:[#allocation2 + $0x192] sm:$0xff]
  %v2909 = vld [vmem:[#allocation2 + $0x19a] sm:$0xff]
  %v2910 = vld [vmem:[#allocation2 + $0x1a2] sm:$0xff]
  %v2911 = vld [vmem:[#allocation2 + $0x1aa] sm:$0xff]
  %v2912 = vld [vmem:[#allocation2 + $0x1b2] sm:$0xff]
  %v2913 = vld [vmem:[#allocation2 + $0x1ba] sm:$0xff]
  %v2914 = vld [vmem:[#allocation2 + $0x1c2] sm:$0xff]
  %v2915 = vld [vmem:[#allocation2 + $0x1ca] sm:$0xff]
  %v2916 = vld [vmem:[#allocation2 + $0x1d2] sm:$0xff]
  %v2917 = vld [vmem:[#allocation2 + $0x1da] sm:$0xff]
  %v2918 = vld [vmem:[#allocation2 + $0x1e2] sm:$0xff]
  %v2919 = vld [vmem:[#allocation2 + $0x1ea] sm:$0xff]
  %v2920 = vld [vmem:[#allocation2 + $0x1f2] sm:$0xff]
  %v2921 = vld [vmem:[#allocation2 + $0x1fa] sm:$0xff]
  %v2922 = vld [vmem:[#allocation2 + $0x202] sm:$0xff]
  %v2923 = vld [vmem:[#allocation2 + $0x20a] sm:$0xff]
  %v2924 = vld [vmem:[#allocation2 + $0x212] sm:$0xff]
  %v2925 = vld [vmem:[#allocation2 + $0x21a] sm:$0xff]
  %v2926 = vld [vmem:[#allocation2 + $0x222] sm:$0xff]
  %v2927 = vld [vmem:[#allocation2 + $0x22a] sm:$0xff]
  %v2928 = vld [vmem:[#allocation2 + $0x232] sm:$0xff]
  %v2929 = vld [vmem:[#allocation2 + $0x23a] sm:$0xff]
  %v2930 = vld [vmem:[#allocation2 + $0x242] sm:$0xff]
  %v2931 = vld [vmem:[#allocation2 + $0x24a] sm:$0xff]
  %v2932 = vld [vmem:[#allocation2 + $0x252] sm:$0xff]
  %v2933 = vld [vmem:[#allocation2 + $0x25a] sm:$0xff]
  %v2934 = vld [vmem:[#allocation2 + $0x262] sm:$0xff]
  %v2935 = vld [vmem:[#allocation2 + $0x26a] sm:$0xff]
  %v2936 = vld [vmem:[#allocation2 + $0x272] sm:$0xff]
  %v2937 = vld [vmem:[#allocation2 + $0x27a] sm:$0xff]
  %v2938 = vld [vmem:[#allocation2 + $0x282] sm:$0xff]
  %v2939 = vld [vmem:[#allocation2 + $0x28a] sm:$0xff]
  %v2940 = vld [vmem:[#allocation2 + $0x292] sm:$0xff]
  %v2941 = vld [vmem:[#allocation2 + $0x29a] sm:$0xff]
  %v2942 = vld [vmem:[#allocation2 + $0x2a2] sm:$0xff]
  %v2943 = vld [vmem:[#allocation2 + $0x2aa] sm:$0xff]
  %v2944 = vmax.f32 %v2782, %v2863
  %v2945 = vmax.f32 %v2783, %v2864
  %v2946 = vmax.f32 %v2784, %v2865
  %v2947 = vmax.f32 %v2785, %v2866
  %v2948 = vmax.f32 %v2786, %v2867
  %v2949 = vmax.f32 %v2787, %v2868
  %v2950 = vmax.f32 %v2788, %v2869
  %v2951 = vmax.f32 %v2789, %v2870
  %v2952 = vmax.f32 %v2790, %v2871
  %v2953 = vmax.f32 %v2791, %v2872
  %v2954 = vmax.f32 %v2792, %v2873
  %v2955 = vmax.f32 %v2793, %v2874
  %v2956 = vmax.f32 %v2794, %v2875
  %v2957 = vmax.f32 %v2795, %v2876
  %v2958 = vmax.f32 %v2796, %v2877
  %v2959 = vmax.f32 %v2797, %v2878
  %v2960 = vmax.f32 %v2798, %v2879
  %v2961 = vmax.f32 %v2799, %v2880
  %v2962 = vmax.f32 %v2800, %v2881
  %v2963 = vmax.f32 %v2801, %v2882
  %v2964 = vmax.f32 %v2802, %v2883
  %v2965 = vmax.f32 %v2803, %v2884
  %v2966 = vmax.f32 %v2804, %v2885
  %v2967 = vmax.f32 %v2805, %v2886
  %v2968 = vmax.f32 %v2806, %v2887
  %v2969 = vmax.f32 %v2807, %v2888
  %v2970 = vmax.f32 %v2808, %v2889
  %v2971 = vmax.f32 %v2809, %v2890
  %v2972 = vmax.f32 %v2810, %v2891
  %v2973 = vmax.f32 %v2811, %v2892
  %v2974 = vmax.f32 %v2812, %v2893
  %v2975 = vmax.f32 %v2813, %v2894
  %v2976 = vmax.f32 %v2814, %v2895
  %v2977 = vmax.f32 %v2815, %v2896
  %v2978 = vmax.f32 %v2816, %v2897
  %v2979 = vmax.f32 %v2817, %v2898
  %v2980 = vmax.f32 %v2818, %v2899
  %v2981 = vmax.f32 %v2819, %v2900
  %v2982 = vmax.f32 %v2820, %v2901
  %v2983 = vmax.f32 %v2821, %v2902
  %v2984 = vmax.f32 %v2822, %v2903
  %v2985 = vmax.f32 %v2823, %v2904
  %v2986 = vmax.f32 %v2824, %v2905
  %v2987 = vmax.f32 %v2825, %v2906
  %v2988 = vmax.f32 %v2826, %v2907
  %v2989 = vmax.f32 %v2827, %v2908
  %v2990 = vmax.f32 %v2828, %v2909
  %v2991 = vmax.f32 %v2829, %v2910
  %v2992 = vmax.f32 %v2830, %v2911
  %v2993 = vmax.f32 %v2831, %v2912
  %v2994 = vmax.f32 %v2832, %v2913
  %v2995 = vmax.f32 %v2833, %v2914
  %v2996 = vmax.f32 %v2834, %v2915
  %v2997 = vmax.f32 %v2835, %v2916
  %v2998 = vmax.f32 %v2836, %v2917
  %v2999 = vmax.f32 %v2837, %v2918
  %v3000 = vmax.f32 %v2838, %v2919
  %v3001 = vmax.f32 %v2839, %v2920
  %v3002 = vmax.f32 %v2840, %v2921
  %v3003 = vmax.f32 %v2841, %v2922
  %v3004 = vmax.f32 %v2842, %v2923
  %v3005 = vmax.f32 %v2843, %v2924
  %v3006 = vmax.f32 %v2844, %v2925
  %v3007 = vmax.f32 %v2845, %v2926
  %v3008 = vmax.f32 %v2846, %v2927
  %v3009 = vmax.f32 %v2847, %v2928
  %v3010 = vmax.f32 %v2848, %v2929
  %v3011 = vmax.f32 %v2849, %v2930
  %v3012 = vmax.f32 %v2850, %v2931
  %v3013 = vmax.f32 %v2851, %v2932
  %v3014 = vmax.f32 %v2852, %v2933
  %v3015 = vmax.f32 %v2853, %v2934
  %v3016 = vmax.f32 %v2854, %v2935
  %v3017 = vmax.f32 %v2855, %v2936
  %v3018 = vmax.f32 %v2856, %v2937
  %v3019 = vmax.f32 %v2857, %v2938
  %v3020 = vmax.f32 %v2858, %v2939
  %v3021 = vmax.f32 %v2859, %v2940
  %v3022 = vmax.f32 %v2860, %v2941
  %v3023 = vmax.f32 %v2861, %v2942
  %v3024 = vmax.f32 %v2862, %v2943
  %v3025 = vld [vmem:[#allocation2 + $0x2b] sm:$0xff]
  %v3026 = vld [vmem:[#allocation2 + $0x33] sm:$0xff]
  %v3027 = vld [vmem:[#allocation2 + $0x3b] sm:$0xff]
  %v3028 = vld [vmem:[#allocation2 + $0x43] sm:$0xff]
  %v3029 = vld [vmem:[#allocation2 + $0x4b] sm:$0xff]
  %v3030 = vld [vmem:[#allocation2 + $0x53] sm:$0xff]
  %v3031 = vld [vmem:[#allocation2 + $0x5b] sm:$0xff]
  %v3032 = vld [vmem:[#allocation2 + $0x63] sm:$0xff]
  %v3033 = vld [vmem:[#allocation2 + $0x6b] sm:$0xff]
  %v3034 = vld [vmem:[#allocation2 + $0x73] sm:$0xff]
  %v3035 = vld [vmem:[#allocation2 + $0x7b] sm:$0xff]
  %v3036 = vld [vmem:[#allocation2 + $0x83] sm:$0xff]
  %v3037 = vld [vmem:[#allocation2 + $0x8b] sm:$0xff]
  %v3038 = vld [vmem:[#allocation2 + $0x93] sm:$0xff]
  %v3039 = vld [vmem:[#allocation2 + $0x9b] sm:$0xff]
  %v3040 = vld [vmem:[#allocation2 + $0xa3] sm:$0xff]
  %v3041 = vld [vmem:[#allocation2 + $0xab] sm:$0xff]
  %v3042 = vld [vmem:[#allocation2 + $0xb3] sm:$0xff]
  %v3043 = vld [vmem:[#allocation2 + $0xbb] sm:$0xff]
  %v3044 = vld [vmem:[#allocation2 + $0xc3] sm:$0xff]
  %v3045 = vld [vmem:[#allocation2 + $0xcb] sm:$0xff]
  %v3046 = vld [vmem:[#allocation2 + $0xd3] sm:$0xff]
  %v3047 = vld [vmem:[#allocation2 + $0xdb] sm:$0xff]
  %v3048 = vld [vmem:[#allocation2 + $0xe3] sm:$0xff]
  %v3049 = vld [vmem:[#allocation2 + $0xeb] sm:$0xff]
  %v3050 = vld [vmem:[#allocation2 + $0xf3] sm:$0xff]
  %v3051 = vld [vmem:[#allocation2 + $0xfb] sm:$0xff]
  %v3052 = vld [vmem:[#allocation2 + $0x103] sm:$0xff]
  %v3053 = vld [vmem:[#allocation2 + $0x10b] sm:$0xff]
  %v3054 = vld [vmem:[#allocation2 + $0x113] sm:$0xff]
  %v3055 = vld [vmem:[#allocation2 + $0x11b] sm:$0xff]
  %v3056 = vld [vmem:[#allocation2 + $0x123] sm:$0xff]
  %v3057 = vld [vmem:[#allocation2 + $0x12b] sm:$0xff]
  %v3058 = vld [vmem:[#allocation2 + $0x133] sm:$0xff]
  %v3059 = vld [vmem:[#allocation2 + $0x13b] sm:$0xff]
  %v3060 = vld [vmem:[#allocation2 + $0x143] sm:$0xff]
  %v3061 = vld [vmem:[#allocation2 + $0x14b] sm:$0xff]
  %v3062 = vld [vmem:[#allocation2 + $0x153] sm:$0xff]
  %v3063 = vld [vmem:[#allocation2 + $0x15b] sm:$0xff]
  %v3064 = vld [vmem:[#allocation2 + $0x163] sm:$0xff]
  %v3065 = vld [vmem:[#allocation2 + $0x16b] sm:$0xff]
  %v3066 = vld [vmem:[#allocation2 + $0x173] sm:$0xff]
  %v3067 = vld [vmem:[#allocation2 + $0x17b] sm:$0xff]
  %v3068 = vld [vmem:[#allocation2 + $0x183] sm:$0xff]
  %v3069 = vld [vmem:[#allocation2 + $0x18b] sm:$0xff]
  %v3070 = vld [vmem:[#allocation2 + $0x193] sm:$0xff]
  %v3071 = vld [vmem:[#allocation2 + $0x19b] sm:$0xff]
  %v3072 = vld [vmem:[#allocation2 + $0x1a3] sm:$0xff]
  %v3073 = vld [vmem:[#allocation2 + $0x1ab] sm:$0xff]
  %v3074 = vld [vmem:[#allocation2 + $0x1b3] sm:$0xff]
  %v3075 = vld [vmem:[#allocation2 + $0x1bb] sm:$0xff]
  %v3076 = vld [vmem:[#allocation2 + $0x1c3] sm:$0xff]
  %v3077 = vld [vmem:[#allocation2 + $0x1cb] sm:$0xff]
  %v3078 = vld [vmem:[#allocation2 + $0x1d3] sm:$0xff]
  %v3079 = vld [vmem:[#allocation2 + $0x1db] sm:$0xff]
  %v3080 = vld [vmem:[#allocation2 + $0x1e3] sm:$0xff]
  %v3081 = vld [vmem:[#allocation2 + $0x1eb] sm:$0xff]
  %v3082 = vld [vmem:[#allocation2 + $0x1f3] sm:$0xff]
  %v3083 = vld [vmem:[#allocation2 + $0x1fb] sm:$0xff]
  %v3084 = vld [vmem:[#allocation2 + $0x203] sm:$0xff]
  %v3085 = vld [vmem:[#allocation2 + $0x20b] sm:$0xff]
  %v3086 = vld [vmem:[#allocation2 + $0x213] sm:$0xff]
  %v3087 = vld [vmem:[#allocation2 + $0x21b] sm:$0xff]
  %v3088 = vld [vmem:[#allocation2 + $0x223] sm:$0xff]
  %v3089 = vld [vmem:[#allocation2 + $0x22b] sm:$0xff]
  %v3090 = vld [vmem:[#allocation2 + $0x233] sm:$0xff]
  %v3091 = vld [vmem:[#allocation2 + $0x23b] sm:$0xff]
  %v3092 = vld [vmem:[#allocation2 + $0x243] sm:$0xff]
  %v3093 = vld [vmem:[#allocation2 + $0x24b] sm:$0xff]
  %v3094 = vld [vmem:[#allocation2 + $0x253] sm:$0xff]
  %v3095 = vld [vmem:[#allocation2 + $0x25b] sm:$0xff]
  %v3096 = vld [vmem:[#allocation2 + $0x263] sm:$0xff]
  %v3097 = vld [vmem:[#allocation2 + $0x26b] sm:$0xff]
  %v3098 = vld [vmem:[#allocation2 + $0x273] sm:$0xff]
  %v3099 = vld [vmem:[#allocation2 + $0x27b] sm:$0xff]
  %v3100 = vld [vmem:[#allocation2 + $0x283] sm:$0xff]
  %v3101 = vld [vmem:[#allocation2 + $0x28b] sm:$0xff]
  %v3102 = vld [vmem:[#allocation2 + $0x293] sm:$0xff]
  %v3103 = vld [vmem:[#allocation2 + $0x29b] sm:$0xff]
  %v3104 = vld [vmem:[#allocation2 + $0x2a3] sm:$0xff]
  %v3105 = vld [vmem:[#allocation2 + $0x2ab] sm:$0xff]
  %v3106 = vmax.f32 %v2944, %v3025
  %v3107 = vmax.f32 %v2945, %v3026
  %v3108 = vmax.f32 %v2946, %v3027
  %v3109 = vmax.f32 %v2947, %v3028
  %v3110 = vmax.f32 %v2948, %v3029
  %v3111 = vmax.f32 %v2949, %v3030
  %v3112 = vmax.f32 %v2950, %v3031
  %v3113 = vmax.f32 %v2951, %v3032
  %v3114 = vmax.f32 %v2952, %v3033
  %v3115 = vmax.f32 %v2953, %v3034
  %v3116 = vmax.f32 %v2954, %v3035
  %v3117 = vmax.f32 %v2955, %v3036
  %v3118 = vmax.f32 %v2956, %v3037
  %v3119 = vmax.f32 %v2957, %v3038
  %v3120 = vmax.f32 %v2958, %v3039
  %v3121 = vmax.f32 %v2959, %v3040
  %v3122 = vmax.f32 %v2960, %v3041
  %v3123 = vmax.f32 %v2961, %v3042
  %v3124 = vmax.f32 %v2962, %v3043
  %v3125 = vmax.f32 %v2963, %v3044
  %v3126 = vmax.f32 %v2964, %v3045
  %v3127 = vmax.f32 %v2965, %v3046
  %v3128 = vmax.f32 %v2966, %v3047
  %v3129 = vmax.f32 %v2967, %v3048
  %v3130 = vmax.f32 %v2968, %v3049
  %v3131 = vmax.f32 %v2969, %v3050
  %v3132 = vmax.f32 %v2970, %v3051
  %v3133 = vmax.f32 %v2971, %v3052
  %v3134 = vmax.f32 %v2972, %v3053
  %v3135 = vmax.f32 %v2973, %v3054
  %v3136 = vmax.f32 %v2974, %v3055
  %v3137 = vmax.f32 %v2975, %v3056
  %v3138 = vmax.f32 %v2976, %v3057
  %v3139 = vmax.f32 %v2977, %v3058
  %v3140 = vmax.f32 %v2978, %v3059
  %v3141 = vmax.f32 %v2979, %v3060
  %v3142 = vmax.f32 %v2980, %v3061
  %v3143 = vmax.f32 %v2981, %v3062
  %v3144 = vmax.f32 %v2982, %v3063
  %v3145 = vmax.f32 %v2983, %v3064
  %v3146 = vmax.f32 %v2984, %v3065
  %v3147 = vmax.f32 %v2985, %v3066
  %v3148 = vmax.f32 %v2986, %v3067
  %v3149 = vmax.f32 %v2987, %v3068
  %v3150 = vmax.f32 %v2988, %v3069
  %v3151 = vmax.f32 %v2989, %v3070
  %v3152 = vmax.f32 %v2990, %v3071
  %v3153 = vmax.f32 %v2991, %v3072
  %v3154 = vmax.f32 %v2992, %v3073
  %v3155 = vmax.f32 %v2993, %v3074
  %v3156 = vmax.f32 %v2994, %v3075
  %v3157 = vmax.f32 %v2995, %v3076
  %v3158 = vmax.f32 %v2996, %v3077
  %v3159 = vmax.f32 %v2997, %v3078
  %v3160 = vmax.f32 %v2998, %v3079
  %v3161 = vmax.f32 %v2999, %v3080
  %v3162 = vmax.f32 %v3000, %v3081
  %v3163 = vmax.f32 %v3001, %v3082
  %v3164 = vmax.f32 %v3002, %v3083
  %v3165 = vmax.f32 %v3003, %v3084
  %v3166 = vmax.f32 %v3004, %v3085
  %v3167 = vmax.f32 %v3005, %v3086
  %v3168 = vmax.f32 %v3006, %v3087
  %v3169 = vmax.f32 %v3007, %v3088
  %v3170 = vmax.f32 %v3008, %v3089
  %v3171 = vmax.f32 %v3009, %v3090
  %v3172 = vmax.f32 %v3010, %v3091
  %v3173 = vmax.f32 %v3011, %v3092
  %v3174 = vmax.f32 %v3012, %v3093
  %v3175 = vmax.f32 %v3013, %v3094
  %v3176 = vmax.f32 %v3014, %v3095
  %v3177 = vmax.f32 %v3015, %v3096
  %v3178 = vmax.f32 %v3016, %v3097
  %v3179 = vmax.f32 %v3017, %v3098
  %v3180 = vmax.f32 %v3018, %v3099
  %v3181 = vmax.f32 %v3019, %v3100
  %v3182 = vmax.f32 %v3020, %v3101
  %v3183 = vmax.f32 %v3021, %v3102
  %v3184 = vmax.f32 %v3022, %v3103
  %v3185 = vmax.f32 %v3023, %v3104
  %v3186 = vmax.f32 %v3024, %v3105
  %3187 = vst.msk [vmem:[%s4] sm:$0xff] %vm1799, %v3106
  %3188 = vst.msk [vmem:[%s4 + $0x8] sm:$0xff] %vm1799, %v3107
  %3189 = vst.msk [vmem:[%s4 + $0x10] sm:$0xff] %vm1799, %v3108
  %3190 = vst.msk [vmem:[%s4 + $0x18] sm:$0xff] %vm1799, %v3109
  %3191 = vst.msk [vmem:[%s4 + $0x20] sm:$0xff] %vm1799, %v3110
  %3192 = vst.msk [vmem:[%s4 + $0x28] sm:$0xff] %vm1799, %v3111
  %3193 = vst.msk [vmem:[%s4 + $0x30] sm:$0xff] %vm1799, %v3112
  %3194 = vst.msk [vmem:[%s4 + $0x38] sm:$0xff] %vm1799, %v3113
  %3195 = vst.msk [vmem:[%s4 + $0x40] sm:$0xff] %vm1799, %v3114
  %3196 = vst.msk [vmem:[%s4 + $0x48] sm:$0xff] %vm1799, %v3115
  %3197 = vst.msk [vmem:[%s4 + $0x50] sm:$0xff] %vm1799, %v3116
  %3198 = vst.msk [vmem:[%s4 + $0x58] sm:$0xff] %vm1799, %v3117
  %3199 = vst.msk [vmem:[%s4 + $0x60] sm:$0xff] %vm1799, %v3118
  %3200 = vst.msk [vmem:[%s4 + $0x68] sm:$0xff] %vm1799, %v3119
  %3201 = vst.msk [vmem:[%s4 + $0x70] sm:$0xff] %vm1799, %v3120
  %3202 = vst.msk [vmem:[%s4 + $0x78] sm:$0xff] %vm1799, %v3121
  %3203 = vst.msk [vmem:[%s4 + $0x80] sm:$0xff] %vm1799, %v3122
  %3204 = vst.msk [vmem:[%s4 + $0x88] sm:$0xff] %vm1799, %v3123
  %3205 = vst.msk [vmem:[%s4 + $0x90] sm:$0xff] %vm1799, %v3124
  %3206 = vst.msk [vmem:[%s4 + $0x98] sm:$0xff] %vm1799, %v3125
  %3207 = vst.msk [vmem:[%s4 + $0xa0] sm:$0xff] %vm1799, %v3126
  %3208 = vst.msk [vmem:[%s4 + $0xa8] sm:$0xff] %vm1799, %v3127
  %3209 = vst.msk [vmem:[%s4 + $0xb0] sm:$0xff] %vm1799, %v3128
  %3210 = vst.msk [vmem:[%s4 + $0xb8] sm:$0xff] %vm1799, %v3129
  %3211 = vst.msk [vmem:[%s4 + $0xc0] sm:$0xff] %vm1799, %v3130
  %3212 = vst.msk [vmem:[%s4 + $0xc8] sm:$0xff] %vm1799, %v3131
  %3213 = vst.msk [vmem:[%s4 + $0xd0] sm:$0xff] %vm1799, %v3132
  %3214 = vst.msk [vmem:[%s4 + $0xd8] sm:$0xff] %vm1799, %v3133
  %3215 = vst.msk [vmem:[%s4 + $0xe0] sm:$0xff] %vm1799, %v3134
  %3216 = vst.msk [vmem:[%s4 + $0xe8] sm:$0xff] %vm1799, %v3135
  %3217 = vst.msk [vmem:[%s4 + $0xf0] sm:$0xff] %vm1799, %v3136
  %3218 = vst.msk [vmem:[%s4 + $0xf8] sm:$0xff] %vm1799, %v3137
  %3219 = vst.msk [vmem:[%s4 + $0x100] sm:$0xff] %vm1799, %v3138
  %3220 = vst.msk [vmem:[%s4 + $0x108] sm:$0xff] %vm1799, %v3139
  %3221 = vst.msk [vmem:[%s4 + $0x110] sm:$0xff] %vm1799, %v3140
  %3222 = vst.msk [vmem:[%s4 + $0x118] sm:$0xff] %vm1799, %v3141
  %3223 = vst.msk [vmem:[%s4 + $0x120] sm:$0xff] %vm1799, %v3142
  %3224 = vst.msk [vmem:[%s4 + $0x128] sm:$0xff] %vm1799, %v3143
  %3225 = vst.msk [vmem:[%s4 + $0x130] sm:$0xff] %vm1799, %v3144
  %3226 = vst.msk [vmem:[%s4 + $0x138] sm:$0xff] %vm1799, %v3145
  %3227 = vst.msk [vmem:[%s4 + $0x140] sm:$0xff] %vm1799, %v3146
  %3228 = vst.msk [vmem:[%s4 + $0x148] sm:$0xff] %vm1799, %v3147
  %3229 = vst.msk [vmem:[%s4 + $0x150] sm:$0xff] %vm1799, %v3148
  %3230 = vst.msk [vmem:[%s4 + $0x158] sm:$0xff] %vm1799, %v3149
  %3231 = vst.msk [vmem:[%s4 + $0x160] sm:$0xff] %vm1799, %v3150
  %3232 = vst.msk [vmem:[%s4 + $0x168] sm:$0xff] %vm1799, %v3151
  %3233 = vst.msk [vmem:[%s4 + $0x170] sm:$0xff] %vm1799, %v3152
  %3234 = vst.msk [vmem:[%s4 + $0x178] sm:$0xff] %vm1799, %v3153
  %3235 = vst.msk [vmem:[%s4 + $0x180] sm:$0xff] %vm1799, %v3154
  %3236 = vst.msk [vmem:[%s4 + $0x188] sm:$0xff] %vm1799, %v3155
  %3237 = vst.msk [vmem:[%s4 + $0x190] sm:$0xff] %vm1799, %v3156
  %3238 = vst.msk [vmem:[%s4 + $0x198] sm:$0xff] %vm1799, %v3157
  %3239 = vst.msk [vmem:[%s4 + $0x1a0] sm:$0xff] %vm1799, %v3158
  %3240 = vst.msk [vmem:[%s4 + $0x1a8] sm:$0xff] %vm1799, %v3159
  %3241 = vst.msk [vmem:[%s4 + $0x1b0] sm:$0xff] %vm1799, %v3160
  %3242 = vst.msk [vmem:[%s4 + $0x1b8] sm:$0xff] %vm1799, %v3161
  %3243 = vst.msk [vmem:[%s4 + $0x1c0] sm:$0xff] %vm1799, %v3162
  %3244 = vst.msk [vmem:[%s4 + $0x1c8] sm:$0xff] %vm1799, %v3163
  %3245 = vst.msk [vmem:[%s4 + $0x1d0] sm:$0xff] %vm1799, %v3164
  %3246 = vst.msk [vmem:[%s4 + $0x1d8] sm:$0xff] %vm1799, %v3165
  %3247 = vst.msk [vmem:[%s4 + $0x1e0] sm:$0xff] %vm1799, %v3166
  %3248 = vst.msk [vmem:[%s4 + $0x1e8] sm:$0xff] %vm1799, %v3167
  %3249 = vst.msk [vmem:[%s4 + $0x1f0] sm:$0xff] %vm1799, %v3168
  %3250 = vst.msk [vmem:[%s4 + $0x1f8] sm:$0xff] %vm1799, %v3169
  %3251 = vst.msk [vmem:[%s4 + $0x200] sm:$0xff] %vm1799, %v3170
  %3252 = vst.msk [vmem:[%s4 + $0x208] sm:$0xff] %vm1799, %v3171
  %3253 = vst.msk [vmem:[%s4 + $0x210] sm:$0xff] %vm1799, %v3172
  %3254 = vst.msk [vmem:[%s4 + $0x218] sm:$0xff] %vm1799, %v3173
  %3255 = vst.msk [vmem:[%s4 + $0x220] sm:$0xff] %vm1799, %v3174
  %3256 = vst.msk [vmem:[%s4 + $0x228] sm:$0xff] %vm1799, %v3175
  %3257 = vst.msk [vmem:[%s4 + $0x230] sm:$0xff] %vm1799, %v3176
  %3258 = vst.msk [vmem:[%s4 + $0x238] sm:$0xff] %vm1799, %v3177
  %3259 = vst.msk [vmem:[%s4 + $0x240] sm:$0xff] %vm1799, %v3178
  %3260 = vst.msk [vmem:[%s4 + $0x248] sm:$0xff] %vm1799, %v3179
  %3261 = vst.msk [vmem:[%s4 + $0x250] sm:$0xff] %vm1799, %v3180
  %3262 = vst.msk [vmem:[%s4 + $0x258] sm:$0xff] %vm1799, %v3181
  %3263 = vst.msk [vmem:[%s4 + $0x260] sm:$0xff] %vm1799, %v3182
  %3264 = vst.msk [vmem:[%s4 + $0x268] sm:$0xff] %vm1799, %v3183
  %3265 = vst.msk [vmem:[%s4 + $0x270] sm:$0xff] %vm1799, %v3184
  %3266 = vst.msk [vmem:[%s4 + $0x278] sm:$0xff] %vm1799, %v3185
  %3267 = vst.msk [vmem:[%s4 + $0x280] sm:$0xff] %vm1799, %v3186
  // Predicated region
  $region18: #{shufflenetv2_backbone_fwd.13} parent=0 // pred_check
    _
  $region19: #{shufflenetv2_backbone_fwd.13} parent=0 // pred_check_branch
    %3269 = sbr.rel (0) target = $region21
  $region20: #{shufflenetv2_backbone_fwd.13} parent=0 // pred_region
    _
  $region21: #{shufflenetv2_backbone_fwd.13} parent=0 // pred_fallthru
    _
  // Predicated region
  $region22: #{shufflenetv2_backbone_fwd.13} parent=0 // pred_check
    _
  $region23: #{shufflenetv2_backbone_fwd.13} parent=0 // pred_check_branch
    %3271 = sbr.rel (0) target = $region25
  $region24: #{shufflenetv2_backbone_fwd.13} parent=0 // pred_region
    _
  $region25: #{shufflenetv2_backbone_fwd.13} parent=0 // pred_fallthru
    _

// kernel: shufflenetv2_backbone_fwd.15
$region0: #{shufflenetv2_backbone_fwd.15}
  #allocation0 [shape = 'u32[]', space=smem, size = 0x4, offset = 0x4, fixed_abs, tag = 'smem constant byte address 0x4 - core index']
  #allocation1 [shape = 'u32[72,128]{1,0:T(1,128)}', space=vmem, size = 0x9000, scoped, tag = 'internal scratch']
  #allocation2 [shape = 'f32[88,16]{1,0:T(8,128)}', space=vmem, size = 0xb000, scoped, tag = 'scratch operand']
  %s0 = inlined_call_operand.vmem [shape: f32[72,16], index: 0, kind: input, shape index: {}]
  %s1 = inlined_call_operand.vmem [shape: f32[72,1], index: 1, kind: input, shape index: {}]
  %s2 = inlined_call_operand.vmem [shape: bf16[16,16], index: 2, kind: input, shape index: {}]
  %s3 = inlined_call_operand.vmem [shape: f32[1,16], index: 3, kind: input, shape index: {}]
  %s4 = inlined_call_operand.vmem [shape: f32[9,1,16], index: 4, kind: input, shape index: {}]
  %s5 = inlined_call_operand.vmem [shape: f32[1,16], index: 5, kind: input, shape index: {}]
  %s6 = inlined_call_operand.vmem [shape: bf16[16,16], index: 6, kind: input, shape index: {}]
  %s7 = inlined_call_operand.vmem [shape: f32[1,16], index: 7, kind: input, shape index: {}]
  %s8 = inlined_call_operand.vmem [shape: f32[72,16], index: 8, kind: output, shape index: {}]
  %s9 = sld [smem:[#allocation0]]
  $region42: #{shufflenetv2_backbone_fwd.15} parent=0
    _
  %s11 = ssub.s32 1, %s9
  %s12 = scalar_select 0, %s11, %s9
  // Predicated region
  $region2: #{shufflenetv2_backbone_fwd.15} parent=0 // pred_check
    _
  $region3: #{shufflenetv2_backbone_fwd.15} parent=0 // pred_check_branch
    %14 = sbr.rel (0) target = $region5
  $region4: #{shufflenetv2_backbone_fwd.15} parent=0 // pred_region
    _
  $region5: #{shufflenetv2_backbone_fwd.15} parent=0 // pred_fallthru
    _
  // Predicated region
  $region6: #{shufflenetv2_backbone_fwd.15} parent=0 // pred_check
    _
  $region7: #{shufflenetv2_backbone_fwd.15} parent=0 // pred_check_branch
    %16 = sbr.rel (0) target = $region9
  $region8: #{shufflenetv2_backbone_fwd.15} parent=0 // pred_region
    _
  $region9: #{shufflenetv2_backbone_fwd.15} parent=0 // pred_fallthru
    _
  // Predicated region
  $region10: #{shufflenetv2_backbone_fwd.15} parent=0 // pred_check
    _
  $region11: #{shufflenetv2_backbone_fwd.15} parent=0 // pred_check_branch
    %18 = sbr.rel (0) target = $region13
  $region12: #{shufflenetv2_backbone_fwd.15} parent=0 // pred_region
    _
  $region13: #{shufflenetv2_backbone_fwd.15} parent=0 // pred_fallthru
    _
  // Predicated region
  $region14: #{shufflenetv2_backbone_fwd.15} parent=0 // pred_check
    _
  $region15: #{shufflenetv2_backbone_fwd.15} parent=0 // pred_check_branch
    %20 = sbr.rel (0) target = $region17
  $region16: #{shufflenetv2_backbone_fwd.15} parent=0 // pred_region
    _
  $region17: #{shufflenetv2_backbone_fwd.15} parent=0 // pred_fallthru
    _
  // Predicated region
  $region18: #{shufflenetv2_backbone_fwd.15} parent=0 // pred_check
    _
  $region19: #{shufflenetv2_backbone_fwd.15} parent=0 // pred_check_branch
    %22 = sbr.rel (0) target = $region21
  $region20: #{shufflenetv2_backbone_fwd.15} parent=0 // pred_region
    _
  $region21: #{shufflenetv2_backbone_fwd.15} parent=0 // pred_fallthru
    _
  // Predicated region
  $region22: #{shufflenetv2_backbone_fwd.15} parent=0 // pred_check
    _
  $region23: #{shufflenetv2_backbone_fwd.15} parent=0 // pred_check_branch
    %24 = sbr.rel (0) target = $region25
  $region24: #{shufflenetv2_backbone_fwd.15} parent=0 // pred_region
    _
  $region25: #{shufflenetv2_backbone_fwd.15} parent=0 // pred_fallthru
    _
  // Predicated region
  $region26: #{shufflenetv2_backbone_fwd.15} parent=0 // pred_check
    _
  $region27: #{shufflenetv2_backbone_fwd.15} parent=0 // pred_check_branch
    %26 = sbr.rel (0) target = $region29
  $region28: #{shufflenetv2_backbone_fwd.15} parent=0 // pred_region
    _
  $region29: #{shufflenetv2_backbone_fwd.15} parent=0 // pred_fallthru
    _
  // Predicated region
  $region30: #{shufflenetv2_backbone_fwd.15} parent=0 // pred_check
    _
  $region31: #{shufflenetv2_backbone_fwd.15} parent=0 // pred_check_branch
    %28 = sbr.rel (0) target = $region33
  $region32: #{shufflenetv2_backbone_fwd.15} parent=0 // pred_region
    _
  $region33: #{shufflenetv2_backbone_fwd.15} parent=0 // pred_fallthru
    _
  %v30 = vld [vmem:[%s1] sm:$0xff]
  %v31 = vld [vmem:[%s1 + $0x8] sm:$0xff]
  %v32 = vld [vmem:[%s1 + $0x10] sm:$0xff]
  %v33 = vld [vmem:[%s1 + $0x18] sm:$0xff]
  %v34 = vld [vmem:[%s1 + $0x20] sm:$0xff]
  %v35 = vld [vmem:[%s1 + $0x28] sm:$0xff]
  %v36 = vld [vmem:[%s1 + $0x30] sm:$0xff]
  %v37 = vld [vmem:[%s1 + $0x38] sm:$0xff]
  %v38 = vld [vmem:[%s1 + $0x40] sm:$0xff]
  %v39 = vld [vmem:[%s0] sm:$0xff]
  %v40 = vld [vmem:[%s0 + $0x8] sm:$0xff]
  %v41 = vld [vmem:[%s0 + $0x10] sm:$0xff]
  %v42 = vld [vmem:[%s0 + $0x18] sm:$0xff]
  %v43 = vld [vmem:[%s0 + $0x20] sm:$0xff]
  %v44 = vld [vmem:[%s0 + $0x28] sm:$0xff]
  %v45 = vld [vmem:[%s0 + $0x30] sm:$0xff]
  %v46 = vld [vmem:[%s0 + $0x38] sm:$0xff]
  %v47 = vld [vmem:[%s0 + $0x40] sm:$0xff]
  %v48 = vpack.c.bf16 %v40, %v39
  %v49 = vpack.c.bf16 %v42, %v41
  %v50 = vpack.c.bf16 %v44, %v43
  %v51 = vpack.c.bf16 %v46, %v45
  %v52 = vpack.c.bf16 %v47, %v47
  %v53 = vld [vmem:[%s2] sm:$0xf]
  %v54 = vld [vmem:[%s2 + $0x4] sm:$0xf]
  %v55 = vld [vmem:[%s3] sm:$0x1]
  %v57 = vperm.slane %v55, 0
  %v61 = vunpack.c.l.b16 %v53
  %v62 = vunpack.c.l.b16 %v54
  %v63 = vpack.c.b16 %v62, %v61
  %vm65 = vcmask 130048
  %v67 = vsel %vm65, %v48, 0
  %v70 = vsel %vm65, %v49, 0
  %v73 = vsel %vm65, %v50, 0
  %v76 = vsel %vm65, %v51, 0
  %v79 = vsel %vm65, %v52, 0
  %81 = vmatpush.bf16.msra.mxu0 0
  %82 = vmatpush.bf16.msra.mxu0 0
  %83 = vmatpush.bf16.msra.mxu0 0
  %84 = vmatpush.bf16.msra.mxu0 0
  %85 = vmatpush.bf16.msra.mxu0 0
  %86 = vmatpush.bf16.msra.mxu0 0
  %87 = vmatpush.bf16.msra.mxu0 0
  %88 = vmatpush.bf16.msra.mxu0 %v63
  %89 = vmatmul.bf16.gmra.mxu0 %v67
  %v90 = vpop.f32.mrf.mxu0
  %v91 = vadd.f32 %v57, %v90
  %v92 = vpop.f32.mrf.mxu0
  %v93 = vadd.f32 %v57, %v92
  %94 = vmatmul.bf16.gmra.mxu0 %v70
  %v95 = vpop.f32.mrf.mxu0
  %v96 = vadd.f32 %v57, %v95
  %v97 = vpop.f32.mrf.mxu0
  %v98 = vadd.f32 %v57, %v97
  %99 = vmatmul.bf16.gmra.mxu0 %v73
  %v100 = vpop.f32.mrf.mxu0
  %v101 = vadd.f32 %v57, %v100
  %v102 = vpop.f32.mrf.mxu0
  %v103 = vadd.f32 %v57, %v102
  %104 = vmatmul.bf16.gmra.mxu0 %v76
  %v105 = vpop.f32.mrf.mxu0
  %v106 = vadd.f32 %v57, %v105
  %v107 = vpop.f32.mrf.mxu0
  %v108 = vadd.f32 %v57, %v107
  %109 = vmatmul.bf16.gmra.mxu0 %v79
  %v110 = vpop.f32.mrf.mxu0
  %v111 = vadd.f32 %v57, %v110
  %v112 = vpop.f32.mrf.mxu0
  %113 = vdwg.mxu0
  %v114 = vmax.f32 %v91, 0.0
  %v115 = vmax.f32 %v93, 0.0
  %v116 = vmax.f32 %v96, 0.0
  %v117 = vmax.f32 %v98, 0.0
  %v118 = vmax.f32 %v101, 0.0
  %v119 = vmax.f32 %v103, 0.0
  %v120 = vmax.f32 %v106, 0.0
  %v121 = vmax.f32 %v108, 0.0
  %v122 = vmax.f32 %v111, 0.0
  %124 = vset.pattern.permute.xlu0 0
  %125 = vperm.xlu0 %124, %v30
  %v126 = vpop.permute.xlu0 %125
  %129 = vset.pattern.permute.xlu0 0
  %130 = vperm.xlu0 %129, %v31
  %v131 = vpop.permute.xlu0 %130
  %134 = vset.pattern.permute.xlu0 0
  %135 = vperm.xlu0 %134, %v32
  %v136 = vpop.permute.xlu0 %135
  %139 = vset.pattern.permute.xlu0 0
  %140 = vperm.xlu0 %139, %v33
  %v141 = vpop.permute.xlu0 %140
  %144 = vset.pattern.permute.xlu0 0
  %145 = vperm.xlu0 %144, %v34
  %v146 = vpop.permute.xlu0 %145
  %149 = vset.pattern.permute.xlu0 0
  %150 = vperm.xlu0 %149, %v35
  %v151 = vpop.permute.xlu0 %150
  %154 = vset.pattern.permute.xlu0 0
  %155 = vperm.xlu0 %154, %v36
  %v156 = vpop.permute.xlu0 %155
  %159 = vset.pattern.permute.xlu0 0
  %160 = vperm.xlu0 %159, %v37
  %v161 = vpop.permute.xlu0 %160
  %164 = vset.pattern.permute.xlu0 0
  %165 = vperm.xlu0 %164, %v38
  %v166 = vpop.permute.xlu0 %165
  %v168 = vmul.f32 %v114, %v126
  %v169 = vmul.f32 %v115, %v131
  %v170 = vmul.f32 %v116, %v136
  %v171 = vmul.f32 %v117, %v141
  %v172 = vmul.f32 %v118, %v146
  %v173 = vmul.f32 %v119, %v151
  %v174 = vmul.f32 %v120, %v156
  %v175 = vmul.f32 %v121, %v161
  %v176 = vmul.f32 %v122, %v166
  %177 = vst.msk [vmem:[#allocation2] sm:$0xff] %vm65, 0.0
  %178 = vst.msk [vmem:[#allocation2 + $0x50] sm:$0xff] %vm65, 0.0
  %179 = vst.msk [vmem:[#allocation2 + $0x8] sm:$0xff] %vm65, %v168
  %180 = vst.msk [vmem:[#allocation2 + $0x10] sm:$0xff] %vm65, %v169
  %181 = vst.msk [vmem:[#allocation2 + $0x18] sm:$0xff] %vm65, %v170
  %182 = vst.msk [vmem:[#allocation2 + $0x20] sm:$0xff] %vm65, %v171
  %183 = vst.msk [vmem:[#allocation2 + $0x28] sm:$0xff] %vm65, %v172
  %184 = vst.msk [vmem:[#allocation2 + $0x30] sm:$0xff] %vm65, %v173
  %185 = vst.msk [vmem:[#allocation2 + $0x38] sm:$0xff] %vm65, %v174
  %186 = vst.msk [vmem:[#allocation2 + $0x40] sm:$0xff] %vm65, %v175
  %187 = vst.msk [vmem:[#allocation2 + $0x48] sm:$0xff] %vm65, %v176
  %v188 = vld [vmem:[#allocation2 + $0x1] sm:$0xff]
  %v189 = vld [vmem:[#allocation2 + $0x9] sm:$0xff]
  %v190 = vld [vmem:[#allocation2 + $0x11] sm:$0xff]
  %v191 = vld [vmem:[#allocation2 + $0x19] sm:$0xff]
  %v192 = vld [vmem:[#allocation2 + $0x21] sm:$0xff]
  %v193 = vld [vmem:[#allocation2 + $0x29] sm:$0xff]
  %v194 = vld [vmem:[#allocation2 + $0x31] sm:$0xff]
  %v195 = vld [vmem:[#allocation2 + $0x39] sm:$0xff]
  %v196 = vld [vmem:[#allocation2 + $0x41] sm:$0xff]
  %v197 = vld [vmem:[%s4] sm:$0x1]
  %v199 = vperm.slane %v197, 0
  %v201 = vmul.f32 %v188, %v199
  %v202 = vmul.f32 %v189, %v199
  %v203 = vmul.f32 %v190, %v199
  %v204 = vmul.f32 %v191, %v199
  %v205 = vmul.f32 %v192, %v199
  %v206 = vmul.f32 %v193, %v199
  %v207 = vmul.f32 %v194, %v199
  %v208 = vmul.f32 %v195, %v199
  %v209 = vmul.f32 %v196, %v199
  %v210 = vadd.f32 %v201, 0.0
  %v211 = vadd.f32 %v202, 0.0
  %v212 = vadd.f32 %v203, 0.0
  %v213 = vadd.f32 %v204, 0.0
  %v214 = vadd.f32 %v205, 0.0
  %v215 = vadd.f32 %v206, 0.0
  %v216 = vadd.f32 %v207, 0.0
  %v217 = vadd.f32 %v208, 0.0
  %v218 = vadd.f32 %v209, 0.0
  %v219 = vld [vmem:[#allocation2 + $0x2] sm:$0xff]
  %v220 = vld [vmem:[#allocation2 + $0xa] sm:$0xff]
  %v221 = vld [vmem:[#allocation2 + $0x12] sm:$0xff]
  %v222 = vld [vmem:[#allocation2 + $0x1a] sm:$0xff]
  %v223 = vld [vmem:[#allocation2 + $0x22] sm:$0xff]
  %v224 = vld [vmem:[#allocation2 + $0x2a] sm:$0xff]
  %v225 = vld [vmem:[#allocation2 + $0x32] sm:$0xff]
  %v226 = vld [vmem:[#allocation2 + $0x3a] sm:$0xff]
  %v227 = vld [vmem:[#allocation2 + $0x42] sm:$0xff]
  %s228 = scalar_lea.vmem %s4, 1
  %v229 = vld [vmem:[%s228] sm:$0x1]
  %v231 = vperm.slane %v229, 0
  %v233 = vmul.f32 %v219, %v231
  %v234 = vmul.f32 %v220, %v231
  %v235 = vmul.f32 %v221, %v231
  %v236 = vmul.f32 %v222, %v231
  %v237 = vmul.f32 %v223, %v231
  %v238 = vmul.f32 %v224, %v231
  %v239 = vmul.f32 %v225, %v231
  %v240 = vmul.f32 %v226, %v231
  %v241 = vmul.f32 %v227, %v231
  %v242 = vadd.f32 %v210, %v233
  %v243 = vadd.f32 %v211, %v234
  %v244 = vadd.f32 %v212, %v235
  %v245 = vadd.f32 %v213, %v236
  %v246 = vadd.f32 %v214, %v237
  %v247 = vadd.f32 %v215, %v238
  %v248 = vadd.f32 %v216, %v239
  %v249 = vadd.f32 %v217, %v240
  %v250 = vadd.f32 %v218, %v241
  %v251 = vld [vmem:[#allocation2 + $0x3] sm:$0xff]
  %v252 = vld [vmem:[#allocation2 + $0xb] sm:$0xff]
  %v253 = vld [vmem:[#allocation2 + $0x13] sm:$0xff]
  %v254 = vld [vmem:[#allocation2 + $0x1b] sm:$0xff]
  %v255 = vld [vmem:[#allocation2 + $0x23] sm:$0xff]
  %v256 = vld [vmem:[#allocation2 + $0x2b] sm:$0xff]
  %v257 = vld [vmem:[#allocation2 + $0x33] sm:$0xff]
  %v258 = vld [vmem:[#allocation2 + $0x3b] sm:$0xff]
  %v259 = vld [vmem:[#allocation2 + $0x43] sm:$0xff]
  %s260 = scalar_lea.vmem %s4, 2
  %v261 = vld [vmem:[%s260] sm:$0x1]
  %v263 = vperm.slane %v261, 0
  %v265 = vmul.f32 %v251, %v263
  %v266 = vmul.f32 %v252, %v263
  %v267 = vmul.f32 %v253, %v263
  %v268 = vmul.f32 %v254, %v263
  %v269 = vmul.f32 %v255, %v263
  %v270 = vmul.f32 %v256, %v263
  %v271 = vmul.f32 %v257, %v263
  %v272 = vmul.f32 %v258, %v263
  %v273 = vmul.f32 %v259, %v263
  %v274 = vadd.f32 %v242, %v265
  %v275 = vadd.f32 %v243, %v266
  %v276 = vadd.f32 %v244, %v267
  %v277 = vadd.f32 %v245, %v268
  %v278 = vadd.f32 %v246, %v269
  %v279 = vadd.f32 %v247, %v270
  %v280 = vadd.f32 %v248, %v271
  %v281 = vadd.f32 %v249, %v272
  %v282 = vadd.f32 %v250, %v273
  %v283 = vld [vmem:[#allocation2 + $0x7] sm:$0xff]
  %v284 = vld [vmem:[#allocation2 + $0xf] sm:$0xff]
  %v285 = vld [vmem:[#allocation2 + $0x17] sm:$0xff]
  %v286 = vld [vmem:[#allocation2 + $0x1f] sm:$0xff]
  %v287 = vld [vmem:[#allocation2 + $0x27] sm:$0xff]
  %v288 = vld [vmem:[#allocation2 + $0x2f] sm:$0xff]
  %v289 = vld [vmem:[#allocation2 + $0x37] sm:$0xff]
  %v290 = vld [vmem:[#allocation2 + $0x3f] sm:$0xff]
  %v291 = vld [vmem:[#allocation2 + $0x47] sm:$0xff]
  %s292 = scalar_lea.vmem %s4, 3
  %v293 = vld [vmem:[%s292] sm:$0x1]
  %v295 = vperm.slane %v293, 0
  %v297 = vmul.f32 %v283, %v295
  %v298 = vmul.f32 %v284, %v295
  %v299 = vmul.f32 %v285, %v295
  %v300 = vmul.f32 %v286, %v295
  %v301 = vmul.f32 %v287, %v295
  %v302 = vmul.f32 %v288, %v295
  %v303 = vmul.f32 %v289, %v295
  %v304 = vmul.f32 %v290, %v295
  %v305 = vmul.f32 %v291, %v295
  %v306 = vadd.f32 %v274, %v297
  %v307 = vadd.f32 %v275, %v298
  %v308 = vadd.f32 %v276, %v299
  %v309 = vadd.f32 %v277, %v300
  %v310 = vadd.f32 %v278, %v301
  %v311 = vadd.f32 %v279, %v302
  %v312 = vadd.f32 %v280, %v303
  %v313 = vadd.f32 %v281, %v304
  %v314 = vadd.f32 %v282, %v305
  %v315 = vld [vmem:[#allocation2 + $0x8] sm:$0xff]
  %v316 = vld [vmem:[#allocation2 + $0x10] sm:$0xff]
  %v317 = vld [vmem:[#allocation2 + $0x18] sm:$0xff]
  %v318 = vld [vmem:[#allocation2 + $0x20] sm:$0xff]
  %v319 = vld [vmem:[#allocation2 + $0x28] sm:$0xff]
  %v320 = vld [vmem:[#allocation2 + $0x30] sm:$0xff]
  %v321 = vld [vmem:[#allocation2 + $0x38] sm:$0xff]
  %v322 = vld [vmem:[#allocation2 + $0x40] sm:$0xff]
  %v323 = vld [vmem:[#allocation2 + $0x48] sm:$0xff]
  %s324 = scalar_lea.vmem %s4, 4
  %v325 = vld [vmem:[%s324] sm:$0x1]
  %v327 = vperm.slane %v325, 0
  %v329 = vmul.f32 %v315, %v327
  %v330 = vmul.f32 %v316, %v327
  %v331 = vmul.f32 %v317, %v327
  %v332 = vmul.f32 %v318, %v327
  %v333 = vmul.f32 %v319, %v327
  %v334 = vmul.f32 %v320, %v327
  %v335 = vmul.f32 %v321, %v327
  %v336 = vmul.f32 %v322, %v327
  %v337 = vmul.f32 %v323, %v327
  %v338 = vadd.f32 %v306, %v329
  %v339 = vadd.f32 %v307, %v330
  %v340 = vadd.f32 %v308, %v331
  %v341 = vadd.f32 %v309, %v332
  %v342 = vadd.f32 %v310, %v333
  %v343 = vadd.f32 %v311, %v334
  %v344 = vadd.f32 %v312, %v335
  %v345 = vadd.f32 %v313, %v336
  %v346 = vadd.f32 %v314, %v337
  %v347 = vld [vmem:[#allocation2 + $0x49] sm:$0xff]
  %s348 = scalar_lea.vmem %s4, 5
  %v349 = vld [vmem:[%s348] sm:$0x1]
  %v351 = vperm.slane %v349, 0
  %v353 = vmul.f32 %v189, %v351
  %v354 = vmul.f32 %v190, %v351
  %v355 = vmul.f32 %v191, %v351
  %v356 = vmul.f32 %v192, %v351
  %v357 = vmul.f32 %v193, %v351
  %v358 = vmul.f32 %v194, %v351
  %v359 = vmul.f32 %v195, %v351
  %v360 = vmul.f32 %v196, %v351
  %v361 = vmul.f32 %v347, %v351
  %v362 = vadd.f32 %v338, %v353
  %v363 = vadd.f32 %v339, %v354
  %v364 = vadd.f32 %v340, %v355
  %v365 = vadd.f32 %v341, %v356
  %v366 = vadd.f32 %v342, %v357
  %v367 = vadd.f32 %v343, %v358
  %v368 = vadd.f32 %v344, %v359
  %v369 = vadd.f32 %v345, %v360
  %v370 = vadd.f32 %v346, %v361
  %v371 = vld [vmem:[#allocation2 + $0xd] sm:$0xff]
  %v372 = vld [vmem:[#allocation2 + $0x15] sm:$0xff]
  %v373 = vld [vmem:[#allocation2 + $0x1d] sm:$0xff]
  %v374 = vld [vmem:[#allocation2 + $0x25] sm:$0xff]
  %v375 = vld [vmem:[#allocation2 + $0x2d] sm:$0xff]
  %v376 = vld [vmem:[#allocation2 + $0x35] sm:$0xff]
  %v377 = vld [vmem:[#allocation2 + $0x3d] sm:$0xff]
  %v378 = vld [vmem:[#allocation2 + $0x45] sm:$0xff]
  %v379 = vld [vmem:[#allocation2 + $0x4d] sm:$0xff]
  %s380 = scalar_lea.vmem %s4, 6
  %v381 = vld [vmem:[%s380] sm:$0x1]
  %v383 = vperm.slane %v381, 0
  %v385 = vmul.f32 %v371, %v383
  %v386 = vmul.f32 %v372, %v383
  %v387 = vmul.f32 %v373, %v383
  %v388 = vmul.f32 %v374, %v383
  %v389 = vmul.f32 %v375, %v383
  %v390 = vmul.f32 %v376, %v383
  %v391 = vmul.f32 %v377, %v383
  %v392 = vmul.f32 %v378, %v383
  %v393 = vmul.f32 %v379, %v383
  %v394 = vadd.f32 %v362, %v385
  %v395 = vadd.f32 %v363, %v386
  %v396 = vadd.f32 %v364, %v387
  %v397 = vadd.f32 %v365, %v388
  %v398 = vadd.f32 %v366, %v389
  %v399 = vadd.f32 %v367, %v390
  %v400 = vadd.f32 %v368, %v391
  %v401 = vadd.f32 %v369, %v392
  %v402 = vadd.f32 %v370, %v393
  %v403 = vld [vmem:[#allocation2 + $0xe] sm:$0xff]
  %v404 = vld [vmem:[#allocation2 + $0x16] sm:$0xff]
  %v405 = vld [vmem:[#allocation2 + $0x1e] sm:$0xff]
  %v406 = vld [vmem:[#allocation2 + $0x26] sm:$0xff]
  %v407 = vld [vmem:[#allocation2 + $0x2e] sm:$0xff]
  %v408 = vld [vmem:[#allocation2 + $0x36] sm:$0xff]
  %v409 = vld [vmem:[#allocation2 + $0x3e] sm:$0xff]
  %v410 = vld [vmem:[#allocation2 + $0x46] sm:$0xff]
  %v411 = vld [vmem:[#allocation2 + $0x4e] sm:$0xff]
  %s412 = scalar_lea.vmem %s4, 7
  %v413 = vld [vmem:[%s412] sm:$0x1]
  %v415 = vperm.slane %v413, 0
  %v417 = vmul.f32 %v403, %v415
  %v418 = vmul.f32 %v404, %v415
  %v419 = vmul.f32 %v405, %v415
  %v420 = vmul.f32 %v406, %v415
  %v421 = vmul.f32 %v407, %v415
  %v422 = vmul.f32 %v408, %v415
  %v423 = vmul.f32 %v409, %v415
  %v424 = vmul.f32 %v410, %v415
  %v425 = vmul.f32 %v411, %v415
  %v426 = vadd.f32 %v394, %v417
  %v427 = vadd.f32 %v395, %v418
  %v428 = vadd.f32 %v396, %v419
  %v429 = vadd.f32 %v397, %v420
  %v430 = vadd.f32 %v398, %v421
  %v431 = vadd.f32 %v399, %v422
  %v432 = vadd.f32 %v400, %v423
  %v433 = vadd.f32 %v401, %v424
  %v434 = vadd.f32 %v402, %v425
  %v435 = vld [vmem:[#allocation2 + $0x4f] sm:$0xff]
  %s436 = scalar_lea.vmem %s4, 8
  %v437 = vld [vmem:[%s436] sm:$0x1]
  %v439 = vperm.slane %v437, 0
  %v441 = vmul.f32 %v284, %v439
  %v442 = vmul.f32 %v285, %v439
  %v443 = vmul.f32 %v286, %v439
  %v444 = vmul.f32 %v287, %v439
  %v445 = vmul.f32 %v288, %v439
  %v446 = vmul.f32 %v289, %v439
  %v447 = vmul.f32 %v290, %v439
  %v448 = vmul.f32 %v291, %v439
  %v449 = vmul.f32 %v435, %v439
  %v450 = vadd.f32 %v426, %v441
  %v451 = vadd.f32 %v427, %v442
  %v452 = vadd.f32 %v428, %v443
  %v453 = vadd.f32 %v429, %v444
  %v454 = vadd.f32 %v430, %v445
  %v455 = vadd.f32 %v431, %v446
  %v456 = vadd.f32 %v432, %v447
  %v457 = vadd.f32 %v433, %v448
  %v458 = vadd.f32 %v434, %v449
  %v459 = vld [vmem:[%s5] sm:$0x1]
  %v461 = vperm.slane %v459, 0
  %v463 = vadd.f32 %v450, %v461
  %v464 = vadd.f32 %v451, %v461
  %v465 = vadd.f32 %v452, %v461
  %v466 = vadd.f32 %v453, %v461
  %v467 = vadd.f32 %v454, %v461
  %v468 = vadd.f32 %v455, %v461
  %v469 = vadd.f32 %v456, %v461
  %v470 = vadd.f32 %v457, %v461
  %v471 = vadd.f32 %v458, %v461
  %v472 = vpack.c.bf16 %v464, %v463
  %v473 = vpack.c.bf16 %v466, %v465
  %v474 = vpack.c.bf16 %v468, %v467
  %v475 = vpack.c.bf16 %v470, %v469
  %v476 = vpack.c.bf16 %v471, %v471
  %v477 = vld [vmem:[%s6] sm:$0xf]
  %v478 = vld [vmem:[%s6 + $0x4] sm:$0xf]
  %v479 = vld [vmem:[%s7] sm:$0x1]
  %v481 = vperm.slane %v479, 0
  %v485 = vunpack.c.l.b16 %v477
  %v486 = vunpack.c.l.b16 %v478
  %v487 = vpack.c.b16 %v486, %v485
  %v490 = vsel %vm65, %v472, 0
  %v493 = vsel %vm65, %v473, 0
  %v496 = vsel %vm65, %v474, 0
  %v499 = vsel %vm65, %v475, 0
  %v502 = vsel %vm65, %v476, 0
  %504 = vmatpush.bf16.msra.mxu0 0
  %505 = vmatpush.bf16.msra.mxu0 0
  %506 = vmatpush.bf16.msra.mxu0 0
  %507 = vmatpush.bf16.msra.mxu0 0
  %508 = vmatpush.bf16.msra.mxu0 0
  %509 = vmatpush.bf16.msra.mxu0 0
  %510 = vmatpush.bf16.msra.mxu0 0
  %511 = vmatpush.bf16.msra.mxu0 %v487
  %512 = vmatmul.bf16.gmra.mxu0 %v490
  %v513 = vpop.f32.mrf.mxu0
  %v514 = vadd.f32 %v481, %v513
  %v515 = vpop.f32.mrf.mxu0
  %v516 = vadd.f32 %v481, %v515
  %517 = vmatmul.bf16.gmra.mxu0 %v493
  %v518 = vpop.f32.mrf.mxu0
  %v519 = vadd.f32 %v481, %v518
  %v520 = vpop.f32.mrf.mxu0
  %v521 = vadd.f32 %v481, %v520
  %522 = vmatmul.bf16.gmra.mxu0 %v496
  %v523 = vpop.f32.mrf.mxu0
  %v524 = vadd.f32 %v481, %v523
  %v525 = vpop.f32.mrf.mxu0
  %v526 = vadd.f32 %v481, %v525
  %527 = vmatmul.bf16.gmra.mxu0 %v499
  %v528 = vpop.f32.mrf.mxu0
  %v529 = vadd.f32 %v481, %v528
  %v530 = vpop.f32.mrf.mxu0
  %v531 = vadd.f32 %v481, %v530
  %532 = vmatmul.bf16.gmra.mxu0 %v502
  %v533 = vpop.f32.mrf.mxu0
  %v534 = vadd.f32 %v481, %v533
  %v535 = vpop.f32.mrf.mxu0
  %536 = vdwg.mxu0
  %v537 = vmax.f32 %v514, 0.0
  %v538 = vmax.f32 %v516, 0.0
  %v539 = vmax.f32 %v519, 0.0
  %v540 = vmax.f32 %v521, 0.0
  %v541 = vmax.f32 %v524, 0.0
  %v542 = vmax.f32 %v526, 0.0
  %v543 = vmax.f32 %v529, 0.0
  %v544 = vmax.f32 %v531, 0.0
  %v545 = vmax.f32 %v534, 0.0
  %546 = vst.msk [vmem:[%s8] sm:$0xff] %vm65, %v537
  %547 = vst.msk [vmem:[%s8 + $0x8] sm:$0xff] %vm65, %v538
  %548 = vst.msk [vmem:[%s8 + $0x10] sm:$0xff] %vm65, %v539
  %549 = vst.msk [vmem:[%s8 + $0x18] sm:$0xff] %vm65, %v540
  %550 = vst.msk [vmem:[%s8 + $0x20] sm:$0xff] %vm65, %v541
  %551 = vst.msk [vmem:[%s8 + $0x28] sm:$0xff] %vm65, %v542
  %552 = vst.msk [vmem:[%s8 + $0x30] sm:$0xff] %vm65, %v543
  %553 = vst.msk [vmem:[%s8 + $0x38] sm:$0xff] %vm65, %v544
  %554 = vst.msk [vmem:[%s8 + $0x40] sm:$0xff] %vm65, %v545
  // Predicated region
  $region34: #{shufflenetv2_backbone_fwd.15} parent=0 // pred_check
    _
  $region35: #{shufflenetv2_backbone_fwd.15} parent=0 // pred_check_branch
    %556 = sbr.rel (0) target = $region37
  $region36: #{shufflenetv2_backbone_fwd.15} parent=0 // pred_region
    _
  $region37: #{shufflenetv2_backbone_fwd.15} parent=0 // pred_fallthru
    _
  // Predicated region
  $region38: #{shufflenetv2_backbone_fwd.15} parent=0 // pred_check
    _
  $region39: #{shufflenetv2_backbone_fwd.15} parent=0 // pred_check_branch
    %558 = sbr.rel (0) target = $region41
  $region40: #{shufflenetv2_backbone_fwd.15} parent=0 // pred_region
    _
  $region41: #{shufflenetv2_backbone_fwd.15} parent=0 // pred_fallthru
    _

// kernel: shufflenetv2_backbone_fwd.19
$region0: #{shufflenetv2_backbone_fwd.19}
  #allocation0 [shape = 'u32[]', space=smem, size = 0x4, offset = 0x4, fixed_abs, tag = 'smem constant byte address 0x4 - core index']
  #allocation1 [shape = 'u32[72,128]{1,0:T(1,128)}', space=vmem, size = 0x9000, scoped, tag = 'internal scratch']
  #allocation2 [shape = 'f32[48,32]{1,0:T(8,128)}', space=vmem, size = 0x6000, scoped, tag = 'scratch operand']
  %s0 = inlined_call_operand.vmem [shape: f32[32,32], index: 0, kind: input, shape index: {}]
  %s1 = inlined_call_operand.vmem [shape: f32[32,1], index: 1, kind: input, shape index: {}]
  %s2 = inlined_call_operand.vmem [shape: bf16[32,32], index: 2, kind: input, shape index: {}]
  %s3 = inlined_call_operand.vmem [shape: f32[1,32], index: 3, kind: input, shape index: {}]
  %s4 = inlined_call_operand.vmem [shape: f32[9,1,32], index: 4, kind: input, shape index: {}]
  %s5 = inlined_call_operand.vmem [shape: f32[1,32], index: 5, kind: input, shape index: {}]
  %s6 = inlined_call_operand.vmem [shape: bf16[32,32], index: 6, kind: input, shape index: {}]
  %s7 = inlined_call_operand.vmem [shape: f32[1,32], index: 7, kind: input, shape index: {}]
  %s8 = inlined_call_operand.vmem [shape: f32[32,32], index: 8, kind: output, shape index: {}]
  %s9 = sld [smem:[#allocation0]]
  $region42: #{shufflenetv2_backbone_fwd.19} parent=0
    _
  %s11 = ssub.s32 1, %s9
  %s12 = scalar_select 0, %s11, %s9
  // Predicated region
  $region2: #{shufflenetv2_backbone_fwd.19} parent=0 // pred_check
    _
  $region3: #{shufflenetv2_backbone_fwd.19} parent=0 // pred_check_branch
    %14 = sbr.rel (0) target = $region5
  $region4: #{shufflenetv2_backbone_fwd.19} parent=0 // pred_region
    _
  $region5: #{shufflenetv2_backbone_fwd.19} parent=0 // pred_fallthru
    _
  // Predicated region
  $region6: #{shufflenetv2_backbone_fwd.19} parent=0 // pred_check
    _
  $region7: #{shufflenetv2_backbone_fwd.19} parent=0 // pred_check_branch
    %16 = sbr.rel (0) target = $region9
  $region8: #{shufflenetv2_backbone_fwd.19} parent=0 // pred_region
    _
  $region9: #{shufflenetv2_backbone_fwd.19} parent=0 // pred_fallthru
    _
  // Predicated region
  $region10: #{shufflenetv2_backbone_fwd.19} parent=0 // pred_check
    _
  $region11: #{shufflenetv2_backbone_fwd.19} parent=0 // pred_check_branch
    %18 = sbr.rel (0) target = $region13
  $region12: #{shufflenetv2_backbone_fwd.19} parent=0 // pred_region
    _
  $region13: #{shufflenetv2_backbone_fwd.19} parent=0 // pred_fallthru
    _
  // Predicated region
  $region14: #{shufflenetv2_backbone_fwd.19} parent=0 // pred_check
    _
  $region15: #{shufflenetv2_backbone_fwd.19} parent=0 // pred_check_branch
    %20 = sbr.rel (0) target = $region17
  $region16: #{shufflenetv2_backbone_fwd.19} parent=0 // pred_region
    _
  $region17: #{shufflenetv2_backbone_fwd.19} parent=0 // pred_fallthru
    _
  // Predicated region
  $region18: #{shufflenetv2_backbone_fwd.19} parent=0 // pred_check
    _
  $region19: #{shufflenetv2_backbone_fwd.19} parent=0 // pred_check_branch
    %22 = sbr.rel (0) target = $region21
  $region20: #{shufflenetv2_backbone_fwd.19} parent=0 // pred_region
    _
  $region21: #{shufflenetv2_backbone_fwd.19} parent=0 // pred_fallthru
    _
  // Predicated region
  $region22: #{shufflenetv2_backbone_fwd.19} parent=0 // pred_check
    _
  $region23: #{shufflenetv2_backbone_fwd.19} parent=0 // pred_check_branch
    %24 = sbr.rel (0) target = $region25
  $region24: #{shufflenetv2_backbone_fwd.19} parent=0 // pred_region
    _
  $region25: #{shufflenetv2_backbone_fwd.19} parent=0 // pred_fallthru
    _
  // Predicated region
  $region26: #{shufflenetv2_backbone_fwd.19} parent=0 // pred_check
    _
  $region27: #{shufflenetv2_backbone_fwd.19} parent=0 // pred_check_branch
    %26 = sbr.rel (0) target = $region29
  $region28: #{shufflenetv2_backbone_fwd.19} parent=0 // pred_region
    _
  $region29: #{shufflenetv2_backbone_fwd.19} parent=0 // pred_fallthru
    _
  // Predicated region
  $region30: #{shufflenetv2_backbone_fwd.19} parent=0 // pred_check
    _
  $region31: #{shufflenetv2_backbone_fwd.19} parent=0 // pred_check_branch
    %28 = sbr.rel (0) target = $region33
  $region32: #{shufflenetv2_backbone_fwd.19} parent=0 // pred_region
    _
  $region33: #{shufflenetv2_backbone_fwd.19} parent=0 // pred_fallthru
    _
  %v30 = vld [vmem:[%s1] sm:$0xff]
  %v31 = vld [vmem:[%s1 + $0x8] sm:$0xff]
  %v32 = vld [vmem:[%s1 + $0x10] sm:$0xff]
  %v33 = vld [vmem:[%s1 + $0x18] sm:$0xff]
  %v34 = vld [vmem:[%s0] sm:$0xff]
  %v35 = vld [vmem:[%s0 + $0x8] sm:$0xff]
  %v36 = vld [vmem:[%s0 + $0x10] sm:$0xff]
  %v37 = vld [vmem:[%s0 + $0x18] sm:$0xff]
  %v38 = vpack.c.bf16 %v35, %v34
  %v39 = vpack.c.bf16 %v37, %v36
  %v40 = vld [vmem:[%s2] sm:$0xf]
  %v41 = vld [vmem:[%s2 + $0x4] sm:$0xf]
  %v42 = vld [vmem:[%s2 + $0x8] sm:$0xf]
  %v43 = vld [vmem:[%s2 + $0xc] sm:$0xf]
  %v44 = vld [vmem:[%s3] sm:$0x1]
  %v46 = vperm.slane %v44, 0
  %v52 = vunpack.c.l.b16 %v40
  %v53 = vunpack.c.l.b16 %v41
  %v54 = vunpack.c.l.b16 %v42
  %v55 = vunpack.c.l.b16 %v43
  %v56 = vpack.c.b16 %v53, %v52
  %v57 = vpack.c.b16 %v55, %v54
  %vm60 = vcmask 261120
  %v62 = vsel %vm60, %v38, 0
  %v65 = vsel %vm60, %v39, 0
  %67 = vmatpush.bf16.msra.mxu0 0
  %68 = vmatpush.bf16.msra.mxu0 0
  %69 = vmatpush.bf16.msra.mxu0 0
  %70 = vmatpush.bf16.msra.mxu0 0
  %71 = vmatpush.bf16.msra.mxu0 0
  %72 = vmatpush.bf16.msra.mxu0 0
  %73 = vmatpush.bf16.msra.mxu0 %v57
  %74 = vmatpush.bf16.msra.mxu0 %v56
  %75 = vmatmul.bf16.gmra.mxu0 %v62
  %v76 = vpop.f32.mrf.mxu0
  %v77 = vadd.f32 %v46, %v76
  %v78 = vpop.f32.mrf.mxu0
  %v79 = vadd.f32 %v46, %v78
  %80 = vmatmul.bf16.gmra.mxu0 %v65
  %v81 = vpop.f32.mrf.mxu0
  %v82 = vadd.f32 %v46, %v81
  %v83 = vpop.f32.mrf.mxu0
  %v84 = vadd.f32 %v46, %v83
  %85 = vdwg.mxu0
  %v86 = vmax.f32 %v77, 0.0
  %v87 = vmax.f32 %v79, 0.0
  %v88 = vmax.f32 %v82, 0.0
  %v89 = vmax.f32 %v84, 0.0
  %91 = vset.pattern.permute.xlu0 0
  %92 = vperm.xlu0 %91, %v30
  %v93 = vpop.permute.xlu0 %92
  %96 = vset.pattern.permute.xlu0 0
  %97 = vperm.xlu0 %96, %v31
  %v98 = vpop.permute.xlu0 %97
  %101 = vset.pattern.permute.xlu0 0
  %102 = vperm.xlu0 %101, %v32
  %v103 = vpop.permute.xlu0 %102
  %106 = vset.pattern.permute.xlu0 0
  %107 = vperm.xlu0 %106, %v33
  %v108 = vpop.permute.xlu0 %107
  %v110 = vmul.f32 %v86, %v93
  %v111 = vmul.f32 %v87, %v98
  %v112 = vmul.f32 %v88, %v103
  %v113 = vmul.f32 %v89, %v108
  %114 = vst.msk [vmem:[#allocation2] sm:$0xff] %vm60, 0.0
  %115 = vst.msk [vmem:[#allocation2 + $0x28] sm:$0xff] %vm60, 0.0
  %116 = vst.msk [vmem:[#allocation2 + $0x8] sm:$0xff] %vm60, %v110
  %117 = vst.msk [vmem:[#allocation2 + $0x10] sm:$0xff] %vm60, %v111
  %118 = vst.msk [vmem:[#allocation2 + $0x18] sm:$0xff] %vm60, %v112
  %119 = vst.msk [vmem:[#allocation2 + $0x20] sm:$0xff] %vm60, %v113
  %v120 = vld [vmem:[#allocation2 + $0x3] sm:$0xff]
  %v121 = vld [vmem:[#allocation2 + $0xb] sm:$0xff]
  %v122 = vld [vmem:[#allocation2 + $0x13] sm:$0xff]
  %v123 = vld [vmem:[#allocation2 + $0x1b] sm:$0xff]
  %v124 = vld [vmem:[%s4] sm:$0x1]
  %v126 = vperm.slane %v124, 0
  %v128 = vmul.f32 %v120, %v126
  %v129 = vmul.f32 %v121, %v126
  %v130 = vmul.f32 %v122, %v126
  %v131 = vmul.f32 %v123, %v126
  %v132 = vadd.f32 %v128, 0.0
  %v133 = vadd.f32 %v129, 0.0
  %v134 = vadd.f32 %v130, 0.0
  %v135 = vadd.f32 %v131, 0.0
  %v136 = vld [vmem:[#allocation2 + $0x4] sm:$0xff]
  %v137 = vld [vmem:[#allocation2 + $0xc] sm:$0xff]
  %v138 = vld [vmem:[#allocation2 + $0x14] sm:$0xff]
  %v139 = vld [vmem:[#allocation2 + $0x1c] sm:$0xff]
  %s140 = scalar_lea.vmem %s4, 1
  %v141 = vld [vmem:[%s140] sm:$0x1]
  %v143 = vperm.slane %v141, 0
  %v145 = vmul.f32 %v136, %v143
  %v146 = vmul.f32 %v137, %v143
  %v147 = vmul.f32 %v138, %v143
  %v148 = vmul.f32 %v139, %v143
  %v149 = vadd.f32 %v132, %v145
  %v150 = vadd.f32 %v133, %v146
  %v151 = vadd.f32 %v134, %v147
  %v152 = vadd.f32 %v135, %v148
  %v153 = vld [vmem:[#allocation2 + $0x5] sm:$0xff]
  %v154 = vld [vmem:[#allocation2 + $0xd] sm:$0xff]
  %v155 = vld [vmem:[#allocation2 + $0x15] sm:$0xff]
  %v156 = vld [vmem:[#allocation2 + $0x1d] sm:$0xff]
  %s157 = scalar_lea.vmem %s4, 2
  %v158 = vld [vmem:[%s157] sm:$0x1]
  %v160 = vperm.slane %v158, 0
  %v162 = vmul.f32 %v153, %v160
  %v163 = vmul.f32 %v154, %v160
  %v164 = vmul.f32 %v155, %v160
  %v165 = vmul.f32 %v156, %v160
  %v166 = vadd.f32 %v149, %v162
  %v167 = vadd.f32 %v150, %v163
  %v168 = vadd.f32 %v151, %v164
  %v169 = vadd.f32 %v152, %v165
  %v170 = vld [vmem:[#allocation2 + $0x7] sm:$0xff]
  %v171 = vld [vmem:[#allocation2 + $0xf] sm:$0xff]
  %v172 = vld [vmem:[#allocation2 + $0x17] sm:$0xff]
  %v173 = vld [vmem:[#allocation2 + $0x1f] sm:$0xff]
  %s174 = scalar_lea.vmem %s4, 3
  %v175 = vld [vmem:[%s174] sm:$0x1]
  %v177 = vperm.slane %v175, 0
  %v179 = vmul.f32 %v170, %v177
  %v180 = vmul.f32 %v171, %v177
  %v181 = vmul.f32 %v172, %v177
  %v182 = vmul.f32 %v173, %v177
  %v183 = vadd.f32 %v166, %v179
  %v184 = vadd.f32 %v167, %v180
  %v185 = vadd.f32 %v168, %v181
  %v186 = vadd.f32 %v169, %v182
  %v187 = vld [vmem:[#allocation2 + $0x8] sm:$0xff]
  %v188 = vld [vmem:[#allocation2 + $0x10] sm:$0xff]
  %v189 = vld [vmem:[#allocation2 + $0x18] sm:$0xff]
  %v190 = vld [vmem:[#allocation2 + $0x20] sm:$0xff]
  %s191 = scalar_lea.vmem %s4, 4
  %v192 = vld [vmem:[%s191] sm:$0x1]
  %v194 = vperm.slane %v192, 0
  %v196 = vmul.f32 %v187, %v194
  %v197 = vmul.f32 %v188, %v194
  %v198 = vmul.f32 %v189, %v194
  %v199 = vmul.f32 %v190, %v194
  %v200 = vadd.f32 %v183, %v196
  %v201 = vadd.f32 %v184, %v197
  %v202 = vadd.f32 %v185, %v198
  %v203 = vadd.f32 %v186, %v199
  %v204 = vld [vmem:[#allocation2 + $0x9] sm:$0xff]
  %v205 = vld [vmem:[#allocation2 + $0x11] sm:$0xff]
  %v206 = vld [vmem:[#allocation2 + $0x19] sm:$0xff]
  %v207 = vld [vmem:[#allocation2 + $0x21] sm:$0xff]
  %s208 = scalar_lea.vmem %s4, 5
  %v209 = vld [vmem:[%s208] sm:$0x1]
  %v211 = vperm.slane %v209, 0
  %v213 = vmul.f32 %v204, %v211
  %v214 = vmul.f32 %v205, %v211
  %v215 = vmul.f32 %v206, %v211
  %v216 = vmul.f32 %v207, %v211
  %v217 = vadd.f32 %v200, %v213
  %v218 = vadd.f32 %v201, %v214
  %v219 = vadd.f32 %v202, %v215
  %v220 = vadd.f32 %v203, %v216
  %v221 = vld [vmem:[#allocation2 + $0x23] sm:$0xff]
  %s222 = scalar_lea.vmem %s4, 6
  %v223 = vld [vmem:[%s222] sm:$0x1]
  %v225 = vperm.slane %v223, 0
  %v227 = vmul.f32 %v121, %v225
  %v228 = vmul.f32 %v122, %v225
  %v229 = vmul.f32 %v123, %v225
  %v230 = vmul.f32 %v221, %v225
  %v231 = vadd.f32 %v217, %v227
  %v232 = vadd.f32 %v218, %v228
  %v233 = vadd.f32 %v219, %v229
  %v234 = vadd.f32 %v220, %v230
  %v235 = vld [vmem:[#allocation2 + $0x24] sm:$0xff]
  %s236 = scalar_lea.vmem %s4, 7
  %v237 = vld [vmem:[%s236] sm:$0x1]
  %v239 = vperm.slane %v237, 0
  %v241 = vmul.f32 %v137, %v239
  %v242 = vmul.f32 %v138, %v239
  %v243 = vmul.f32 %v139, %v239
  %v244 = vmul.f32 %v235, %v239
  %v245 = vadd.f32 %v231, %v241
  %v246 = vadd.f32 %v232, %v242
  %v247 = vadd.f32 %v233, %v243
  %v248 = vadd.f32 %v234, %v244
  %v249 = vld [vmem:[#allocation2 + $0x25] sm:$0xff]
  %s250 = scalar_lea.vmem %s4, 8
  %v251 = vld [vmem:[%s250] sm:$0x1]
  %v253 = vperm.slane %v251, 0
  %v255 = vmul.f32 %v154, %v253
  %v256 = vmul.f32 %v155, %v253
  %v257 = vmul.f32 %v156, %v253
  %v258 = vmul.f32 %v249, %v253
  %v259 = vadd.f32 %v245, %v255
  %v260 = vadd.f32 %v246, %v256
  %v261 = vadd.f32 %v247, %v257
  %v262 = vadd.f32 %v248, %v258
  %v263 = vld [vmem:[%s5] sm:$0x1]
  %v265 = vperm.slane %v263, 0
  %v267 = vadd.f32 %v259, %v265
  %v268 = vadd.f32 %v260, %v265
  %v269 = vadd.f32 %v261, %v265
  %v270 = vadd.f32 %v262, %v265
  %v271 = vpack.c.bf16 %v268, %v267
  %v272 = vpack.c.bf16 %v270, %v269
  %v273 = vld [vmem:[%s6] sm:$0xf]
  %v274 = vld [vmem:[%s6 + $0x4] sm:$0xf]
  %v275 = vld [vmem:[%s6 + $0x8] sm:$0xf]
  %v276 = vld [vmem:[%s6 + $0xc] sm:$0xf]
  %v277 = vld [vmem:[%s7] sm:$0x1]
  %v279 = vperm.slane %v277, 0
  %v285 = vunpack.c.l.b16 %v273
  %v286 = vunpack.c.l.b16 %v274
  %v287 = vunpack.c.l.b16 %v275
  %v288 = vunpack.c.l.b16 %v276
  %v289 = vpack.c.b16 %v286, %v285
  %v290 = vpack.c.b16 %v288, %v287
  %v294 = vsel %vm60, %v271, 0
  %v297 = vsel %vm60, %v272, 0
  %299 = vmatpush.bf16.msra.mxu0 0
  %300 = vmatpush.bf16.msra.mxu0 0
  %301 = vmatpush.bf16.msra.mxu0 0
  %302 = vmatpush.bf16.msra.mxu0 0
  %303 = vmatpush.bf16.msra.mxu0 0
  %304 = vmatpush.bf16.msra.mxu0 0
  %305 = vmatpush.bf16.msra.mxu0 %v290
  %306 = vmatpush.bf16.msra.mxu0 %v289
  %307 = vmatmul.bf16.gmra.mxu0 %v294
  %v308 = vpop.f32.mrf.mxu0
  %v309 = vadd.f32 %v279, %v308
  %v310 = vpop.f32.mrf.mxu0
  %v311 = vadd.f32 %v279, %v310
  %312 = vmatmul.bf16.gmra.mxu0 %v297
  %v313 = vpop.f32.mrf.mxu0
  %v314 = vadd.f32 %v279, %v313
  %v315 = vpop.f32.mrf.mxu0
  %v316 = vadd.f32 %v279, %v315
  %317 = vdwg.mxu0
  %v318 = vmax.f32 %v309, 0.0
  %v319 = vmax.f32 %v311, 0.0
  %v320 = vmax.f32 %v314, 0.0
  %v321 = vmax.f32 %v316, 0.0
  %322 = vst.msk [vmem:[%s8] sm:$0xff] %vm60, %v318
  %323 = vst.msk [vmem:[%s8 + $0x8] sm:$0xff] %vm60, %v319
  %324 = vst.msk [vmem:[%s8 + $0x10] sm:$0xff] %vm60, %v320
  %325 = vst.msk [vmem:[%s8 + $0x18] sm:$0xff] %vm60, %v321
  // Predicated region
  $region34: #{shufflenetv2_backbone_fwd.19} parent=0 // pred_check
    _
  $region35: #{shufflenetv2_backbone_fwd.19} parent=0 // pred_check_branch
    %327 = sbr.rel (0) target = $region37
  $region36: #{shufflenetv2_backbone_fwd.19} parent=0 // pred_region
    _
  $region37: #{shufflenetv2_backbone_fwd.19} parent=0 // pred_fallthru
    _
  // Predicated region
  $region38: #{shufflenetv2_backbone_fwd.19} parent=0 // pred_check
    _
  $region39: #{shufflenetv2_backbone_fwd.19} parent=0 // pred_check_branch
    %329 = sbr.rel (0) target = $region41
  $region40: #{shufflenetv2_backbone_fwd.19} parent=0 // pred_region
    _
  $region41: #{shufflenetv2_backbone_fwd.19} parent=0 // pred_fallthru
    _

</llo_original>
